<compile_context>
chip_gen: v7x
topology: tpu7x:2x2x1
jax: 0.10.0
libtpu: 0.0.40
codegen_flags: <defaults>
</compile_context>

<pallas_src>
import jax
import jax.numpy as jnp
import numpy as np
from jax.experimental import pallas as pl
from jax.experimental.pallas import tpu as pltpu

# Interior activation lives at sublane (W-dim) offset 16 inside the padded scratch so
# the interior bf16 store and the center tap are 16-sublane-tile aligned.
_PADL = 16


def _round_up(x, m):
    return (x + m - 1) // m * m


def _zero_halo(pad_ref, H, W):
    """Zero only the halo cells the 3x3 taps ever read.

    The taps read rows [0, H+2) and cols [_PADL-1, _PADL+W+1); the interior
    (rows 1..H, cols _PADL.._PADL+W-1) is fully rewritten by each conv before being
    read, so only rows 0 / H+1 and cols _PADL-1 / _PADL+W need to be zero.
    """
    wp = pad_ref.shape[1]
    cm = pad_ref.shape[2]
    zrow = jnp.zeros((1, wp, cm), pad_ref.dtype)
    pad_ref[0:1, :, :] = zrow
    pad_ref[H + 1:H + 2, :, :] = zrow
    zcol = jnp.zeros((H + 2, 1, cm), pad_ref.dtype)
    pad_ref[:, _PADL - 1:_PADL, :] = zcol
    pad_ref[:, _PADL + W:_PADL + W + 1, :] = zcol


def _gn_silu_conv3(x_f32, gamma_ref, beta_ref, p_ref, w_ref, b_ref, pad_ref, *, H, W, eps):
    """Fused GroupNorm(affine) + SiLU + 3x3 conv (padding=1) on one (H*W, Cin) tile.

    x_f32:   (H*W, Cin) float32 value (already loaded).
    p_ref:   (Cin, Cin) group-averaging matrix (1/group_size within group, else 0).
    w_ref:   (9, Cin, Cout) bf16 conv taps, tap index = 3*dy + dx.
    pad_ref: shared VMEM scratch (H+2, W_pad, Cmax) bf16; halo pre-zeroed, interior
             fully overwritten here before being read.
    Returns (H*W, Cout) float32 = conv(silu(groupnorm(x))) + bias.
    """
    cin = x_f32.shape[-1]
    cout = w_ref.shape[-1]
    inv_n = jnp.float32(1.0 / (H * W))

    # --- GroupNorm statistics: single (2,C)x(C,C) f32 matmul (mean & E[x^2] fused) ---
    stats = jnp.concatenate(
        [jnp.sum(x_f32, axis=0, keepdims=True),
         jnp.sum(x_f32 * x_f32, axis=0, keepdims=True)],
        axis=0) * inv_n                                             # (2, Cin)
    g = jnp.dot(stats, p_ref[...], preferred_element_type=jnp.float32)  # (2, Cin)
    mean_c = g[0:1]
    var_c = jnp.maximum(g[1:2] - mean_c * mean_c, 0.0)
    scale = jax.lax.rsqrt(var_c + jnp.float32(eps)) * gamma_ref[...]     # (1, Cin)
    shift = beta_ref[...] - mean_c * scale                               # (1, Cin)

    # --- normalize + SiLU (f32 VPU/EUP), store interior of the padded scratch (bf16) ---
    y = x_f32 * scale + shift
    y = y * jax.nn.sigmoid(y)
    pad_ref[1:H + 1, _PADL:_PADL + W, :cin] = y.reshape(H, W, cin).astype(pad_ref.dtype)

    # --- 3x3 conv: bias-initialized accumulator + 9 accumulating MXU matmuls
    #     (bf16 operands, f32 accumulation). One shifted load per dx; dy handled by
    #     cheap leading-dim value slices. ---
    acc = jnp.broadcast_to(b_ref[...], (H * W, cout))               # (H*W, Cout) f32
    for dx in range(3):
        col = _PADL - 1 + dx
        s_dx = pad_ref[:, col:col + W, :cin]                        # (H+2, W, Cin) bf16
        for dy in range(3):
            patch = s_dx[dy:dy + H].reshape(H * W, cin)             # (H*W, Cin) bf16
            acc = acc + jnp.dot(patch, w_ref[3 * dy + dx],
                                preferred_element_type=jnp.float32)
    return acc


def _make_block_kernel(H, W, eps, inv_scale, conv_shortcut):
    def kernel(x_ref, g1_ref, be1_ref, p1_ref, w1_ref, cb1_ref,
               g2_ref, be2_ref, p2_ref, w2_ref, cb2_ref, *rest):
        if conv_shortcut:
            wsc_ref, bsc_ref, o_ref, pad_ref = rest
        else:
            o_ref, pad_ref = rest

        # Thin halo zero (megacore-safe; interior never zeroed — see header comment).
        _zero_halo(pad_ref, H, W)

        x = x_ref[0].astype(jnp.float32)                            # (H*W, Cin) f32
        h = _gn_silu_conv3(x, g1_ref, be1_ref, p1_ref, w1_ref, cb1_ref, pad_ref,
                           H=H, W=W, eps=eps)                       # (H*W, Cout) f32
        # nn.Dropout(p=0.0) / eval mode is the identity: nothing to do.
        y = _gn_silu_conv3(h, g2_ref, be2_ref, p2_ref, w2_ref, cb2_ref, pad_ref,
                           H=H, W=W, eps=eps)                       # (H*W, Cout) f32

        # Shortcut: re-read the still-resident input block instead of keeping a
        # private f32 copy of x alive across both convs.
        if conv_shortcut:
            sc = jnp.dot(x_ref[0].astype(jnp.bfloat16), wsc_ref[...],
                         preferred_element_type=jnp.float32) + bsc_ref[...]
        else:
            sc = x_ref[0].astype(jnp.float32)                       # Cin == Cout
        o_ref[0] = ((y + sc) * jnp.float32(inv_scale)).astype(o_ref.dtype)

    return kernel


def _group_avg_matrix(C, G):
    """(C, C) matrix: 1/(C//G) within a group, 0 elsewhere; x @ P = per-channel group mean."""
    cg = C // G
    same = (jnp.arange(C)[:, None] // cg) == (jnp.arange(C)[None, :] // cg)
    return same.astype(jnp.float32) / jnp.float32(cg)


def _vmem_limit_bytes(H, W, Cin, Cout, w_pad):
    """Generation-aware VMEM budget: count the actual buffers, cap below physical."""
    hw = H * W
    cmax = max(Cin, Cout)
    est = (2 * hw * Cin * 4                      # double-buffered input blocks (f32)
           + 2 * hw * Cout * 4                   # double-buffered output blocks (f32)
           + (H + 2) * w_pad * cmax * 2          # shared bf16 pad scratch
           + 4 * hw * cmax * 4                   # live f32 intermediates (x/h/acc/y)
           + 2 * 9 * (Cin + Cout) * Cout * 2     # double-buffered bf16 conv weights
           + (2 << 20))                          # norm params / biases / slack
    try:
        phys = pltpu.get_tpu_info().vmem_capacity_bytes
    except Exception:
        phys = 128 * 2 ** 20
    cap = int(phys * 7 // 8)                     # ~56 MiB on v7x, ~112 MiB on v5e/v6e
    return int(min(max(est, 32 * 2 ** 20), cap))


def residual_block_2d_nhwc(x_bhwc, params, *, num_groups, eps=1e-6, output_scale_factor=1.0):
    """Channels-last entry point: x is (B, H, W, C) -> (B, H, W, Cout).

    Prefer this when the surrounding model carries activations channels-last: it
    avoids the two full-tensor NCHW<->NHWC HBM round trips of the NCHW wrapper.
    """
    B, H, W, Cin = x_bhwc.shape
    Cout = params["conv1_w"].shape[0]
    assert Cin % num_groups == 0 and Cout % num_groups == 0
    conv_shortcut = Cin != Cout
    cmax = max(Cin, Cout)
    w_pad = _round_up(_PADL + W + 1, 16)

    x_flat = x_bhwc.reshape(B, H * W, Cin)

    # Parameter prep (tiny, one-time): bf16 conv taps for the MXU, f32 norm params.
    w1 = jnp.transpose(params["conv1_w"], (2, 3, 1, 0)).reshape(9, Cin, Cout).astype(jnp.bfloat16)
    w2 = jnp.transpose(params["conv2_w"], (2, 3, 1, 0)).reshape(9, Cout, Cout).astype(jnp.bfloat16)
    cb1 = params["conv1_b"].reshape(1, Cout).astype(jnp.float32)
    cb2 = params["conv2_b"].reshape(1, Cout).astype(jnp.float32)
    g1 = params["norm1_g"].reshape(1, Cin).astype(jnp.float32)
    be1 = params["norm1_b"].reshape(1, Cin).astype(jnp.float32)
    g2 = params["norm2_g"].reshape(1, Cout).astype(jnp.float32)
    be2 = params["norm2_b"].reshape(1, Cout).astype(jnp.float32)
    p1 = _group_avg_matrix(Cin, num_groups)
    p2 = _group_avg_matrix(Cout, num_groups)

    const = lambda shape: pl.BlockSpec(shape, lambda b: (0,) * len(shape))
    in_specs = [
        pl.BlockSpec((1, H * W, Cin), lambda b: (b, 0, 0)),
        const((1, Cin)), const((1, Cin)), const((Cin, Cin)),
        const((9, Cin, Cout)), const((1, Cout)),
        const((1, Cout)), const((1, Cout)), const((Cout, Cout)),
        const((9, Cout, Cout)), const((1, Cout)),
    ]
    args = [x_flat, g1, be1, p1, w1, cb1, g2, be2, p2, w2, cb2]
    if conv_shortcut:
        wsc = jnp.transpose(params["shortcut_w"].reshape(Cout, Cin)).astype(jnp.bfloat16)
        bsc = params["shortcut_b"].reshape(1, Cout).astype(jnp.float32)
        in_specs += [const((Cin, Cout)), const((1, Cout))]
        args += [wsc, bsc]

    kernel = _make_block_kernel(H, W, eps, 1.0 / output_scale_factor, conv_shortcut)

    out = pl.pallas_call(
        kernel,
        out_shape=jax.ShapeDtypeStruct((B, H * W, Cout), x_bhwc.dtype),
        grid_spec=pltpu.PrefetchScalarGridSpec(
            num_scalar_prefetch=0,
            grid=(B,),
            in_specs=in_specs,
            out_specs=pl.BlockSpec((1, H * W, Cout), lambda b: (b, 0, 0)),
            scratch_shapes=[
                # One bf16 pad scratch shared by both convs (channel dim sliced per
                # conv); persists across grid steps, halo re-zeroed each step.
                pltpu.VMEM((H + 2, w_pad, cmax), jnp.bfloat16),
            ],
        ),
        compiler_params=pltpu.CompilerParams(
            dimension_semantics=("parallel",),
            vmem_limit_bytes=_vmem_limit_bytes(H, W, Cin, Cout, w_pad),
        ),
    )(*args)

    return out.reshape(B, H, W, Cout)


def residual_block_2d(x_nchw, params, *, num_groups, eps=1e-6, output_scale_factor=1.0):
    """NCHW (PyTorch-convention) wrapper around the channels-last fused kernel."""
    x_bhwc = jnp.transpose(x_nchw, (0, 2, 3, 1))
    out = residual_block_2d_nhwc(x_bhwc, params, num_groups=num_groups, eps=eps,
                                 output_scale_factor=output_scale_factor)
    return jnp.transpose(out, (0, 3, 1, 2))


# ---------------------------------------------------------------------------
# Pure-JAX reference (f32) for verification.
# ---------------------------------------------------------------------------
def ref_forward(x, params, *, num_groups, eps, output_scale_factor):
    def gn(t, gamma, beta):
        B, C, H, W = t.shape
        tg = t.reshape(B, num_groups, -1)
        m = tg.mean(-1, keepdims=True)
        v = tg.var(-1, keepdims=True)
        tn = ((tg - m) * jax.lax.rsqrt(v + eps)).reshape(B, C, H, W)
        return tn * gamma[None, :, None, None] + beta[None, :, None, None]

    def conv(t, w, b, pad):
        y = jax.lax.conv_general_dilated(
            t, w, window_strides=(1, 1), padding=[(pad, pad), (pad, pad)],
            dimension_numbers=("NCHW", "OIHW", "NCHW"))
        return y + b[None, :, None, None]

    silu = lambda t: t * jax.nn.sigmoid(t)
    Cin = x.shape[1]
    Cout = params["conv1_w"].shape[0]
    shortcut = (conv(x, params["shortcut_w"], params["shortcut_b"], 0)
                if Cin != Cout else x)
    h = silu(gn(x, params["norm1_g"], params["norm1_b"]))
    h = conv(h, params["conv1_w"], params["conv1_b"], 1)
    h = silu(gn(h, params["norm2_g"], params["norm2_b"]))
    h = conv(h, params["conv2_w"], params["conv2_b"], 1)
    return (h + shortcut) / output_scale_factor


if __name__ == "__main__":
    B, Cin, Cout, H, W = 2, 8, 16, 16, 16
    num_groups = 4          # must divide both channel counts
    eps = 1e-6
    output_scale_factor = 1.0

    key = jax.random.PRNGKey(0)
    keys = jax.random.split(key, 11)
    params = {
        "norm1_g": 1.0 + 0.1 * jax.random.normal(keys[0], (Cin,), jnp.float32),
        "norm1_b": 0.1 * jax.random.normal(keys[1], (Cin,), jnp.float32),
        "conv1_w": 0.1 * jax.random.normal(keys[2], (Cout, Cin, 3, 3), jnp.float32),
        "conv1_b": 0.05 * jax.random.normal(keys[3], (Cout,), jnp.float32),
        "norm2_g": 1.0 + 0.1 * jax.random.normal(keys[4], (Cout,), jnp.float32),
        "norm2_b": 0.1 * jax.random.normal(keys[5], (Cout,), jnp.float32),
        "conv2_w": 0.1 * jax.random.normal(keys[6], (Cout, Cout, 3, 3), jnp.float32),
        "conv2_b": 0.05 * jax.random.normal(keys[7], (Cout,), jnp.float32),
        "shortcut_w": 0.1 * jax.random.normal(keys[8], (Cout, Cin, 1, 1), jnp.float32),
        "shortcut_b": 0.05 * jax.random.normal(keys[9], (Cout,), jnp.float32),
    }
    x = jax.random.normal(keys[10], (B, Cin, H, W), jnp.float32)

    out = residual_block_2d(x, params, num_groups=num_groups, eps=eps,
                            output_scale_factor=output_scale_factor)
    out = jax.block_until_ready(out)

    ref = ref_forward(x, params, num_groups=num_groups, eps=eps,
                      output_scale_factor=output_scale_factor)
    # bf16 MXU operands (f32 accumulation) -> tolerance relaxed vs. pure-f32 reference.
    np.testing.assert_allclose(np.asarray(out), np.asarray(ref), rtol=2e-2, atol=2e-2)
    print("KERNEL_OK")
</pallas_src>

<mosaic_0001>
module attributes {stable_mosaic.version = 11 : i64} {
  func.func @kernel(%arg0: i32, %arg1: memref<1x256x8xf32, #tpu.memory_space<vmem>>, %arg2: memref<1x8xf32, #tpu.memory_space<vmem>>, %arg3: memref<1x8xf32, #tpu.memory_space<vmem>>, %arg4: memref<8x8xf32, #tpu.memory_space<vmem>>, %arg5: memref<9x8x16xbf16, #tpu.memory_space<vmem>>, %arg6: memref<1x16xf32, #tpu.memory_space<vmem>>, %arg7: memref<1x16xf32, #tpu.memory_space<vmem>>, %arg8: memref<1x16xf32, #tpu.memory_space<vmem>>, %arg9: memref<16x16xf32, #tpu.memory_space<vmem>>, %arg10: memref<9x16x16xbf16, #tpu.memory_space<vmem>>, %arg11: memref<1x16xf32, #tpu.memory_space<vmem>>, %arg12: memref<8x16xbf16, #tpu.memory_space<vmem>>, %arg13: memref<1x16xf32, #tpu.memory_space<vmem>>, %arg14: memref<1x256x16xf32, #tpu.memory_space<vmem>>, %arg15: memref<18x48x16xbf16, #tpu.memory_space<vmem>>) attributes {dimension_semantics = [#tpu.dimension_semantics<parallel>], iteration_bounds = array<i64: 2>, scalar_prefetch = 0 : i64, scratch_operands = 1 : i64, tpu.core_type = #tpu.core_type<tc>, window_params = [{transform_indices = @transform_0, window_bounds = array<i64: 1, 256, 8>}, {pipeline_mode = #tpu.pipeline_mode<synchronous>, transform_indices = @transform_1, window_bounds = array<i64: 1, 8>}, {pipeline_mode = #tpu.pipeline_mode<synchronous>, transform_indices = @transform_2, window_bounds = array<i64: 1, 8>}, {pipeline_mode = #tpu.pipeline_mode<synchronous>, transform_indices = @transform_3, window_bounds = array<i64: 8, 8>}, {pipeline_mode = #tpu.pipeline_mode<synchronous>, transform_indices = @transform_4, window_bounds = array<i64: 9, 8, 16>}, {pipeline_mode = #tpu.pipeline_mode<synchronous>, transform_indices = @transform_5, window_bounds = array<i64: 1, 16>}, {pipeline_mode = #tpu.pipeline_mode<synchronous>, transform_indices = @transform_6, window_bounds = array<i64: 1, 16>}, {pipeline_mode = #tpu.pipeline_mode<synchronous>, transform_indices = @transform_7, window_bounds = array<i64: 1, 16>}, {pipeline_mode = #tpu.pipeline_mode<synchronous>, transform_indices = @transform_8, window_bounds = array<i64: 16, 16>}, {pipeline_mode = #tpu.pipeline_mode<synchronous>, transform_indices = @transform_9, window_bounds = array<i64: 9, 16, 16>}, {pipeline_mode = #tpu.pipeline_mode<synchronous>, transform_indices = @transform_10, window_bounds = array<i64: 1, 16>}, {pipeline_mode = #tpu.pipeline_mode<synchronous>, transform_indices = @transform_11, window_bounds = array<i64: 8, 16>}, {pipeline_mode = #tpu.pipeline_mode<synchronous>, transform_indices = @transform_12, window_bounds = array<i64: 1, 16>}, {transform_indices = @transform_13, window_bounds = array<i64: 1, 256, 16>}]} {
    %cst = arith.constant 0.000000e+00 : bf16
    %0 = vector.broadcast %cst : bf16 to vector<1x48x16xbf16>
    %c0 = arith.constant 0 : index
    %c0_0 = arith.constant 0 : index
    %c0_1 = arith.constant 0 : index
    %1 = vector.load %arg15[%c0, %c0_0, %c0_1] : memref<18x48x16xbf16, #tpu.memory_space<vmem>>, vector<1x48x16xbf16>
    tpu.vector_store %arg15[%c0, %c0_0, %c0_1], %0 {strides = array<i32>} : memref<18x48x16xbf16, #tpu.memory_space<vmem>>, vector<1x48x16xbf16>,
    %c17 = arith.constant 17 : index
    %c0_2 = arith.constant 0 : index
    %c0_3 = arith.constant 0 : index
    %2 = vector.load %arg15[%c17, %c0_2, %c0_3] : memref<18x48x16xbf16, #tpu.memory_space<vmem>>, vector<1x48x16xbf16>
    tpu.vector_store %arg15[%c17, %c0_2, %c0_3], %0 {strides = array<i32>} : memref<18x48x16xbf16, #tpu.memory_space<vmem>>, vector<1x48x16xbf16>,
    %cst_4 = arith.constant 0.000000e+00 : bf16
    %3 = vector.broadcast %cst_4 : bf16 to vector<18x1x16xbf16>
    %c0_5 = arith.constant 0 : index
    %c15 = arith.constant 15 : index
    %c0_6 = arith.constant 0 : index
    %4 = vector.load %arg15[%c0_5, %c15, %c0_6] : memref<18x48x16xbf16, #tpu.memory_space<vmem>>, vector<18x1x16xbf16>
    tpu.vector_store %arg15[%c0_5, %c15, %c0_6], %3 {strides = array<i32>} : memref<18x48x16xbf16, #tpu.memory_space<vmem>>, vector<18x1x16xbf16>,
    %c0_7 = arith.constant 0 : index
    %c32 = arith.constant 32 : index
    %c0_8 = arith.constant 0 : index
    %5 = vector.load %arg15[%c0_7, %c32, %c0_8] : memref<18x48x16xbf16, #tpu.memory_space<vmem>>, vector<18x1x16xbf16>
    tpu.vector_store %arg15[%c0_7, %c32, %c0_8], %3 {strides = array<i32>} : memref<18x48x16xbf16, #tpu.memory_space<vmem>>, vector<18x1x16xbf16>,
    %c0_9 = arith.constant 0 : index
    %c0_10 = arith.constant 0 : index
    %c0_11 = arith.constant 0 : index
    %6 = vector.load %arg1[%c0_9, %c0_10, %c0_11] : memref<1x256x8xf32, #tpu.memory_space<vmem>>, vector<1x256x8xf32>
    %7 = vector.shape_cast %6 : vector<1x256x8xf32> to vector<256x8xf32>
    %cst_12 = arith.constant dense<0.000000e+00> : vector<8xf32>
    %8 = vector.multi_reduction <add>, %7, %cst_12 [0] : vector<256x8xf32> to vector<8xf32>
    %9 = vector.shape_cast %8 : vector<8xf32> to vector<1x8xf32>
    %10 = arith.mulf %7, %7 : vector<256x8xf32>
    %cst_13 = arith.constant dense<0.000000e+00> : vector<8xf32>
    %11 = vector.multi_reduction <add>, %10, %cst_13 [0] : vector<256x8xf32> to vector<8xf32>
    %12 = vector.shape_cast %11 : vector<8xf32> to vector<1x8xf32>
    %13 = tpu.concatenate %9, %12 in 0 : vector<1x8xf32>, vector<1x8xf32> -> vector<2x8xf32>
    %cst_14 = arith.constant 3.906250e-03 : f32
    %14 = vector.broadcast %cst_14 : f32 to vector<2x8xf32>
    %15 = arith.mulf %13, %14 : vector<2x8xf32>
    %c0_15 = arith.constant 0 : index
    %c0_16 = arith.constant 0 : index
    %16 = vector.load %arg4[%c0_15, %c0_16] : memref<8x8xf32, #tpu.memory_space<vmem>>, vector<8x8xf32>
    %cst_17 = arith.constant dense<0.000000e+00> : vector<2x8xf32>
    %17 = tpu.matmul %15, %16, %cst_17 {dimension_numbers = #tpu.dot_dimension_numbers<[1], [0], [0], [1], [0, 0, 1, 1], [], []>} : vector<2x8xf32>, vector<8x8xf32>, vector<2x8xf32> -> vector<2x8xf32>
    %18 = vector.extract_strided_slice %17 {offsets = [0, 0], sizes = [1, 8], strides = [1, 1]} : vector<2x8xf32> to vector<1x8xf32>
    %19 = vector.extract_strided_slice %17 {offsets = [1, 0], sizes = [1, 8], strides = [1, 1]} : vector<2x8xf32> to vector<1x8xf32>
    %20 = arith.mulf %18, %18 : vector<1x8xf32>
    %21 = arith.subf %19, %20 : vector<1x8xf32>
    %cst_18 = arith.constant 0.000000e+00 : f32
    %22 = vector.broadcast %cst_18 : f32 to vector<1x8xf32>
    %23 = arith.maximumf %21, %22 : vector<1x8xf32>
    %cst_19 = arith.constant 9.99999997E-7 : f32
    %24 = vector.broadcast %cst_19 : f32 to vector<1x8xf32>
    %25 = arith.addf %23, %24 : vector<1x8xf32>
    %26 = math.rsqrt %25 : vector<1x8xf32>
    %c0_20 = arith.constant 0 : index
    %c0_21 = arith.constant 0 : index
    %27 = vector.load %arg2[%c0_20, %c0_21] : memref<1x8xf32, #tpu.memory_space<vmem>>, vector<1x8xf32>
    %28 = arith.mulf %26, %27 : vector<1x8xf32>
    %c0_22 = arith.constant 0 : index
    %c0_23 = arith.constant 0 : index
    %29 = vector.load %arg3[%c0_22, %c0_23] : memref<1x8xf32, #tpu.memory_space<vmem>>, vector<1x8xf32>
    %30 = arith.mulf %18, %28 : vector<1x8xf32>
    %31 = arith.subf %29, %30 : vector<1x8xf32>
    %32 = vector.broadcast %28 : vector<1x8xf32> to vector<256x8xf32>
    %33 = arith.mulf %7, %32 : vector<256x8xf32>
    %34 = vector.broadcast %31 : vector<1x8xf32> to vector<256x8xf32>
    %35 = arith.addf %33, %34 : vector<256x8xf32>
    %36 = arith.negf %35 : vector<256x8xf32>
    %37 = math.exp %36 : vector<256x8xf32>
    %cst_24 = arith.constant 1.000000e+00 : f32
    %38 = vector.broadcast %cst_24 : f32 to vector<256x8xf32>
    %39 = arith.addf %38, %37 : vector<256x8xf32>
    %40 = arith.divf %38, %39 : vector<256x8xf32>
    %41 = arith.mulf %35, %40 : vector<256x8xf32>
    %42 = vector.shape_cast %41 : vector<256x8xf32> to vector<16x16x8xf32>
    %43 = arith.truncf %42 : vector<16x16x8xf32> to vector<16x16x8xbf16>
    %c1 = arith.constant 1 : index
    %c16 = arith.constant 16 : index
    %c0_25 = arith.constant 0 : index
    %44 = vector.load %arg15[%c1, %c16, %c0_25] : memref<18x48x16xbf16, #tpu.memory_space<vmem>>, vector<16x16x8xbf16>
    tpu.vector_store %arg15[%c1, %c16, %c0_25], %43 {strides = array<i32>} : memref<18x48x16xbf16, #tpu.memory_space<vmem>>, vector<16x16x8xbf16>,
    %c0_26 = arith.constant 0 : index
    %c0_27 = arith.constant 0 : index
    %45 = vector.load %arg6[%c0_26, %c0_27] : memref<1x16xf32, #tpu.memory_space<vmem>>, vector<1x16xf32>
    %46 = vector.shape_cast %45 : vector<1x16xf32> to vector<1x16xf32>
    %47 = vector.broadcast %46 : vector<1x16xf32> to vector<256x16xf32>
    %c0_28 = arith.constant 0 : index
    %c15_29 = arith.constant 15 : index
    %c0_30 = arith.constant 0 : index
    %48 = vector.load %arg15[%c0_28, %c15_29, %c0_30] : memref<18x48x16xbf16, #tpu.memory_space<vmem>>, vector<18x16x8xbf16>
    %49 = vector.extract_strided_slice %48 {offsets = [0, 0, 0], sizes = [16, 16, 8], strides = [1, 1, 1]} : vector<18x16x8xbf16> to vector<16x16x8xbf16>
    %50 = vector.shape_cast %49 : vector<16x16x8xbf16> to vector<256x8xbf16>
    %c0_31 = arith.constant 0 : index
    %c0_32 = arith.constant 0 : index
    %c0_33 = arith.constant 0 : index
    %51 = vector.load %arg5[%c0_31, %c0_32, %c0_33] : memref<9x8x16xbf16, #tpu.memory_space<vmem>>, vector<1x8x16xbf16>
    %52 = vector.shape_cast %51 : vector<1x8x16xbf16> to vector<8x16xbf16>
    %cst_34 = arith.constant dense<0.000000e+00> : vector<256x16xf32>
    %53 = tpu.matmul %50, %52, %cst_34 {dimension_numbers = #tpu.dot_dimension_numbers<[1], [0], [0], [1], [0, 0, 1, 1], [], []>} : vector<256x8xbf16>, vector<8x16xbf16>, vector<256x16xf32> -> vector<256x16xf32>
    %54 = arith.addf %47, %53 : vector<256x16xf32>
    %55 = vector.extract_strided_slice %48 {offsets = [1, 0, 0], sizes = [16, 16, 8], strides = [1, 1, 1]} : vector<18x16x8xbf16> to vector<16x16x8xbf16>
    %56 = vector.shape_cast %55 : vector<16x16x8xbf16> to vector<256x8xbf16>
    %c3 = arith.constant 3 : index
    %c0_35 = arith.constant 0 : index
    %c0_36 = arith.constant 0 : index
    %57 = vector.load %arg5[%c3, %c0_35, %c0_36] : memref<9x8x16xbf16, #tpu.memory_space<vmem>>, vector<1x8x16xbf16>
    %58 = vector.shape_cast %57 : vector<1x8x16xbf16> to vector<8x16xbf16>
    %cst_37 = arith.constant dense<0.000000e+00> : vector<256x16xf32>
    %59 = tpu.matmul %56, %58, %cst_37 {dimension_numbers = #tpu.dot_dimension_numbers<[1], [0], [0], [1], [0, 0, 1, 1], [], []>} : vector<256x8xbf16>, vector<8x16xbf16>, vector<256x16xf32> -> vector<256x16xf32>
    %60 = arith.addf %54, %59 : vector<256x16xf32>
    %61 = vector.extract_strided_slice %48 {offsets = [2, 0, 0], sizes = [16, 16, 8], strides = [1, 1, 1]} : vector<18x16x8xbf16> to vector<16x16x8xbf16>
    %62 = vector.shape_cast %61 : vector<16x16x8xbf16> to vector<256x8xbf16>
    %c6 = arith.constant 6 : index
    %c0_38 = arith.constant 0 : index
    %c0_39 = arith.constant 0 : index
    %63 = vector.load %arg5[%c6, %c0_38, %c0_39] : memref<9x8x16xbf16, #tpu.memory_space<vmem>>, vector<1x8x16xbf16>
    %64 = vector.shape_cast %63 : vector<1x8x16xbf16> to vector<8x16xbf16>
    %cst_40 = arith.constant dense<0.000000e+00> : vector<256x16xf32>
    %65 = tpu.matmul %62, %64, %cst_40 {dimension_numbers = #tpu.dot_dimension_numbers<[1], [0], [0], [1], [0, 0, 1, 1], [], []>} : vector<256x8xbf16>, vector<8x16xbf16>, vector<256x16xf32> -> vector<256x16xf32>
    %66 = arith.addf %60, %65 : vector<256x16xf32>
    %c0_41 = arith.constant 0 : index
    %c16_42 = arith.constant 16 : index
    %c0_43 = arith.constant 0 : index
    %67 = vector.load %arg15[%c0_41, %c16_42, %c0_43] : memref<18x48x16xbf16, #tpu.memory_space<vmem>>, vector<18x16x8xbf16>
    %68 = vector.extract_strided_slice %67 {offsets = [0, 0, 0], sizes = [16, 16, 8], strides = [1, 1, 1]} : vector<18x16x8xbf16> to vector<16x16x8xbf16>
    %69 = vector.shape_cast %68 : vector<16x16x8xbf16> to vector<256x8xbf16>
    %c1_44 = arith.constant 1 : index
    %c0_45 = arith.constant 0 : index
    %c0_46 = arith.constant 0 : index
    %70 = vector.load %arg5[%c1_44, %c0_45, %c0_46] : memref<9x8x16xbf16, #tpu.memory_space<vmem>>, vector<1x8x16xbf16>
    %71 = vector.shape_cast %70 : vector<1x8x16xbf16> to vector<8x16xbf16>
    %cst_47 = arith.constant dense<0.000000e+00> : vector<256x16xf32>
    %72 = tpu.matmul %69, %71, %cst_47 {dimension_numbers = #tpu.dot_dimension_numbers<[1], [0], [0], [1], [0, 0, 1, 1], [], []>} : vector<256x8xbf16>, vector<8x16xbf16>, vector<256x16xf32> -> vector<256x16xf32>
    %73 = arith.addf %66, %72 : vector<256x16xf32>
    %74 = vector.extract_strided_slice %67 {offsets = [1, 0, 0], sizes = [16, 16, 8], strides = [1, 1, 1]} : vector<18x16x8xbf16> to vector<16x16x8xbf16>
    %75 = vector.shape_cast %74 : vector<16x16x8xbf16> to vector<256x8xbf16>
    %c4 = arith.constant 4 : index
    %c0_48 = arith.constant 0 : index
    %c0_49 = arith.constant 0 : index
    %76 = vector.load %arg5[%c4, %c0_48, %c0_49] : memref<9x8x16xbf16, #tpu.memory_space<vmem>>, vector<1x8x16xbf16>
    %77 = vector.shape_cast %76 : vector<1x8x16xbf16> to vector<8x16xbf16>
    %cst_50 = arith.constant dense<0.000000e+00> : vector<256x16xf32>
    %78 = tpu.matmul %75, %77, %cst_50 {dimension_numbers = #tpu.dot_dimension_numbers<[1], [0], [0], [1], [0, 0, 1, 1], [], []>} : vector<256x8xbf16>, vector<8x16xbf16>, vector<256x16xf32> -> vector<256x16xf32>
    %79 = arith.addf %73, %78 : vector<256x16xf32>
    %80 = vector.extract_strided_slice %67 {offsets = [2, 0, 0], sizes = [16, 16, 8], strides = [1, 1, 1]} : vector<18x16x8xbf16> to vector<16x16x8xbf16>
    %81 = vector.shape_cast %80 : vector<16x16x8xbf16> to vector<256x8xbf16>
    %c7 = arith.constant 7 : index
    %c0_51 = arith.constant 0 : index
    %c0_52 = arith.constant 0 : index
    %82 = vector.load %arg5[%c7, %c0_51, %c0_52] : memref<9x8x16xbf16, #tpu.memory_space<vmem>>, vector<1x8x16xbf16>
    %83 = vector.shape_cast %82 : vector<1x8x16xbf16> to vector<8x16xbf16>
    %cst_53 = arith.constant dense<0.000000e+00> : vector<256x16xf32>
    %84 = tpu.matmul %81, %83, %cst_53 {dimension_numbers = #tpu.dot_dimension_numbers<[1], [0], [0], [1], [0, 0, 1, 1], [], []>} : vector<256x8xbf16>, vector<8x16xbf16>, vector<256x16xf32> -> vector<256x16xf32>
    %85 = arith.addf %79, %84 : vector<256x16xf32>
    %c0_54 = arith.constant 0 : index
    %c17_55 = arith.constant 17 : index
    %c0_56 = arith.constant 0 : index
    %86 = vector.load %arg15[%c0_54, %c17_55, %c0_56] : memref<18x48x16xbf16, #tpu.memory_space<vmem>>, vector<18x16x8xbf16>
    %87 = vector.extract_strided_slice %86 {offsets = [0, 0, 0], sizes = [16, 16, 8], strides = [1, 1, 1]} : vector<18x16x8xbf16> to vector<16x16x8xbf16>
    %88 = vector.shape_cast %87 : vector<16x16x8xbf16> to vector<256x8xbf16>
    %c2 = arith.constant 2 : index
    %c0_57 = arith.constant 0 : index
    %c0_58 = arith.constant 0 : index
    %89 = vector.load %arg5[%c2, %c0_57, %c0_58] : memref<9x8x16xbf16, #tpu.memory_space<vmem>>, vector<1x8x16xbf16>
    %90 = vector.shape_cast %89 : vector<1x8x16xbf16> to vector<8x16xbf16>
    %cst_59 = arith.constant dense<0.000000e+00> : vector<256x16xf32>
    %91 = tpu.matmul %88, %90, %cst_59 {dimension_numbers = #tpu.dot_dimension_numbers<[1], [0], [0], [1], [0, 0, 1, 1], [], []>} : vector<256x8xbf16>, vector<8x16xbf16>, vector<256x16xf32> -> vector<256x16xf32>
    %92 = arith.addf %85, %91 : vector<256x16xf32>
    %93 = vector.extract_strided_slice %86 {offsets = [1, 0, 0], sizes = [16, 16, 8], strides = [1, 1, 1]} : vector<18x16x8xbf16> to vector<16x16x8xbf16>
    %94 = vector.shape_cast %93 : vector<16x16x8xbf16> to vector<256x8xbf16>
    %c5 = arith.constant 5 : index
    %c0_60 = arith.constant 0 : index
    %c0_61 = arith.constant 0 : index
    %95 = vector.load %arg5[%c5, %c0_60, %c0_61] : memref<9x8x16xbf16, #tpu.memory_space<vmem>>, vector<1x8x16xbf16>
    %96 = vector.shape_cast %95 : vector<1x8x16xbf16> to vector<8x16xbf16>
    %cst_62 = arith.constant dense<0.000000e+00> : vector<256x16xf32>
    %97 = tpu.matmul %94, %96, %cst_62 {dimension_numbers = #tpu.dot_dimension_numbers<[1], [0], [0], [1], [0, 0, 1, 1], [], []>} : vector<256x8xbf16>, vector<8x16xbf16>, vector<256x16xf32> -> vector<256x16xf32>
    %98 = arith.addf %92, %97 : vector<256x16xf32>
    %99 = vector.extract_strided_slice %86 {offsets = [2, 0, 0], sizes = [16, 16, 8], strides = [1, 1, 1]} : vector<18x16x8xbf16> to vector<16x16x8xbf16>
    %100 = vector.shape_cast %99 : vector<16x16x8xbf16> to vector<256x8xbf16>
    %c8 = arith.constant 8 : index
    %c0_63 = arith.constant 0 : index
    %c0_64 = arith.constant 0 : index
    %101 = vector.load %arg5[%c8, %c0_63, %c0_64] : memref<9x8x16xbf16, #tpu.memory_space<vmem>>, vector<1x8x16xbf16>
    %102 = vector.shape_cast %101 : vector<1x8x16xbf16> to vector<8x16xbf16>
    %cst_65 = arith.constant dense<0.000000e+00> : vector<256x16xf32>
    %103 = tpu.matmul %100, %102, %cst_65 {dimension_numbers = #tpu.dot_dimension_numbers<[1], [0], [0], [1], [0, 0, 1, 1], [], []>} : vector<256x8xbf16>, vector<8x16xbf16>, vector<256x16xf32> -> vector<256x16xf32>
    %104 = arith.addf %98, %103 : vector<256x16xf32>
    %cst_66 = arith.constant dense<0.000000e+00> : vector<16xf32>
    %105 = vector.multi_reduction <add>, %104, %cst_66 [0] : vector<256x16xf32> to vector<16xf32>
    %106 = vector.shape_cast %105 : vector<16xf32> to vector<1x16xf32>
    %107 = arith.mulf %104, %104 : vector<256x16xf32>
    %cst_67 = arith.constant dense<0.000000e+00> : vector<16xf32>
    %108 = vector.multi_reduction <add>, %107, %cst_67 [0] : vector<256x16xf32> to vector<16xf32>
    %109 = vector.shape_cast %108 : vector<16xf32> to vector<1x16xf32>
    %110 = tpu.concatenate %106, %109 in 0 : vector<1x16xf32>, vector<1x16xf32> -> vector<2x16xf32>
    %cst_68 = arith.constant 3.906250e-03 : f32
    %111 = vector.broadcast %cst_68 : f32 to vector<2x16xf32>
    %112 = arith.mulf %110, %111 : vector<2x16xf32>
    %c0_69 = arith.constant 0 : index
    %c0_70 = arith.constant 0 : index
    %113 = vector.load %arg9[%c0_69, %c0_70] : memref<16x16xf32, #tpu.memory_space<vmem>>, vector<16x16xf32>
    %cst_71 = arith.constant dense<0.000000e+00> : vector<2x16xf32>
    %114 = tpu.matmul %112, %113, %cst_71 {dimension_numbers = #tpu.dot_dimension_numbers<[1], [0], [0], [1], [0, 0, 1, 1], [], []>} : vector<2x16xf32>, vector<16x16xf32>, vector<2x16xf32> -> vector<2x16xf32>
    %115 = vector.extract_strided_slice %114 {offsets = [0, 0], sizes = [1, 16], strides = [1, 1]} : vector<2x16xf32> to vector<1x16xf32>
    %116 = vector.extract_strided_slice %114 {offsets = [1, 0], sizes = [1, 16], strides = [1, 1]} : vector<2x16xf32> to vector<1x16xf32>
    %117 = arith.mulf %115, %115 : vector<1x16xf32>
    %118 = arith.subf %116, %117 : vector<1x16xf32>
    %cst_72 = arith.constant 0.000000e+00 : f32
    %119 = vector.broadcast %cst_72 : f32 to vector<1x16xf32>
    %120 = arith.maximumf %118, %119 : vector<1x16xf32>
    %cst_73 = arith.constant 9.99999997E-7 : f32
    %121 = vector.broadcast %cst_73 : f32 to vector<1x16xf32>
    %122 = arith.addf %120, %121 : vector<1x16xf32>
    %123 = math.rsqrt %122 : vector<1x16xf32>
    %c0_74 = arith.constant 0 : index
    %c0_75 = arith.constant 0 : index
    %124 = vector.load %arg7[%c0_74, %c0_75] : memref<1x16xf32, #tpu.memory_space<vmem>>, vector<1x16xf32>
    %125 = arith.mulf %123, %124 : vector<1x16xf32>
    %c0_76 = arith.constant 0 : index
    %c0_77 = arith.constant 0 : index
    %126 = vector.load %arg8[%c0_76, %c0_77] : memref<1x16xf32, #tpu.memory_space<vmem>>, vector<1x16xf32>
    %127 = arith.mulf %115, %125 : vector<1x16xf32>
    %128 = arith.subf %126, %127 : vector<1x16xf32>
    %129 = vector.broadcast %125 : vector<1x16xf32> to vector<256x16xf32>
    %130 = arith.mulf %104, %129 : vector<256x16xf32>
    %131 = vector.broadcast %128 : vector<1x16xf32> to vector<256x16xf32>
    %132 = arith.addf %130, %131 : vector<256x16xf32>
    %133 = arith.negf %132 : vector<256x16xf32>
    %134 = math.exp %133 : vector<256x16xf32>
    %cst_78 = arith.constant 1.000000e+00 : f32
    %135 = vector.broadcast %cst_78 : f32 to vector<256x16xf32>
    %136 = arith.addf %135, %134 : vector<256x16xf32>
    %137 = arith.divf %135, %136 : vector<256x16xf32>
    %138 = arith.mulf %132, %137 : vector<256x16xf32>
    %139 = vector.shape_cast %138 : vector<256x16xf32> to vector<16x16x16xf32>
    %140 = arith.truncf %139 : vector<16x16x16xf32> to vector<16x16x16xbf16>
    %c1_79 = arith.constant 1 : index
    %c16_80 = arith.constant 16 : index
    %c0_81 = arith.constant 0 : index
    %141 = vector.load %arg15[%c1_79, %c16_80, %c0_81] : memref<18x48x16xbf16, #tpu.memory_space<vmem>>, vector<16x16x16xbf16>
    tpu.vector_store %arg15[%c1_79, %c16_80, %c0_81], %140 {strides = array<i32>} : memref<18x48x16xbf16, #tpu.memory_space<vmem>>, vector<16x16x16xbf16>,
    %c0_82 = arith.constant 0 : index
    %c0_83 = arith.constant 0 : index
    %142 = vector.load %arg11[%c0_82, %c0_83] : memref<1x16xf32, #tpu.memory_space<vmem>>, vector<1x16xf32>
    %143 = vector.shape_cast %142 : vector<1x16xf32> to vector<1x16xf32>
    %144 = vector.broadcast %143 : vector<1x16xf32> to vector<256x16xf32>
    %c0_84 = arith.constant 0 : index
    %c15_85 = arith.constant 15 : index
    %c0_86 = arith.constant 0 : index
    %145 = vector.load %arg15[%c0_84, %c15_85, %c0_86] : memref<18x48x16xbf16, #tpu.memory_space<vmem>>, vector<18x16x16xbf16>
    %146 = vector.extract_strided_slice %145 {offsets = [0, 0, 0], sizes = [16, 16, 16], strides = [1, 1, 1]} : vector<18x16x16xbf16> to vector<16x16x16xbf16>
    %147 = vector.shape_cast %146 : vector<16x16x16xbf16> to vector<256x16xbf16>
    %c0_87 = arith.constant 0 : index
    %c0_88 = arith.constant 0 : index
    %c0_89 = arith.constant 0 : index
    %148 = vector.load %arg10[%c0_87, %c0_88, %c0_89] : memref<9x16x16xbf16, #tpu.memory_space<vmem>>, vector<1x16x16xbf16>
    %149 = vector.shape_cast %148 : vector<1x16x16xbf16> to vector<16x16xbf16>
    %cst_90 = arith.constant dense<0.000000e+00> : vector<256x16xf32>
    %150 = tpu.matmul %147, %149, %cst_90 {dimension_numbers = #tpu.dot_dimension_numbers<[1], [0], [0], [1], [0, 0, 1, 1], [], []>} : vector<256x16xbf16>, vector<16x16xbf16>, vector<256x16xf32> -> vector<256x16xf32>
    %151 = arith.addf %144, %150 : vector<256x16xf32>
    %152 = vector.extract_strided_slice %145 {offsets = [1, 0, 0], sizes = [16, 16, 16], strides = [1, 1, 1]} : vector<18x16x16xbf16> to vector<16x16x16xbf16>
    %153 = vector.shape_cast %152 : vector<16x16x16xbf16> to vector<256x16xbf16>
    %c3_91 = arith.constant 3 : index
    %c0_92 = arith.constant 0 : index
    %c0_93 = arith.constant 0 : index
    %154 = vector.load %arg10[%c3_91, %c0_92, %c0_93] : memref<9x16x16xbf16, #tpu.memory_space<vmem>>, vector<1x16x16xbf16>
    %155 = vector.shape_cast %154 : vector<1x16x16xbf16> to vector<16x16xbf16>
    %cst_94 = arith.constant dense<0.000000e+00> : vector<256x16xf32>
    %156 = tpu.matmul %153, %155, %cst_94 {dimension_numbers = #tpu.dot_dimension_numbers<[1], [0], [0], [1], [0, 0, 1, 1], [], []>} : vector<256x16xbf16>, vector<16x16xbf16>, vector<256x16xf32> -> vector<256x16xf32>
    %157 = arith.addf %151, %156 : vector<256x16xf32>
    %158 = vector.extract_strided_slice %145 {offsets = [2, 0, 0], sizes = [16, 16, 16], strides = [1, 1, 1]} : vector<18x16x16xbf16> to vector<16x16x16xbf16>
    %159 = vector.shape_cast %158 : vector<16x16x16xbf16> to vector<256x16xbf16>
    %c6_95 = arith.constant 6 : index
    %c0_96 = arith.constant 0 : index
    %c0_97 = arith.constant 0 : index
    %160 = vector.load %arg10[%c6_95, %c0_96, %c0_97] : memref<9x16x16xbf16, #tpu.memory_space<vmem>>, vector<1x16x16xbf16>
    %161 = vector.shape_cast %160 : vector<1x16x16xbf16> to vector<16x16xbf16>
    %cst_98 = arith.constant dense<0.000000e+00> : vector<256x16xf32>
    %162 = tpu.matmul %159, %161, %cst_98 {dimension_numbers = #tpu.dot_dimension_numbers<[1], [0], [0], [1], [0, 0, 1, 1], [], []>} : vector<256x16xbf16>, vector<16x16xbf16>, vector<256x16xf32> -> vector<256x16xf32>
    %163 = arith.addf %157, %162 : vector<256x16xf32>
    %c0_99 = arith.constant 0 : index
    %c16_100 = arith.constant 16 : index
    %c0_101 = arith.constant 0 : index
    %164 = vector.load %arg15[%c0_99, %c16_100, %c0_101] : memref<18x48x16xbf16, #tpu.memory_space<vmem>>, vector<18x16x16xbf16>
    %165 = vector.extract_strided_slice %164 {offsets = [0, 0, 0], sizes = [16, 16, 16], strides = [1, 1, 1]} : vector<18x16x16xbf16> to vector<16x16x16xbf16>
    %166 = vector.shape_cast %165 : vector<16x16x16xbf16> to vector<256x16xbf16>
    %c1_102 = arith.constant 1 : index
    %c0_103 = arith.constant 0 : index
    %c0_104 = arith.constant 0 : index
    %167 = vector.load %arg10[%c1_102, %c0_103, %c0_104] : memref<9x16x16xbf16, #tpu.memory_space<vmem>>, vector<1x16x16xbf16>
    %168 = vector.shape_cast %167 : vector<1x16x16xbf16> to vector<16x16xbf16>
    %cst_105 = arith.constant dense<0.000000e+00> : vector<256x16xf32>
    %169 = tpu.matmul %166, %168, %cst_105 {dimension_numbers = #tpu.dot_dimension_numbers<[1], [0], [0], [1], [0, 0, 1, 1], [], []>} : vector<256x16xbf16>, vector<16x16xbf16>, vector<256x16xf32> -> vector<256x16xf32>
    %170 = arith.addf %163, %169 : vector<256x16xf32>
    %171 = vector.extract_strided_slice %164 {offsets = [1, 0, 0], sizes = [16, 16, 16], strides = [1, 1, 1]} : vector<18x16x16xbf16> to vector<16x16x16xbf16>
    %172 = vector.shape_cast %171 : vector<16x16x16xbf16> to vector<256x16xbf16>
    %c4_106 = arith.constant 4 : index
    %c0_107 = arith.constant 0 : index
    %c0_108 = arith.constant 0 : index
    %173 = vector.load %arg10[%c4_106, %c0_107, %c0_108] : memref<9x16x16xbf16, #tpu.memory_space<vmem>>, vector<1x16x16xbf16>
    %174 = vector.shape_cast %173 : vector<1x16x16xbf16> to vector<16x16xbf16>
    %cst_109 = arith.constant dense<0.000000e+00> : vector<256x16xf32>
    %175 = tpu.matmul %172, %174, %cst_109 {dimension_numbers = #tpu.dot_dimension_numbers<[1], [0], [0], [1], [0, 0, 1, 1], [], []>} : vector<256x16xbf16>, vector<16x16xbf16>, vector<256x16xf32> -> vector<256x16xf32>
    %176 = arith.addf %170, %175 : vector<256x16xf32>
    %177 = vector.extract_strided_slice %164 {offsets = [2, 0, 0], sizes = [16, 16, 16], strides = [1, 1, 1]} : vector<18x16x16xbf16> to vector<16x16x16xbf16>
    %178 = vector.shape_cast %177 : vector<16x16x16xbf16> to vector<256x16xbf16>
    %c7_110 = arith.constant 7 : index
    %c0_111 = arith.constant 0 : index
    %c0_112 = arith.constant 0 : index
    %179 = vector.load %arg10[%c7_110, %c0_111, %c0_112] : memref<9x16x16xbf16, #tpu.memory_space<vmem>>, vector<1x16x16xbf16>
    %180 = vector.shape_cast %179 : vector<1x16x16xbf16> to vector<16x16xbf16>
    %cst_113 = arith.constant dense<0.000000e+00> : vector<256x16xf32>
    %181 = tpu.matmul %178, %180, %cst_113 {dimension_numbers = #tpu.dot_dimension_numbers<[1], [0], [0], [1], [0, 0, 1, 1], [], []>} : vector<256x16xbf16>, vector<16x16xbf16>, vector<256x16xf32> -> vector<256x16xf32>
    %182 = arith.addf %176, %181 : vector<256x16xf32>
    %c0_114 = arith.constant 0 : index
    %c17_115 = arith.constant 17 : index
    %c0_116 = arith.constant 0 : index
    %183 = vector.load %arg15[%c0_114, %c17_115, %c0_116] : memref<18x48x16xbf16, #tpu.memory_space<vmem>>, vector<18x16x16xbf16>
    %184 = vector.extract_strided_slice %183 {offsets = [0, 0, 0], sizes = [16, 16, 16], strides = [1, 1, 1]} : vector<18x16x16xbf16> to vector<16x16x16xbf16>
    %185 = vector.shape_cast %184 : vector<16x16x16xbf16> to vector<256x16xbf16>
    %c2_117 = arith.constant 2 : index
    %c0_118 = arith.constant 0 : index
    %c0_119 = arith.constant 0 : index
    %186 = vector.load %arg10[%c2_117, %c0_118, %c0_119] : memref<9x16x16xbf16, #tpu.memory_space<vmem>>, vector<1x16x16xbf16>
    %187 = vector.shape_cast %186 : vector<1x16x16xbf16> to vector<16x16xbf16>
    %cst_120 = arith.constant dense<0.000000e+00> : vector<256x16xf32>
    %188 = tpu.matmul %185, %187, %cst_120 {dimension_numbers = #tpu.dot_dimension_numbers<[1], [0], [0], [1], [0, 0, 1, 1], [], []>} : vector<256x16xbf16>, vector<16x16xbf16>, vector<256x16xf32> -> vector<256x16xf32>
    %189 = arith.addf %182, %188 : vector<256x16xf32>
    %190 = vector.extract_strided_slice %183 {offsets = [1, 0, 0], sizes = [16, 16, 16], strides = [1, 1, 1]} : vector<18x16x16xbf16> to vector<16x16x16xbf16>
    %191 = vector.shape_cast %190 : vector<16x16x16xbf16> to vector<256x16xbf16>
    %c5_121 = arith.constant 5 : index
    %c0_122 = arith.constant 0 : index
    %c0_123 = arith.constant 0 : index
    %192 = vector.load %arg10[%c5_121, %c0_122, %c0_123] : memref<9x16x16xbf16, #tpu.memory_space<vmem>>, vector<1x16x16xbf16>
    %193 = vector.shape_cast %192 : vector<1x16x16xbf16> to vector<16x16xbf16>
    %cst_124 = arith.constant dense<0.000000e+00> : vector<256x16xf32>
    %194 = tpu.matmul %191, %193, %cst_124 {dimension_numbers = #tpu.dot_dimension_numbers<[1], [0], [0], [1], [0, 0, 1, 1], [], []>} : vector<256x16xbf16>, vector<16x16xbf16>, vector<256x16xf32> -> vector<256x16xf32>
    %195 = arith.addf %189, %194 : vector<256x16xf32>
    %196 = vector.extract_strided_slice %183 {offsets = [2, 0, 0], sizes = [16, 16, 16], strides = [1, 1, 1]} : vector<18x16x16xbf16> to vector<16x16x16xbf16>
    %197 = vector.shape_cast %196 : vector<16x16x16xbf16> to vector<256x16xbf16>
    %c8_125 = arith.constant 8 : index
    %c0_126 = arith.constant 0 : index
    %c0_127 = arith.constant 0 : index
    %198 = vector.load %arg10[%c8_125, %c0_126, %c0_127] : memref<9x16x16xbf16, #tpu.memory_space<vmem>>, vector<1x16x16xbf16>
    %199 = vector.shape_cast %198 : vector<1x16x16xbf16> to vector<16x16xbf16>
    %cst_128 = arith.constant dense<0.000000e+00> : vector<256x16xf32>
    %200 = tpu.matmul %197, %199, %cst_128 {dimension_numbers = #tpu.dot_dimension_numbers<[1], [0], [0], [1], [0, 0, 1, 1], [], []>} : vector<256x16xbf16>, vector<16x16xbf16>, vector<256x16xf32> -> vector<256x16xf32>
    %201 = arith.addf %195, %200 : vector<256x16xf32>
    %c0_129 = arith.constant 0 : index
    %c0_130 = arith.constant 0 : index
    %c0_131 = arith.constant 0 : index
    %202 = vector.load %arg1[%c0_129, %c0_130, %c0_131] : memref<1x256x8xf32, #tpu.memory_space<vmem>>, vector<1x256x8xf32>
    %203 = vector.shape_cast %202 : vector<1x256x8xf32> to vector<256x8xf32>
    %204 = arith.truncf %203 : vector<256x8xf32> to vector<256x8xbf16>
    %c0_132 = arith.constant 0 : index
    %c0_133 = arith.constant 0 : index
    %205 = vector.load %arg12[%c0_132, %c0_133] : memref<8x16xbf16, #tpu.memory_space<vmem>>, vector<8x16xbf16>
    %cst_134 = arith.constant dense<0.000000e+00> : vector<256x16xf32>
    %206 = tpu.matmul %204, %205, %cst_134 {dimension_numbers = #tpu.dot_dimension_numbers<[1], [0], [0], [1], [0, 0, 1, 1], [], []>} : vector<256x8xbf16>, vector<8x16xbf16>, vector<256x16xf32> -> vector<256x16xf32>
    %c0_135 = arith.constant 0 : index
    %c0_136 = arith.constant 0 : index
    %207 = vector.load %arg13[%c0_135, %c0_136] : memref<1x16xf32, #tpu.memory_space<vmem>>, vector<1x16xf32>
    %208 = vector.broadcast %207 : vector<1x16xf32> to vector<256x16xf32>
    %209 = arith.addf %206, %208 : vector<256x16xf32>
    %210 = arith.addf %201, %209 : vector<256x16xf32>
    %cst_137 = arith.constant 1.000000e+00 : f32
    %211 = vector.broadcast %cst_137 : f32 to vector<256x16xf32>
    %212 = arith.mulf %210, %211 : vector<256x16xf32>
    %c0_138 = arith.constant 0 : index
    %c0_139 = arith.constant 0 : index
    %c0_140 = arith.constant 0 : index
    %213 = vector.load %arg14[%c0_138, %c0_139, %c0_140] : memref<1x256x16xf32, #tpu.memory_space<vmem>>, vector<1x256x16xf32>
    %214 = vector.shape_cast %213 : vector<1x256x16xf32> to vector<256x16xf32>
    %215 = vector.shape_cast %212 : vector<256x16xf32> to vector<1x256x16xf32>
    tpu.vector_store %arg14[%c0_138, %c0_139, %c0_140], %215 {strides = array<i32>} : memref<1x256x16xf32, #tpu.memory_space<vmem>>, vector<1x256x16xf32>,
    return
  }
  func.func @transform_0(%arg0: i32) -> (i32, i32, i32) {
    %c0_i32 = arith.constant 0 : i32
    %c0_i32_0 = arith.constant 0 : i32
    %c0_i32_1 = arith.constant 0 : i32
    return %arg0, %c0_i32, %c0_i32_0 : i32, i32, i32
  }
  func.func @transform_1(%arg0: i32) -> (i32, i32) {
    %c0_i32 = arith.constant 0 : i32
    %c0_i32_0 = arith.constant 0 : i32
    %c0_i32_1 = arith.constant 0 : i32
    return %c0_i32, %c0_i32_0 : i32, i32
  }
  func.func @transform_2(%arg0: i32) -> (i32, i32) {
    %c0_i32 = arith.constant 0 : i32
    %c0_i32_0 = arith.constant 0 : i32
    %c0_i32_1 = arith.constant 0 : i32
    return %c0_i32, %c0_i32_0 : i32, i32
  }
  func.func @transform_3(%arg0: i32) -> (i32, i32) {
    %c0_i32 = arith.constant 0 : i32
    %c0_i32_0 = arith.constant 0 : i32
    %c0_i32_1 = arith.constant 0 : i32
    return %c0_i32, %c0_i32_0 : i32, i32
  }
  func.func @transform_4(%arg0: i32) -> (i32, i32, i32) {
    %c0_i32 = arith.constant 0 : i32
    %c0_i32_0 = arith.constant 0 : i32
    %c0_i32_1 = arith.constant 0 : i32
    %c0_i32_2 = arith.constant 0 : i32
    return %c0_i32, %c0_i32_0, %c0_i32_1 : i32, i32, i32
  }
  func.func @transform_5(%arg0: i32) -> (i32, i32) {
    %c0_i32 = arith.constant 0 : i32
    %c0_i32_0 = arith.constant 0 : i32
    %c0_i32_1 = arith.constant 0 : i32
    return %c0_i32, %c0_i32_0 : i32, i32
  }
  func.func @transform_6(%arg0: i32) -> (i32, i32) {
    %c0_i32 = arith.constant 0 : i32
    %c0_i32_0 = arith.constant 0 : i32
    %c0_i32_1 = arith.constant 0 : i32
    return %c0_i32, %c0_i32_0 : i32, i32
  }
  func.func @transform_7(%arg0: i32) -> (i32, i32) {
    %c0_i32 = arith.constant 0 : i32
    %c0_i32_0 = arith.constant 0 : i32
    %c0_i32_1 = arith.constant 0 : i32
    return %c0_i32, %c0_i32_0 : i32, i32
  }
  func.func @transform_8(%arg0: i32) -> (i32, i32) {
    %c0_i32 = arith.constant 0 : i32
    %c0_i32_0 = arith.constant 0 : i32
    %c0_i32_1 = arith.constant 0 : i32
    return %c0_i32, %c0_i32_0 : i32, i32
  }
  func.func @transform_9(%arg0: i32) -> (i32, i32, i32) {
    %c0_i32 = arith.constant 0 : i32
    %c0_i32_0 = arith.constant 0 : i32
    %c0_i32_1 = arith.constant 0 : i32
    %c0_i32_2 = arith.constant 0 : i32
    return %c0_i32, %c0_i32_0, %c0_i32_1 : i32, i32, i32
  }
  func.func @transform_10(%arg0: i32) -> (i32, i32) {
    %c0_i32 = arith.constant 0 : i32
    %c0_i32_0 = arith.constant 0 : i32
    %c0_i32_1 = arith.constant 0 : i32
    return %c0_i32, %c0_i32_0 : i32, i32
  }
  func.func @transform_11(%arg0: i32) -> (i32, i32) {
    %c0_i32 = arith.constant 0 : i32
    %c0_i32_0 = arith.constant 0 : i32
    %c0_i32_1 = arith.constant 0 : i32
    return %c0_i32, %c0_i32_0 : i32, i32
  }
  func.func @transform_12(%arg0: i32) -> (i32, i32) {
    %c0_i32 = arith.constant 0 : i32
    %c0_i32_0 = arith.constant 0 : i32
    %c0_i32_1 = arith.constant 0 : i32
    return %c0_i32, %c0_i32_0 : i32, i32
  }
  func.func @transform_13(%arg0: i32) -> (i32, i32, i32) {
    %c0_i32 = arith.constant 0 : i32
    %c0_i32_0 = arith.constant 0 : i32
    %c0_i32_1 = arith.constant 0 : i32
    return %arg0, %c0_i32, %c0_i32_0 : i32, i32, i32
  }
}

</mosaic_0001>

<llo_original>
// kernel: tpu_custom_call.1
$region0: #{tpu_custom_call.1}
  #allocation0 [shape = 'u32[]', space=smem, size = 0x4, offset = 0x4, fixed_abs, tag = 'smem constant byte address 0x4 - core index']
  #allocation1 [shape = 'u32[144,128]{1,0:T(1,128)}', space=vmem, size = 0x12000, scoped, tag = 'internal scratch']
  #allocation2 [shape = 'bf16[18,48,16]{2,1,0:T(16,128)(2,1)}', space=vmem, size = 0x36000, scoped, tag = 'scratch operand']
  %s0 = inlined_call_operand.vmem [shape: f32[2,256,8], index: 0, kind: input, shape index: {}]
  %s1 = inlined_call_operand.vmem [shape: f32[1,8], index: 1, kind: input, shape index: {}]
  %s2 = inlined_call_operand.vmem [shape: f32[1,8], index: 2, kind: input, shape index: {}]
  %s3 = inlined_call_operand.vmem [shape: f32[8,8], index: 3, kind: input, shape index: {}]
  %s4 = inlined_call_operand.vmem [shape: bf16[9,8,16], index: 4, kind: input, shape index: {}]
  %s5 = inlined_call_operand.vmem [shape: f32[1,16], index: 5, kind: input, shape index: {}]
  %s6 = inlined_call_operand.vmem [shape: f32[1,16], index: 6, kind: input, shape index: {}]
  %s7 = inlined_call_operand.vmem [shape: f32[1,16], index: 7, kind: input, shape index: {}]
  %s8 = inlined_call_operand.vmem [shape: f32[16,16], index: 8, kind: input, shape index: {}]
  %s9 = inlined_call_operand.vmem [shape: bf16[9,16,16], index: 9, kind: input, shape index: {}]
  %s10 = inlined_call_operand.vmem [shape: f32[1,16], index: 10, kind: input, shape index: {}]
  %s11 = inlined_call_operand.vmem [shape: bf16[8,16], index: 11, kind: input, shape index: {}]
  %s12 = inlined_call_operand.vmem [shape: f32[1,16], index: 12, kind: input, shape index: {}]
  %s13 = inlined_call_operand.vmem [shape: f32[2,256,16], index: 13, kind: output, shape index: {}]
  %s14 = sld [smem:[#allocation0]]
  $region85: #{tpu_custom_call.1} parent=0
    _
  %s16 = ssub.s32 1, %s14
  %s17 = scalar_select 0, %s16, %s14
  loop: start=0, step=1, limit=4
  $region2: #{tpu_custom_call.1} parent=0 // loop_pre_header
    _
  $region3: #{tpu_custom_call.1} parent=0 // loop_header
    %s19 = sphi 0, %s23
    %p20 = scmp.ge.s32.totalorder %s19, 4
    %s29 = sphi 0, %s31
    %s32 = sphi 0, %s29
    %s33 = sphi 0, %s32
    %s49 = sphi 0, %s33
    %s53 = sphi 0, %s53
    %s55 = sphi 0, %s53
    %s56 = sphi 0, %s55
    %s70 = sphi 0, %s56
    %s74 = sphi 0, %s74
    %s76 = sphi 0, %s74
    %s77 = sphi 0, %s76
    %s91 = sphi 0, %s77
    %s95 = sphi 0, %s95
    %s97 = sphi 0, %s95
    %s98 = sphi 0, %s97
    %s112 = sphi 0, %s98
    %s116 = sphi 0, %s116
    %s118 = sphi 0, %s116
    %s119 = sphi 0, %s118
    %s133 = sphi 0, %s119
    %s137 = sphi 0, %s137
    %s139 = sphi 0, %s137
    %s140 = sphi 0, %s139
    %s154 = sphi 0, %s140
    %s158 = sphi 0, %s158
    %s160 = sphi 0, %s158
    %s161 = sphi 0, %s160
    %s175 = sphi 0, %s161
    %s179 = sphi 0, %s179
    %s181 = sphi 0, %s179
    %s182 = sphi 0, %s181
    %s196 = sphi 0, %s182
    %s200 = sphi 0, %s200
    %s202 = sphi 0, %s200
    %s203 = sphi 0, %s202
    %s217 = sphi 0, %s203
    %s221 = sphi 0, %s221
    %s223 = sphi 0, %s221
    %s224 = sphi 0, %s223
    %s238 = sphi 0, %s224
    %s242 = sphi 0, %s242
    %s244 = sphi 0, %s242
    %s245 = sphi 0, %s244
    %s259 = sphi 0, %s245
    %s263 = sphi 0, %s263
    %s265 = sphi 0, %s263
    %s266 = sphi 0, %s265
    %s280 = sphi 0, %s266
    %s284 = sphi 0, %s284
    %s286 = sphi 0, %s284
    %s287 = sphi 0, %s286
    %s301 = sphi 0, %s287
    %s307 = sphi 0, %s309
    %s310 = sphi 0, %s307
    %s311 = sphi 0, %s310
    %s327 = sphi 0, %s311
  $region4: #{tpu_custom_call.1} parent=0 // loop_header_branch
    %22 = sbr.rel (%p20) target = $region8
  $region5: #{tpu_custom_call.1} parent=0 // loop_body
    %s24 = ssub.s32 %s19, 1
    %s25 = ssub.s32 %s19, 2
    %s26 = sadd.s32 %s19, 1
    %s27 = ssub.s32 %s19, %s26
    %p28 = scmp.eq.s32.totalorder %s27, 0
    %s30 = sadd.s32 %s29, 1
    %s31 = scalar_select %p28, %s29, %s30
    %p34 = pneg %p28
    %p35 = scmp.eq.s32.totalorder %s19, 1
    %p36 = por %p34, %p35
    %p37 = scmp.ne.s32.totalorder %s29, %s32
    %p38 = scmp.eq.s32.totalorder %s19, 0
    %p39 = por %p37, %p38
    %p40 = scmp.ne.s32.totalorder %s29, %s32
    %p41 = scmp.eq.s32.totalorder %s24, 1
    %p42 = por %p40, %p41
    %p43 = scmp.ne.s32.totalorder %s32, %s33
    %p44 = scmp.eq.s32.totalorder %s24, 0
    %p45 = por %p43, %p44
    %p46 = scmp.ne.s32.totalorder %s32, %s33
    %p47 = scmp.eq.s32.totalorder %s25, 1
    %p48 = por %p46, %p47
    %p50 = scmp.ne.s32.totalorder %s33, %s49
    %p51 = scmp.eq.s32.totalorder %s25, 0
    %p52 = por %p50, %p51
    %s54 = sadd.s32 %s53, 1
    %p57 = scmp.eq.s32.totalorder %s19, 1
    %p58 = scmp.ne.s32.totalorder %s53, %s55
    %p59 = scmp.eq.s32.totalorder %s19, 0
    %p60 = por %p58, %p59
    %p61 = scmp.ne.s32.totalorder %s53, %s55
    %p62 = scmp.eq.s32.totalorder %s24, 1
    %p63 = por %p61, %p62
    %p64 = scmp.ne.s32.totalorder %s55, %s56
    %p65 = scmp.eq.s32.totalorder %s24, 0
    %p66 = por %p64, %p65
    %p67 = scmp.ne.s32.totalorder %s55, %s56
    %p68 = scmp.eq.s32.totalorder %s25, 1
    %p69 = por %p67, %p68
    %p71 = scmp.ne.s32.totalorder %s56, %s70
    %p72 = scmp.eq.s32.totalorder %s25, 0
    %p73 = por %p71, %p72
    %s75 = sadd.s32 %s74, 1
    %p78 = scmp.eq.s32.totalorder %s19, 1
    %p79 = scmp.ne.s32.totalorder %s74, %s76
    %p80 = scmp.eq.s32.totalorder %s19, 0
    %p81 = por %p79, %p80
    %p82 = scmp.ne.s32.totalorder %s74, %s76
    %p83 = scmp.eq.s32.totalorder %s24, 1
    %p84 = por %p82, %p83
    %p85 = scmp.ne.s32.totalorder %s76, %s77
    %p86 = scmp.eq.s32.totalorder %s24, 0
    %p87 = por %p85, %p86
    %p88 = scmp.ne.s32.totalorder %s76, %s77
    %p89 = scmp.eq.s32.totalorder %s25, 1
    %p90 = por %p88, %p89
    %p92 = scmp.ne.s32.totalorder %s77, %s91
    %p93 = scmp.eq.s32.totalorder %s25, 0
    %p94 = por %p92, %p93
    %s96 = sadd.s32 %s95, 1
    %p99 = scmp.eq.s32.totalorder %s19, 1
    %p100 = scmp.ne.s32.totalorder %s95, %s97
    %p101 = scmp.eq.s32.totalorder %s19, 0
    %p102 = por %p100, %p101
    %p103 = scmp.ne.s32.totalorder %s95, %s97
    %p104 = scmp.eq.s32.totalorder %s24, 1
    %p105 = por %p103, %p104
    %p106 = scmp.ne.s32.totalorder %s97, %s98
    %p107 = scmp.eq.s32.totalorder %s24, 0
    %p108 = por %p106, %p107
    %p109 = scmp.ne.s32.totalorder %s97, %s98
    %p110 = scmp.eq.s32.totalorder %s25, 1
    %p111 = por %p109, %p110
    %p113 = scmp.ne.s32.totalorder %s98, %s112
    %p114 = scmp.eq.s32.totalorder %s25, 0
    %p115 = por %p113, %p114
    %s117 = sadd.s32 %s116, 1
    %p120 = scmp.eq.s32.totalorder %s19, 1
    %p121 = scmp.ne.s32.totalorder %s116, %s118
    %p122 = scmp.eq.s32.totalorder %s19, 0
    %p123 = por %p121, %p122
    %p124 = scmp.ne.s32.totalorder %s116, %s118
    %p125 = scmp.eq.s32.totalorder %s24, 1
    %p126 = por %p124, %p125
    %p127 = scmp.ne.s32.totalorder %s118, %s119
    %p128 = scmp.eq.s32.totalorder %s24, 0
    %p129 = por %p127, %p128
    %p130 = scmp.ne.s32.totalorder %s118, %s119
    %p131 = scmp.eq.s32.totalorder %s25, 1
    %p132 = por %p130, %p131
    %p134 = scmp.ne.s32.totalorder %s119, %s133
    %p135 = scmp.eq.s32.totalorder %s25, 0
    %p136 = por %p134, %p135
    %s138 = sadd.s32 %s137, 1
    %p141 = scmp.eq.s32.totalorder %s19, 1
    %p142 = scmp.ne.s32.totalorder %s137, %s139
    %p143 = scmp.eq.s32.totalorder %s19, 0
    %p144 = por %p142, %p143
    %p145 = scmp.ne.s32.totalorder %s137, %s139
    %p146 = scmp.eq.s32.totalorder %s24, 1
    %p147 = por %p145, %p146
    %p148 = scmp.ne.s32.totalorder %s139, %s140
    %p149 = scmp.eq.s32.totalorder %s24, 0
    %p150 = por %p148, %p149
    %p151 = scmp.ne.s32.totalorder %s139, %s140
    %p152 = scmp.eq.s32.totalorder %s25, 1
    %p153 = por %p151, %p152
    %p155 = scmp.ne.s32.totalorder %s140, %s154
    %p156 = scmp.eq.s32.totalorder %s25, 0
    %p157 = por %p155, %p156
    %s159 = sadd.s32 %s158, 1
    %p162 = scmp.eq.s32.totalorder %s19, 1
    %p163 = scmp.ne.s32.totalorder %s158, %s160
    %p164 = scmp.eq.s32.totalorder %s19, 0
    %p165 = por %p163, %p164
    %p166 = scmp.ne.s32.totalorder %s158, %s160
    %p167 = scmp.eq.s32.totalorder %s24, 1
    %p168 = por %p166, %p167
    %p169 = scmp.ne.s32.totalorder %s160, %s161
    %p170 = scmp.eq.s32.totalorder %s24, 0
    %p171 = por %p169, %p170
    %p172 = scmp.ne.s32.totalorder %s160, %s161
    %p173 = scmp.eq.s32.totalorder %s25, 1
    %p174 = por %p172, %p173
    %p176 = scmp.ne.s32.totalorder %s161, %s175
    %p177 = scmp.eq.s32.totalorder %s25, 0
    %p178 = por %p176, %p177
    %s180 = sadd.s32 %s179, 1
    %p183 = scmp.eq.s32.totalorder %s19, 1
    %p184 = scmp.ne.s32.totalorder %s179, %s181
    %p185 = scmp.eq.s32.totalorder %s19, 0
    %p186 = por %p184, %p185
    %p187 = scmp.ne.s32.totalorder %s179, %s181
    %p188 = scmp.eq.s32.totalorder %s24, 1
    %p189 = por %p187, %p188
    %p190 = scmp.ne.s32.totalorder %s181, %s182
    %p191 = scmp.eq.s32.totalorder %s24, 0
    %p192 = por %p190, %p191
    %p193 = scmp.ne.s32.totalorder %s181, %s182
    %p194 = scmp.eq.s32.totalorder %s25, 1
    %p195 = por %p193, %p194
    %p197 = scmp.ne.s32.totalorder %s182, %s196
    %p198 = scmp.eq.s32.totalorder %s25, 0
    %p199 = por %p197, %p198
    %s201 = sadd.s32 %s200, 1
    %p204 = scmp.eq.s32.totalorder %s19, 1
    %p205 = scmp.ne.s32.totalorder %s200, %s202
    %p206 = scmp.eq.s32.totalorder %s19, 0
    %p207 = por %p205, %p206
    %p208 = scmp.ne.s32.totalorder %s200, %s202
    %p209 = scmp.eq.s32.totalorder %s24, 1
    %p210 = por %p208, %p209
    %p211 = scmp.ne.s32.totalorder %s202, %s203
    %p212 = scmp.eq.s32.totalorder %s24, 0
    %p213 = por %p211, %p212
    %p214 = scmp.ne.s32.totalorder %s202, %s203
    %p215 = scmp.eq.s32.totalorder %s25, 1
    %p216 = por %p214, %p215
    %p218 = scmp.ne.s32.totalorder %s203, %s217
    %p219 = scmp.eq.s32.totalorder %s25, 0
    %p220 = por %p218, %p219
    %s222 = sadd.s32 %s221, 1
    %p225 = scmp.eq.s32.totalorder %s19, 1
    %p226 = scmp.ne.s32.totalorder %s221, %s223
    %p227 = scmp.eq.s32.totalorder %s19, 0
    %p228 = por %p226, %p227
    %p229 = scmp.ne.s32.totalorder %s221, %s223
    %p230 = scmp.eq.s32.totalorder %s24, 1
    %p231 = por %p229, %p230
    %p232 = scmp.ne.s32.totalorder %s223, %s224
    %p233 = scmp.eq.s32.totalorder %s24, 0
    %p234 = por %p232, %p233
    %p235 = scmp.ne.s32.totalorder %s223, %s224
    %p236 = scmp.eq.s32.totalorder %s25, 1
    %p237 = por %p235, %p236
    %p239 = scmp.ne.s32.totalorder %s224, %s238
    %p240 = scmp.eq.s32.totalorder %s25, 0
    %p241 = por %p239, %p240
    %s243 = sadd.s32 %s242, 1
    %p246 = scmp.eq.s32.totalorder %s19, 1
    %p247 = scmp.ne.s32.totalorder %s242, %s244
    %p248 = scmp.eq.s32.totalorder %s19, 0
    %p249 = por %p247, %p248
    %p250 = scmp.ne.s32.totalorder %s242, %s244
    %p251 = scmp.eq.s32.totalorder %s24, 1
    %p252 = por %p250, %p251
    %p253 = scmp.ne.s32.totalorder %s244, %s245
    %p254 = scmp.eq.s32.totalorder %s24, 0
    %p255 = por %p253, %p254
    %p256 = scmp.ne.s32.totalorder %s244, %s245
    %p257 = scmp.eq.s32.totalorder %s25, 1
    %p258 = por %p256, %p257
    %p260 = scmp.ne.s32.totalorder %s245, %s259
    %p261 = scmp.eq.s32.totalorder %s25, 0
    %p262 = por %p260, %p261
    %s264 = sadd.s32 %s263, 1
    %p267 = scmp.eq.s32.totalorder %s19, 1
    %p268 = scmp.ne.s32.totalorder %s263, %s265
    %p269 = scmp.eq.s32.totalorder %s19, 0
    %p270 = por %p268, %p269
    %p271 = scmp.ne.s32.totalorder %s263, %s265
    %p272 = scmp.eq.s32.totalorder %s24, 1
    %p273 = por %p271, %p272
    %p274 = scmp.ne.s32.totalorder %s265, %s266
    %p275 = scmp.eq.s32.totalorder %s24, 0
    %p276 = por %p274, %p275
    %p277 = scmp.ne.s32.totalorder %s265, %s266
    %p278 = scmp.eq.s32.totalorder %s25, 1
    %p279 = por %p277, %p278
    %p281 = scmp.ne.s32.totalorder %s266, %s280
    %p282 = scmp.eq.s32.totalorder %s25, 0
    %p283 = por %p281, %p282
    %s285 = sadd.s32 %s284, 1
    %p288 = scmp.eq.s32.totalorder %s19, 1
    %p289 = scmp.ne.s32.totalorder %s284, %s286
    %p290 = scmp.eq.s32.totalorder %s19, 0
    %p291 = por %p289, %p290
    %p292 = scmp.ne.s32.totalorder %s284, %s286
    %p293 = scmp.eq.s32.totalorder %s24, 1
    %p294 = por %p292, %p293
    %p295 = scmp.ne.s32.totalorder %s286, %s287
    %p296 = scmp.eq.s32.totalorder %s24, 0
    %p297 = por %p295, %p296
    %p298 = scmp.ne.s32.totalorder %s286, %s287
    %p299 = scmp.eq.s32.totalorder %s25, 1
    %p300 = por %p298, %p299
    %p302 = scmp.ne.s32.totalorder %s287, %s301
    %p303 = scmp.eq.s32.totalorder %s25, 0
    %p304 = por %p302, %p303
    %s305 = ssub.s32 %s19, %s26
    %p306 = scmp.eq.s32.totalorder %s305, 0
    %s308 = sadd.s32 %s307, 1
    %s309 = scalar_select %p306, %s307, %s308
    %p312 = pneg %p306
    %p313 = scmp.eq.s32.totalorder %s19, 1
    %p314 = por %p312, %p313
    %p315 = scmp.ne.s32.totalorder %s307, %s310
    %p316 = scmp.eq.s32.totalorder %s19, 0
    %p317 = por %p315, %p316
    %p318 = scmp.ne.s32.totalorder %s307, %s310
    %p319 = scmp.eq.s32.totalorder %s24, 1
    %p320 = por %p318, %p319
    %p321 = scmp.ne.s32.totalorder %s310, %s311
    %p322 = scmp.eq.s32.totalorder %s24, 0
    %p323 = por %p321, %p322
    %p324 = scmp.ne.s32.totalorder %s310, %s311
    %p325 = scmp.eq.s32.totalorder %s25, 1
    %p326 = por %p324, %p325
    %p328 = scmp.ne.s32.totalorder %s311, %s327
    %p329 = scmp.eq.s32.totalorder %s25, 0
    %p330 = por %p328, %p329
    %p331 = scmp.le.s32.totalorder 1, %s19
    %p332 = scmp.lt.s32.totalorder %s19, 3
    %p333 = pnand %p331, %p332
    %p334 = pneg %p333
    // Predicated region
    $region9: #{tpu_custom_call.1} parent=5 // pred_check
      _
    $region10: #{tpu_custom_call.1} parent=5 // pred_check_branch
      %336 = sbr.rel (%p333) target = $region12
    $region11: #{tpu_custom_call.1} parent=5 // pred_region
      %s337 = ssub.s32 %s19, 1
      // Predicated region
      $region13: #{tpu_custom_call.1} parent=11 // pred_check
        %p338 = pneg %p66
      $region14: #{tpu_custom_call.1} parent=11 // pred_check_branch
        %340 = sbr.rel (%p338) target = $region16
      $region15: #{tpu_custom_call.1} parent=11 // pred_region
        _
      $region16: #{tpu_custom_call.1} parent=11 // pred_fallthru
        _
      // Predicated region
      $region17: #{tpu_custom_call.1} parent=11 // pred_check
        %p341 = pneg %p87
      $region18: #{tpu_custom_call.1} parent=11 // pred_check_branch
        %343 = sbr.rel (%p341) target = $region20
      $region19: #{tpu_custom_call.1} parent=11 // pred_region
        _
      $region20: #{tpu_custom_call.1} parent=11 // pred_fallthru
        _
      // Predicated region
      $region21: #{tpu_custom_call.1} parent=11 // pred_check
        %p344 = pneg %p108
      $region22: #{tpu_custom_call.1} parent=11 // pred_check_branch
        %346 = sbr.rel (%p344) target = $region24
      $region23: #{tpu_custom_call.1} parent=11 // pred_region
        _
      $region24: #{tpu_custom_call.1} parent=11 // pred_fallthru
        _
      // Predicated region
      $region25: #{tpu_custom_call.1} parent=11 // pred_check
        %p347 = pneg %p129
      $region26: #{tpu_custom_call.1} parent=11 // pred_check_branch
        %349 = sbr.rel (%p347) target = $region28
      $region27: #{tpu_custom_call.1} parent=11 // pred_region
        _
      $region28: #{tpu_custom_call.1} parent=11 // pred_fallthru
        _
      // Predicated region
      $region29: #{tpu_custom_call.1} parent=11 // pred_check
        %p350 = pneg %p150
      $region30: #{tpu_custom_call.1} parent=11 // pred_check_branch
        %352 = sbr.rel (%p350) target = $region32
      $region31: #{tpu_custom_call.1} parent=11 // pred_region
        _
      $region32: #{tpu_custom_call.1} parent=11 // pred_fallthru
        _
      // Predicated region
      $region33: #{tpu_custom_call.1} parent=11 // pred_check
        %p353 = pneg %p171
      $region34: #{tpu_custom_call.1} parent=11 // pred_check_branch
        %355 = sbr.rel (%p353) target = $region36
      $region35: #{tpu_custom_call.1} parent=11 // pred_region
        _
      $region36: #{tpu_custom_call.1} parent=11 // pred_fallthru
        _
      // Predicated region
      $region37: #{tpu_custom_call.1} parent=11 // pred_check
        %p356 = pneg %p192
      $region38: #{tpu_custom_call.1} parent=11 // pred_check_branch
        %358 = sbr.rel (%p356) target = $region40
      $region39: #{tpu_custom_call.1} parent=11 // pred_region
        _
      $region40: #{tpu_custom_call.1} parent=11 // pred_fallthru
        _
      // Predicated region
      $region41: #{tpu_custom_call.1} parent=11 // pred_check
        %p359 = pneg %p213
      $region42: #{tpu_custom_call.1} parent=11 // pred_check_branch
        %361 = sbr.rel (%p359) target = $region44
      $region43: #{tpu_custom_call.1} parent=11 // pred_region
        _
      $region44: #{tpu_custom_call.1} parent=11 // pred_fallthru
        _
      // Predicated region
      $region45: #{tpu_custom_call.1} parent=11 // pred_check
        %p362 = pneg %p234
      $region46: #{tpu_custom_call.1} parent=11 // pred_check_branch
        %364 = sbr.rel (%p362) target = $region48
      $region47: #{tpu_custom_call.1} parent=11 // pred_region
        _
      $region48: #{tpu_custom_call.1} parent=11 // pred_fallthru
        _
      // Predicated region
      $region49: #{tpu_custom_call.1} parent=11 // pred_check
        %p365 = pneg %p255
      $region50: #{tpu_custom_call.1} parent=11 // pred_check_branch
        %367 = sbr.rel (%p365) target = $region52
      $region51: #{tpu_custom_call.1} parent=11 // pred_region
        _
      $region52: #{tpu_custom_call.1} parent=11 // pred_fallthru
        _
      // Predicated region
      $region53: #{tpu_custom_call.1} parent=11 // pred_check
        %p368 = pneg %p276
      $region54: #{tpu_custom_call.1} parent=11 // pred_check_branch
        %370 = sbr.rel (%p368) target = $region56
      $region55: #{tpu_custom_call.1} parent=11 // pred_region
        _
      $region56: #{tpu_custom_call.1} parent=11 // pred_fallthru
        _
      // Predicated region
      $region57: #{tpu_custom_call.1} parent=11 // pred_check
        %p371 = pneg %p297
      $region58: #{tpu_custom_call.1} parent=11 // pred_check_branch
        %373 = sbr.rel (%p371) target = $region60
      $region59: #{tpu_custom_call.1} parent=11 // pred_region
        _
      $region60: #{tpu_custom_call.1} parent=11 // pred_fallthru
        _
    $region12: #{tpu_custom_call.1} parent=5 // pred_fallthru
      _
    %p374 = scmp.lt.s32.totalorder %s19, 2
    // Predicated region
    $region61: #{tpu_custom_call.1} parent=5 // pred_check
      %p375 = pneg %p374
    $region62: #{tpu_custom_call.1} parent=5 // pred_check_branch
      %377 = sbr.rel (%p375) target = $region64
    $region63: #{tpu_custom_call.1} parent=5 // pred_region
      // Predicated region
      $region65: #{tpu_custom_call.1} parent=63 // pred_check
        %p378 = pneg %p39
      $region66: #{tpu_custom_call.1} parent=63 // pred_check_branch
        %380 = sbr.rel (%p378) target = $region68
      $region67: #{tpu_custom_call.1} parent=63 // pred_region
        %p381 = scmp.lt.s32.totalorder %s19, 1
        %s382 = scalar_select %p381, %s19, 1
        %s383 = smul.addr %s382, 32
        %s384 = smul.addr %s383, 8
        %s385 = scalar_lea.vmem %s0, %s384
      $region68: #{tpu_custom_call.1} parent=63 // pred_fallthru
        _
    $region64: #{tpu_custom_call.1} parent=5 // pred_fallthru
      _
    %p386 = scmp.le.s32.totalorder 1, %s19
    %p387 = scmp.lt.s32.totalorder %s19, 3
    %p388 = pnand %p386, %p387
    %p389 = pneg %p388
    // Predicated region
    $region69: #{tpu_custom_call.1} parent=5 // pred_check
      _
    $region70: #{tpu_custom_call.1} parent=5 // pred_check_branch
      %391 = sbr.rel (%p388) target = $region72
    $region71: #{tpu_custom_call.1} parent=5 // pred_region
      %s392 = ssub.s32 %s19, 1
      %p393 = scmp.lt.s32.totalorder %s24, 1
      %s394 = scalar_select %p393, %s24, 1
      %s395 = smul.addr %s394, 32
      %s396 = smul.addr %s395, 8
      %s397 = scalar_lea.vmem %s0, %s396
      %p398 = pneg %p45
      %p399 = pneg %p42
      %p400 = pneg %p66
      %p401 = pneg %p63
      %p402 = pneg %p87
      %p403 = pneg %p84
      %p404 = pneg %p108
      %p405 = pneg %p105
      %p406 = pneg %p129
      %p407 = pneg %p126
      %p408 = pneg %p150
      %p409 = pneg %p147
      %p410 = pneg %p171
      %p411 = pneg %p168
      %p412 = pneg %p192
      %p413 = pneg %p189
      %p414 = pneg %p213
      %p415 = pneg %p210
      %p416 = pneg %p234
      %p417 = pneg %p231
      %p418 = pneg %p255
      %p419 = pneg %p252
      %p420 = pneg %p276
      %p421 = pneg %p273
      %p422 = pneg %p297
      %p423 = pneg %p294
      %p424 = pneg %p323
      %p425 = pneg %p320
      %p426 = scmp.lt.s32.totalorder %s24, 1
      %s427 = scalar_select %p426, %s24, 1
      %s428 = smul.addr %s427, 32
      %s429 = smul.addr %s428, 8
      %s430 = scalar_lea.vmem %s13, %s429
      %p431 = scmp.lt.s32.totalorder %s24, 1
      %s432 = scalar_select %p431, %s24, 1
      %s433 = smul.addr %s432, 32
      %s434 = smul.addr %s433, 8
      %s435 = scalar_lea.vmem %s0, %s434
      %p436 = scmp.lt.s32.totalorder %s24, 1
      %s437 = scalar_select %p436, %s24, 1
      %s438 = smul.addr %s437, 32
      %s439 = smul.addr %s438, 8
      %s440 = scalar_lea.vmem %s13, %s439
      %vm442 = vcmask 130048
      %443 = vst.msk [vmem:[#allocation2] sm:$0xff] %vm442, 0
      %444 = vst.msk [vmem:[#allocation2 + $0x8] sm:$0xff] %vm442, 0
      %445 = vst.msk [vmem:[#allocation2 + $0x10] sm:$0xff] %vm442, 0
      %s446 = scalar_lea.vmem [#allocation2], 408
      %447 = vst.msk [vmem:[%s446] sm:$0xff] %vm442, 0
      %448 = vst.msk [vmem:[%s446 + $0x8] sm:$0xff] %vm442, 0
      %449 = vst.msk [vmem:[%s446 + $0x10] sm:$0xff] %vm442, 0
      %vm450 = vcmask 130055
      %vm451 = vsmask.f32 7966
      %vm452 = vmand %vm450, %vm451
      %v453 = vld [vmem:[#allocation2] sm:$0x80]
      %v454 = vsel %vm452, 0, %v453
      %455 = vst [vmem:[#allocation2] sm:$0x80] %v454
      %v456 = vld [vmem:[#allocation2 + $0x18] sm:$0x80]
      %v457 = vsel %vm452, 0, %v456
      %458 = vst [vmem:[#allocation2 + $0x18] sm:$0x80] %v457
      %v459 = vld [vmem:[#allocation2 + $0x30] sm:$0x80]
      %v460 = vsel %vm452, 0, %v459
      %461 = vst [vmem:[#allocation2 + $0x30] sm:$0x80] %v460
      %v462 = vld [vmem:[#allocation2 + $0x48] sm:$0x80]
      %v463 = vsel %vm452, 0, %v462
      %464 = vst [vmem:[#allocation2 + $0x48] sm:$0x80] %v463
      %v465 = vld [vmem:[#allocation2 + $0x60] sm:$0x80]
      %v466 = vsel %vm452, 0, %v465
      %467 = vst [vmem:[#allocation2 + $0x60] sm:$0x80] %v466
      %v468 = vld [vmem:[#allocation2 + $0x78] sm:$0x80]
      %v469 = vsel %vm452, 0, %v468
      %470 = vst [vmem:[#allocation2 + $0x78] sm:$0x80] %v469
      %v471 = vld [vmem:[#allocation2 + $0x90] sm:$0x80]
      %v472 = vsel %vm452, 0, %v471
      %473 = vst [vmem:[#allocation2 + $0x90] sm:$0x80] %v472
      %v474 = vld [vmem:[#allocation2 + $0xa8] sm:$0x80]
      %v475 = vsel %vm452, 0, %v474
      %476 = vst [vmem:[#allocation2 + $0xa8] sm:$0x80] %v475
      %v477 = vld [vmem:[#allocation2 + $0xc0] sm:$0x80]
      %v478 = vsel %vm452, 0, %v477
      %479 = vst [vmem:[#allocation2 + $0xc0] sm:$0x80] %v478
      %v480 = vld [vmem:[#allocation2 + $0xd8] sm:$0x80]
      %v481 = vsel %vm452, 0, %v480
      %482 = vst [vmem:[#allocation2 + $0xd8] sm:$0x80] %v481
      %v483 = vld [vmem:[#allocation2 + $0xf0] sm:$0x80]
      %v484 = vsel %vm452, 0, %v483
      %485 = vst [vmem:[#allocation2 + $0xf0] sm:$0x80] %v484
      %v486 = vld [vmem:[#allocation2 + $0x108] sm:$0x80]
      %v487 = vsel %vm452, 0, %v486
      %488 = vst [vmem:[#allocation2 + $0x108] sm:$0x80] %v487
      %v489 = vld [vmem:[#allocation2 + $0x120] sm:$0x80]
      %v490 = vsel %vm452, 0, %v489
      %491 = vst [vmem:[#allocation2 + $0x120] sm:$0x80] %v490
      %v492 = vld [vmem:[#allocation2 + $0x138] sm:$0x80]
      %v493 = vsel %vm452, 0, %v492
      %494 = vst [vmem:[#allocation2 + $0x138] sm:$0x80] %v493
      %v495 = vld [vmem:[#allocation2 + $0x150] sm:$0x80]
      %v496 = vsel %vm452, 0, %v495
      %497 = vst [vmem:[#allocation2 + $0x150] sm:$0x80] %v496
      %v498 = vld [vmem:[#allocation2 + $0x168] sm:$0x80]
      %v499 = vsel %vm452, 0, %v498
      %500 = vst [vmem:[#allocation2 + $0x168] sm:$0x80] %v499
      %v501 = vld [vmem:[#allocation2 + $0x180] sm:$0x80]
      %v502 = vsel %vm452, 0, %v501
      %503 = vst [vmem:[#allocation2 + $0x180] sm:$0x80] %v502
      %v504 = vld [vmem:[#allocation2 + $0x198] sm:$0x80]
      %v505 = vsel %vm452, 0, %v504
      %506 = vst [vmem:[#allocation2 + $0x198] sm:$0x80] %v505
      %vm507 = vcmask 122880
      %vm508 = vsmask.f32 256
      %vm509 = vmand %vm507, %vm508
      %v510 = vld [vmem:[#allocation2 + $0x10] sm:$0x1]
      %v511 = vsel %vm509, 0, %v510
      %512 = vst [vmem:[#allocation2 + $0x10] sm:$0x1] %v511
      %v513 = vld [vmem:[#allocation2 + $0x28] sm:$0x1]
      %v514 = vsel %vm509, 0, %v513
      %515 = vst [vmem:[#allocation2 + $0x28] sm:$0x1] %v514
      %v516 = vld [vmem:[#allocation2 + $0x40] sm:$0x1]
      %v517 = vsel %vm509, 0, %v516
      %518 = vst [vmem:[#allocation2 + $0x40] sm:$0x1] %v517
      %v519 = vld [vmem:[#allocation2 + $0x58] sm:$0x1]
      %v520 = vsel %vm509, 0, %v519
      %521 = vst [vmem:[#allocation2 + $0x58] sm:$0x1] %v520
      %v522 = vld [vmem:[#allocation2 + $0x70] sm:$0x1]
      %v523 = vsel %vm509, 0, %v522
      %524 = vst [vmem:[#allocation2 + $0x70] sm:$0x1] %v523
      %v525 = vld [vmem:[#allocation2 + $0x88] sm:$0x1]
      %v526 = vsel %vm509, 0, %v525
      %527 = vst [vmem:[#allocation2 + $0x88] sm:$0x1] %v526
      %v528 = vld [vmem:[#allocation2 + $0xa0] sm:$0x1]
      %v529 = vsel %vm509, 0, %v528
      %530 = vst [vmem:[#allocation2 + $0xa0] sm:$0x1] %v529
      %v531 = vld [vmem:[#allocation2 + $0xb8] sm:$0x1]
      %v532 = vsel %vm509, 0, %v531
      %533 = vst [vmem:[#allocation2 + $0xb8] sm:$0x1] %v532
      %v534 = vld [vmem:[#allocation2 + $0xd0] sm:$0x1]
      %v535 = vsel %vm509, 0, %v534
      %536 = vst [vmem:[#allocation2 + $0xd0] sm:$0x1] %v535
      %v537 = vld [vmem:[#allocation2 + $0xe8] sm:$0x1]
      %v538 = vsel %vm509, 0, %v537
      %539 = vst [vmem:[#allocation2 + $0xe8] sm:$0x1] %v538
      %v540 = vld [vmem:[#allocation2 + $0x100] sm:$0x1]
      %v541 = vsel %vm509, 0, %v540
      %542 = vst [vmem:[#allocation2 + $0x100] sm:$0x1] %v541
      %v543 = vld [vmem:[#allocation2 + $0x118] sm:$0x1]
      %v544 = vsel %vm509, 0, %v543
      %545 = vst [vmem:[#allocation2 + $0x118] sm:$0x1] %v544
      %v546 = vld [vmem:[#allocation2 + $0x130] sm:$0x1]
      %v547 = vsel %vm509, 0, %v546
      %548 = vst [vmem:[#allocation2 + $0x130] sm:$0x1] %v547
      %v549 = vld [vmem:[#allocation2 + $0x148] sm:$0x1]
      %v550 = vsel %vm509, 0, %v549
      %551 = vst [vmem:[#allocation2 + $0x148] sm:$0x1] %v550
      %v552 = vld [vmem:[#allocation2 + $0x160] sm:$0x1]
      %v553 = vsel %vm509, 0, %v552
      %554 = vst [vmem:[#allocation2 + $0x160] sm:$0x1] %v553
      %v555 = vld [vmem:[#allocation2 + $0x178] sm:$0x1]
      %v556 = vsel %vm509, 0, %v555
      %557 = vst [vmem:[#allocation2 + $0x178] sm:$0x1] %v556
      %v558 = vld [vmem:[#allocation2 + $0x190] sm:$0x1]
      %v559 = vsel %vm509, 0, %v558
      %560 = vst [vmem:[#allocation2 + $0x190] sm:$0x1] %v559
      %v561 = vld [vmem:[#allocation2 + $0x1a8] sm:$0x1]
      %v562 = vsel %vm509, 0, %v561
      %563 = vst [vmem:[#allocation2 + $0x1a8] sm:$0x1] %v562
      %v564 = vld [vmem:[%s435] sm:$0xff]
      %v565 = vld [vmem:[%s435 + $0x8] sm:$0xff]
      %v566 = vld [vmem:[%s435 + $0x10] sm:$0xff]
      %v567 = vld [vmem:[%s435 + $0x18] sm:$0xff]
      %v568 = vld [vmem:[%s435 + $0x20] sm:$0xff]
      %v569 = vld [vmem:[%s435 + $0x28] sm:$0xff]
      %v570 = vld [vmem:[%s435 + $0x30] sm:$0xff]
      %v571 = vld [vmem:[%s435 + $0x38] sm:$0xff]
      %v572 = vld [vmem:[%s435 + $0x40] sm:$0xff]
      %v573 = vld [vmem:[%s435 + $0x48] sm:$0xff]
      %v574 = vld [vmem:[%s435 + $0x50] sm:$0xff]
      %v575 = vld [vmem:[%s435 + $0x58] sm:$0xff]
      %v576 = vld [vmem:[%s435 + $0x60] sm:$0xff]
      %v577 = vld [vmem:[%s435 + $0x68] sm:$0xff]
      %v578 = vld [vmem:[%s435 + $0x70] sm:$0xff]
      %v579 = vld [vmem:[%s435 + $0x78] sm:$0xff]
      %v580 = vld [vmem:[%s435 + $0x80] sm:$0xff]
      %v581 = vld [vmem:[%s435 + $0x88] sm:$0xff]
      %v582 = vld [vmem:[%s435 + $0x90] sm:$0xff]
      %v583 = vld [vmem:[%s435 + $0x98] sm:$0xff]
      %v584 = vld [vmem:[%s435 + $0xa0] sm:$0xff]
      %v585 = vld [vmem:[%s435 + $0xa8] sm:$0xff]
      %v586 = vld [vmem:[%s435 + $0xb0] sm:$0xff]
      %v587 = vld [vmem:[%s435 + $0xb8] sm:$0xff]
      %v588 = vld [vmem:[%s435 + $0xc0] sm:$0xff]
      %v589 = vld [vmem:[%s435 + $0xc8] sm:$0xff]
      %v590 = vld [vmem:[%s435 + $0xd0] sm:$0xff]
      %v591 = vld [vmem:[%s435 + $0xd8] sm:$0xff]
      %v592 = vld [vmem:[%s435 + $0xe0] sm:$0xff]
      %v593 = vld [vmem:[%s435 + $0xe8] sm:$0xff]
      %v594 = vld [vmem:[%s435 + $0xf0] sm:$0xff]
      %v595 = vld [vmem:[%s435 + $0xf8] sm:$0xff]
      %vm596 = vcmask 64512
      %v597 = vsel %vm596, %v564, 0.0
      %v598 = vsel %vm596, %v565, 0.0
      %v599 = vadd.f32 %v597, %v598
      %v600 = vsel %vm596, %v566, 0.0
      %v601 = vadd.f32 %v599, %v600
      %v602 = vsel %vm596, %v567, 0.0
      %v603 = vadd.f32 %v601, %v602
      %v604 = vsel %vm596, %v568, 0.0
      %v605 = vadd.f32 %v603, %v604
      %v606 = vsel %vm596, %v569, 0.0
      %v607 = vadd.f32 %v605, %v606
      %v608 = vsel %vm596, %v570, 0.0
      %v609 = vadd.f32 %v607, %v608
      %v610 = vsel %vm596, %v571, 0.0
      %v611 = vadd.f32 %v609, %v610
      %v612 = vsel %vm596, %v572, 0.0
      %v613 = vadd.f32 %v611, %v612
      %v614 = vsel %vm596, %v573, 0.0
      %v615 = vadd.f32 %v613, %v614
      %v616 = vsel %vm596, %v574, 0.0
      %v617 = vadd.f32 %v615, %v616
      %v618 = vsel %vm596, %v575, 0.0
      %v619 = vadd.f32 %v617, %v618
      %v620 = vsel %vm596, %v576, 0.0
      %v621 = vadd.f32 %v619, %v620
      %v622 = vsel %vm596, %v577, 0.0
      %v623 = vadd.f32 %v621, %v622
      %v624 = vsel %vm596, %v578, 0.0
      %v625 = vadd.f32 %v623, %v624
      %v626 = vsel %vm596, %v579, 0.0
      %v627 = vadd.f32 %v625, %v626
      %v628 = vsel %vm596, %v580, 0.0
      %v629 = vadd.f32 %v627, %v628
      %v630 = vsel %vm596, %v581, 0.0
      %v631 = vadd.f32 %v629, %v630
      %v632 = vsel %vm596, %v582, 0.0
      %v633 = vadd.f32 %v631, %v632
      %v634 = vsel %vm596, %v583, 0.0
      %v635 = vadd.f32 %v633, %v634
      %v636 = vsel %vm596, %v584, 0.0
      %v637 = vadd.f32 %v635, %v636
      %v638 = vsel %vm596, %v585, 0.0
      %v639 = vadd.f32 %v637, %v638
      %v640 = vsel %vm596, %v586, 0.0
      %v641 = vadd.f32 %v639, %v640
      %v642 = vsel %vm596, %v587, 0.0
      %v643 = vadd.f32 %v641, %v642
      %v644 = vsel %vm596, %v588, 0.0
      %v645 = vadd.f32 %v643, %v644
      %v646 = vsel %vm596, %v589, 0.0
      %v647 = vadd.f32 %v645, %v646
      %v648 = vsel %vm596, %v590, 0.0
      %v649 = vadd.f32 %v647, %v648
      %v650 = vsel %vm596, %v591, 0.0
      %v651 = vadd.f32 %v649, %v650
      %v652 = vsel %vm596, %v592, 0.0
      %v653 = vadd.f32 %v651, %v652
      %v654 = vsel %vm596, %v593, 0.0
      %v655 = vadd.f32 %v653, %v654
      %v656 = vsel %vm596, %v594, 0.0
      %v657 = vadd.f32 %v655, %v656
      %v658 = vsel %vm596, %v595, 0.0
      %v659 = vadd.f32 %v657, %v658
      %v660 = vrot.slane %v659, 4
      %v661 = vadd.f32 %v659, %v660
      %v662 = vrot.slane %v661, 2
      %v663 = vadd.f32 %v661, %v662
      %v664 = vrot.slane %v663, 1
      %v665 = vadd.f32 %v663, %v664
      %v666 = vmul.f32 %v564, %v564
      %v667 = vmul.f32 %v565, %v565
      %v668 = vmul.f32 %v566, %v566
      %v669 = vmul.f32 %v567, %v567
      %v670 = vmul.f32 %v568, %v568
      %v671 = vmul.f32 %v569, %v569
      %v672 = vmul.f32 %v570, %v570
      %v673 = vmul.f32 %v571, %v571
      %v674 = vmul.f32 %v572, %v572
      %v675 = vmul.f32 %v573, %v573
      %v676 = vmul.f32 %v574, %v574
      %v677 = vmul.f32 %v575, %v575
      %v678 = vmul.f32 %v576, %v576
      %v679 = vmul.f32 %v577, %v577
      %v680 = vmul.f32 %v578, %v578
      %v681 = vmul.f32 %v579, %v579
      %v682 = vmul.f32 %v580, %v580
      %v683 = vmul.f32 %v581, %v581
      %v684 = vmul.f32 %v582, %v582
      %v685 = vmul.f32 %v583, %v583
      %v686 = vmul.f32 %v584, %v584
      %v687 = vmul.f32 %v585, %v585
      %v688 = vmul.f32 %v586, %v586
      %v689 = vmul.f32 %v587, %v587
      %v690 = vmul.f32 %v588, %v588
      %v691 = vmul.f32 %v589, %v589
      %v692 = vmul.f32 %v590, %v590
      %v693 = vmul.f32 %v591, %v591
      %v694 = vmul.f32 %v592, %v592
      %v695 = vmul.f32 %v593, %v593
      %v696 = vmul.f32 %v594, %v594
      %v697 = vmul.f32 %v595, %v595
      %v698 = vsel %vm596, %v666, 0.0
      %v699 = vsel %vm596, %v667, 0.0
      %v700 = vadd.f32 %v698, %v699
      %v701 = vsel %vm596, %v668, 0.0
      %v702 = vadd.f32 %v700, %v701
      %v703 = vsel %vm596, %v669, 0.0
      %v704 = vadd.f32 %v702, %v703
      %v705 = vsel %vm596, %v670, 0.0
      %v706 = vadd.f32 %v704, %v705
      %v707 = vsel %vm596, %v671, 0.0
      %v708 = vadd.f32 %v706, %v707
      %v709 = vsel %vm596, %v672, 0.0
      %v710 = vadd.f32 %v708, %v709
      %v711 = vsel %vm596, %v673, 0.0
      %v712 = vadd.f32 %v710, %v711
      %v713 = vsel %vm596, %v674, 0.0
      %v714 = vadd.f32 %v712, %v713
      %v715 = vsel %vm596, %v675, 0.0
      %v716 = vadd.f32 %v714, %v715
      %v717 = vsel %vm596, %v676, 0.0
      %v718 = vadd.f32 %v716, %v717
      %v719 = vsel %vm596, %v677, 0.0
      %v720 = vadd.f32 %v718, %v719
      %v721 = vsel %vm596, %v678, 0.0
      %v722 = vadd.f32 %v720, %v721
      %v723 = vsel %vm596, %v679, 0.0
      %v724 = vadd.f32 %v722, %v723
      %v725 = vsel %vm596, %v680, 0.0
      %v726 = vadd.f32 %v724, %v725
      %v727 = vsel %vm596, %v681, 0.0
      %v728 = vadd.f32 %v726, %v727
      %v729 = vsel %vm596, %v682, 0.0
      %v730 = vadd.f32 %v728, %v729
      %v731 = vsel %vm596, %v683, 0.0
      %v732 = vadd.f32 %v730, %v731
      %v733 = vsel %vm596, %v684, 0.0
      %v734 = vadd.f32 %v732, %v733
      %v735 = vsel %vm596, %v685, 0.0
      %v736 = vadd.f32 %v734, %v735
      %v737 = vsel %vm596, %v686, 0.0
      %v738 = vadd.f32 %v736, %v737
      %v739 = vsel %vm596, %v687, 0.0
      %v740 = vadd.f32 %v738, %v739
      %v741 = vsel %vm596, %v688, 0.0
      %v742 = vadd.f32 %v740, %v741
      %v743 = vsel %vm596, %v689, 0.0
      %v744 = vadd.f32 %v742, %v743
      %v745 = vsel %vm596, %v690, 0.0
      %v746 = vadd.f32 %v744, %v745
      %v747 = vsel %vm596, %v691, 0.0
      %v748 = vadd.f32 %v746, %v747
      %v749 = vsel %vm596, %v692, 0.0
      %v750 = vadd.f32 %v748, %v749
      %v751 = vsel %vm596, %v693, 0.0
      %v752 = vadd.f32 %v750, %v751
      %v753 = vsel %vm596, %v694, 0.0
      %v754 = vadd.f32 %v752, %v753
      %v755 = vsel %vm596, %v695, 0.0
      %v756 = vadd.f32 %v754, %v755
      %v757 = vsel %vm596, %v696, 0.0
      %v758 = vadd.f32 %v756, %v757
      %v759 = vsel %vm596, %v697, 0.0
      %v760 = vadd.f32 %v758, %v759
      %v761 = vrot.slane %v760, 4
      %v762 = vadd.f32 %v760, %v761
      %v763 = vrot.slane %v762, 2
      %v764 = vadd.f32 %v762, %v763
      %v765 = vrot.slane %v764, 1
      %v766 = vadd.f32 %v764, %v765
      %vm767 = vcmask 1040384
      %v768 = vsel %vm767, %v665, %v766
      %v769 = vmul.f32 %v768, 0.00390625
      %v770 = vld [vmem:[%s3] sm:$0xff]
      %v772 = vsel %vm596, %v769, 0
      %774 = vmatprep.subr.mxu0 0.0
      %775 = vmatpush1.msra.mxu0 %v770
      %776 = vmatprep.subr.mxu0 0.0
      %777 = vmatpush1.msra.mxu0 0.0
      %778 = vmatprep.subr.mxu0 0.0
      %779 = vmatpush1.msra.mxu0 0.0
      %780 = vmatprep.subr.mxu0 0.0
      %781 = vmatpush1.msra.mxu0 0.0
      %782 = vmatprep.subr.mxu0 0.0
      %783 = vmatpush1.msra.mxu0 0.0
      %784 = vmatprep.subr.mxu0 0.0
      %785 = vmatpush1.msra.mxu0 0.0
      %786 = vmatprep.subr.mxu0 0.0
      %787 = vmatpush1.msra.mxu0 0.0
      %788 = vmatprep.subr.mxu0 0.0
      %789 = vmatpush1.msra.mxu0 0.0
      %790 = vmatprep.subr.mxu0 0.0
      %791 = vmatpush1.msra.mxu0 0.0
      %792 = vmatprep.subr.mxu0 0.0
      %793 = vmatpush1.msra.mxu0 0.0
      %794 = vmatprep.subr.mxu0 0.0
      %795 = vmatpush1.msra.mxu0 0.0
      %796 = vmatprep.subr.mxu0 0.0
      %797 = vmatpush1.msra.mxu0 0.0
      %798 = vmatprep.subr.mxu0 0.0
      %799 = vmatpush1.msra.mxu0 0.0
      %800 = vmatprep.subr.mxu0 0.0
      %801 = vmatpush1.msra.mxu0 0.0
      %802 = vmatprep.subr.mxu0 0.0
      %803 = vmatpush1.msra.mxu0 0.0
      %804 = vmatprep.subr.mxu0 0.0
      %805 = vmatpush1.msra.mxu0 0.0
      %806 = vmatprep.subr.mxu0 0.0
      %807 = vmatpush1.msra.mxu0 0.0
      %808 = vmatprep.subr.mxu0 0.0
      %809 = vmatpush1.msra.mxu0 0.0
      %810 = vmatprep.subr.mxu0 0.0
      %811 = vmatpush1.msra.mxu0 0.0
      %812 = vmatprep.subr.mxu0 0.0
      %813 = vmatpush1.msra.mxu0 0.0
      %814 = vmatprep.subr.mxu0 0.0
      %815 = vmatpush1.msra.mxu0 0.0
      %816 = vmatprep.subr.mxu0 0.0
      %817 = vmatpush1.msra.mxu0 0.0
      %818 = vmatprep.subr.mxu0 0.0
      %819 = vmatpush1.msra.mxu0 0.0
      %820 = vmatprep.subr.mxu0 0.0
      %821 = vmatpush1.msra.mxu0 0.0
      %822 = vmatprep.subr.mxu0 0.0
      %823 = vmatpush1.msra.mxu0 0.0
      %824 = vmatprep.subr.mxu0 0.0
      %825 = vmatpush1.msra.mxu0 0.0
      %826 = vmatprep.subr.mxu0 0.0
      %827 = vmatpush1.msra.mxu0 0.0
      %828 = vmatprep.subr.mxu0 0.0
      %829 = vmatpush1.msra.mxu0 0.0
      %830 = vmatprep.subr.mxu0 0.0
      %831 = vmatpush1.msra.mxu0 0.0
      %832 = vmatprep.subr.mxu0 0.0
      %833 = vmatpush1.msra.mxu0 0.0
      %834 = vmatprep.subr.mxu0 0.0
      %835 = vmatpush1.msra.mxu0 0.0
      %836 = vmatprep.subr.mxu0 0.0
      %837 = vmatpush1.msra.mxu0 0.0
      %838 = vmatprep.mubr.f32.mxu0 0.0
      %839 = vmatmul.mubr.f32.gmra.mrb[0].mxu0 %v772
      %v840 = vpop.f32.mrb[0].mxu0
      %v841 = vadd.f32 0.0, %v840
      %v842 = vpop.f32.mrb[0].mxu0
      %843 = vdwg.mxu0
      %v844 = vmul.f32 %v841, %v841
      %v846 = vrot.slane %v844, 7
      %v848 = vsub.f32 %v841, %v846
      %v849 = vmax.f32 %v848, 0.0
      %v850 = vadd.f32 %v849, 1e-06
      %v851 = vrsqrt.pop %v850
      %v852 = vld [vmem:[%s1] sm:$0x1]
      %v854 = vlaneseq
      %v855 = vshrl.u32 %v854, 7
      %v856 = vsub.s32 0, %v855
      %v857 = vrot.slane %v852, %v856
      %v859 = vmul.f32 %v851, %v857
      %v860 = vld [vmem:[%s2] sm:$0x1]
      %v862 = vrot.slane %v859, 1
      %v864 = vmul.f32 %v841, %v862
      %v865 = vsub.f32 %v860, %v864
      %v866 = vlaneseq
      %v867 = vshrl.u32 %v866, 7
      %v868 = vsub.s32 1, %v867
      %v869 = vrot.slane %v859, %v868
      %v870 = vmul.f32 %v564, %v869
      %v871 = vmul.f32 %v565, %v869
      %v872 = vmul.f32 %v566, %v869
      %v873 = vmul.f32 %v567, %v869
      %v874 = vmul.f32 %v568, %v869
      %v875 = vmul.f32 %v569, %v869
      %v876 = vmul.f32 %v570, %v869
      %v877 = vmul.f32 %v571, %v869
      %v878 = vmul.f32 %v572, %v869
      %v879 = vmul.f32 %v573, %v869
      %v880 = vmul.f32 %v574, %v869
      %v881 = vmul.f32 %v575, %v869
      %v882 = vmul.f32 %v576, %v869
      %v883 = vmul.f32 %v577, %v869
      %v884 = vmul.f32 %v578, %v869
      %v885 = vmul.f32 %v579, %v869
      %v886 = vmul.f32 %v580, %v869
      %v887 = vmul.f32 %v581, %v869
      %v888 = vmul.f32 %v582, %v869
      %v889 = vmul.f32 %v583, %v869
      %v890 = vmul.f32 %v584, %v869
      %v891 = vmul.f32 %v585, %v869
      %v892 = vmul.f32 %v586, %v869
      %v893 = vmul.f32 %v587, %v869
      %v894 = vmul.f32 %v588, %v869
      %v895 = vmul.f32 %v589, %v869
      %v896 = vmul.f32 %v590, %v869
      %v897 = vmul.f32 %v591, %v869
      %v898 = vmul.f32 %v592, %v869
      %v899 = vmul.f32 %v593, %v869
      %v900 = vmul.f32 %v594, %v869
      %v901 = vmul.f32 %v595, %v869
      %v903 = vlaneseq
      %v904 = vshrl.u32 %v903, 7
      %v905 = vsub.s32 0, %v904
      %v906 = vrot.slane %v865, %v905
      %v908 = vadd.f32 %v870, %v906
      %v909 = vadd.f32 %v871, %v906
      %v910 = vadd.f32 %v872, %v906
      %v911 = vadd.f32 %v873, %v906
      %v912 = vadd.f32 %v874, %v906
      %v913 = vadd.f32 %v875, %v906
      %v914 = vadd.f32 %v876, %v906
      %v915 = vadd.f32 %v877, %v906
      %v916 = vadd.f32 %v878, %v906
      %v917 = vadd.f32 %v879, %v906
      %v918 = vadd.f32 %v880, %v906
      %v919 = vadd.f32 %v881, %v906
      %v920 = vadd.f32 %v882, %v906
      %v921 = vadd.f32 %v883, %v906
      %v922 = vadd.f32 %v884, %v906
      %v923 = vadd.f32 %v885, %v906
      %v924 = vadd.f32 %v886, %v906
      %v925 = vadd.f32 %v887, %v906
      %v926 = vadd.f32 %v888, %v906
      %v927 = vadd.f32 %v889, %v906
      %v928 = vadd.f32 %v890, %v906
      %v929 = vadd.f32 %v891, %v906
      %v930 = vadd.f32 %v892, %v906
      %v931 = vadd.f32 %v893, %v906
      %v932 = vadd.f32 %v894, %v906
      %v933 = vadd.f32 %v895, %v906
      %v934 = vadd.f32 %v896, %v906
      %v935 = vadd.f32 %v897, %v906
      %v936 = vadd.f32 %v898, %v906
      %v937 = vadd.f32 %v899, %v906
      %v938 = vadd.f32 %v900, %v906
      %v939 = vadd.f32 %v901, %v906
      %v940 = vxor.u32 %v908, 2147483648
      %v941 = vxor.u32 %v909, 2147483648
      %v942 = vxor.u32 %v910, 2147483648
      %v943 = vxor.u32 %v911, 2147483648
      %v944 = vxor.u32 %v912, 2147483648
      %v945 = vxor.u32 %v913, 2147483648
      %v946 = vxor.u32 %v914, 2147483648
      %v947 = vxor.u32 %v915, 2147483648
      %v948 = vxor.u32 %v916, 2147483648
      %v949 = vxor.u32 %v917, 2147483648
      %v950 = vxor.u32 %v918, 2147483648
      %v951 = vxor.u32 %v919, 2147483648
      %v952 = vxor.u32 %v920, 2147483648
      %v953 = vxor.u32 %v921, 2147483648
      %v954 = vxor.u32 %v922, 2147483648
      %v955 = vxor.u32 %v923, 2147483648
      %v956 = vxor.u32 %v924, 2147483648
      %v957 = vxor.u32 %v925, 2147483648
      %v958 = vxor.u32 %v926, 2147483648
      %v959 = vxor.u32 %v927, 2147483648
      %v960 = vxor.u32 %v928, 2147483648
      %v961 = vxor.u32 %v929, 2147483648
      %v962 = vxor.u32 %v930, 2147483648
      %v963 = vxor.u32 %v931, 2147483648
      %v964 = vxor.u32 %v932, 2147483648
      %v965 = vxor.u32 %v933, 2147483648
      %v966 = vxor.u32 %v934, 2147483648
      %v967 = vxor.u32 %v935, 2147483648
      %v968 = vxor.u32 %v936, 2147483648
      %v969 = vxor.u32 %v937, 2147483648
      %v970 = vxor.u32 %v938, 2147483648
      %v971 = vxor.u32 %v939, 2147483648
      %v972 = vmul.f32 %v940, 1.442695
      %v973 = vpow.pop %v972
      %v974 = vmul.f32 %v941, 1.442695
      %v975 = vpow.pop %v974
      %v976 = vmul.f32 %v942, 1.442695
      %v977 = vpow.pop %v976
      %v978 = vmul.f32 %v943, 1.442695
      %v979 = vpow.pop %v978
      %v980 = vmul.f32 %v944, 1.442695
      %v981 = vpow.pop %v980
      %v982 = vmul.f32 %v945, 1.442695
      %v983 = vpow.pop %v982
      %v984 = vmul.f32 %v946, 1.442695
      %v985 = vpow.pop %v984
      %v986 = vmul.f32 %v947, 1.442695
      %v987 = vpow.pop %v986
      %v988 = vmul.f32 %v948, 1.442695
      %v989 = vpow.pop %v988
      %v990 = vmul.f32 %v949, 1.442695
      %v991 = vpow.pop %v990
      %v992 = vmul.f32 %v950, 1.442695
      %v993 = vpow.pop %v992
      %v994 = vmul.f32 %v951, 1.442695
      %v995 = vpow.pop %v994
      %v996 = vmul.f32 %v952, 1.442695
      %v997 = vpow.pop %v996
      %v998 = vmul.f32 %v953, 1.442695
      %v999 = vpow.pop %v998
      %v1000 = vmul.f32 %v954, 1.442695
      %v1001 = vpow.pop %v1000
      %v1002 = vmul.f32 %v955, 1.442695
      %v1003 = vpow.pop %v1002
      %v1004 = vmul.f32 %v956, 1.442695
      %v1005 = vpow.pop %v1004
      %v1006 = vmul.f32 %v957, 1.442695
      %v1007 = vpow.pop %v1006
      %v1008 = vmul.f32 %v958, 1.442695
      %v1009 = vpow.pop %v1008
      %v1010 = vmul.f32 %v959, 1.442695
      %v1011 = vpow.pop %v1010
      %v1012 = vmul.f32 %v960, 1.442695
      %v1013 = vpow.pop %v1012
      %v1014 = vmul.f32 %v961, 1.442695
      %v1015 = vpow.pop %v1014
      %v1016 = vmul.f32 %v962, 1.442695
      %v1017 = vpow.pop %v1016
      %v1018 = vmul.f32 %v963, 1.442695
      %v1019 = vpow.pop %v1018
      %v1020 = vmul.f32 %v964, 1.442695
      %v1021 = vpow.pop %v1020
      %v1022 = vmul.f32 %v965, 1.442695
      %v1023 = vpow.pop %v1022
      %v1024 = vmul.f32 %v966, 1.442695
      %v1025 = vpow.pop %v1024
      %v1026 = vmul.f32 %v967, 1.442695
      %v1027 = vpow.pop %v1026
      %v1028 = vmul.f32 %v968, 1.442695
      %v1029 = vpow.pop %v1028
      %v1030 = vmul.f32 %v969, 1.442695
      %v1031 = vpow.pop %v1030
      %v1032 = vmul.f32 %v970, 1.442695
      %v1033 = vpow.pop %v1032
      %v1034 = vmul.f32 %v971, 1.442695
      %v1035 = vpow.pop %v1034
      %v1036 = vadd.f32 %v973, 1.0
      %v1037 = vadd.f32 %v975, 1.0
      %v1038 = vadd.f32 %v977, 1.0
      %v1039 = vadd.f32 %v979, 1.0
      %v1040 = vadd.f32 %v981, 1.0
      %v1041 = vadd.f32 %v983, 1.0
      %v1042 = vadd.f32 %v985, 1.0
      %v1043 = vadd.f32 %v987, 1.0
      %v1044 = vadd.f32 %v989, 1.0
      %v1045 = vadd.f32 %v991, 1.0
      %v1046 = vadd.f32 %v993, 1.0
      %v1047 = vadd.f32 %v995, 1.0
      %v1048 = vadd.f32 %v997, 1.0
      %v1049 = vadd.f32 %v999, 1.0
      %v1050 = vadd.f32 %v1001, 1.0
      %v1051 = vadd.f32 %v1003, 1.0
      %v1052 = vadd.f32 %v1005, 1.0
      %v1053 = vadd.f32 %v1007, 1.0
      %v1054 = vadd.f32 %v1009, 1.0
      %v1055 = vadd.f32 %v1011, 1.0
      %v1056 = vadd.f32 %v1013, 1.0
      %v1057 = vadd.f32 %v1015, 1.0
      %v1058 = vadd.f32 %v1017, 1.0
      %v1059 = vadd.f32 %v1019, 1.0
      %v1060 = vadd.f32 %v1021, 1.0
      %v1061 = vadd.f32 %v1023, 1.0
      %v1062 = vadd.f32 %v1025, 1.0
      %v1063 = vadd.f32 %v1027, 1.0
      %v1064 = vadd.f32 %v1029, 1.0
      %v1065 = vadd.f32 %v1031, 1.0
      %v1066 = vadd.f32 %v1033, 1.0
      %v1067 = vadd.f32 %v1035, 1.0
      %v1068 = vrcp.pop %v1036
      %v1069 = vmul.f32 1.0, %v1068
      %v1070 = vrcp.pop %v1037
      %v1071 = vmul.f32 1.0, %v1070
      %v1072 = vrcp.pop %v1038
      %v1073 = vmul.f32 1.0, %v1072
      %v1074 = vrcp.pop %v1039
      %v1075 = vmul.f32 1.0, %v1074
      %v1076 = vrcp.pop %v1040
      %v1077 = vmul.f32 1.0, %v1076
      %v1078 = vrcp.pop %v1041
      %v1079 = vmul.f32 1.0, %v1078
      %v1080 = vrcp.pop %v1042
      %v1081 = vmul.f32 1.0, %v1080
      %v1082 = vrcp.pop %v1043
      %v1083 = vmul.f32 1.0, %v1082
      %v1084 = vrcp.pop %v1044
      %v1085 = vmul.f32 1.0, %v1084
      %v1086 = vrcp.pop %v1045
      %v1087 = vmul.f32 1.0, %v1086
      %v1088 = vrcp.pop %v1046
      %v1089 = vmul.f32 1.0, %v1088
      %v1090 = vrcp.pop %v1047
      %v1091 = vmul.f32 1.0, %v1090
      %v1092 = vrcp.pop %v1048
      %v1093 = vmul.f32 1.0, %v1092
      %v1094 = vrcp.pop %v1049
      %v1095 = vmul.f32 1.0, %v1094
      %v1096 = vrcp.pop %v1050
      %v1097 = vmul.f32 1.0, %v1096
      %v1098 = vrcp.pop %v1051
      %v1099 = vmul.f32 1.0, %v1098
      %v1100 = vrcp.pop %v1052
      %v1101 = vmul.f32 1.0, %v1100
      %v1102 = vrcp.pop %v1053
      %v1103 = vmul.f32 1.0, %v1102
      %v1104 = vrcp.pop %v1054
      %v1105 = vmul.f32 1.0, %v1104
      %v1106 = vrcp.pop %v1055
      %v1107 = vmul.f32 1.0, %v1106
      %v1108 = vrcp.pop %v1056
      %v1109 = vmul.f32 1.0, %v1108
      %v1110 = vrcp.pop %v1057
      %v1111 = vmul.f32 1.0, %v1110
      %v1112 = vrcp.pop %v1058
      %v1113 = vmul.f32 1.0, %v1112
      %v1114 = vrcp.pop %v1059
      %v1115 = vmul.f32 1.0, %v1114
      %v1116 = vrcp.pop %v1060
      %v1117 = vmul.f32 1.0, %v1116
      %v1118 = vrcp.pop %v1061
      %v1119 = vmul.f32 1.0, %v1118
      %v1120 = vrcp.pop %v1062
      %v1121 = vmul.f32 1.0, %v1120
      %v1122 = vrcp.pop %v1063
      %v1123 = vmul.f32 1.0, %v1122
      %v1124 = vrcp.pop %v1064
      %v1125 = vmul.f32 1.0, %v1124
      %v1126 = vrcp.pop %v1065
      %v1127 = vmul.f32 1.0, %v1126
      %v1128 = vrcp.pop %v1066
      %v1129 = vmul.f32 1.0, %v1128
      %v1130 = vrcp.pop %v1067
      %v1131 = vmul.f32 1.0, %v1130
      %v1132 = vmul.f32 %v908, %v1069
      %v1133 = vmul.f32 %v909, %v1071
      %v1134 = vmul.f32 %v910, %v1073
      %v1135 = vmul.f32 %v911, %v1075
      %v1136 = vmul.f32 %v912, %v1077
      %v1137 = vmul.f32 %v913, %v1079
      %v1138 = vmul.f32 %v914, %v1081
      %v1139 = vmul.f32 %v915, %v1083
      %v1140 = vmul.f32 %v916, %v1085
      %v1141 = vmul.f32 %v917, %v1087
      %v1142 = vmul.f32 %v918, %v1089
      %v1143 = vmul.f32 %v919, %v1091
      %v1144 = vmul.f32 %v920, %v1093
      %v1145 = vmul.f32 %v921, %v1095
      %v1146 = vmul.f32 %v922, %v1097
      %v1147 = vmul.f32 %v923, %v1099
      %v1148 = vmul.f32 %v924, %v1101
      %v1149 = vmul.f32 %v925, %v1103
      %v1150 = vmul.f32 %v926, %v1105
      %v1151 = vmul.f32 %v927, %v1107
      %v1152 = vmul.f32 %v928, %v1109
      %v1153 = vmul.f32 %v929, %v1111
      %v1154 = vmul.f32 %v930, %v1113
      %v1155 = vmul.f32 %v931, %v1115
      %v1156 = vmul.f32 %v932, %v1117
      %v1157 = vmul.f32 %v933, %v1119
      %v1158 = vmul.f32 %v934, %v1121
      %v1159 = vmul.f32 %v935, %v1123
      %v1160 = vmul.f32 %v936, %v1125
      %v1161 = vmul.f32 %v937, %v1127
      %v1162 = vmul.f32 %v938, %v1129
      %v1163 = vmul.f32 %v939, %v1131
      %v1164 = vpack.c.bf16 %v1133, %v1132
      %v1165 = vpack.c.bf16 %v1135, %v1134
      %v1166 = vpack.c.bf16 %v1137, %v1136
      %v1167 = vpack.c.bf16 %v1139, %v1138
      %v1168 = vpack.c.bf16 %v1141, %v1140
      %v1169 = vpack.c.bf16 %v1143, %v1142
      %v1170 = vpack.c.bf16 %v1145, %v1144
      %v1171 = vpack.c.bf16 %v1147, %v1146
      %v1172 = vpack.c.bf16 %v1149, %v1148
      %v1173 = vpack.c.bf16 %v1151, %v1150
      %v1174 = vpack.c.bf16 %v1153, %v1152
      %v1175 = vpack.c.bf16 %v1155, %v1154
      %v1176 = vpack.c.bf16 %v1157, %v1156
      %v1177 = vpack.c.bf16 %v1159, %v1158
      %v1178 = vpack.c.bf16 %v1161, %v1160
      %v1179 = vpack.c.bf16 %v1163, %v1162
      %s1180 = scalar_lea.vmem [#allocation2], 24
      %1181 = vst.msk [vmem:[%s1180 + $0x8] sm:$0xff] %vm596, %v1164
      %1182 = vst.msk [vmem:[%s1180 + $0x20] sm:$0xff] %vm596, %v1165
      %1183 = vst.msk [vmem:[%s1180 + $0x38] sm:$0xff] %vm596, %v1166
      %1184 = vst.msk [vmem:[%s1180 + $0x50] sm:$0xff] %vm596, %v1167
      %1185 = vst.msk [vmem:[%s1180 + $0x68] sm:$0xff] %vm596, %v1168
      %1186 = vst.msk [vmem:[%s1180 + $0x80] sm:$0xff] %vm596, %v1169
      %1187 = vst.msk [vmem:[%s1180 + $0x98] sm:$0xff] %vm596, %v1170
      %1188 = vst.msk [vmem:[%s1180 + $0xb0] sm:$0xff] %vm596, %v1171
      %1189 = vst.msk [vmem:[%s1180 + $0xc8] sm:$0xff] %vm596, %v1172
      %1190 = vst.msk [vmem:[%s1180 + $0xe0] sm:$0xff] %vm596, %v1173
      %1191 = vst.msk [vmem:[%s1180 + $0xf8] sm:$0xff] %vm596, %v1174
      %1192 = vst.msk [vmem:[%s1180 + $0x110] sm:$0xff] %vm596, %v1175
      %1193 = vst.msk [vmem:[%s1180 + $0x128] sm:$0xff] %vm596, %v1176
      %1194 = vst.msk [vmem:[%s1180 + $0x140] sm:$0xff] %vm596, %v1177
      %1195 = vst.msk [vmem:[%s1180 + $0x158] sm:$0xff] %vm596, %v1178
      %1196 = vst.msk [vmem:[%s1180 + $0x170] sm:$0xff] %vm596, %v1179
      %v1197 = vld [vmem:[%s5] sm:$0x1]
      %v1199 = vlaneseq
      %v1200 = vshrl.u32 %v1199, 7
      %v1201 = vsub.s32 0, %v1200
      %v1202 = vrot.slane %v1197, %v1201
      %v1204 = vld [vmem:[#allocation2] sm:$0x80]
      %v1205 = vld [vmem:[#allocation2 + $0x8] sm:$0xff]
      %v1206 = vld [vmem:[#allocation2 + $0x18] sm:$0x80]
      %v1207 = vld [vmem:[#allocation2 + $0x20] sm:$0xff]
      %v1208 = vld [vmem:[#allocation2 + $0x30] sm:$0x80]
      %v1209 = vld [vmem:[#allocation2 + $0x38] sm:$0xff]
      %v1210 = vld [vmem:[#allocation2 + $0x48] sm:$0x80]
      %v1211 = vld [vmem:[#allocation2 + $0x50] sm:$0xff]
      %v1212 = vld [vmem:[#allocation2 + $0x60] sm:$0x80]
      %v1213 = vld [vmem:[#allocation2 + $0x68] sm:$0xff]
      %v1214 = vld [vmem:[#allocation2 + $0x78] sm:$0x80]
      %v1215 = vld [vmem:[#allocation2 + $0x80] sm:$0xff]
      %v1216 = vld [vmem:[#allocation2 + $0x90] sm:$0x80]
      %v1217 = vld [vmem:[#allocation2 + $0x98] sm:$0xff]
      %v1218 = vld [vmem:[#allocation2 + $0xa8] sm:$0x80]
      %v1219 = vld [vmem:[#allocation2 + $0xb0] sm:$0xff]
      %v1220 = vld [vmem:[#allocation2 + $0xc0] sm:$0x80]
      %v1221 = vld [vmem:[#allocation2 + $0xc8] sm:$0xff]
      %v1222 = vld [vmem:[#allocation2 + $0xd8] sm:$0x80]
      %v1223 = vld [vmem:[#allocation2 + $0xe0] sm:$0xff]
      %v1224 = vld [vmem:[#allocation2 + $0xf0] sm:$0x80]
      %v1225 = vld [vmem:[#allocation2 + $0xf8] sm:$0xff]
      %v1226 = vld [vmem:[#allocation2 + $0x108] sm:$0x80]
      %v1227 = vld [vmem:[#allocation2 + $0x110] sm:$0xff]
      %v1228 = vld [vmem:[#allocation2 + $0x120] sm:$0x80]
      %v1229 = vld [vmem:[#allocation2 + $0x128] sm:$0xff]
      %v1230 = vld [vmem:[#allocation2 + $0x138] sm:$0x80]
      %v1231 = vld [vmem:[#allocation2 + $0x140] sm:$0xff]
      %v1232 = vld [vmem:[#allocation2 + $0x150] sm:$0x80]
      %v1233 = vld [vmem:[#allocation2 + $0x158] sm:$0xff]
      %v1234 = vld [vmem:[#allocation2 + $0x168] sm:$0x80]
      %v1235 = vld [vmem:[#allocation2 + $0x170] sm:$0xff]
      %v1236 = vld [vmem:[#allocation2 + $0x180] sm:$0x80]
      %v1237 = vld [vmem:[#allocation2 + $0x188] sm:$0xff]
      %v1238 = vld [vmem:[#allocation2 + $0x198] sm:$0x80]
      %v1239 = vld [vmem:[#allocation2 + $0x1a0] sm:$0xff]
      %v1241 = vshrl.u32 %v1204, 16
      %v1243 = vrot.slane %v1241, 7
      %v1245 = vshrl.u32 %v1205, 16
      %v1247 = vrot.slane %v1245, 7
      %v1248 = vshll.u32 %v1205, 16
      %v1250 = vor.u32 %v1247, %v1248
      %v1251 = vsel %vm508, %v1243, %v1250
      %v1253 = vshrl.u32 %v1206, 16
      %v1255 = vrot.slane %v1253, 7
      %v1257 = vshrl.u32 %v1207, 16
      %v1259 = vrot.slane %v1257, 7
      %v1260 = vshll.u32 %v1207, 16
      %v1262 = vor.u32 %v1259, %v1260
      %v1263 = vsel %vm508, %v1255, %v1262
      %v1265 = vshrl.u32 %v1208, 16
      %v1267 = vrot.slane %v1265, 7
      %v1269 = vshrl.u32 %v1209, 16
      %v1271 = vrot.slane %v1269, 7
      %v1272 = vshll.u32 %v1209, 16
      %v1274 = vor.u32 %v1271, %v1272
      %v1275 = vsel %vm508, %v1267, %v1274
      %v1277 = vshrl.u32 %v1210, 16
      %v1279 = vrot.slane %v1277, 7
      %v1281 = vshrl.u32 %v1211, 16
      %v1283 = vrot.slane %v1281, 7
      %v1284 = vshll.u32 %v1211, 16
      %v1286 = vor.u32 %v1283, %v1284
      %v1287 = vsel %vm508, %v1279, %v1286
      %v1289 = vshrl.u32 %v1212, 16
      %v1291 = vrot.slane %v1289, 7
      %v1293 = vshrl.u32 %v1213, 16
      %v1295 = vrot.slane %v1293, 7
      %v1296 = vshll.u32 %v1213, 16
      %v1298 = vor.u32 %v1295, %v1296
      %v1299 = vsel %vm508, %v1291, %v1298
      %v1301 = vshrl.u32 %v1214, 16
      %v1303 = vrot.slane %v1301, 7
      %v1305 = vshrl.u32 %v1215, 16
      %v1307 = vrot.slane %v1305, 7
      %v1308 = vshll.u32 %v1215, 16
      %v1310 = vor.u32 %v1307, %v1308
      %v1311 = vsel %vm508, %v1303, %v1310
      %v1313 = vshrl.u32 %v1216, 16
      %v1315 = vrot.slane %v1313, 7
      %v1317 = vshrl.u32 %v1217, 16
      %v1319 = vrot.slane %v1317, 7
      %v1320 = vshll.u32 %v1217, 16
      %v1322 = vor.u32 %v1319, %v1320
      %v1323 = vsel %vm508, %v1315, %v1322
      %v1325 = vshrl.u32 %v1218, 16
      %v1327 = vrot.slane %v1325, 7
      %v1329 = vshrl.u32 %v1219, 16
      %v1331 = vrot.slane %v1329, 7
      %v1332 = vshll.u32 %v1219, 16
      %v1334 = vor.u32 %v1331, %v1332
      %v1335 = vsel %vm508, %v1327, %v1334
      %v1337 = vshrl.u32 %v1220, 16
      %v1339 = vrot.slane %v1337, 7
      %v1341 = vshrl.u32 %v1221, 16
      %v1343 = vrot.slane %v1341, 7
      %v1344 = vshll.u32 %v1221, 16
      %v1346 = vor.u32 %v1343, %v1344
      %v1347 = vsel %vm508, %v1339, %v1346
      %v1349 = vshrl.u32 %v1222, 16
      %v1351 = vrot.slane %v1349, 7
      %v1353 = vshrl.u32 %v1223, 16
      %v1355 = vrot.slane %v1353, 7
      %v1356 = vshll.u32 %v1223, 16
      %v1358 = vor.u32 %v1355, %v1356
      %v1359 = vsel %vm508, %v1351, %v1358
      %v1361 = vshrl.u32 %v1224, 16
      %v1363 = vrot.slane %v1361, 7
      %v1365 = vshrl.u32 %v1225, 16
      %v1367 = vrot.slane %v1365, 7
      %v1368 = vshll.u32 %v1225, 16
      %v1370 = vor.u32 %v1367, %v1368
      %v1371 = vsel %vm508, %v1363, %v1370
      %v1373 = vshrl.u32 %v1226, 16
      %v1375 = vrot.slane %v1373, 7
      %v1377 = vshrl.u32 %v1227, 16
      %v1379 = vrot.slane %v1377, 7
      %v1380 = vshll.u32 %v1227, 16
      %v1382 = vor.u32 %v1379, %v1380
      %v1383 = vsel %vm508, %v1375, %v1382
      %v1385 = vshrl.u32 %v1228, 16
      %v1387 = vrot.slane %v1385, 7
      %v1389 = vshrl.u32 %v1229, 16
      %v1391 = vrot.slane %v1389, 7
      %v1392 = vshll.u32 %v1229, 16
      %v1394 = vor.u32 %v1391, %v1392
      %v1395 = vsel %vm508, %v1387, %v1394
      %v1397 = vshrl.u32 %v1230, 16
      %v1399 = vrot.slane %v1397, 7
      %v1401 = vshrl.u32 %v1231, 16
      %v1403 = vrot.slane %v1401, 7
      %v1404 = vshll.u32 %v1231, 16
      %v1406 = vor.u32 %v1403, %v1404
      %v1407 = vsel %vm508, %v1399, %v1406
      %v1409 = vshrl.u32 %v1232, 16
      %v1411 = vrot.slane %v1409, 7
      %v1413 = vshrl.u32 %v1233, 16
      %v1415 = vrot.slane %v1413, 7
      %v1416 = vshll.u32 %v1233, 16
      %v1418 = vor.u32 %v1415, %v1416
      %v1419 = vsel %vm508, %v1411, %v1418
      %v1421 = vshrl.u32 %v1234, 16
      %v1423 = vrot.slane %v1421, 7
      %v1425 = vshrl.u32 %v1235, 16
      %v1427 = vrot.slane %v1425, 7
      %v1428 = vshll.u32 %v1235, 16
      %v1430 = vor.u32 %v1427, %v1428
      %v1431 = vsel %vm508, %v1423, %v1430
      %v1432 = vld [vmem:[%s4] sm:$0xf]
      %v1434 = vsel %vm596, %v1251, 0
      %v1437 = vsel %vm596, %v1263, 0
      %v1440 = vsel %vm596, %v1275, 0
      %v1443 = vsel %vm596, %v1287, 0
      %v1446 = vsel %vm596, %v1299, 0
      %v1449 = vsel %vm596, %v1311, 0
      %v1452 = vsel %vm596, %v1323, 0
      %v1455 = vsel %vm596, %v1335, 0
      %v1458 = vsel %vm596, %v1347, 0
      %v1461 = vsel %vm596, %v1359, 0
      %v1464 = vsel %vm596, %v1371, 0
      %v1467 = vsel %vm596, %v1383, 0
      %v1470 = vsel %vm596, %v1395, 0
      %v1473 = vsel %vm596, %v1407, 0
      %v1476 = vsel %vm596, %v1419, 0
      %v1479 = vsel %vm596, %v1431, 0
      %vm1481 = vcmask 1043456
      %v1483 = vsel %vm1481, %v1432, 0
      %1485 = vmatprep.subr.bf16.mxu0 0
      %1486 = vmatpush1.bf16.msra.mxu0 %v1483
      %1487 = vmatprep.subr.bf16.mxu0 0
      %1488 = vmatpush1.bf16.msra.mxu0 0
      %1489 = vmatprep.subr.bf16.mxu0 0
      %1490 = vmatpush1.bf16.msra.mxu0 0
      %1491 = vmatprep.subr.bf16.mxu0 0
      %1492 = vmatpush1.bf16.msra.mxu0 0
      %1493 = vmatprep.subr.bf16.mxu0 0
      %1494 = vmatpush1.bf16.msra.mxu0 0
      %1495 = vmatprep.subr.bf16.mxu0 0
      %1496 = vmatpush1.bf16.msra.mxu0 0
      %1497 = vmatprep.subr.bf16.mxu0 0
      %1498 = vmatpush1.bf16.msra.mxu0 0
      %1499 = vmatprep.subr.bf16.mxu0 0
      %1500 = vmatpush1.bf16.msra.mxu0 0
      %1501 = vmatprep.subr.bf16.mxu0 0
      %1502 = vmatpush1.bf16.msra.mxu0 0
      %1503 = vmatprep.subr.bf16.mxu0 0
      %1504 = vmatpush1.bf16.msra.mxu0 0
      %1505 = vmatprep.subr.bf16.mxu0 0
      %1506 = vmatpush1.bf16.msra.mxu0 0
      %1507 = vmatprep.subr.bf16.mxu0 0
      %1508 = vmatpush1.bf16.msra.mxu0 0
      %1509 = vmatprep.subr.bf16.mxu0 0
      %1510 = vmatpush1.bf16.msra.mxu0 0
      %1511 = vmatprep.subr.bf16.mxu0 0
      %1512 = vmatpush1.bf16.msra.mxu0 0
      %1513 = vmatprep.subr.bf16.mxu0 0
      %1514 = vmatpush1.bf16.msra.mxu0 0
      %1515 = vmatprep.subr.bf16.mxu0 0
      %1516 = vmatpush1.bf16.msra.mxu0 0
      %1517 = vmatprep.mubr.bf16.mxu0 0
      %1518 = vmatmul.mubr.bf16.gmra.mrb[0].mxu0 %v1434
      %v1519 = vpop.f32.mrb[0].mxu0
      %v1520 = vadd.f32 0.0, %v1519
      %v1521 = vpop.f32.mrb[0].mxu0
      %v1522 = vpop.f32.mrb[0].mxu0
      %v1523 = vadd.f32 0.0, %v1522
      %v1524 = vpop.f32.mrb[0].mxu0
      %1525 = vmatprep.mubr.bf16.mxu0 0
      %1526 = vmatmul.mubr.bf16.gmra.mrb[0].mxu0 %v1437
      %v1527 = vpop.f32.mrb[0].mxu0
      %v1528 = vadd.f32 0.0, %v1527
      %v1529 = vpop.f32.mrb[0].mxu0
      %v1530 = vpop.f32.mrb[0].mxu0
      %v1531 = vadd.f32 0.0, %v1530
      %v1532 = vpop.f32.mrb[0].mxu0
      %1533 = vmatprep.mubr.bf16.mxu0 0
      %1534 = vmatmul.mubr.bf16.gmra.mrb[0].mxu0 %v1440
      %v1535 = vpop.f32.mrb[0].mxu0
      %v1536 = vadd.f32 0.0, %v1535
      %v1537 = vpop.f32.mrb[0].mxu0
      %v1538 = vpop.f32.mrb[0].mxu0
      %v1539 = vadd.f32 0.0, %v1538
      %v1540 = vpop.f32.mrb[0].mxu0
      %1541 = vmatprep.mubr.bf16.mxu0 0
      %1542 = vmatmul.mubr.bf16.gmra.mrb[0].mxu0 %v1443
      %v1543 = vpop.f32.mrb[0].mxu0
      %v1544 = vadd.f32 0.0, %v1543
      %v1545 = vpop.f32.mrb[0].mxu0
      %v1546 = vpop.f32.mrb[0].mxu0
      %v1547 = vadd.f32 0.0, %v1546
      %v1548 = vpop.f32.mrb[0].mxu0
      %1549 = vmatprep.mubr.bf16.mxu0 0
      %1550 = vmatmul.mubr.bf16.gmra.mrb[0].mxu0 %v1446
      %v1551 = vpop.f32.mrb[0].mxu0
      %v1552 = vadd.f32 0.0, %v1551
      %v1553 = vpop.f32.mrb[0].mxu0
      %v1554 = vpop.f32.mrb[0].mxu0
      %v1555 = vadd.f32 0.0, %v1554
      %v1556 = vpop.f32.mrb[0].mxu0
      %1557 = vmatprep.mubr.bf16.mxu0 0
      %1558 = vmatmul.mubr.bf16.gmra.mrb[0].mxu0 %v1449
      %v1559 = vpop.f32.mrb[0].mxu0
      %v1560 = vadd.f32 0.0, %v1559
      %v1561 = vpop.f32.mrb[0].mxu0
      %v1562 = vpop.f32.mrb[0].mxu0
      %v1563 = vadd.f32 0.0, %v1562
      %v1564 = vpop.f32.mrb[0].mxu0
      %1565 = vmatprep.mubr.bf16.mxu0 0
      %1566 = vmatmul.mubr.bf16.gmra.mrb[0].mxu0 %v1452
      %v1567 = vpop.f32.mrb[0].mxu0
      %v1568 = vadd.f32 0.0, %v1567
      %v1569 = vpop.f32.mrb[0].mxu0
      %v1570 = vpop.f32.mrb[0].mxu0
      %v1571 = vadd.f32 0.0, %v1570
      %v1572 = vpop.f32.mrb[0].mxu0
      %1573 = vmatprep.mubr.bf16.mxu0 0
      %1574 = vmatmul.mubr.bf16.gmra.mrb[0].mxu0 %v1455
      %v1575 = vpop.f32.mrb[0].mxu0
      %v1576 = vadd.f32 0.0, %v1575
      %v1577 = vpop.f32.mrb[0].mxu0
      %v1578 = vpop.f32.mrb[0].mxu0
      %v1579 = vadd.f32 0.0, %v1578
      %v1580 = vpop.f32.mrb[0].mxu0
      %1581 = vmatprep.mubr.bf16.mxu0 0
      %1582 = vmatmul.mubr.bf16.gmra.mrb[0].mxu0 %v1458
      %v1583 = vpop.f32.mrb[0].mxu0
      %v1584 = vadd.f32 0.0, %v1583
      %v1585 = vpop.f32.mrb[0].mxu0
      %v1586 = vpop.f32.mrb[0].mxu0
      %v1587 = vadd.f32 0.0, %v1586
      %v1588 = vpop.f32.mrb[0].mxu0
      %1589 = vmatprep.mubr.bf16.mxu0 0
      %1590 = vmatmul.mubr.bf16.gmra.mrb[0].mxu0 %v1461
      %v1591 = vpop.f32.mrb[0].mxu0
      %v1592 = vadd.f32 0.0, %v1591
      %v1593 = vpop.f32.mrb[0].mxu0
      %v1594 = vpop.f32.mrb[0].mxu0
      %v1595 = vadd.f32 0.0, %v1594
      %v1596 = vpop.f32.mrb[0].mxu0
      %1597 = vmatprep.mubr.bf16.mxu0 0
      %1598 = vmatmul.mubr.bf16.gmra.mrb[0].mxu0 %v1464
      %v1599 = vpop.f32.mrb[0].mxu0
      %v1600 = vadd.f32 0.0, %v1599
      %v1601 = vpop.f32.mrb[0].mxu0
      %v1602 = vpop.f32.mrb[0].mxu0
      %v1603 = vadd.f32 0.0, %v1602
      %v1604 = vpop.f32.mrb[0].mxu0
      %1605 = vmatprep.mubr.bf16.mxu0 0
      %1606 = vmatmul.mubr.bf16.gmra.mrb[0].mxu0 %v1467
      %v1607 = vpop.f32.mrb[0].mxu0
      %v1608 = vadd.f32 0.0, %v1607
      %v1609 = vpop.f32.mrb[0].mxu0
      %v1610 = vpop.f32.mrb[0].mxu0
      %v1611 = vadd.f32 0.0, %v1610
      %v1612 = vpop.f32.mrb[0].mxu0
      %1613 = vmatprep.mubr.bf16.mxu0 0
      %1614 = vmatmul.mubr.bf16.gmra.mrb[0].mxu0 %v1470
      %v1615 = vpop.f32.mrb[0].mxu0
      %v1616 = vadd.f32 0.0, %v1615
      %v1617 = vpop.f32.mrb[0].mxu0
      %v1618 = vpop.f32.mrb[0].mxu0
      %v1619 = vadd.f32 0.0, %v1618
      %v1620 = vpop.f32.mrb[0].mxu0
      %1621 = vmatprep.mubr.bf16.mxu0 0
      %1622 = vmatmul.mubr.bf16.gmra.mrb[0].mxu0 %v1473
      %v1623 = vpop.f32.mrb[0].mxu0
      %v1624 = vadd.f32 0.0, %v1623
      %v1625 = vpop.f32.mrb[0].mxu0
      %v1626 = vpop.f32.mrb[0].mxu0
      %v1627 = vadd.f32 0.0, %v1626
      %v1628 = vpop.f32.mrb[0].mxu0
      %1629 = vmatprep.mubr.bf16.mxu0 0
      %1630 = vmatmul.mubr.bf16.gmra.mrb[0].mxu0 %v1476
      %v1631 = vpop.f32.mrb[0].mxu0
      %v1632 = vadd.f32 0.0, %v1631
      %v1633 = vpop.f32.mrb[0].mxu0
      %v1634 = vpop.f32.mrb[0].mxu0
      %v1635 = vadd.f32 0.0, %v1634
      %v1636 = vpop.f32.mrb[0].mxu0
      %1637 = vmatprep.mubr.bf16.mxu0 0
      %1638 = vmatmul.mubr.bf16.gmra.mrb[0].mxu0 %v1479
      %v1639 = vpop.f32.mrb[0].mxu0
      %v1640 = vadd.f32 0.0, %v1639
      %v1641 = vpop.f32.mrb[0].mxu0
      %v1642 = vpop.f32.mrb[0].mxu0
      %v1643 = vadd.f32 0.0, %v1642
      %v1644 = vpop.f32.mrb[0].mxu0
      %1645 = vdwg.mxu0
      %v1646 = vadd.f32 %v1202, %v1520
      %v1647 = vadd.f32 %v1202, %v1523
      %v1648 = vadd.f32 %v1202, %v1528
      %v1649 = vadd.f32 %v1202, %v1531
      %v1650 = vadd.f32 %v1202, %v1536
      %v1651 = vadd.f32 %v1202, %v1539
      %v1652 = vadd.f32 %v1202, %v1544
      %v1653 = vadd.f32 %v1202, %v1547
      %v1654 = vadd.f32 %v1202, %v1552
      %v1655 = vadd.f32 %v1202, %v1555
      %v1656 = vadd.f32 %v1202, %v1560
      %v1657 = vadd.f32 %v1202, %v1563
      %v1658 = vadd.f32 %v1202, %v1568
      %v1659 = vadd.f32 %v1202, %v1571
      %v1660 = vadd.f32 %v1202, %v1576
      %v1661 = vadd.f32 %v1202, %v1579
      %v1662 = vadd.f32 %v1202, %v1584
      %v1663 = vadd.f32 %v1202, %v1587
      %v1664 = vadd.f32 %v1202, %v1592
      %v1665 = vadd.f32 %v1202, %v1595
      %v1666 = vadd.f32 %v1202, %v1600
      %v1667 = vadd.f32 %v1202, %v1603
      %v1668 = vadd.f32 %v1202, %v1608
      %v1669 = vadd.f32 %v1202, %v1611
      %v1670 = vadd.f32 %v1202, %v1616
      %v1671 = vadd.f32 %v1202, %v1619
      %v1672 = vadd.f32 %v1202, %v1624
      %v1673 = vadd.f32 %v1202, %v1627
      %v1674 = vadd.f32 %v1202, %v1632
      %v1675 = vadd.f32 %v1202, %v1635
      %v1676 = vadd.f32 %v1202, %v1640
      %v1677 = vadd.f32 %v1202, %v1643
      %v1679 = vshrl.u32 %v1236, 16
      %v1681 = vrot.slane %v1679, 7
      %v1683 = vshrl.u32 %v1237, 16
      %v1685 = vrot.slane %v1683, 7
      %v1686 = vshll.u32 %v1237, 16
      %v1688 = vor.u32 %v1685, %v1686
      %v1689 = vsel %vm508, %v1681, %v1688
      %s1690 = scalar_lea.vmem %s4, 12
      %v1691 = vld [vmem:[%s1690] sm:$0xf]
      %v1693 = vsel %vm596, %v1689, 0
      %v1696 = vsel %vm1481, %v1691, 0
      %1698 = vmatprep.subr.bf16.mxu0 0
      %1699 = vmatpush1.bf16.msra.mxu0 %v1696
      %1700 = vmatprep.subr.bf16.mxu0 0
      %1701 = vmatpush1.bf16.msra.mxu0 0
      %1702 = vmatprep.subr.bf16.mxu0 0
      %1703 = vmatpush1.bf16.msra.mxu0 0
      %1704 = vmatprep.subr.bf16.mxu0 0
      %1705 = vmatpush1.bf16.msra.mxu0 0
      %1706 = vmatprep.subr.bf16.mxu0 0
      %1707 = vmatpush1.bf16.msra.mxu0 0
      %1708 = vmatprep.subr.bf16.mxu0 0
      %1709 = vmatpush1.bf16.msra.mxu0 0
      %1710 = vmatprep.subr.bf16.mxu0 0
      %1711 = vmatpush1.bf16.msra.mxu0 0
      %1712 = vmatprep.subr.bf16.mxu0 0
      %1713 = vmatpush1.bf16.msra.mxu0 0
      %1714 = vmatprep.subr.bf16.mxu0 0
      %1715 = vmatpush1.bf16.msra.mxu0 0
      %1716 = vmatprep.subr.bf16.mxu0 0
      %1717 = vmatpush1.bf16.msra.mxu0 0
      %1718 = vmatprep.subr.bf16.mxu0 0
      %1719 = vmatpush1.bf16.msra.mxu0 0
      %1720 = vmatprep.subr.bf16.mxu0 0
      %1721 = vmatpush1.bf16.msra.mxu0 0
      %1722 = vmatprep.subr.bf16.mxu0 0
      %1723 = vmatpush1.bf16.msra.mxu0 0
      %1724 = vmatprep.subr.bf16.mxu0 0
      %1725 = vmatpush1.bf16.msra.mxu0 0
      %1726 = vmatprep.subr.bf16.mxu0 0
      %1727 = vmatpush1.bf16.msra.mxu0 0
      %1728 = vmatprep.subr.bf16.mxu0 0
      %1729 = vmatpush1.bf16.msra.mxu0 0
      %1730 = vmatprep.mubr.bf16.mxu0 0
      %1731 = vmatmul.mubr.bf16.gmra.mrb[0].mxu0 %v1437
      %v1732 = vpop.f32.mrb[0].mxu0
      %v1733 = vadd.f32 0.0, %v1732
      %v1734 = vpop.f32.mrb[0].mxu0
      %v1735 = vpop.f32.mrb[0].mxu0
      %v1736 = vadd.f32 0.0, %v1735
      %v1737 = vpop.f32.mrb[0].mxu0
      %1738 = vmatprep.mubr.bf16.mxu0 0
      %1739 = vmatmul.mubr.bf16.gmra.mrb[0].mxu0 %v1440
      %v1740 = vpop.f32.mrb[0].mxu0
      %v1741 = vadd.f32 0.0, %v1740
      %v1742 = vpop.f32.mrb[0].mxu0
      %v1743 = vpop.f32.mrb[0].mxu0
      %v1744 = vadd.f32 0.0, %v1743
      %v1745 = vpop.f32.mrb[0].mxu0
      %1746 = vmatprep.mubr.bf16.mxu0 0
      %1747 = vmatmul.mubr.bf16.gmra.mrb[0].mxu0 %v1443
      %v1748 = vpop.f32.mrb[0].mxu0
      %v1749 = vadd.f32 0.0, %v1748
      %v1750 = vpop.f32.mrb[0].mxu0
      %v1751 = vpop.f32.mrb[0].mxu0
      %v1752 = vadd.f32 0.0, %v1751
      %v1753 = vpop.f32.mrb[0].mxu0
      %1754 = vmatprep.mubr.bf16.mxu0 0
      %1755 = vmatmul.mubr.bf16.gmra.mrb[0].mxu0 %v1446
      %v1756 = vpop.f32.mrb[0].mxu0
      %v1757 = vadd.f32 0.0, %v1756
      %v1758 = vpop.f32.mrb[0].mxu0
      %v1759 = vpop.f32.mrb[0].mxu0
      %v1760 = vadd.f32 0.0, %v1759
      %v1761 = vpop.f32.mrb[0].mxu0
      %1762 = vmatprep.mubr.bf16.mxu0 0
      %1763 = vmatmul.mubr.bf16.gmra.mrb[0].mxu0 %v1449
      %v1764 = vpop.f32.mrb[0].mxu0
      %v1765 = vadd.f32 0.0, %v1764
      %v1766 = vpop.f32.mrb[0].mxu0
      %v1767 = vpop.f32.mrb[0].mxu0
      %v1768 = vadd.f32 0.0, %v1767
      %v1769 = vpop.f32.mrb[0].mxu0
      %1770 = vmatprep.mubr.bf16.mxu0 0
      %1771 = vmatmul.mubr.bf16.gmra.mrb[0].mxu0 %v1452
      %v1772 = vpop.f32.mrb[0].mxu0
      %v1773 = vadd.f32 0.0, %v1772
      %v1774 = vpop.f32.mrb[0].mxu0
      %v1775 = vpop.f32.mrb[0].mxu0
      %v1776 = vadd.f32 0.0, %v1775
      %v1777 = vpop.f32.mrb[0].mxu0
      %1778 = vmatprep.mubr.bf16.mxu0 0
      %1779 = vmatmul.mubr.bf16.gmra.mrb[0].mxu0 %v1455
      %v1780 = vpop.f32.mrb[0].mxu0
      %v1781 = vadd.f32 0.0, %v1780
      %v1782 = vpop.f32.mrb[0].mxu0
      %v1783 = vpop.f32.mrb[0].mxu0
      %v1784 = vadd.f32 0.0, %v1783
      %v1785 = vpop.f32.mrb[0].mxu0
      %1786 = vmatprep.mubr.bf16.mxu0 0
      %1787 = vmatmul.mubr.bf16.gmra.mrb[0].mxu0 %v1458
      %v1788 = vpop.f32.mrb[0].mxu0
      %v1789 = vadd.f32 0.0, %v1788
      %v1790 = vpop.f32.mrb[0].mxu0
      %v1791 = vpop.f32.mrb[0].mxu0
      %v1792 = vadd.f32 0.0, %v1791
      %v1793 = vpop.f32.mrb[0].mxu0
      %1794 = vmatprep.mubr.bf16.mxu0 0
      %1795 = vmatmul.mubr.bf16.gmra.mrb[0].mxu0 %v1461
      %v1796 = vpop.f32.mrb[0].mxu0
      %v1797 = vadd.f32 0.0, %v1796
      %v1798 = vpop.f32.mrb[0].mxu0
      %v1799 = vpop.f32.mrb[0].mxu0
      %v1800 = vadd.f32 0.0, %v1799
      %v1801 = vpop.f32.mrb[0].mxu0
      %1802 = vmatprep.mubr.bf16.mxu0 0
      %1803 = vmatmul.mubr.bf16.gmra.mrb[0].mxu0 %v1464
      %v1804 = vpop.f32.mrb[0].mxu0
      %v1805 = vadd.f32 0.0, %v1804
      %v1806 = vpop.f32.mrb[0].mxu0
      %v1807 = vpop.f32.mrb[0].mxu0
      %v1808 = vadd.f32 0.0, %v1807
      %v1809 = vpop.f32.mrb[0].mxu0
      %1810 = vmatprep.mubr.bf16.mxu0 0
      %1811 = vmatmul.mubr.bf16.gmra.mrb[0].mxu0 %v1467
      %v1812 = vpop.f32.mrb[0].mxu0
      %v1813 = vadd.f32 0.0, %v1812
      %v1814 = vpop.f32.mrb[0].mxu0
      %v1815 = vpop.f32.mrb[0].mxu0
      %v1816 = vadd.f32 0.0, %v1815
      %v1817 = vpop.f32.mrb[0].mxu0
      %1818 = vmatprep.mubr.bf16.mxu0 0
      %1819 = vmatmul.mubr.bf16.gmra.mrb[0].mxu0 %v1470
      %v1820 = vpop.f32.mrb[0].mxu0
      %v1821 = vadd.f32 0.0, %v1820
      %v1822 = vpop.f32.mrb[0].mxu0
      %v1823 = vpop.f32.mrb[0].mxu0
      %v1824 = vadd.f32 0.0, %v1823
      %v1825 = vpop.f32.mrb[0].mxu0
      %1826 = vmatprep.mubr.bf16.mxu0 0
      %1827 = vmatmul.mubr.bf16.gmra.mrb[0].mxu0 %v1473
      %v1828 = vpop.f32.mrb[0].mxu0
      %v1829 = vadd.f32 0.0, %v1828
      %v1830 = vpop.f32.mrb[0].mxu0
      %v1831 = vpop.f32.mrb[0].mxu0
      %v1832 = vadd.f32 0.0, %v1831
      %v1833 = vpop.f32.mrb[0].mxu0
      %1834 = vmatprep.mubr.bf16.mxu0 0
      %1835 = vmatmul.mubr.bf16.gmra.mrb[0].mxu0 %v1476
      %v1836 = vpop.f32.mrb[0].mxu0
      %v1837 = vadd.f32 0.0, %v1836
      %v1838 = vpop.f32.mrb[0].mxu0
      %v1839 = vpop.f32.mrb[0].mxu0
      %v1840 = vadd.f32 0.0, %v1839
      %v1841 = vpop.f32.mrb[0].mxu0
      %1842 = vmatprep.mubr.bf16.mxu0 0
      %1843 = vmatmul.mubr.bf16.gmra.mrb[0].mxu0 %v1479
      %v1844 = vpop.f32.mrb[0].mxu0
      %v1845 = vadd.f32 0.0, %v1844
      %v1846 = vpop.f32.mrb[0].mxu0
      %v1847 = vpop.f32.mrb[0].mxu0
      %v1848 = vadd.f32 0.0, %v1847
      %v1849 = vpop.f32.mrb[0].mxu0
      %1850 = vmatprep.mubr.bf16.mxu0 0
      %1851 = vmatmul.mubr.bf16.gmra.mrb[0].mxu0 %v1693
      %v1852 = vpop.f32.mrb[0].mxu0
      %v1853 = vadd.f32 0.0, %v1852
      %v1854 = vpop.f32.mrb[0].mxu0
      %v1855 = vpop.f32.mrb[0].mxu0
      %v1856 = vadd.f32 0.0, %v1855
      %v1857 = vpop.f32.mrb[0].mxu0
      %1858 = vdwg.mxu0
      %v1859 = vadd.f32 %v1646, %v1733
      %v1860 = vadd.f32 %v1647, %v1736
      %v1861 = vadd.f32 %v1648, %v1741
      %v1862 = vadd.f32 %v1649, %v1744
      %v1863 = vadd.f32 %v1650, %v1749
      %v1864 = vadd.f32 %v1651, %v1752
      %v1865 = vadd.f32 %v1652, %v1757
      %v1866 = vadd.f32 %v1653, %v1760
      %v1867 = vadd.f32 %v1654, %v1765
      %v1868 = vadd.f32 %v1655, %v1768
      %v1869 = vadd.f32 %v1656, %v1773
      %v1870 = vadd.f32 %v1657, %v1776
      %v1871 = vadd.f32 %v1658, %v1781
      %v1872 = vadd.f32 %v1659, %v1784
      %v1873 = vadd.f32 %v1660, %v1789
      %v1874 = vadd.f32 %v1661, %v1792
      %v1875 = vadd.f32 %v1662, %v1797
      %v1876 = vadd.f32 %v1663, %v1800
      %v1877 = vadd.f32 %v1664, %v1805
      %v1878 = vadd.f32 %v1665, %v1808
      %v1879 = vadd.f32 %v1666, %v1813
      %v1880 = vadd.f32 %v1667, %v1816
      %v1881 = vadd.f32 %v1668, %v1821
      %v1882 = vadd.f32 %v1669, %v1824
      %v1883 = vadd.f32 %v1670, %v1829
      %v1884 = vadd.f32 %v1671, %v1832
      %v1885 = vadd.f32 %v1672, %v1837
      %v1886 = vadd.f32 %v1673, %v1840
      %v1887 = vadd.f32 %v1674, %v1845
      %v1888 = vadd.f32 %v1675, %v1848
      %v1889 = vadd.f32 %v1676, %v1853
      %v1890 = vadd.f32 %v1677, %v1856
      %v1892 = vshrl.u32 %v1238, 16
      %v1894 = vrot.slane %v1892, 7
      %v1896 = vshrl.u32 %v1239, 16
      %v1898 = vrot.slane %v1896, 7
      %v1899 = vshll.u32 %v1239, 16
      %v1901 = vor.u32 %v1898, %v1899
      %v1902 = vsel %vm508, %v1894, %v1901
      %s1903 = scalar_lea.vmem %s4, 24
      %v1904 = vld [vmem:[%s1903] sm:$0xf]
      %v1906 = vsel %vm596, %v1902, 0
      %v1909 = vsel %vm1481, %v1904, 0
      %1911 = vmatprep.subr.bf16.mxu0 0
      %1912 = vmatpush1.bf16.msra.mxu0 %v1909
      %1913 = vmatprep.subr.bf16.mxu0 0
      %1914 = vmatpush1.bf16.msra.mxu0 0
      %1915 = vmatprep.subr.bf16.mxu0 0
      %1916 = vmatpush1.bf16.msra.mxu0 0
      %1917 = vmatprep.subr.bf16.mxu0 0
      %1918 = vmatpush1.bf16.msra.mxu0 0
      %1919 = vmatprep.subr.bf16.mxu0 0
      %1920 = vmatpush1.bf16.msra.mxu0 0
      %1921 = vmatprep.subr.bf16.mxu0 0
      %1922 = vmatpush1.bf16.msra.mxu0 0
      %1923 = vmatprep.subr.bf16.mxu0 0
      %1924 = vmatpush1.bf16.msra.mxu0 0
      %1925 = vmatprep.subr.bf16.mxu0 0
      %1926 = vmatpush1.bf16.msra.mxu0 0
      %1927 = vmatprep.subr.bf16.mxu0 0
      %1928 = vmatpush1.bf16.msra.mxu0 0
      %1929 = vmatprep.subr.bf16.mxu0 0
      %1930 = vmatpush1.bf16.msra.mxu0 0
      %1931 = vmatprep.subr.bf16.mxu0 0
      %1932 = vmatpush1.bf16.msra.mxu0 0
      %1933 = vmatprep.subr.bf16.mxu0 0
      %1934 = vmatpush1.bf16.msra.mxu0 0
      %1935 = vmatprep.subr.bf16.mxu0 0
      %1936 = vmatpush1.bf16.msra.mxu0 0
      %1937 = vmatprep.subr.bf16.mxu0 0
      %1938 = vmatpush1.bf16.msra.mxu0 0
      %1939 = vmatprep.subr.bf16.mxu0 0
      %1940 = vmatpush1.bf16.msra.mxu0 0
      %1941 = vmatprep.subr.bf16.mxu0 0
      %1942 = vmatpush1.bf16.msra.mxu0 0
      %1943 = vmatprep.mubr.bf16.mxu0 0
      %1944 = vmatmul.mubr.bf16.gmra.mrb[0].mxu0 %v1440
      %v1945 = vpop.f32.mrb[0].mxu0
      %v1946 = vadd.f32 0.0, %v1945
      %v1947 = vpop.f32.mrb[0].mxu0
      %v1948 = vpop.f32.mrb[0].mxu0
      %v1949 = vadd.f32 0.0, %v1948
      %v1950 = vpop.f32.mrb[0].mxu0
      %1951 = vmatprep.mubr.bf16.mxu0 0
      %1952 = vmatmul.mubr.bf16.gmra.mrb[0].mxu0 %v1443
      %v1953 = vpop.f32.mrb[0].mxu0
      %v1954 = vadd.f32 0.0, %v1953
      %v1955 = vpop.f32.mrb[0].mxu0
      %v1956 = vpop.f32.mrb[0].mxu0
      %v1957 = vadd.f32 0.0, %v1956
      %v1958 = vpop.f32.mrb[0].mxu0
      %1959 = vmatprep.mubr.bf16.mxu0 0
      %1960 = vmatmul.mubr.bf16.gmra.mrb[0].mxu0 %v1446
      %v1961 = vpop.f32.mrb[0].mxu0
      %v1962 = vadd.f32 0.0, %v1961
      %v1963 = vpop.f32.mrb[0].mxu0
      %v1964 = vpop.f32.mrb[0].mxu0
      %v1965 = vadd.f32 0.0, %v1964
      %v1966 = vpop.f32.mrb[0].mxu0
      %1967 = vmatprep.mubr.bf16.mxu0 0
      %1968 = vmatmul.mubr.bf16.gmra.mrb[0].mxu0 %v1449
      %v1969 = vpop.f32.mrb[0].mxu0
      %v1970 = vadd.f32 0.0, %v1969
      %v1971 = vpop.f32.mrb[0].mxu0
      %v1972 = vpop.f32.mrb[0].mxu0
      %v1973 = vadd.f32 0.0, %v1972
      %v1974 = vpop.f32.mrb[0].mxu0
      %1975 = vmatprep.mubr.bf16.mxu0 0
      %1976 = vmatmul.mubr.bf16.gmra.mrb[0].mxu0 %v1452
      %v1977 = vpop.f32.mrb[0].mxu0
      %v1978 = vadd.f32 0.0, %v1977
      %v1979 = vpop.f32.mrb[0].mxu0
      %v1980 = vpop.f32.mrb[0].mxu0
      %v1981 = vadd.f32 0.0, %v1980
      %v1982 = vpop.f32.mrb[0].mxu0
      %1983 = vmatprep.mubr.bf16.mxu0 0
      %1984 = vmatmul.mubr.bf16.gmra.mrb[0].mxu0 %v1455
      %v1985 = vpop.f32.mrb[0].mxu0
      %v1986 = vadd.f32 0.0, %v1985
      %v1987 = vpop.f32.mrb[0].mxu0
      %v1988 = vpop.f32.mrb[0].mxu0
      %v1989 = vadd.f32 0.0, %v1988
      %v1990 = vpop.f32.mrb[0].mxu0
      %1991 = vmatprep.mubr.bf16.mxu0 0
      %1992 = vmatmul.mubr.bf16.gmra.mrb[0].mxu0 %v1458
      %v1993 = vpop.f32.mrb[0].mxu0
      %v1994 = vadd.f32 0.0, %v1993
      %v1995 = vpop.f32.mrb[0].mxu0
      %v1996 = vpop.f32.mrb[0].mxu0
      %v1997 = vadd.f32 0.0, %v1996
      %v1998 = vpop.f32.mrb[0].mxu0
      %1999 = vmatprep.mubr.bf16.mxu0 0
      %2000 = vmatmul.mubr.bf16.gmra.mrb[0].mxu0 %v1461
      %v2001 = vpop.f32.mrb[0].mxu0
      %v2002 = vadd.f32 0.0, %v2001
      %v2003 = vpop.f32.mrb[0].mxu0
      %v2004 = vpop.f32.mrb[0].mxu0
      %v2005 = vadd.f32 0.0, %v2004
      %v2006 = vpop.f32.mrb[0].mxu0
      %2007 = vmatprep.mubr.bf16.mxu0 0
      %2008 = vmatmul.mubr.bf16.gmra.mrb[0].mxu0 %v1464
      %v2009 = vpop.f32.mrb[0].mxu0
      %v2010 = vadd.f32 0.0, %v2009
      %v2011 = vpop.f32.mrb[0].mxu0
      %v2012 = vpop.f32.mrb[0].mxu0
      %v2013 = vadd.f32 0.0, %v2012
      %v2014 = vpop.f32.mrb[0].mxu0
      %2015 = vmatprep.mubr.bf16.mxu0 0
      %2016 = vmatmul.mubr.bf16.gmra.mrb[0].mxu0 %v1467
      %v2017 = vpop.f32.mrb[0].mxu0
      %v2018 = vadd.f32 0.0, %v2017
      %v2019 = vpop.f32.mrb[0].mxu0
      %v2020 = vpop.f32.mrb[0].mxu0
      %v2021 = vadd.f32 0.0, %v2020
      %v2022 = vpop.f32.mrb[0].mxu0
      %2023 = vmatprep.mubr.bf16.mxu0 0
      %2024 = vmatmul.mubr.bf16.gmra.mrb[0].mxu0 %v1470
      %v2025 = vpop.f32.mrb[0].mxu0
      %v2026 = vadd.f32 0.0, %v2025
      %v2027 = vpop.f32.mrb[0].mxu0
      %v2028 = vpop.f32.mrb[0].mxu0
      %v2029 = vadd.f32 0.0, %v2028
      %v2030 = vpop.f32.mrb[0].mxu0
      %2031 = vmatprep.mubr.bf16.mxu0 0
      %2032 = vmatmul.mubr.bf16.gmra.mrb[0].mxu0 %v1473
      %v2033 = vpop.f32.mrb[0].mxu0
      %v2034 = vadd.f32 0.0, %v2033
      %v2035 = vpop.f32.mrb[0].mxu0
      %v2036 = vpop.f32.mrb[0].mxu0
      %v2037 = vadd.f32 0.0, %v2036
      %v2038 = vpop.f32.mrb[0].mxu0
      %2039 = vmatprep.mubr.bf16.mxu0 0
      %2040 = vmatmul.mubr.bf16.gmra.mrb[0].mxu0 %v1476
      %v2041 = vpop.f32.mrb[0].mxu0
      %v2042 = vadd.f32 0.0, %v2041
      %v2043 = vpop.f32.mrb[0].mxu0
      %v2044 = vpop.f32.mrb[0].mxu0
      %v2045 = vadd.f32 0.0, %v2044
      %v2046 = vpop.f32.mrb[0].mxu0
      %2047 = vmatprep.mubr.bf16.mxu0 0
      %2048 = vmatmul.mubr.bf16.gmra.mrb[0].mxu0 %v1479
      %v2049 = vpop.f32.mrb[0].mxu0
      %v2050 = vadd.f32 0.0, %v2049
      %v2051 = vpop.f32.mrb[0].mxu0
      %v2052 = vpop.f32.mrb[0].mxu0
      %v2053 = vadd.f32 0.0, %v2052
      %v2054 = vpop.f32.mrb[0].mxu0
      %2055 = vmatprep.mubr.bf16.mxu0 0
      %2056 = vmatmul.mubr.bf16.gmra.mrb[0].mxu0 %v1693
      %v2057 = vpop.f32.mrb[0].mxu0
      %v2058 = vadd.f32 0.0, %v2057
      %v2059 = vpop.f32.mrb[0].mxu0
      %v2060 = vpop.f32.mrb[0].mxu0
      %v2061 = vadd.f32 0.0, %v2060
      %v2062 = vpop.f32.mrb[0].mxu0
      %2063 = vmatprep.mubr.bf16.mxu0 0
      %2064 = vmatmul.mubr.bf16.gmra.mrb[0].mxu0 %v1906
      %v2065 = vpop.f32.mrb[0].mxu0
      %v2066 = vadd.f32 0.0, %v2065
      %v2067 = vpop.f32.mrb[0].mxu0
      %v2068 = vpop.f32.mrb[0].mxu0
      %v2069 = vadd.f32 0.0, %v2068
      %v2070 = vpop.f32.mrb[0].mxu0
      %2071 = vdwg.mxu0
      %v2072 = vadd.f32 %v1859, %v1946
      %v2073 = vadd.f32 %v1860, %v1949
      %v2074 = vadd.f32 %v1861, %v1954
      %v2075 = vadd.f32 %v1862, %v1957
      %v2076 = vadd.f32 %v1863, %v1962
      %v2077 = vadd.f32 %v1864, %v1965
      %v2078 = vadd.f32 %v1865, %v1970
      %v2079 = vadd.f32 %v1866, %v1973
      %v2080 = vadd.f32 %v1867, %v1978
      %v2081 = vadd.f32 %v1868, %v1981
      %v2082 = vadd.f32 %v1869, %v1986
      %v2083 = vadd.f32 %v1870, %v1989
      %v2084 = vadd.f32 %v1871, %v1994
      %v2085 = vadd.f32 %v1872, %v1997
      %v2086 = vadd.f32 %v1873, %v2002
      %v2087 = vadd.f32 %v1874, %v2005
      %v2088 = vadd.f32 %v1875, %v2010
      %v2089 = vadd.f32 %v1876, %v2013
      %v2090 = vadd.f32 %v1877, %v2018
      %v2091 = vadd.f32 %v1878, %v2021
      %v2092 = vadd.f32 %v1879, %v2026
      %v2093 = vadd.f32 %v1880, %v2029
      %v2094 = vadd.f32 %v1881, %v2034
      %v2095 = vadd.f32 %v1882, %v2037
      %v2096 = vadd.f32 %v1883, %v2042
      %v2097 = vadd.f32 %v1884, %v2045
      %v2098 = vadd.f32 %v1885, %v2050
      %v2099 = vadd.f32 %v1886, %v2053
      %v2100 = vadd.f32 %v1887, %v2058
      %v2101 = vadd.f32 %v1888, %v2061
      %v2102 = vadd.f32 %v1889, %v2066
      %v2103 = vadd.f32 %v1890, %v2069
      %s2104 = scalar_lea.vmem %s4, 4
      %v2105 = vld [vmem:[%s2104] sm:$0xf]
      %v2106 = vsel %vm596, %v1205, 0
      %v2108 = vsel %vm596, %v1207, 0
      %v2110 = vsel %vm596, %v1209, 0
      %v2112 = vsel %vm596, %v1211, 0
      %v2114 = vsel %vm596, %v1213, 0
      %v2116 = vsel %vm596, %v1215, 0
      %v2118 = vsel %vm596, %v1217, 0
      %v2120 = vsel %vm596, %v1219, 0
      %v2122 = vsel %vm596, %v1221, 0
      %v2124 = vsel %vm596, %v1223, 0
      %v2126 = vsel %vm596, %v1225, 0
      %v2128 = vsel %vm596, %v1227, 0
      %v2130 = vsel %vm596, %v1229, 0
      %v2132 = vsel %vm596, %v1231, 0
      %v2134 = vsel %vm596, %v1233, 0
      %v2136 = vsel %vm596, %v1235, 0
      %v2139 = vsel %vm1481, %v2105, 0
      %2141 = vmatprep.subr.bf16.mxu0 0
      %2142 = vmatpush1.bf16.msra.mxu0 %v2139
      %2143 = vmatprep.subr.bf16.mxu0 0
      %2144 = vmatpush1.bf16.msra.mxu0 0
      %2145 = vmatprep.subr.bf16.mxu0 0
      %2146 = vmatpush1.bf16.msra.mxu0 0
      %2147 = vmatprep.subr.bf16.mxu0 0
      %2148 = vmatpush1.bf16.msra.mxu0 0
      %2149 = vmatprep.subr.bf16.mxu0 0
      %2150 = vmatpush1.bf16.msra.mxu0 0
      %2151 = vmatprep.subr.bf16.mxu0 0
      %2152 = vmatpush1.bf16.msra.mxu0 0
      %2153 = vmatprep.subr.bf16.mxu0 0
      %2154 = vmatpush1.bf16.msra.mxu0 0
      %2155 = vmatprep.subr.bf16.mxu0 0
      %2156 = vmatpush1.bf16.msra.mxu0 0
      %2157 = vmatprep.subr.bf16.mxu0 0
      %2158 = vmatpush1.bf16.msra.mxu0 0
      %2159 = vmatprep.subr.bf16.mxu0 0
      %2160 = vmatpush1.bf16.msra.mxu0 0
      %2161 = vmatprep.subr.bf16.mxu0 0
      %2162 = vmatpush1.bf16.msra.mxu0 0
      %2163 = vmatprep.subr.bf16.mxu0 0
      %2164 = vmatpush1.bf16.msra.mxu0 0
      %2165 = vmatprep.subr.bf16.mxu0 0
      %2166 = vmatpush1.bf16.msra.mxu0 0
      %2167 = vmatprep.subr.bf16.mxu0 0
      %2168 = vmatpush1.bf16.msra.mxu0 0
      %2169 = vmatprep.subr.bf16.mxu0 0
      %2170 = vmatpush1.bf16.msra.mxu0 0
      %2171 = vmatprep.subr.bf16.mxu0 0
      %2172 = vmatpush1.bf16.msra.mxu0 0
      %2173 = vmatprep.mubr.bf16.mxu0 0
      %2174 = vmatmul.mubr.bf16.gmra.mrb[0].mxu0 %v2106
      %v2175 = vpop.f32.mrb[0].mxu0
      %v2176 = vadd.f32 0.0, %v2175
      %v2177 = vpop.f32.mrb[0].mxu0
      %v2178 = vpop.f32.mrb[0].mxu0
      %v2179 = vadd.f32 0.0, %v2178
      %v2180 = vpop.f32.mrb[0].mxu0
      %2181 = vmatprep.mubr.bf16.mxu0 0
      %2182 = vmatmul.mubr.bf16.gmra.mrb[0].mxu0 %v2108
      %v2183 = vpop.f32.mrb[0].mxu0
      %v2184 = vadd.f32 0.0, %v2183
      %v2185 = vpop.f32.mrb[0].mxu0
      %v2186 = vpop.f32.mrb[0].mxu0
      %v2187 = vadd.f32 0.0, %v2186
      %v2188 = vpop.f32.mrb[0].mxu0
      %2189 = vmatprep.mubr.bf16.mxu0 0
      %2190 = vmatmul.mubr.bf16.gmra.mrb[0].mxu0 %v2110
      %v2191 = vpop.f32.mrb[0].mxu0
      %v2192 = vadd.f32 0.0, %v2191
      %v2193 = vpop.f32.mrb[0].mxu0
      %v2194 = vpop.f32.mrb[0].mxu0
      %v2195 = vadd.f32 0.0, %v2194
      %v2196 = vpop.f32.mrb[0].mxu0
      %2197 = vmatprep.mubr.bf16.mxu0 0
      %2198 = vmatmul.mubr.bf16.gmra.mrb[0].mxu0 %v2112
      %v2199 = vpop.f32.mrb[0].mxu0
      %v2200 = vadd.f32 0.0, %v2199
      %v2201 = vpop.f32.mrb[0].mxu0
      %v2202 = vpop.f32.mrb[0].mxu0
      %v2203 = vadd.f32 0.0, %v2202
      %v2204 = vpop.f32.mrb[0].mxu0
      %2205 = vmatprep.mubr.bf16.mxu0 0
      %2206 = vmatmul.mubr.bf16.gmra.mrb[0].mxu0 %v2114
      %v2207 = vpop.f32.mrb[0].mxu0
      %v2208 = vadd.f32 0.0, %v2207
      %v2209 = vpop.f32.mrb[0].mxu0
      %v2210 = vpop.f32.mrb[0].mxu0
      %v2211 = vadd.f32 0.0, %v2210
      %v2212 = vpop.f32.mrb[0].mxu0
      %2213 = vmatprep.mubr.bf16.mxu0 0
      %2214 = vmatmul.mubr.bf16.gmra.mrb[0].mxu0 %v2116
      %v2215 = vpop.f32.mrb[0].mxu0
      %v2216 = vadd.f32 0.0, %v2215
      %v2217 = vpop.f32.mrb[0].mxu0
      %v2218 = vpop.f32.mrb[0].mxu0
      %v2219 = vadd.f32 0.0, %v2218
      %v2220 = vpop.f32.mrb[0].mxu0
      %2221 = vmatprep.mubr.bf16.mxu0 0
      %2222 = vmatmul.mubr.bf16.gmra.mrb[0].mxu0 %v2118
      %v2223 = vpop.f32.mrb[0].mxu0
      %v2224 = vadd.f32 0.0, %v2223
      %v2225 = vpop.f32.mrb[0].mxu0
      %v2226 = vpop.f32.mrb[0].mxu0
      %v2227 = vadd.f32 0.0, %v2226
      %v2228 = vpop.f32.mrb[0].mxu0
      %2229 = vmatprep.mubr.bf16.mxu0 0
      %2230 = vmatmul.mubr.bf16.gmra.mrb[0].mxu0 %v2120
      %v2231 = vpop.f32.mrb[0].mxu0
      %v2232 = vadd.f32 0.0, %v2231
      %v2233 = vpop.f32.mrb[0].mxu0
      %v2234 = vpop.f32.mrb[0].mxu0
      %v2235 = vadd.f32 0.0, %v2234
      %v2236 = vpop.f32.mrb[0].mxu0
      %2237 = vmatprep.mubr.bf16.mxu0 0
      %2238 = vmatmul.mubr.bf16.gmra.mrb[0].mxu0 %v2122
      %v2239 = vpop.f32.mrb[0].mxu0
      %v2240 = vadd.f32 0.0, %v2239
      %v2241 = vpop.f32.mrb[0].mxu0
      %v2242 = vpop.f32.mrb[0].mxu0
      %v2243 = vadd.f32 0.0, %v2242
      %v2244 = vpop.f32.mrb[0].mxu0
      %2245 = vmatprep.mubr.bf16.mxu0 0
      %2246 = vmatmul.mubr.bf16.gmra.mrb[0].mxu0 %v2124
      %v2247 = vpop.f32.mrb[0].mxu0
      %v2248 = vadd.f32 0.0, %v2247
      %v2249 = vpop.f32.mrb[0].mxu0
      %v2250 = vpop.f32.mrb[0].mxu0
      %v2251 = vadd.f32 0.0, %v2250
      %v2252 = vpop.f32.mrb[0].mxu0
      %2253 = vmatprep.mubr.bf16.mxu0 0
      %2254 = vmatmul.mubr.bf16.gmra.mrb[0].mxu0 %v2126
      %v2255 = vpop.f32.mrb[0].mxu0
      %v2256 = vadd.f32 0.0, %v2255
      %v2257 = vpop.f32.mrb[0].mxu0
      %v2258 = vpop.f32.mrb[0].mxu0
      %v2259 = vadd.f32 0.0, %v2258
      %v2260 = vpop.f32.mrb[0].mxu0
      %2261 = vmatprep.mubr.bf16.mxu0 0
      %2262 = vmatmul.mubr.bf16.gmra.mrb[0].mxu0 %v2128
      %v2263 = vpop.f32.mrb[0].mxu0
      %v2264 = vadd.f32 0.0, %v2263
      %v2265 = vpop.f32.mrb[0].mxu0
      %v2266 = vpop.f32.mrb[0].mxu0
      %v2267 = vadd.f32 0.0, %v2266
      %v2268 = vpop.f32.mrb[0].mxu0
      %2269 = vmatprep.mubr.bf16.mxu0 0
      %2270 = vmatmul.mubr.bf16.gmra.mrb[0].mxu0 %v2130
      %v2271 = vpop.f32.mrb[0].mxu0
      %v2272 = vadd.f32 0.0, %v2271
      %v2273 = vpop.f32.mrb[0].mxu0
      %v2274 = vpop.f32.mrb[0].mxu0
      %v2275 = vadd.f32 0.0, %v2274
      %v2276 = vpop.f32.mrb[0].mxu0
      %2277 = vmatprep.mubr.bf16.mxu0 0
      %2278 = vmatmul.mubr.bf16.gmra.mrb[0].mxu0 %v2132
      %v2279 = vpop.f32.mrb[0].mxu0
      %v2280 = vadd.f32 0.0, %v2279
      %v2281 = vpop.f32.mrb[0].mxu0
      %v2282 = vpop.f32.mrb[0].mxu0
      %v2283 = vadd.f32 0.0, %v2282
      %v2284 = vpop.f32.mrb[0].mxu0
      %2285 = vmatprep.mubr.bf16.mxu0 0
      %2286 = vmatmul.mubr.bf16.gmra.mrb[0].mxu0 %v2134
      %v2287 = vpop.f32.mrb[0].mxu0
      %v2288 = vadd.f32 0.0, %v2287
      %v2289 = vpop.f32.mrb[0].mxu0
      %v2290 = vpop.f32.mrb[0].mxu0
      %v2291 = vadd.f32 0.0, %v2290
      %v2292 = vpop.f32.mrb[0].mxu0
      %2293 = vmatprep.mubr.bf16.mxu0 0
      %2294 = vmatmul.mubr.bf16.gmra.mrb[0].mxu0 %v2136
      %v2295 = vpop.f32.mrb[0].mxu0
      %v2296 = vadd.f32 0.0, %v2295
      %v2297 = vpop.f32.mrb[0].mxu0
      %v2298 = vpop.f32.mrb[0].mxu0
      %v2299 = vadd.f32 0.0, %v2298
      %v2300 = vpop.f32.mrb[0].mxu0
      %2301 = vdwg.mxu0
      %v2302 = vadd.f32 %v2072, %v2176
      %v2303 = vadd.f32 %v2073, %v2179
      %v2304 = vadd.f32 %v2074, %v2184
      %v2305 = vadd.f32 %v2075, %v2187
      %v2306 = vadd.f32 %v2076, %v2192
      %v2307 = vadd.f32 %v2077, %v2195
      %v2308 = vadd.f32 %v2078, %v2200
      %v2309 = vadd.f32 %v2079, %v2203
      %v2310 = vadd.f32 %v2080, %v2208
      %v2311 = vadd.f32 %v2081, %v2211
      %v2312 = vadd.f32 %v2082, %v2216
      %v2313 = vadd.f32 %v2083, %v2219
      %v2314 = vadd.f32 %v2084, %v2224
      %v2315 = vadd.f32 %v2085, %v2227
      %v2316 = vadd.f32 %v2086, %v2232
      %v2317 = vadd.f32 %v2087, %v2235
      %v2318 = vadd.f32 %v2088, %v2240
      %v2319 = vadd.f32 %v2089, %v2243
      %v2320 = vadd.f32 %v2090, %v2248
      %v2321 = vadd.f32 %v2091, %v2251
      %v2322 = vadd.f32 %v2092, %v2256
      %v2323 = vadd.f32 %v2093, %v2259
      %v2324 = vadd.f32 %v2094, %v2264
      %v2325 = vadd.f32 %v2095, %v2267
      %v2326 = vadd.f32 %v2096, %v2272
      %v2327 = vadd.f32 %v2097, %v2275
      %v2328 = vadd.f32 %v2098, %v2280
      %v2329 = vadd.f32 %v2099, %v2283
      %v2330 = vadd.f32 %v2100, %v2288
      %v2331 = vadd.f32 %v2101, %v2291
      %v2332 = vadd.f32 %v2102, %v2296
      %v2333 = vadd.f32 %v2103, %v2299
      %s2334 = scalar_lea.vmem %s4, 16
      %v2335 = vld [vmem:[%s2334] sm:$0xf]
      %v2336 = vsel %vm596, %v1237, 0
      %v2339 = vsel %vm1481, %v2335, 0
      %2341 = vmatprep.subr.bf16.mxu0 0
      %2342 = vmatpush1.bf16.msra.mxu0 %v2339
      %2343 = vmatprep.subr.bf16.mxu0 0
      %2344 = vmatpush1.bf16.msra.mxu0 0
      %2345 = vmatprep.subr.bf16.mxu0 0
      %2346 = vmatpush1.bf16.msra.mxu0 0
      %2347 = vmatprep.subr.bf16.mxu0 0
      %2348 = vmatpush1.bf16.msra.mxu0 0
      %2349 = vmatprep.subr.bf16.mxu0 0
      %2350 = vmatpush1.bf16.msra.mxu0 0
      %2351 = vmatprep.subr.bf16.mxu0 0
      %2352 = vmatpush1.bf16.msra.mxu0 0
      %2353 = vmatprep.subr.bf16.mxu0 0
      %2354 = vmatpush1.bf16.msra.mxu0 0
      %2355 = vmatprep.subr.bf16.mxu0 0
      %2356 = vmatpush1.bf16.msra.mxu0 0
      %2357 = vmatprep.subr.bf16.mxu0 0
      %2358 = vmatpush1.bf16.msra.mxu0 0
      %2359 = vmatprep.subr.bf16.mxu0 0
      %2360 = vmatpush1.bf16.msra.mxu0 0
      %2361 = vmatprep.subr.bf16.mxu0 0
      %2362 = vmatpush1.bf16.msra.mxu0 0
      %2363 = vmatprep.subr.bf16.mxu0 0
      %2364 = vmatpush1.bf16.msra.mxu0 0
      %2365 = vmatprep.subr.bf16.mxu0 0
      %2366 = vmatpush1.bf16.msra.mxu0 0
      %2367 = vmatprep.subr.bf16.mxu0 0
      %2368 = vmatpush1.bf16.msra.mxu0 0
      %2369 = vmatprep.subr.bf16.mxu0 0
      %2370 = vmatpush1.bf16.msra.mxu0 0
      %2371 = vmatprep.subr.bf16.mxu0 0
      %2372 = vmatpush1.bf16.msra.mxu0 0
      %2373 = vmatprep.mubr.bf16.mxu0 0
      %2374 = vmatmul.mubr.bf16.gmra.mrb[0].mxu0 %v2108
      %v2375 = vpop.f32.mrb[0].mxu0
      %v2376 = vadd.f32 0.0, %v2375
      %v2377 = vpop.f32.mrb[0].mxu0
      %v2378 = vpop.f32.mrb[0].mxu0
      %v2379 = vadd.f32 0.0, %v2378
      %v2380 = vpop.f32.mrb[0].mxu0
      %2381 = vmatprep.mubr.bf16.mxu0 0
      %2382 = vmatmul.mubr.bf16.gmra.mrb[0].mxu0 %v2110
      %v2383 = vpop.f32.mrb[0].mxu0
      %v2384 = vadd.f32 0.0, %v2383
      %v2385 = vpop.f32.mrb[0].mxu0
      %v2386 = vpop.f32.mrb[0].mxu0
      %v2387 = vadd.f32 0.0, %v2386
      %v2388 = vpop.f32.mrb[0].mxu0
      %2389 = vmatprep.mubr.bf16.mxu0 0
      %2390 = vmatmul.mubr.bf16.gmra.mrb[0].mxu0 %v2112
      %v2391 = vpop.f32.mrb[0].mxu0
      %v2392 = vadd.f32 0.0, %v2391
      %v2393 = vpop.f32.mrb[0].mxu0
      %v2394 = vpop.f32.mrb[0].mxu0
      %v2395 = vadd.f32 0.0, %v2394
      %v2396 = vpop.f32.mrb[0].mxu0
      %2397 = vmatprep.mubr.bf16.mxu0 0
      %2398 = vmatmul.mubr.bf16.gmra.mrb[0].mxu0 %v2114
      %v2399 = vpop.f32.mrb[0].mxu0
      %v2400 = vadd.f32 0.0, %v2399
      %v2401 = vpop.f32.mrb[0].mxu0
      %v2402 = vpop.f32.mrb[0].mxu0
      %v2403 = vadd.f32 0.0, %v2402
      %v2404 = vpop.f32.mrb[0].mxu0
      %2405 = vmatprep.mubr.bf16.mxu0 0
      %2406 = vmatmul.mubr.bf16.gmra.mrb[0].mxu0 %v2116
      %v2407 = vpop.f32.mrb[0].mxu0
      %v2408 = vadd.f32 0.0, %v2407
      %v2409 = vpop.f32.mrb[0].mxu0
      %v2410 = vpop.f32.mrb[0].mxu0
      %v2411 = vadd.f32 0.0, %v2410
      %v2412 = vpop.f32.mrb[0].mxu0
      %2413 = vmatprep.mubr.bf16.mxu0 0
      %2414 = vmatmul.mubr.bf16.gmra.mrb[0].mxu0 %v2118
      %v2415 = vpop.f32.mrb[0].mxu0
      %v2416 = vadd.f32 0.0, %v2415
      %v2417 = vpop.f32.mrb[0].mxu0
      %v2418 = vpop.f32.mrb[0].mxu0
      %v2419 = vadd.f32 0.0, %v2418
      %v2420 = vpop.f32.mrb[0].mxu0
      %2421 = vmatprep.mubr.bf16.mxu0 0
      %2422 = vmatmul.mubr.bf16.gmra.mrb[0].mxu0 %v2120
      %v2423 = vpop.f32.mrb[0].mxu0
      %v2424 = vadd.f32 0.0, %v2423
      %v2425 = vpop.f32.mrb[0].mxu0
      %v2426 = vpop.f32.mrb[0].mxu0
      %v2427 = vadd.f32 0.0, %v2426
      %v2428 = vpop.f32.mrb[0].mxu0
      %2429 = vmatprep.mubr.bf16.mxu0 0
      %2430 = vmatmul.mubr.bf16.gmra.mrb[0].mxu0 %v2122
      %v2431 = vpop.f32.mrb[0].mxu0
      %v2432 = vadd.f32 0.0, %v2431
      %v2433 = vpop.f32.mrb[0].mxu0
      %v2434 = vpop.f32.mrb[0].mxu0
      %v2435 = vadd.f32 0.0, %v2434
      %v2436 = vpop.f32.mrb[0].mxu0
      %2437 = vmatprep.mubr.bf16.mxu0 0
      %2438 = vmatmul.mubr.bf16.gmra.mrb[0].mxu0 %v2124
      %v2439 = vpop.f32.mrb[0].mxu0
      %v2440 = vadd.f32 0.0, %v2439
      %v2441 = vpop.f32.mrb[0].mxu0
      %v2442 = vpop.f32.mrb[0].mxu0
      %v2443 = vadd.f32 0.0, %v2442
      %v2444 = vpop.f32.mrb[0].mxu0
      %2445 = vmatprep.mubr.bf16.mxu0 0
      %2446 = vmatmul.mubr.bf16.gmra.mrb[0].mxu0 %v2126
      %v2447 = vpop.f32.mrb[0].mxu0
      %v2448 = vadd.f32 0.0, %v2447
      %v2449 = vpop.f32.mrb[0].mxu0
      %v2450 = vpop.f32.mrb[0].mxu0
      %v2451 = vadd.f32 0.0, %v2450
      %v2452 = vpop.f32.mrb[0].mxu0
      %2453 = vmatprep.mubr.bf16.mxu0 0
      %2454 = vmatmul.mubr.bf16.gmra.mrb[0].mxu0 %v2128
      %v2455 = vpop.f32.mrb[0].mxu0
      %v2456 = vadd.f32 0.0, %v2455
      %v2457 = vpop.f32.mrb[0].mxu0
      %v2458 = vpop.f32.mrb[0].mxu0
      %v2459 = vadd.f32 0.0, %v2458
      %v2460 = vpop.f32.mrb[0].mxu0
      %2461 = vmatprep.mubr.bf16.mxu0 0
      %2462 = vmatmul.mubr.bf16.gmra.mrb[0].mxu0 %v2130
      %v2463 = vpop.f32.mrb[0].mxu0
      %v2464 = vadd.f32 0.0, %v2463
      %v2465 = vpop.f32.mrb[0].mxu0
      %v2466 = vpop.f32.mrb[0].mxu0
      %v2467 = vadd.f32 0.0, %v2466
      %v2468 = vpop.f32.mrb[0].mxu0
      %2469 = vmatprep.mubr.bf16.mxu0 0
      %2470 = vmatmul.mubr.bf16.gmra.mrb[0].mxu0 %v2132
      %v2471 = vpop.f32.mrb[0].mxu0
      %v2472 = vadd.f32 0.0, %v2471
      %v2473 = vpop.f32.mrb[0].mxu0
      %v2474 = vpop.f32.mrb[0].mxu0
      %v2475 = vadd.f32 0.0, %v2474
      %v2476 = vpop.f32.mrb[0].mxu0
      %2477 = vmatprep.mubr.bf16.mxu0 0
      %2478 = vmatmul.mubr.bf16.gmra.mrb[0].mxu0 %v2134
      %v2479 = vpop.f32.mrb[0].mxu0
      %v2480 = vadd.f32 0.0, %v2479
      %v2481 = vpop.f32.mrb[0].mxu0
      %v2482 = vpop.f32.mrb[0].mxu0
      %v2483 = vadd.f32 0.0, %v2482
      %v2484 = vpop.f32.mrb[0].mxu0
      %2485 = vmatprep.mubr.bf16.mxu0 0
      %2486 = vmatmul.mubr.bf16.gmra.mrb[0].mxu0 %v2136
      %v2487 = vpop.f32.mrb[0].mxu0
      %v2488 = vadd.f32 0.0, %v2487
      %v2489 = vpop.f32.mrb[0].mxu0
      %v2490 = vpop.f32.mrb[0].mxu0
      %v2491 = vadd.f32 0.0, %v2490
      %v2492 = vpop.f32.mrb[0].mxu0
      %2493 = vmatprep.mubr.bf16.mxu0 0
      %2494 = vmatmul.mubr.bf16.gmra.mrb[0].mxu0 %v2336
      %v2495 = vpop.f32.mrb[0].mxu0
      %v2496 = vadd.f32 0.0, %v2495
      %v2497 = vpop.f32.mrb[0].mxu0
      %v2498 = vpop.f32.mrb[0].mxu0
      %v2499 = vadd.f32 0.0, %v2498
      %v2500 = vpop.f32.mrb[0].mxu0
      %2501 = vdwg.mxu0
      %v2502 = vadd.f32 %v2302, %v2376
      %v2503 = vadd.f32 %v2303, %v2379
      %v2504 = vadd.f32 %v2304, %v2384
      %v2505 = vadd.f32 %v2305, %v2387
      %v2506 = vadd.f32 %v2306, %v2392
      %v2507 = vadd.f32 %v2307, %v2395
      %v2508 = vadd.f32 %v2308, %v2400
      %v2509 = vadd.f32 %v2309, %v2403
      %v2510 = vadd.f32 %v2310, %v2408
      %v2511 = vadd.f32 %v2311, %v2411
      %v2512 = vadd.f32 %v2312, %v2416
      %v2513 = vadd.f32 %v2313, %v2419
      %v2514 = vadd.f32 %v2314, %v2424
      %v2515 = vadd.f32 %v2315, %v2427
      %v2516 = vadd.f32 %v2316, %v2432
      %v2517 = vadd.f32 %v2317, %v2435
      %v2518 = vadd.f32 %v2318, %v2440
      %v2519 = vadd.f32 %v2319, %v2443
      %v2520 = vadd.f32 %v2320, %v2448
      %v2521 = vadd.f32 %v2321, %v2451
      %v2522 = vadd.f32 %v2322, %v2456
      %v2523 = vadd.f32 %v2323, %v2459
      %v2524 = vadd.f32 %v2324, %v2464
      %v2525 = vadd.f32 %v2325, %v2467
      %v2526 = vadd.f32 %v2326, %v2472
      %v2527 = vadd.f32 %v2327, %v2475
      %v2528 = vadd.f32 %v2328, %v2480
      %v2529 = vadd.f32 %v2329, %v2483
      %v2530 = vadd.f32 %v2330, %v2488
      %v2531 = vadd.f32 %v2331, %v2491
      %v2532 = vadd.f32 %v2332, %v2496
      %v2533 = vadd.f32 %v2333, %v2499
      %s2534 = scalar_lea.vmem %s4, 28
      %v2535 = vld [vmem:[%s2534] sm:$0xf]
      %v2536 = vsel %vm596, %v1239, 0
      %v2539 = vsel %vm1481, %v2535, 0
      %2541 = vmatprep.subr.bf16.mxu0 0
      %2542 = vmatpush1.bf16.msra.mxu0 %v2539
      %2543 = vmatprep.subr.bf16.mxu0 0
      %2544 = vmatpush1.bf16.msra.mxu0 0
      %2545 = vmatprep.subr.bf16.mxu0 0
      %2546 = vmatpush1.bf16.msra.mxu0 0
      %2547 = vmatprep.subr.bf16.mxu0 0
      %2548 = vmatpush1.bf16.msra.mxu0 0
      %2549 = vmatprep.subr.bf16.mxu0 0
      %2550 = vmatpush1.bf16.msra.mxu0 0
      %2551 = vmatprep.subr.bf16.mxu0 0
      %2552 = vmatpush1.bf16.msra.mxu0 0
      %2553 = vmatprep.subr.bf16.mxu0 0
      %2554 = vmatpush1.bf16.msra.mxu0 0
      %2555 = vmatprep.subr.bf16.mxu0 0
      %2556 = vmatpush1.bf16.msra.mxu0 0
      %2557 = vmatprep.subr.bf16.mxu0 0
      %2558 = vmatpush1.bf16.msra.mxu0 0
      %2559 = vmatprep.subr.bf16.mxu0 0
      %2560 = vmatpush1.bf16.msra.mxu0 0
      %2561 = vmatprep.subr.bf16.mxu0 0
      %2562 = vmatpush1.bf16.msra.mxu0 0
      %2563 = vmatprep.subr.bf16.mxu0 0
      %2564 = vmatpush1.bf16.msra.mxu0 0
      %2565 = vmatprep.subr.bf16.mxu0 0
      %2566 = vmatpush1.bf16.msra.mxu0 0
      %2567 = vmatprep.subr.bf16.mxu0 0
      %2568 = vmatpush1.bf16.msra.mxu0 0
      %2569 = vmatprep.subr.bf16.mxu0 0
      %2570 = vmatpush1.bf16.msra.mxu0 0
      %2571 = vmatprep.subr.bf16.mxu0 0
      %2572 = vmatpush1.bf16.msra.mxu0 0
      %2573 = vmatprep.mubr.bf16.mxu0 0
      %2574 = vmatmul.mubr.bf16.gmra.mrb[0].mxu0 %v2110
      %v2575 = vpop.f32.mrb[0].mxu0
      %v2576 = vadd.f32 0.0, %v2575
      %v2577 = vpop.f32.mrb[0].mxu0
      %v2578 = vpop.f32.mrb[0].mxu0
      %v2579 = vadd.f32 0.0, %v2578
      %v2580 = vpop.f32.mrb[0].mxu0
      %2581 = vmatprep.mubr.bf16.mxu0 0
      %2582 = vmatmul.mubr.bf16.gmra.mrb[0].mxu0 %v2112
      %v2583 = vpop.f32.mrb[0].mxu0
      %v2584 = vadd.f32 0.0, %v2583
      %v2585 = vpop.f32.mrb[0].mxu0
      %v2586 = vpop.f32.mrb[0].mxu0
      %v2587 = vadd.f32 0.0, %v2586
      %v2588 = vpop.f32.mrb[0].mxu0
      %2589 = vmatprep.mubr.bf16.mxu0 0
      %2590 = vmatmul.mubr.bf16.gmra.mrb[0].mxu0 %v2114
      %v2591 = vpop.f32.mrb[0].mxu0
      %v2592 = vadd.f32 0.0, %v2591
      %v2593 = vpop.f32.mrb[0].mxu0
      %v2594 = vpop.f32.mrb[0].mxu0
      %v2595 = vadd.f32 0.0, %v2594
      %v2596 = vpop.f32.mrb[0].mxu0
      %2597 = vmatprep.mubr.bf16.mxu0 0
      %2598 = vmatmul.mubr.bf16.gmra.mrb[0].mxu0 %v2116
      %v2599 = vpop.f32.mrb[0].mxu0
      %v2600 = vadd.f32 0.0, %v2599
      %v2601 = vpop.f32.mrb[0].mxu0
      %v2602 = vpop.f32.mrb[0].mxu0
      %v2603 = vadd.f32 0.0, %v2602
      %v2604 = vpop.f32.mrb[0].mxu0
      %2605 = vmatprep.mubr.bf16.mxu0 0
      %2606 = vmatmul.mubr.bf16.gmra.mrb[0].mxu0 %v2118
      %v2607 = vpop.f32.mrb[0].mxu0
      %v2608 = vadd.f32 0.0, %v2607
      %v2609 = vpop.f32.mrb[0].mxu0
      %v2610 = vpop.f32.mrb[0].mxu0
      %v2611 = vadd.f32 0.0, %v2610
      %v2612 = vpop.f32.mrb[0].mxu0
      %2613 = vmatprep.mubr.bf16.mxu0 0
      %2614 = vmatmul.mubr.bf16.gmra.mrb[0].mxu0 %v2120
      %v2615 = vpop.f32.mrb[0].mxu0
      %v2616 = vadd.f32 0.0, %v2615
      %v2617 = vpop.f32.mrb[0].mxu0
      %v2618 = vpop.f32.mrb[0].mxu0
      %v2619 = vadd.f32 0.0, %v2618
      %v2620 = vpop.f32.mrb[0].mxu0
      %2621 = vmatprep.mubr.bf16.mxu0 0
      %2622 = vmatmul.mubr.bf16.gmra.mrb[0].mxu0 %v2122
      %v2623 = vpop.f32.mrb[0].mxu0
      %v2624 = vadd.f32 0.0, %v2623
      %v2625 = vpop.f32.mrb[0].mxu0
      %v2626 = vpop.f32.mrb[0].mxu0
      %v2627 = vadd.f32 0.0, %v2626
      %v2628 = vpop.f32.mrb[0].mxu0
      %2629 = vmatprep.mubr.bf16.mxu0 0
      %2630 = vmatmul.mubr.bf16.gmra.mrb[0].mxu0 %v2124
      %v2631 = vpop.f32.mrb[0].mxu0
      %v2632 = vadd.f32 0.0, %v2631
      %v2633 = vpop.f32.mrb[0].mxu0
      %v2634 = vpop.f32.mrb[0].mxu0
      %v2635 = vadd.f32 0.0, %v2634
      %v2636 = vpop.f32.mrb[0].mxu0
      %2637 = vmatprep.mubr.bf16.mxu0 0
      %2638 = vmatmul.mubr.bf16.gmra.mrb[0].mxu0 %v2126
      %v2639 = vpop.f32.mrb[0].mxu0
      %v2640 = vadd.f32 0.0, %v2639
      %v2641 = vpop.f32.mrb[0].mxu0
      %v2642 = vpop.f32.mrb[0].mxu0
      %v2643 = vadd.f32 0.0, %v2642
      %v2644 = vpop.f32.mrb[0].mxu0
      %2645 = vmatprep.mubr.bf16.mxu0 0
      %2646 = vmatmul.mubr.bf16.gmra.mrb[0].mxu0 %v2128
      %v2647 = vpop.f32.mrb[0].mxu0
      %v2648 = vadd.f32 0.0, %v2647
      %v2649 = vpop.f32.mrb[0].mxu0
      %v2650 = vpop.f32.mrb[0].mxu0
      %v2651 = vadd.f32 0.0, %v2650
      %v2652 = vpop.f32.mrb[0].mxu0
      %2653 = vmatprep.mubr.bf16.mxu0 0
      %2654 = vmatmul.mubr.bf16.gmra.mrb[0].mxu0 %v2130
      %v2655 = vpop.f32.mrb[0].mxu0
      %v2656 = vadd.f32 0.0, %v2655
      %v2657 = vpop.f32.mrb[0].mxu0
      %v2658 = vpop.f32.mrb[0].mxu0
      %v2659 = vadd.f32 0.0, %v2658
      %v2660 = vpop.f32.mrb[0].mxu0
      %2661 = vmatprep.mubr.bf16.mxu0 0
      %2662 = vmatmul.mubr.bf16.gmra.mrb[0].mxu0 %v2132
      %v2663 = vpop.f32.mrb[0].mxu0
      %v2664 = vadd.f32 0.0, %v2663
      %v2665 = vpop.f32.mrb[0].mxu0
      %v2666 = vpop.f32.mrb[0].mxu0
      %v2667 = vadd.f32 0.0, %v2666
      %v2668 = vpop.f32.mrb[0].mxu0
      %2669 = vmatprep.mubr.bf16.mxu0 0
      %2670 = vmatmul.mubr.bf16.gmra.mrb[0].mxu0 %v2134
      %v2671 = vpop.f32.mrb[0].mxu0
      %v2672 = vadd.f32 0.0, %v2671
      %v2673 = vpop.f32.mrb[0].mxu0
      %v2674 = vpop.f32.mrb[0].mxu0
      %v2675 = vadd.f32 0.0, %v2674
      %v2676 = vpop.f32.mrb[0].mxu0
      %2677 = vmatprep.mubr.bf16.mxu0 0
      %2678 = vmatmul.mubr.bf16.gmra.mrb[0].mxu0 %v2136
      %v2679 = vpop.f32.mrb[0].mxu0
      %v2680 = vadd.f32 0.0, %v2679
      %v2681 = vpop.f32.mrb[0].mxu0
      %v2682 = vpop.f32.mrb[0].mxu0
      %v2683 = vadd.f32 0.0, %v2682
      %v2684 = vpop.f32.mrb[0].mxu0
      %2685 = vmatprep.mubr.bf16.mxu0 0
      %2686 = vmatmul.mubr.bf16.gmra.mrb[0].mxu0 %v2336
      %v2687 = vpop.f32.mrb[0].mxu0
      %v2688 = vadd.f32 0.0, %v2687
      %v2689 = vpop.f32.mrb[0].mxu0
      %v2690 = vpop.f32.mrb[0].mxu0
      %v2691 = vadd.f32 0.0, %v2690
      %v2692 = vpop.f32.mrb[0].mxu0
      %2693 = vmatprep.mubr.bf16.mxu0 0
      %2694 = vmatmul.mubr.bf16.gmra.mrb[0].mxu0 %v2536
      %v2695 = vpop.f32.mrb[0].mxu0
      %v2696 = vadd.f32 0.0, %v2695
      %v2697 = vpop.f32.mrb[0].mxu0
      %v2698 = vpop.f32.mrb[0].mxu0
      %v2699 = vadd.f32 0.0, %v2698
      %v2700 = vpop.f32.mrb[0].mxu0
      %2701 = vdwg.mxu0
      %v2702 = vadd.f32 %v2502, %v2576
      %v2703 = vadd.f32 %v2503, %v2579
      %v2704 = vadd.f32 %v2504, %v2584
      %v2705 = vadd.f32 %v2505, %v2587
      %v2706 = vadd.f32 %v2506, %v2592
      %v2707 = vadd.f32 %v2507, %v2595
      %v2708 = vadd.f32 %v2508, %v2600
      %v2709 = vadd.f32 %v2509, %v2603
      %v2710 = vadd.f32 %v2510, %v2608
      %v2711 = vadd.f32 %v2511, %v2611
      %v2712 = vadd.f32 %v2512, %v2616
      %v2713 = vadd.f32 %v2513, %v2619
      %v2714 = vadd.f32 %v2514, %v2624
      %v2715 = vadd.f32 %v2515, %v2627
      %v2716 = vadd.f32 %v2516, %v2632
      %v2717 = vadd.f32 %v2517, %v2635
      %v2718 = vadd.f32 %v2518, %v2640
      %v2719 = vadd.f32 %v2519, %v2643
      %v2720 = vadd.f32 %v2520, %v2648
      %v2721 = vadd.f32 %v2521, %v2651
      %v2722 = vadd.f32 %v2522, %v2656
      %v2723 = vadd.f32 %v2523, %v2659
      %v2724 = vadd.f32 %v2524, %v2664
      %v2725 = vadd.f32 %v2525, %v2667
      %v2726 = vadd.f32 %v2526, %v2672
      %v2727 = vadd.f32 %v2527, %v2675
      %v2728 = vadd.f32 %v2528, %v2680
      %v2729 = vadd.f32 %v2529, %v2683
      %v2730 = vadd.f32 %v2530, %v2688
      %v2731 = vadd.f32 %v2531, %v2691
      %v2732 = vadd.f32 %v2532, %v2696
      %v2733 = vadd.f32 %v2533, %v2699
      %v2734 = vld [vmem:[#allocation2 + $0x8] sm:$0xff]
      %v2735 = vld [vmem:[#allocation2 + $0x10] sm:$0x1]
      %v2736 = vld [vmem:[#allocation2 + $0x20] sm:$0xff]
      %v2737 = vld [vmem:[#allocation2 + $0x28] sm:$0x1]
      %v2738 = vld [vmem:[#allocation2 + $0x38] sm:$0xff]
      %v2739 = vld [vmem:[#allocation2 + $0x40] sm:$0x1]
      %v2740 = vld [vmem:[#allocation2 + $0x50] sm:$0xff]
      %v2741 = vld [vmem:[#allocation2 + $0x58] sm:$0x1]
      %v2742 = vld [vmem:[#allocation2 + $0x68] sm:$0xff]
      %v2743 = vld [vmem:[#allocation2 + $0x70] sm:$0x1]
      %v2744 = vld [vmem:[#allocation2 + $0x80] sm:$0xff]
      %v2745 = vld [vmem:[#allocation2 + $0x88] sm:$0x1]
      %v2746 = vld [vmem:[#allocation2 + $0x98] sm:$0xff]
      %v2747 = vld [vmem:[#allocation2 + $0xa0] sm:$0x1]
      %v2748 = vld [vmem:[#allocation2 + $0xb0] sm:$0xff]
      %v2749 = vld [vmem:[#allocation2 + $0xb8] sm:$0x1]
      %v2750 = vld [vmem:[#allocation2 + $0xc8] sm:$0xff]
      %v2751 = vld [vmem:[#allocation2 + $0xd0] sm:$0x1]
      %v2752 = vld [vmem:[#allocation2 + $0xe0] sm:$0xff]
      %v2753 = vld [vmem:[#allocation2 + $0xe8] sm:$0x1]
      %v2754 = vld [vmem:[#allocation2 + $0xf8] sm:$0xff]
      %v2755 = vld [vmem:[#allocation2 + $0x100] sm:$0x1]
      %v2756 = vld [vmem:[#allocation2 + $0x110] sm:$0xff]
      %v2757 = vld [vmem:[#allocation2 + $0x118] sm:$0x1]
      %v2758 = vld [vmem:[#allocation2 + $0x128] sm:$0xff]
      %v2759 = vld [vmem:[#allocation2 + $0x130] sm:$0x1]
      %v2760 = vld [vmem:[#allocation2 + $0x140] sm:$0xff]
      %v2761 = vld [vmem:[#allocation2 + $0x148] sm:$0x1]
      %v2762 = vld [vmem:[#allocation2 + $0x158] sm:$0xff]
      %v2763 = vld [vmem:[#allocation2 + $0x160] sm:$0x1]
      %v2764 = vld [vmem:[#allocation2 + $0x170] sm:$0xff]
      %v2765 = vld [vmem:[#allocation2 + $0x178] sm:$0x1]
      %v2766 = vld [vmem:[#allocation2 + $0x188] sm:$0xff]
      %v2767 = vld [vmem:[#allocation2 + $0x190] sm:$0x1]
      %v2768 = vld [vmem:[#allocation2 + $0x1a0] sm:$0xff]
      %v2769 = vld [vmem:[#allocation2 + $0x1a8] sm:$0x1]
      %vm2770 = vsmask.f32 7424
      %v2772 = vshrl.u32 %v2734, 16
      %v2774 = vshll.u32 %v2734, 16
      %v2776 = vrot.slane %v2774, 1
      %v2777 = vor.u32 %v2772, %v2776
      %v2779 = vshll.u32 %v2735, 16
      %v2781 = vrot.slane %v2779, 1
      %v2782 = vsel %vm2770, %v2777, %v2781
      %v2784 = vshrl.u32 %v2736, 16
      %v2786 = vshll.u32 %v2736, 16
      %v2788 = vrot.slane %v2786, 1
      %v2789 = vor.u32 %v2784, %v2788
      %v2791 = vshll.u32 %v2737, 16
      %v2793 = vrot.slane %v2791, 1
      %v2794 = vsel %vm2770, %v2789, %v2793
      %v2796 = vshrl.u32 %v2738, 16
      %v2798 = vshll.u32 %v2738, 16
      %v2800 = vrot.slane %v2798, 1
      %v2801 = vor.u32 %v2796, %v2800
      %v2803 = vshll.u32 %v2739, 16
      %v2805 = vrot.slane %v2803, 1
      %v2806 = vsel %vm2770, %v2801, %v2805
      %v2808 = vshrl.u32 %v2740, 16
      %v2810 = vshll.u32 %v2740, 16
      %v2812 = vrot.slane %v2810, 1
      %v2813 = vor.u32 %v2808, %v2812
      %v2815 = vshll.u32 %v2741, 16
      %v2817 = vrot.slane %v2815, 1
      %v2818 = vsel %vm2770, %v2813, %v2817
      %v2820 = vshrl.u32 %v2742, 16
      %v2822 = vshll.u32 %v2742, 16
      %v2824 = vrot.slane %v2822, 1
      %v2825 = vor.u32 %v2820, %v2824
      %v2827 = vshll.u32 %v2743, 16
      %v2829 = vrot.slane %v2827, 1
      %v2830 = vsel %vm2770, %v2825, %v2829
      %v2832 = vshrl.u32 %v2744, 16
      %v2834 = vshll.u32 %v2744, 16
      %v2836 = vrot.slane %v2834, 1
      %v2837 = vor.u32 %v2832, %v2836
      %v2839 = vshll.u32 %v2745, 16
      %v2841 = vrot.slane %v2839, 1
      %v2842 = vsel %vm2770, %v2837, %v2841
      %v2844 = vshrl.u32 %v2746, 16
      %v2846 = vshll.u32 %v2746, 16
      %v2848 = vrot.slane %v2846, 1
      %v2849 = vor.u32 %v2844, %v2848
      %v2851 = vshll.u32 %v2747, 16
      %v2853 = vrot.slane %v2851, 1
      %v2854 = vsel %vm2770, %v2849, %v2853
      %v2856 = vshrl.u32 %v2748, 16
      %v2858 = vshll.u32 %v2748, 16
      %v2860 = vrot.slane %v2858, 1
      %v2861 = vor.u32 %v2856, %v2860
      %v2863 = vshll.u32 %v2749, 16
      %v2865 = vrot.slane %v2863, 1
      %v2866 = vsel %vm2770, %v2861, %v2865
      %v2868 = vshrl.u32 %v2750, 16
      %v2870 = vshll.u32 %v2750, 16
      %v2872 = vrot.slane %v2870, 1
      %v2873 = vor.u32 %v2868, %v2872
      %v2875 = vshll.u32 %v2751, 16
      %v2877 = vrot.slane %v2875, 1
      %v2878 = vsel %vm2770, %v2873, %v2877
      %v2880 = vshrl.u32 %v2752, 16
      %v2882 = vshll.u32 %v2752, 16
      %v2884 = vrot.slane %v2882, 1
      %v2885 = vor.u32 %v2880, %v2884
      %v2887 = vshll.u32 %v2753, 16
      %v2889 = vrot.slane %v2887, 1
      %v2890 = vsel %vm2770, %v2885, %v2889
      %v2892 = vshrl.u32 %v2754, 16
      %v2894 = vshll.u32 %v2754, 16
      %v2896 = vrot.slane %v2894, 1
      %v2897 = vor.u32 %v2892, %v2896
      %v2899 = vshll.u32 %v2755, 16
      %v2901 = vrot.slane %v2899, 1
      %v2902 = vsel %vm2770, %v2897, %v2901
      %v2904 = vshrl.u32 %v2756, 16
      %v2906 = vshll.u32 %v2756, 16
      %v2908 = vrot.slane %v2906, 1
      %v2909 = vor.u32 %v2904, %v2908
      %v2911 = vshll.u32 %v2757, 16
      %v2913 = vrot.slane %v2911, 1
      %v2914 = vsel %vm2770, %v2909, %v2913
      %v2916 = vshrl.u32 %v2758, 16
      %v2918 = vshll.u32 %v2758, 16
      %v2920 = vrot.slane %v2918, 1
      %v2921 = vor.u32 %v2916, %v2920
      %v2923 = vshll.u32 %v2759, 16
      %v2925 = vrot.slane %v2923, 1
      %v2926 = vsel %vm2770, %v2921, %v2925
      %v2928 = vshrl.u32 %v2760, 16
      %v2930 = vshll.u32 %v2760, 16
      %v2932 = vrot.slane %v2930, 1
      %v2933 = vor.u32 %v2928, %v2932
      %v2935 = vshll.u32 %v2761, 16
      %v2937 = vrot.slane %v2935, 1
      %v2938 = vsel %vm2770, %v2933, %v2937
      %v2940 = vshrl.u32 %v2762, 16
      %v2942 = vshll.u32 %v2762, 16
      %v2944 = vrot.slane %v2942, 1
      %v2945 = vor.u32 %v2940, %v2944
      %v2947 = vshll.u32 %v2763, 16
      %v2949 = vrot.slane %v2947, 1
      %v2950 = vsel %vm2770, %v2945, %v2949
      %v2952 = vshrl.u32 %v2764, 16
      %v2954 = vshll.u32 %v2764, 16
      %v2956 = vrot.slane %v2954, 1
      %v2957 = vor.u32 %v2952, %v2956
      %v2959 = vshll.u32 %v2765, 16
      %v2961 = vrot.slane %v2959, 1
      %v2962 = vsel %vm2770, %v2957, %v2961
      %s2963 = scalar_lea.vmem %s4, 8
      %v2964 = vld [vmem:[%s2963] sm:$0xf]
      %v2966 = vsel %vm596, %v2782, 0
      %v2969 = vsel %vm596, %v2794, 0
      %v2972 = vsel %vm596, %v2806, 0
      %v2975 = vsel %vm596, %v2818, 0
      %v2978 = vsel %vm596, %v2830, 0
      %v2981 = vsel %vm596, %v2842, 0
      %v2984 = vsel %vm596, %v2854, 0
      %v2987 = vsel %vm596, %v2866, 0
      %v2990 = vsel %vm596, %v2878, 0
      %v2993 = vsel %vm596, %v2890, 0
      %v2996 = vsel %vm596, %v2902, 0
      %v2999 = vsel %vm596, %v2914, 0
      %v3002 = vsel %vm596, %v2926, 0
      %v3005 = vsel %vm596, %v2938, 0
      %v3008 = vsel %vm596, %v2950, 0
      %v3011 = vsel %vm596, %v2962, 0
      %v3014 = vsel %vm1481, %v2964, 0
      %3016 = vmatprep.subr.bf16.mxu0 0
      %3017 = vmatpush1.bf16.msra.mxu0 %v3014
      %3018 = vmatprep.subr.bf16.mxu0 0
      %3019 = vmatpush1.bf16.msra.mxu0 0
      %3020 = vmatprep.subr.bf16.mxu0 0
      %3021 = vmatpush1.bf16.msra.mxu0 0
      %3022 = vmatprep.subr.bf16.mxu0 0
      %3023 = vmatpush1.bf16.msra.mxu0 0
      %3024 = vmatprep.subr.bf16.mxu0 0
      %3025 = vmatpush1.bf16.msra.mxu0 0
      %3026 = vmatprep.subr.bf16.mxu0 0
      %3027 = vmatpush1.bf16.msra.mxu0 0
      %3028 = vmatprep.subr.bf16.mxu0 0
      %3029 = vmatpush1.bf16.msra.mxu0 0
      %3030 = vmatprep.subr.bf16.mxu0 0
      %3031 = vmatpush1.bf16.msra.mxu0 0
      %3032 = vmatprep.subr.bf16.mxu0 0
      %3033 = vmatpush1.bf16.msra.mxu0 0
      %3034 = vmatprep.subr.bf16.mxu0 0
      %3035 = vmatpush1.bf16.msra.mxu0 0
      %3036 = vmatprep.subr.bf16.mxu0 0
      %3037 = vmatpush1.bf16.msra.mxu0 0
      %3038 = vmatprep.subr.bf16.mxu0 0
      %3039 = vmatpush1.bf16.msra.mxu0 0
      %3040 = vmatprep.subr.bf16.mxu0 0
      %3041 = vmatpush1.bf16.msra.mxu0 0
      %3042 = vmatprep.subr.bf16.mxu0 0
      %3043 = vmatpush1.bf16.msra.mxu0 0
      %3044 = vmatprep.subr.bf16.mxu0 0
      %3045 = vmatpush1.bf16.msra.mxu0 0
      %3046 = vmatprep.subr.bf16.mxu0 0
      %3047 = vmatpush1.bf16.msra.mxu0 0
      %3048 = vmatprep.mubr.bf16.mxu0 0
      %3049 = vmatmul.mubr.bf16.gmra.mrb[0].mxu0 %v2966
      %v3050 = vpop.f32.mrb[0].mxu0
      %v3051 = vadd.f32 0.0, %v3050
      %v3052 = vpop.f32.mrb[0].mxu0
      %v3053 = vpop.f32.mrb[0].mxu0
      %v3054 = vadd.f32 0.0, %v3053
      %v3055 = vpop.f32.mrb[0].mxu0
      %3056 = vmatprep.mubr.bf16.mxu0 0
      %3057 = vmatmul.mubr.bf16.gmra.mrb[0].mxu0 %v2969
      %v3058 = vpop.f32.mrb[0].mxu0
      %v3059 = vadd.f32 0.0, %v3058
      %v3060 = vpop.f32.mrb[0].mxu0
      %v3061 = vpop.f32.mrb[0].mxu0
      %v3062 = vadd.f32 0.0, %v3061
      %v3063 = vpop.f32.mrb[0].mxu0
      %3064 = vmatprep.mubr.bf16.mxu0 0
      %3065 = vmatmul.mubr.bf16.gmra.mrb[0].mxu0 %v2972
      %v3066 = vpop.f32.mrb[0].mxu0
      %v3067 = vadd.f32 0.0, %v3066
      %v3068 = vpop.f32.mrb[0].mxu0
      %v3069 = vpop.f32.mrb[0].mxu0
      %v3070 = vadd.f32 0.0, %v3069
      %v3071 = vpop.f32.mrb[0].mxu0
      %3072 = vmatprep.mubr.bf16.mxu0 0
      %3073 = vmatmul.mubr.bf16.gmra.mrb[0].mxu0 %v2975
      %v3074 = vpop.f32.mrb[0].mxu0
      %v3075 = vadd.f32 0.0, %v3074
      %v3076 = vpop.f32.mrb[0].mxu0
      %v3077 = vpop.f32.mrb[0].mxu0
      %v3078 = vadd.f32 0.0, %v3077
      %v3079 = vpop.f32.mrb[0].mxu0
      %3080 = vmatprep.mubr.bf16.mxu0 0
      %3081 = vmatmul.mubr.bf16.gmra.mrb[0].mxu0 %v2978
      %v3082 = vpop.f32.mrb[0].mxu0
      %v3083 = vadd.f32 0.0, %v3082
      %v3084 = vpop.f32.mrb[0].mxu0
      %v3085 = vpop.f32.mrb[0].mxu0
      %v3086 = vadd.f32 0.0, %v3085
      %v3087 = vpop.f32.mrb[0].mxu0
      %3088 = vmatprep.mubr.bf16.mxu0 0
      %3089 = vmatmul.mubr.bf16.gmra.mrb[0].mxu0 %v2981
      %v3090 = vpop.f32.mrb[0].mxu0
      %v3091 = vadd.f32 0.0, %v3090
      %v3092 = vpop.f32.mrb[0].mxu0
      %v3093 = vpop.f32.mrb[0].mxu0
      %v3094 = vadd.f32 0.0, %v3093
      %v3095 = vpop.f32.mrb[0].mxu0
      %3096 = vmatprep.mubr.bf16.mxu0 0
      %3097 = vmatmul.mubr.bf16.gmra.mrb[0].mxu0 %v2984
      %v3098 = vpop.f32.mrb[0].mxu0
      %v3099 = vadd.f32 0.0, %v3098
      %v3100 = vpop.f32.mrb[0].mxu0
      %v3101 = vpop.f32.mrb[0].mxu0
      %v3102 = vadd.f32 0.0, %v3101
      %v3103 = vpop.f32.mrb[0].mxu0
      %3104 = vmatprep.mubr.bf16.mxu0 0
      %3105 = vmatmul.mubr.bf16.gmra.mrb[0].mxu0 %v2987
      %v3106 = vpop.f32.mrb[0].mxu0
      %v3107 = vadd.f32 0.0, %v3106
      %v3108 = vpop.f32.mrb[0].mxu0
      %v3109 = vpop.f32.mrb[0].mxu0
      %v3110 = vadd.f32 0.0, %v3109
      %v3111 = vpop.f32.mrb[0].mxu0
      %3112 = vmatprep.mubr.bf16.mxu0 0
      %3113 = vmatmul.mubr.bf16.gmra.mrb[0].mxu0 %v2990
      %v3114 = vpop.f32.mrb[0].mxu0
      %v3115 = vadd.f32 0.0, %v3114
      %v3116 = vpop.f32.mrb[0].mxu0
      %v3117 = vpop.f32.mrb[0].mxu0
      %v3118 = vadd.f32 0.0, %v3117
      %v3119 = vpop.f32.mrb[0].mxu0
      %3120 = vmatprep.mubr.bf16.mxu0 0
      %3121 = vmatmul.mubr.bf16.gmra.mrb[0].mxu0 %v2993
      %v3122 = vpop.f32.mrb[0].mxu0
      %v3123 = vadd.f32 0.0, %v3122
      %v3124 = vpop.f32.mrb[0].mxu0
      %v3125 = vpop.f32.mrb[0].mxu0
      %v3126 = vadd.f32 0.0, %v3125
      %v3127 = vpop.f32.mrb[0].mxu0
      %3128 = vmatprep.mubr.bf16.mxu0 0
      %3129 = vmatmul.mubr.bf16.gmra.mrb[0].mxu0 %v2996
      %v3130 = vpop.f32.mrb[0].mxu0
      %v3131 = vadd.f32 0.0, %v3130
      %v3132 = vpop.f32.mrb[0].mxu0
      %v3133 = vpop.f32.mrb[0].mxu0
      %v3134 = vadd.f32 0.0, %v3133
      %v3135 = vpop.f32.mrb[0].mxu0
      %3136 = vmatprep.mubr.bf16.mxu0 0
      %3137 = vmatmul.mubr.bf16.gmra.mrb[0].mxu0 %v2999
      %v3138 = vpop.f32.mrb[0].mxu0
      %v3139 = vadd.f32 0.0, %v3138
      %v3140 = vpop.f32.mrb[0].mxu0
      %v3141 = vpop.f32.mrb[0].mxu0
      %v3142 = vadd.f32 0.0, %v3141
      %v3143 = vpop.f32.mrb[0].mxu0
      %3144 = vmatprep.mubr.bf16.mxu0 0
      %3145 = vmatmul.mubr.bf16.gmra.mrb[0].mxu0 %v3002
      %v3146 = vpop.f32.mrb[0].mxu0
      %v3147 = vadd.f32 0.0, %v3146
      %v3148 = vpop.f32.mrb[0].mxu0
      %v3149 = vpop.f32.mrb[0].mxu0
      %v3150 = vadd.f32 0.0, %v3149
      %v3151 = vpop.f32.mrb[0].mxu0
      %3152 = vmatprep.mubr.bf16.mxu0 0
      %3153 = vmatmul.mubr.bf16.gmra.mrb[0].mxu0 %v3005
      %v3154 = vpop.f32.mrb[0].mxu0
      %v3155 = vadd.f32 0.0, %v3154
      %v3156 = vpop.f32.mrb[0].mxu0
      %v3157 = vpop.f32.mrb[0].mxu0
      %v3158 = vadd.f32 0.0, %v3157
      %v3159 = vpop.f32.mrb[0].mxu0
      %3160 = vmatprep.mubr.bf16.mxu0 0
      %3161 = vmatmul.mubr.bf16.gmra.mrb[0].mxu0 %v3008
      %v3162 = vpop.f32.mrb[0].mxu0
      %v3163 = vadd.f32 0.0, %v3162
      %v3164 = vpop.f32.mrb[0].mxu0
      %v3165 = vpop.f32.mrb[0].mxu0
      %v3166 = vadd.f32 0.0, %v3165
      %v3167 = vpop.f32.mrb[0].mxu0
      %3168 = vmatprep.mubr.bf16.mxu0 0
      %3169 = vmatmul.mubr.bf16.gmra.mrb[0].mxu0 %v3011
      %v3170 = vpop.f32.mrb[0].mxu0
      %v3171 = vadd.f32 0.0, %v3170
      %v3172 = vpop.f32.mrb[0].mxu0
      %v3173 = vpop.f32.mrb[0].mxu0
      %v3174 = vadd.f32 0.0, %v3173
      %v3175 = vpop.f32.mrb[0].mxu0
      %3176 = vdwg.mxu0
      %v3177 = vadd.f32 %v2702, %v3051
      %v3178 = vadd.f32 %v2703, %v3054
      %v3179 = vadd.f32 %v2704, %v3059
      %v3180 = vadd.f32 %v2705, %v3062
      %v3181 = vadd.f32 %v2706, %v3067
      %v3182 = vadd.f32 %v2707, %v3070
      %v3183 = vadd.f32 %v2708, %v3075
      %v3184 = vadd.f32 %v2709, %v3078
      %v3185 = vadd.f32 %v2710, %v3083
      %v3186 = vadd.f32 %v2711, %v3086
      %v3187 = vadd.f32 %v2712, %v3091
      %v3188 = vadd.f32 %v2713, %v3094
      %v3189 = vadd.f32 %v2714, %v3099
      %v3190 = vadd.f32 %v2715, %v3102
      %v3191 = vadd.f32 %v2716, %v3107
      %v3192 = vadd.f32 %v2717, %v3110
      %v3193 = vadd.f32 %v2718, %v3115
      %v3194 = vadd.f32 %v2719, %v3118
      %v3195 = vadd.f32 %v2720, %v3123
      %v3196 = vadd.f32 %v2721, %v3126
      %v3197 = vadd.f32 %v2722, %v3131
      %v3198 = vadd.f32 %v2723, %v3134
      %v3199 = vadd.f32 %v2724, %v3139
      %v3200 = vadd.f32 %v2725, %v3142
      %v3201 = vadd.f32 %v2726, %v3147
      %v3202 = vadd.f32 %v2727, %v3150
      %v3203 = vadd.f32 %v2728, %v3155
      %v3204 = vadd.f32 %v2729, %v3158
      %v3205 = vadd.f32 %v2730, %v3163
      %v3206 = vadd.f32 %v2731, %v3166
      %v3207 = vadd.f32 %v2732, %v3171
      %v3208 = vadd.f32 %v2733, %v3174
      %v3210 = vshrl.u32 %v2766, 16
      %v3212 = vshll.u32 %v2766, 16
      %v3214 = vrot.slane %v3212, 1
      %v3215 = vor.u32 %v3210, %v3214
      %v3217 = vshll.u32 %v2767, 16
      %v3219 = vrot.slane %v3217, 1
      %v3220 = vsel %vm2770, %v3215, %v3219
      %s3221 = scalar_lea.vmem %s4, 20
      %v3222 = vld [vmem:[%s3221] sm:$0xf]
      %v3224 = vsel %vm596, %v3220, 0
      %v3227 = vsel %vm1481, %v3222, 0
      %3229 = vmatprep.subr.bf16.mxu0 0
      %3230 = vmatpush1.bf16.msra.mxu0 %v3227
      %3231 = vmatprep.subr.bf16.mxu0 0
      %3232 = vmatpush1.bf16.msra.mxu0 0
      %3233 = vmatprep.subr.bf16.mxu0 0
      %3234 = vmatpush1.bf16.msra.mxu0 0
      %3235 = vmatprep.subr.bf16.mxu0 0
      %3236 = vmatpush1.bf16.msra.mxu0 0
      %3237 = vmatprep.subr.bf16.mxu0 0
      %3238 = vmatpush1.bf16.msra.mxu0 0
      %3239 = vmatprep.subr.bf16.mxu0 0
      %3240 = vmatpush1.bf16.msra.mxu0 0
      %3241 = vmatprep.subr.bf16.mxu0 0
      %3242 = vmatpush1.bf16.msra.mxu0 0
      %3243 = vmatprep.subr.bf16.mxu0 0
      %3244 = vmatpush1.bf16.msra.mxu0 0
      %3245 = vmatprep.subr.bf16.mxu0 0
      %3246 = vmatpush1.bf16.msra.mxu0 0
      %3247 = vmatprep.subr.bf16.mxu0 0
      %3248 = vmatpush1.bf16.msra.mxu0 0
      %3249 = vmatprep.subr.bf16.mxu0 0
      %3250 = vmatpush1.bf16.msra.mxu0 0
      %3251 = vmatprep.subr.bf16.mxu0 0
      %3252 = vmatpush1.bf16.msra.mxu0 0
      %3253 = vmatprep.subr.bf16.mxu0 0
      %3254 = vmatpush1.bf16.msra.mxu0 0
      %3255 = vmatprep.subr.bf16.mxu0 0
      %3256 = vmatpush1.bf16.msra.mxu0 0
      %3257 = vmatprep.subr.bf16.mxu0 0
      %3258 = vmatpush1.bf16.msra.mxu0 0
      %3259 = vmatprep.subr.bf16.mxu0 0
      %3260 = vmatpush1.bf16.msra.mxu0 0
      %3261 = vmatprep.mubr.bf16.mxu0 0
      %3262 = vmatmul.mubr.bf16.gmra.mrb[0].mxu0 %v2969
      %v3263 = vpop.f32.mrb[0].mxu0
      %v3264 = vadd.f32 0.0, %v3263
      %v3265 = vpop.f32.mrb[0].mxu0
      %v3266 = vpop.f32.mrb[0].mxu0
      %v3267 = vadd.f32 0.0, %v3266
      %v3268 = vpop.f32.mrb[0].mxu0
      %3269 = vmatprep.mubr.bf16.mxu0 0
      %3270 = vmatmul.mubr.bf16.gmra.mrb[0].mxu0 %v2972
      %v3271 = vpop.f32.mrb[0].mxu0
      %v3272 = vadd.f32 0.0, %v3271
      %v3273 = vpop.f32.mrb[0].mxu0
      %v3274 = vpop.f32.mrb[0].mxu0
      %v3275 = vadd.f32 0.0, %v3274
      %v3276 = vpop.f32.mrb[0].mxu0
      %3277 = vmatprep.mubr.bf16.mxu0 0
      %3278 = vmatmul.mubr.bf16.gmra.mrb[0].mxu0 %v2975
      %v3279 = vpop.f32.mrb[0].mxu0
      %v3280 = vadd.f32 0.0, %v3279
      %v3281 = vpop.f32.mrb[0].mxu0
      %v3282 = vpop.f32.mrb[0].mxu0
      %v3283 = vadd.f32 0.0, %v3282
      %v3284 = vpop.f32.mrb[0].mxu0
      %3285 = vmatprep.mubr.bf16.mxu0 0
      %3286 = vmatmul.mubr.bf16.gmra.mrb[0].mxu0 %v2978
      %v3287 = vpop.f32.mrb[0].mxu0
      %v3288 = vadd.f32 0.0, %v3287
      %v3289 = vpop.f32.mrb[0].mxu0
      %v3290 = vpop.f32.mrb[0].mxu0
      %v3291 = vadd.f32 0.0, %v3290
      %v3292 = vpop.f32.mrb[0].mxu0
      %3293 = vmatprep.mubr.bf16.mxu0 0
      %3294 = vmatmul.mubr.bf16.gmra.mrb[0].mxu0 %v2981
      %v3295 = vpop.f32.mrb[0].mxu0
      %v3296 = vadd.f32 0.0, %v3295
      %v3297 = vpop.f32.mrb[0].mxu0
      %v3298 = vpop.f32.mrb[0].mxu0
      %v3299 = vadd.f32 0.0, %v3298
      %v3300 = vpop.f32.mrb[0].mxu0
      %3301 = vmatprep.mubr.bf16.mxu0 0
      %3302 = vmatmul.mubr.bf16.gmra.mrb[0].mxu0 %v2984
      %v3303 = vpop.f32.mrb[0].mxu0
      %v3304 = vadd.f32 0.0, %v3303
      %v3305 = vpop.f32.mrb[0].mxu0
      %v3306 = vpop.f32.mrb[0].mxu0
      %v3307 = vadd.f32 0.0, %v3306
      %v3308 = vpop.f32.mrb[0].mxu0
      %3309 = vmatprep.mubr.bf16.mxu0 0
      %3310 = vmatmul.mubr.bf16.gmra.mrb[0].mxu0 %v2987
      %v3311 = vpop.f32.mrb[0].mxu0
      %v3312 = vadd.f32 0.0, %v3311
      %v3313 = vpop.f32.mrb[0].mxu0
      %v3314 = vpop.f32.mrb[0].mxu0
      %v3315 = vadd.f32 0.0, %v3314
      %v3316 = vpop.f32.mrb[0].mxu0
      %3317 = vmatprep.mubr.bf16.mxu0 0
      %3318 = vmatmul.mubr.bf16.gmra.mrb[0].mxu0 %v2990
      %v3319 = vpop.f32.mrb[0].mxu0
      %v3320 = vadd.f32 0.0, %v3319
      %v3321 = vpop.f32.mrb[0].mxu0
      %v3322 = vpop.f32.mrb[0].mxu0
      %v3323 = vadd.f32 0.0, %v3322
      %v3324 = vpop.f32.mrb[0].mxu0
      %3325 = vmatprep.mubr.bf16.mxu0 0
      %3326 = vmatmul.mubr.bf16.gmra.mrb[0].mxu0 %v2993
      %v3327 = vpop.f32.mrb[0].mxu0
      %v3328 = vadd.f32 0.0, %v3327
      %v3329 = vpop.f32.mrb[0].mxu0
      %v3330 = vpop.f32.mrb[0].mxu0
      %v3331 = vadd.f32 0.0, %v3330
      %v3332 = vpop.f32.mrb[0].mxu0
      %3333 = vmatprep.mubr.bf16.mxu0 0
      %3334 = vmatmul.mubr.bf16.gmra.mrb[0].mxu0 %v2996
      %v3335 = vpop.f32.mrb[0].mxu0
      %v3336 = vadd.f32 0.0, %v3335
      %v3337 = vpop.f32.mrb[0].mxu0
      %v3338 = vpop.f32.mrb[0].mxu0
      %v3339 = vadd.f32 0.0, %v3338
      %v3340 = vpop.f32.mrb[0].mxu0
      %3341 = vmatprep.mubr.bf16.mxu0 0
      %3342 = vmatmul.mubr.bf16.gmra.mrb[0].mxu0 %v2999
      %v3343 = vpop.f32.mrb[0].mxu0
      %v3344 = vadd.f32 0.0, %v3343
      %v3345 = vpop.f32.mrb[0].mxu0
      %v3346 = vpop.f32.mrb[0].mxu0
      %v3347 = vadd.f32 0.0, %v3346
      %v3348 = vpop.f32.mrb[0].mxu0
      %3349 = vmatprep.mubr.bf16.mxu0 0
      %3350 = vmatmul.mubr.bf16.gmra.mrb[0].mxu0 %v3002
      %v3351 = vpop.f32.mrb[0].mxu0
      %v3352 = vadd.f32 0.0, %v3351
      %v3353 = vpop.f32.mrb[0].mxu0
      %v3354 = vpop.f32.mrb[0].mxu0
      %v3355 = vadd.f32 0.0, %v3354
      %v3356 = vpop.f32.mrb[0].mxu0
      %3357 = vmatprep.mubr.bf16.mxu0 0
      %3358 = vmatmul.mubr.bf16.gmra.mrb[0].mxu0 %v3005
      %v3359 = vpop.f32.mrb[0].mxu0
      %v3360 = vadd.f32 0.0, %v3359
      %v3361 = vpop.f32.mrb[0].mxu0
      %v3362 = vpop.f32.mrb[0].mxu0
      %v3363 = vadd.f32 0.0, %v3362
      %v3364 = vpop.f32.mrb[0].mxu0
      %3365 = vmatprep.mubr.bf16.mxu0 0
      %3366 = vmatmul.mubr.bf16.gmra.mrb[0].mxu0 %v3008
      %v3367 = vpop.f32.mrb[0].mxu0
      %v3368 = vadd.f32 0.0, %v3367
      %v3369 = vpop.f32.mrb[0].mxu0
      %v3370 = vpop.f32.mrb[0].mxu0
      %v3371 = vadd.f32 0.0, %v3370
      %v3372 = vpop.f32.mrb[0].mxu0
      %3373 = vmatprep.mubr.bf16.mxu0 0
      %3374 = vmatmul.mubr.bf16.gmra.mrb[0].mxu0 %v3011
      %v3375 = vpop.f32.mrb[0].mxu0
      %v3376 = vadd.f32 0.0, %v3375
      %v3377 = vpop.f32.mrb[0].mxu0
      %v3378 = vpop.f32.mrb[0].mxu0
      %v3379 = vadd.f32 0.0, %v3378
      %v3380 = vpop.f32.mrb[0].mxu0
      %3381 = vmatprep.mubr.bf16.mxu0 0
      %3382 = vmatmul.mubr.bf16.gmra.mrb[0].mxu0 %v3224
      %v3383 = vpop.f32.mrb[0].mxu0
      %v3384 = vadd.f32 0.0, %v3383
      %v3385 = vpop.f32.mrb[0].mxu0
      %v3386 = vpop.f32.mrb[0].mxu0
      %v3387 = vadd.f32 0.0, %v3386
      %v3388 = vpop.f32.mrb[0].mxu0
      %3389 = vdwg.mxu0
      %v3390 = vadd.f32 %v3177, %v3264
      %v3391 = vadd.f32 %v3178, %v3267
      %v3392 = vadd.f32 %v3179, %v3272
      %v3393 = vadd.f32 %v3180, %v3275
      %v3394 = vadd.f32 %v3181, %v3280
      %v3395 = vadd.f32 %v3182, %v3283
      %v3396 = vadd.f32 %v3183, %v3288
      %v3397 = vadd.f32 %v3184, %v3291
      %v3398 = vadd.f32 %v3185, %v3296
      %v3399 = vadd.f32 %v3186, %v3299
      %v3400 = vadd.f32 %v3187, %v3304
      %v3401 = vadd.f32 %v3188, %v3307
      %v3402 = vadd.f32 %v3189, %v3312
      %v3403 = vadd.f32 %v3190, %v3315
      %v3404 = vadd.f32 %v3191, %v3320
      %v3405 = vadd.f32 %v3192, %v3323
      %v3406 = vadd.f32 %v3193, %v3328
      %v3407 = vadd.f32 %v3194, %v3331
      %v3408 = vadd.f32 %v3195, %v3336
      %v3409 = vadd.f32 %v3196, %v3339
      %v3410 = vadd.f32 %v3197, %v3344
      %v3411 = vadd.f32 %v3198, %v3347
      %v3412 = vadd.f32 %v3199, %v3352
      %v3413 = vadd.f32 %v3200, %v3355
      %v3414 = vadd.f32 %v3201, %v3360
      %v3415 = vadd.f32 %v3202, %v3363
      %v3416 = vadd.f32 %v3203, %v3368
      %v3417 = vadd.f32 %v3204, %v3371
      %v3418 = vadd.f32 %v3205, %v3376
      %v3419 = vadd.f32 %v3206, %v3379
      %v3420 = vadd.f32 %v3207, %v3384
      %v3421 = vadd.f32 %v3208, %v3387
      %v3423 = vshrl.u32 %v2768, 16
      %v3425 = vshll.u32 %v2768, 16
      %v3427 = vrot.slane %v3425, 1
      %v3428 = vor.u32 %v3423, %v3427
      %v3430 = vshll.u32 %v2769, 16
      %v3432 = vrot.slane %v3430, 1
      %v3433 = vsel %vm2770, %v3428, %v3432
      %s3434 = scalar_lea.vmem %s4, 32
      %v3435 = vld [vmem:[%s3434] sm:$0xf]
      %v3437 = vsel %vm596, %v3433, 0
      %v3440 = vsel %vm1481, %v3435, 0
      %3442 = vmatprep.subr.bf16.mxu0 0
      %3443 = vmatpush1.bf16.msra.mxu0 %v3440
      %3444 = vmatprep.subr.bf16.mxu0 0
      %3445 = vmatpush1.bf16.msra.mxu0 0
      %3446 = vmatprep.subr.bf16.mxu0 0
      %3447 = vmatpush1.bf16.msra.mxu0 0
      %3448 = vmatprep.subr.bf16.mxu0 0
      %3449 = vmatpush1.bf16.msra.mxu0 0
      %3450 = vmatprep.subr.bf16.mxu0 0
      %3451 = vmatpush1.bf16.msra.mxu0 0
      %3452 = vmatprep.subr.bf16.mxu0 0
      %3453 = vmatpush1.bf16.msra.mxu0 0
      %3454 = vmatprep.subr.bf16.mxu0 0
      %3455 = vmatpush1.bf16.msra.mxu0 0
      %3456 = vmatprep.subr.bf16.mxu0 0
      %3457 = vmatpush1.bf16.msra.mxu0 0
      %3458 = vmatprep.subr.bf16.mxu0 0
      %3459 = vmatpush1.bf16.msra.mxu0 0
      %3460 = vmatprep.subr.bf16.mxu0 0
      %3461 = vmatpush1.bf16.msra.mxu0 0
      %3462 = vmatprep.subr.bf16.mxu0 0
      %3463 = vmatpush1.bf16.msra.mxu0 0
      %3464 = vmatprep.subr.bf16.mxu0 0
      %3465 = vmatpush1.bf16.msra.mxu0 0
      %3466 = vmatprep.subr.bf16.mxu0 0
      %3467 = vmatpush1.bf16.msra.mxu0 0
      %3468 = vmatprep.subr.bf16.mxu0 0
      %3469 = vmatpush1.bf16.msra.mxu0 0
      %3470 = vmatprep.subr.bf16.mxu0 0
      %3471 = vmatpush1.bf16.msra.mxu0 0
      %3472 = vmatprep.subr.bf16.mxu0 0
      %3473 = vmatpush1.bf16.msra.mxu0 0
      %3474 = vmatprep.mubr.bf16.mxu0 0
      %3475 = vmatmul.mubr.bf16.gmra.mrb[0].mxu0 %v2972
      %v3476 = vpop.f32.mrb[0].mxu0
      %v3477 = vadd.f32 0.0, %v3476
      %v3478 = vpop.f32.mrb[0].mxu0
      %v3479 = vpop.f32.mrb[0].mxu0
      %v3480 = vadd.f32 0.0, %v3479
      %v3481 = vpop.f32.mrb[0].mxu0
      %3482 = vmatprep.mubr.bf16.mxu0 0
      %3483 = vmatmul.mubr.bf16.gmra.mrb[0].mxu0 %v2975
      %v3484 = vpop.f32.mrb[0].mxu0
      %v3485 = vadd.f32 0.0, %v3484
      %v3486 = vpop.f32.mrb[0].mxu0
      %v3487 = vpop.f32.mrb[0].mxu0
      %v3488 = vadd.f32 0.0, %v3487
      %v3489 = vpop.f32.mrb[0].mxu0
      %3490 = vmatprep.mubr.bf16.mxu0 0
      %3491 = vmatmul.mubr.bf16.gmra.mrb[0].mxu0 %v2978
      %v3492 = vpop.f32.mrb[0].mxu0
      %v3493 = vadd.f32 0.0, %v3492
      %v3494 = vpop.f32.mrb[0].mxu0
      %v3495 = vpop.f32.mrb[0].mxu0
      %v3496 = vadd.f32 0.0, %v3495
      %v3497 = vpop.f32.mrb[0].mxu0
      %3498 = vmatprep.mubr.bf16.mxu0 0
      %3499 = vmatmul.mubr.bf16.gmra.mrb[0].mxu0 %v2981
      %v3500 = vpop.f32.mrb[0].mxu0
      %v3501 = vadd.f32 0.0, %v3500
      %v3502 = vpop.f32.mrb[0].mxu0
      %v3503 = vpop.f32.mrb[0].mxu0
      %v3504 = vadd.f32 0.0, %v3503
      %v3505 = vpop.f32.mrb[0].mxu0
      %3506 = vmatprep.mubr.bf16.mxu0 0
      %3507 = vmatmul.mubr.bf16.gmra.mrb[0].mxu0 %v2984
      %v3508 = vpop.f32.mrb[0].mxu0
      %v3509 = vadd.f32 0.0, %v3508
      %v3510 = vpop.f32.mrb[0].mxu0
      %v3511 = vpop.f32.mrb[0].mxu0
      %v3512 = vadd.f32 0.0, %v3511
      %v3513 = vpop.f32.mrb[0].mxu0
      %3514 = vmatprep.mubr.bf16.mxu0 0
      %3515 = vmatmul.mubr.bf16.gmra.mrb[0].mxu0 %v2987
      %v3516 = vpop.f32.mrb[0].mxu0
      %v3517 = vadd.f32 0.0, %v3516
      %v3518 = vpop.f32.mrb[0].mxu0
      %v3519 = vpop.f32.mrb[0].mxu0
      %v3520 = vadd.f32 0.0, %v3519
      %v3521 = vpop.f32.mrb[0].mxu0
      %3522 = vmatprep.mubr.bf16.mxu0 0
      %3523 = vmatmul.mubr.bf16.gmra.mrb[0].mxu0 %v2990
      %v3524 = vpop.f32.mrb[0].mxu0
      %v3525 = vadd.f32 0.0, %v3524
      %v3526 = vpop.f32.mrb[0].mxu0
      %v3527 = vpop.f32.mrb[0].mxu0
      %v3528 = vadd.f32 0.0, %v3527
      %v3529 = vpop.f32.mrb[0].mxu0
      %3530 = vmatprep.mubr.bf16.mxu0 0
      %3531 = vmatmul.mubr.bf16.gmra.mrb[0].mxu0 %v2993
      %v3532 = vpop.f32.mrb[0].mxu0
      %v3533 = vadd.f32 0.0, %v3532
      %v3534 = vpop.f32.mrb[0].mxu0
      %v3535 = vpop.f32.mrb[0].mxu0
      %v3536 = vadd.f32 0.0, %v3535
      %v3537 = vpop.f32.mrb[0].mxu0
      %3538 = vmatprep.mubr.bf16.mxu0 0
      %3539 = vmatmul.mubr.bf16.gmra.mrb[0].mxu0 %v2996
      %v3540 = vpop.f32.mrb[0].mxu0
      %v3541 = vadd.f32 0.0, %v3540
      %v3542 = vpop.f32.mrb[0].mxu0
      %v3543 = vpop.f32.mrb[0].mxu0
      %v3544 = vadd.f32 0.0, %v3543
      %v3545 = vpop.f32.mrb[0].mxu0
      %3546 = vmatprep.mubr.bf16.mxu0 0
      %3547 = vmatmul.mubr.bf16.gmra.mrb[0].mxu0 %v2999
      %v3548 = vpop.f32.mrb[0].mxu0
      %v3549 = vadd.f32 0.0, %v3548
      %v3550 = vpop.f32.mrb[0].mxu0
      %v3551 = vpop.f32.mrb[0].mxu0
      %v3552 = vadd.f32 0.0, %v3551
      %v3553 = vpop.f32.mrb[0].mxu0
      %3554 = vmatprep.mubr.bf16.mxu0 0
      %3555 = vmatmul.mubr.bf16.gmra.mrb[0].mxu0 %v3002
      %v3556 = vpop.f32.mrb[0].mxu0
      %v3557 = vadd.f32 0.0, %v3556
      %v3558 = vpop.f32.mrb[0].mxu0
      %v3559 = vpop.f32.mrb[0].mxu0
      %v3560 = vadd.f32 0.0, %v3559
      %v3561 = vpop.f32.mrb[0].mxu0
      %3562 = vmatprep.mubr.bf16.mxu0 0
      %3563 = vmatmul.mubr.bf16.gmra.mrb[0].mxu0 %v3005
      %v3564 = vpop.f32.mrb[0].mxu0
      %v3565 = vadd.f32 0.0, %v3564
      %v3566 = vpop.f32.mrb[0].mxu0
      %v3567 = vpop.f32.mrb[0].mxu0
      %v3568 = vadd.f32 0.0, %v3567
      %v3569 = vpop.f32.mrb[0].mxu0
      %3570 = vmatprep.mubr.bf16.mxu0 0
      %3571 = vmatmul.mubr.bf16.gmra.mrb[0].mxu0 %v3008
      %v3572 = vpop.f32.mrb[0].mxu0
      %v3573 = vadd.f32 0.0, %v3572
      %v3574 = vpop.f32.mrb[0].mxu0
      %v3575 = vpop.f32.mrb[0].mxu0
      %v3576 = vadd.f32 0.0, %v3575
      %v3577 = vpop.f32.mrb[0].mxu0
      %3578 = vmatprep.mubr.bf16.mxu0 0
      %3579 = vmatmul.mubr.bf16.gmra.mrb[0].mxu0 %v3011
      %v3580 = vpop.f32.mrb[0].mxu0
      %v3581 = vadd.f32 0.0, %v3580
      %v3582 = vpop.f32.mrb[0].mxu0
      %v3583 = vpop.f32.mrb[0].mxu0
      %v3584 = vadd.f32 0.0, %v3583
      %v3585 = vpop.f32.mrb[0].mxu0
      %3586 = vmatprep.mubr.bf16.mxu0 0
      %3587 = vmatmul.mubr.bf16.gmra.mrb[0].mxu0 %v3224
      %v3588 = vpop.f32.mrb[0].mxu0
      %v3589 = vadd.f32 0.0, %v3588
      %v3590 = vpop.f32.mrb[0].mxu0
      %v3591 = vpop.f32.mrb[0].mxu0
      %v3592 = vadd.f32 0.0, %v3591
      %v3593 = vpop.f32.mrb[0].mxu0
      %3594 = vmatprep.mubr.bf16.mxu0 0
      %3595 = vmatmul.mubr.bf16.gmra.mrb[0].mxu0 %v3437
      %v3596 = vpop.f32.mrb[0].mxu0
      %v3597 = vadd.f32 0.0, %v3596
      %v3598 = vpop.f32.mrb[0].mxu0
      %v3599 = vpop.f32.mrb[0].mxu0
      %v3600 = vadd.f32 0.0, %v3599
      %v3601 = vpop.f32.mrb[0].mxu0
      %3602 = vdwg.mxu0
      %v3603 = vadd.f32 %v3390, %v3477
      %v3604 = vadd.f32 %v3391, %v3480
      %v3605 = vadd.f32 %v3392, %v3485
      %v3606 = vadd.f32 %v3393, %v3488
      %v3607 = vadd.f32 %v3394, %v3493
      %v3608 = vadd.f32 %v3395, %v3496
      %v3609 = vadd.f32 %v3396, %v3501
      %v3610 = vadd.f32 %v3397, %v3504
      %v3611 = vadd.f32 %v3398, %v3509
      %v3612 = vadd.f32 %v3399, %v3512
      %v3613 = vadd.f32 %v3400, %v3517
      %v3614 = vadd.f32 %v3401, %v3520
      %v3615 = vadd.f32 %v3402, %v3525
      %v3616 = vadd.f32 %v3403, %v3528
      %v3617 = vadd.f32 %v3404, %v3533
      %v3618 = vadd.f32 %v3405, %v3536
      %v3619 = vadd.f32 %v3406, %v3541
      %v3620 = vadd.f32 %v3407, %v3544
      %v3621 = vadd.f32 %v3408, %v3549
      %v3622 = vadd.f32 %v3409, %v3552
      %v3623 = vadd.f32 %v3410, %v3557
      %v3624 = vadd.f32 %v3411, %v3560
      %v3625 = vadd.f32 %v3412, %v3565
      %v3626 = vadd.f32 %v3413, %v3568
      %v3627 = vadd.f32 %v3414, %v3573
      %v3628 = vadd.f32 %v3415, %v3576
      %v3629 = vadd.f32 %v3416, %v3581
      %v3630 = vadd.f32 %v3417, %v3584
      %v3631 = vadd.f32 %v3418, %v3589
      %v3632 = vadd.f32 %v3419, %v3592
      %v3633 = vadd.f32 %v3420, %v3597
      %v3634 = vadd.f32 %v3421, %v3600
      %v3635 = vsel %vm442, %v3603, 0.0
      %v3636 = vsel %vm442, %v3604, 0.0
      %v3637 = vadd.f32 %v3635, %v3636
      %v3638 = vsel %vm442, %v3605, 0.0
      %v3639 = vadd.f32 %v3637, %v3638
      %v3640 = vsel %vm442, %v3606, 0.0
      %v3641 = vadd.f32 %v3639, %v3640
      %v3642 = vsel %vm442, %v3607, 0.0
      %v3643 = vadd.f32 %v3641, %v3642
      %v3644 = vsel %vm442, %v3608, 0.0
      %v3645 = vadd.f32 %v3643, %v3644
      %v3646 = vsel %vm442, %v3609, 0.0
      %v3647 = vadd.f32 %v3645, %v3646
      %v3648 = vsel %vm442, %v3610, 0.0
      %v3649 = vadd.f32 %v3647, %v3648
      %v3650 = vsel %vm442, %v3611, 0.0
      %v3651 = vadd.f32 %v3649, %v3650
      %v3652 = vsel %vm442, %v3612, 0.0
      %v3653 = vadd.f32 %v3651, %v3652
      %v3654 = vsel %vm442, %v3613, 0.0
      %v3655 = vadd.f32 %v3653, %v3654
      %v3656 = vsel %vm442, %v3614, 0.0
      %v3657 = vadd.f32 %v3655, %v3656
      %v3658 = vsel %vm442, %v3615, 0.0
      %v3659 = vadd.f32 %v3657, %v3658
      %v3660 = vsel %vm442, %v3616, 0.0
      %v3661 = vadd.f32 %v3659, %v3660
      %v3662 = vsel %vm442, %v3617, 0.0
      %v3663 = vadd.f32 %v3661, %v3662
      %v3664 = vsel %vm442, %v3618, 0.0
      %v3665 = vadd.f32 %v3663, %v3664
      %v3666 = vsel %vm442, %v3619, 0.0
      %v3667 = vadd.f32 %v3665, %v3666
      %v3668 = vsel %vm442, %v3620, 0.0
      %v3669 = vadd.f32 %v3667, %v3668
      %v3670 = vsel %vm442, %v3621, 0.0
      %v3671 = vadd.f32 %v3669, %v3670
      %v3672 = vsel %vm442, %v3622, 0.0
      %v3673 = vadd.f32 %v3671, %v3672
      %v3674 = vsel %vm442, %v3623, 0.0
      %v3675 = vadd.f32 %v3673, %v3674
      %v3676 = vsel %vm442, %v3624, 0.0
      %v3677 = vadd.f32 %v3675, %v3676
      %v3678 = vsel %vm442, %v3625, 0.0
      %v3679 = vadd.f32 %v3677, %v3678
      %v3680 = vsel %vm442, %v3626, 0.0
      %v3681 = vadd.f32 %v3679, %v3680
      %v3682 = vsel %vm442, %v3627, 0.0
      %v3683 = vadd.f32 %v3681, %v3682
      %v3684 = vsel %vm442, %v3628, 0.0
      %v3685 = vadd.f32 %v3683, %v3684
      %v3686 = vsel %vm442, %v3629, 0.0
      %v3687 = vadd.f32 %v3685, %v3686
      %v3688 = vsel %vm442, %v3630, 0.0
      %v3689 = vadd.f32 %v3687, %v3688
      %v3690 = vsel %vm442, %v3631, 0.0
      %v3691 = vadd.f32 %v3689, %v3690
      %v3692 = vsel %vm442, %v3632, 0.0
      %v3693 = vadd.f32 %v3691, %v3692
      %v3694 = vsel %vm442, %v3633, 0.0
      %v3695 = vadd.f32 %v3693, %v3694
      %v3696 = vsel %vm442, %v3634, 0.0
      %v3697 = vadd.f32 %v3695, %v3696
      %v3698 = vrot.slane %v3697, 4
      %v3699 = vadd.f32 %v3697, %v3698
      %v3700 = vrot.slane %v3699, 2
      %v3701 = vadd.f32 %v3699, %v3700
      %v3702 = vrot.slane %v3701, 1
      %v3703 = vadd.f32 %v3701, %v3702
      %v3704 = vmul.f32 %v3603, %v3603
      %v3705 = vmul.f32 %v3604, %v3604
      %v3706 = vmul.f32 %v3605, %v3605
      %v3707 = vmul.f32 %v3606, %v3606
      %v3708 = vmul.f32 %v3607, %v3607
      %v3709 = vmul.f32 %v3608, %v3608
      %v3710 = vmul.f32 %v3609, %v3609
      %v3711 = vmul.f32 %v3610, %v3610
      %v3712 = vmul.f32 %v3611, %v3611
      %v3713 = vmul.f32 %v3612, %v3612
      %v3714 = vmul.f32 %v3613, %v3613
      %v3715 = vmul.f32 %v3614, %v3614
      %v3716 = vmul.f32 %v3615, %v3615
      %v3717 = vmul.f32 %v3616, %v3616
      %v3718 = vmul.f32 %v3617, %v3617
      %v3719 = vmul.f32 %v3618, %v3618
      %v3720 = vmul.f32 %v3619, %v3619
      %v3721 = vmul.f32 %v3620, %v3620
      %v3722 = vmul.f32 %v3621, %v3621
      %v3723 = vmul.f32 %v3622, %v3622
      %v3724 = vmul.f32 %v3623, %v3623
      %v3725 = vmul.f32 %v3624, %v3624
      %v3726 = vmul.f32 %v3625, %v3625
      %v3727 = vmul.f32 %v3626, %v3626
      %v3728 = vmul.f32 %v3627, %v3627
      %v3729 = vmul.f32 %v3628, %v3628
      %v3730 = vmul.f32 %v3629, %v3629
      %v3731 = vmul.f32 %v3630, %v3630
      %v3732 = vmul.f32 %v3631, %v3631
      %v3733 = vmul.f32 %v3632, %v3632
      %v3734 = vmul.f32 %v3633, %v3633
      %v3735 = vmul.f32 %v3634, %v3634
      %v3736 = vsel %vm442, %v3704, 0.0
      %v3737 = vsel %vm442, %v3705, 0.0
      %v3738 = vadd.f32 %v3736, %v3737
      %v3739 = vsel %vm442, %v3706, 0.0
      %v3740 = vadd.f32 %v3738, %v3739
      %v3741 = vsel %vm442, %v3707, 0.0
      %v3742 = vadd.f32 %v3740, %v3741
      %v3743 = vsel %vm442, %v3708, 0.0
      %v3744 = vadd.f32 %v3742, %v3743
      %v3745 = vsel %vm442, %v3709, 0.0
      %v3746 = vadd.f32 %v3744, %v3745
      %v3747 = vsel %vm442, %v3710, 0.0
      %v3748 = vadd.f32 %v3746, %v3747
      %v3749 = vsel %vm442, %v3711, 0.0
      %v3750 = vadd.f32 %v3748, %v3749
      %v3751 = vsel %vm442, %v3712, 0.0
      %v3752 = vadd.f32 %v3750, %v3751
      %v3753 = vsel %vm442, %v3713, 0.0
      %v3754 = vadd.f32 %v3752, %v3753
      %v3755 = vsel %vm442, %v3714, 0.0
      %v3756 = vadd.f32 %v3754, %v3755
      %v3757 = vsel %vm442, %v3715, 0.0
      %v3758 = vadd.f32 %v3756, %v3757
      %v3759 = vsel %vm442, %v3716, 0.0
      %v3760 = vadd.f32 %v3758, %v3759
      %v3761 = vsel %vm442, %v3717, 0.0
      %v3762 = vadd.f32 %v3760, %v3761
      %v3763 = vsel %vm442, %v3718, 0.0
      %v3764 = vadd.f32 %v3762, %v3763
      %v3765 = vsel %vm442, %v3719, 0.0
      %v3766 = vadd.f32 %v3764, %v3765
      %v3767 = vsel %vm442, %v3720, 0.0
      %v3768 = vadd.f32 %v3766, %v3767
      %v3769 = vsel %vm442, %v3721, 0.0
      %v3770 = vadd.f32 %v3768, %v3769
      %v3771 = vsel %vm442, %v3722, 0.0
      %v3772 = vadd.f32 %v3770, %v3771
      %v3773 = vsel %vm442, %v3723, 0.0
      %v3774 = vadd.f32 %v3772, %v3773
      %v3775 = vsel %vm442, %v3724, 0.0
      %v3776 = vadd.f32 %v3774, %v3775
      %v3777 = vsel %vm442, %v3725, 0.0
      %v3778 = vadd.f32 %v3776, %v3777
      %v3779 = vsel %vm442, %v3726, 0.0
      %v3780 = vadd.f32 %v3778, %v3779
      %v3781 = vsel %vm442, %v3727, 0.0
      %v3782 = vadd.f32 %v3780, %v3781
      %v3783 = vsel %vm442, %v3728, 0.0
      %v3784 = vadd.f32 %v3782, %v3783
      %v3785 = vsel %vm442, %v3729, 0.0
      %v3786 = vadd.f32 %v3784, %v3785
      %v3787 = vsel %vm442, %v3730, 0.0
      %v3788 = vadd.f32 %v3786, %v3787
      %v3789 = vsel %vm442, %v3731, 0.0
      %v3790 = vadd.f32 %v3788, %v3789
      %v3791 = vsel %vm442, %v3732, 0.0
      %v3792 = vadd.f32 %v3790, %v3791
      %v3793 = vsel %vm442, %v3733, 0.0
      %v3794 = vadd.f32 %v3792, %v3793
      %v3795 = vsel %vm442, %v3734, 0.0
      %v3796 = vadd.f32 %v3794, %v3795
      %v3797 = vsel %vm442, %v3735, 0.0
      %v3798 = vadd.f32 %v3796, %v3797
      %v3799 = vrot.slane %v3798, 4
      %v3800 = vadd.f32 %v3798, %v3799
      %v3801 = vrot.slane %v3800, 2
      %v3802 = vadd.f32 %v3800, %v3801
      %v3803 = vrot.slane %v3802, 1
      %v3804 = vadd.f32 %v3802, %v3803
      %v3805 = vsel %vm767, %v3703, %v3804
      %v3806 = vmul.f32 %v3805, 0.00390625
      %v3807 = vld [vmem:[%s8] sm:$0xff]
      %v3808 = vld [vmem:[%s8 + $0x8] sm:$0xff]
      %v3810 = vsel %vm442, %v3806, 0
      %3812 = vmatprep.subr.mxu0 0.0
      %3813 = vmatpush1.msra.mxu0 %v3807
      %3814 = vmatprep.subr.mxu0 0.0
      %3815 = vmatpush1.msra.mxu0 %v3808
      %3816 = vmatprep.subr.mxu0 0.0
      %3817 = vmatpush1.msra.mxu0 0.0
      %3818 = vmatprep.subr.mxu0 0.0
      %3819 = vmatpush1.msra.mxu0 0.0
      %3820 = vmatprep.subr.mxu0 0.0
      %3821 = vmatpush1.msra.mxu0 0.0
      %3822 = vmatprep.subr.mxu0 0.0
      %3823 = vmatpush1.msra.mxu0 0.0
      %3824 = vmatprep.subr.mxu0 0.0
      %3825 = vmatpush1.msra.mxu0 0.0
      %3826 = vmatprep.subr.mxu0 0.0
      %3827 = vmatpush1.msra.mxu0 0.0
      %3828 = vmatprep.subr.mxu0 0.0
      %3829 = vmatpush1.msra.mxu0 0.0
      %3830 = vmatprep.subr.mxu0 0.0
      %3831 = vmatpush1.msra.mxu0 0.0
      %3832 = vmatprep.subr.mxu0 0.0
      %3833 = vmatpush1.msra.mxu0 0.0
      %3834 = vmatprep.subr.mxu0 0.0
      %3835 = vmatpush1.msra.mxu0 0.0
      %3836 = vmatprep.subr.mxu0 0.0
      %3837 = vmatpush1.msra.mxu0 0.0
      %3838 = vmatprep.subr.mxu0 0.0
      %3839 = vmatpush1.msra.mxu0 0.0
      %3840 = vmatprep.subr.mxu0 0.0
      %3841 = vmatpush1.msra.mxu0 0.0
      %3842 = vmatprep.subr.mxu0 0.0
      %3843 = vmatpush1.msra.mxu0 0.0
      %3844 = vmatprep.subr.mxu0 0.0
      %3845 = vmatpush1.msra.mxu0 0.0
      %3846 = vmatprep.subr.mxu0 0.0
      %3847 = vmatpush1.msra.mxu0 0.0
      %3848 = vmatprep.subr.mxu0 0.0
      %3849 = vmatpush1.msra.mxu0 0.0
      %3850 = vmatprep.subr.mxu0 0.0
      %3851 = vmatpush1.msra.mxu0 0.0
      %3852 = vmatprep.subr.mxu0 0.0
      %3853 = vmatpush1.msra.mxu0 0.0
      %3854 = vmatprep.subr.mxu0 0.0
      %3855 = vmatpush1.msra.mxu0 0.0
      %3856 = vmatprep.subr.mxu0 0.0
      %3857 = vmatpush1.msra.mxu0 0.0
      %3858 = vmatprep.subr.mxu0 0.0
      %3859 = vmatpush1.msra.mxu0 0.0
      %3860 = vmatprep.subr.mxu0 0.0
      %3861 = vmatpush1.msra.mxu0 0.0
      %3862 = vmatprep.subr.mxu0 0.0
      %3863 = vmatpush1.msra.mxu0 0.0
      %3864 = vmatprep.subr.mxu0 0.0
      %3865 = vmatpush1.msra.mxu0 0.0
      %3866 = vmatprep.subr.mxu0 0.0
      %3867 = vmatpush1.msra.mxu0 0.0
      %3868 = vmatprep.subr.mxu0 0.0
      %3869 = vmatpush1.msra.mxu0 0.0
      %3870 = vmatprep.subr.mxu0 0.0
      %3871 = vmatpush1.msra.mxu0 0.0
      %3872 = vmatprep.subr.mxu0 0.0
      %3873 = vmatpush1.msra.mxu0 0.0
      %3874 = vmatprep.subr.mxu0 0.0
      %3875 = vmatpush1.msra.mxu0 0.0
      %3876 = vmatprep.mubr.f32.mxu0 0.0
      %3877 = vmatmul.mubr.f32.gmra.mrb[0].mxu0 %v3810
      %v3878 = vpop.f32.mrb[0].mxu0
      %v3879 = vadd.f32 0.0, %v3878
      %v3880 = vpop.f32.mrb[0].mxu0
      %3881 = vdwg.mxu0
      %v3882 = vmul.f32 %v3879, %v3879
      %v3884 = vrot.slane %v3882, 7
      %v3886 = vsub.f32 %v3879, %v3884
      %v3887 = vmax.f32 %v3886, 0.0
      %v3888 = vadd.f32 %v3887, 1e-06
      %v3889 = vrsqrt.pop %v3888
      %v3890 = vld [vmem:[%s6] sm:$0x1]
      %v3892 = vlaneseq
      %v3893 = vshrl.u32 %v3892, 7
      %v3894 = vsub.s32 0, %v3893
      %v3895 = vrot.slane %v3890, %v3894
      %v3897 = vmul.f32 %v3889, %v3895
      %v3898 = vld [vmem:[%s7] sm:$0x1]
      %v3900 = vrot.slane %v3897, 1
      %v3902 = vmul.f32 %v3879, %v3900
      %v3903 = vsub.f32 %v3898, %v3902
      %v3904 = vlaneseq
      %v3905 = vshrl.u32 %v3904, 7
      %v3906 = vsub.s32 1, %v3905
      %v3907 = vrot.slane %v3897, %v3906
      %v3908 = vmul.f32 %v3603, %v3907
      %v3909 = vmul.f32 %v3604, %v3907
      %v3910 = vmul.f32 %v3605, %v3907
      %v3911 = vmul.f32 %v3606, %v3907
      %v3912 = vmul.f32 %v3607, %v3907
      %v3913 = vmul.f32 %v3608, %v3907
      %v3914 = vmul.f32 %v3609, %v3907
      %v3915 = vmul.f32 %v3610, %v3907
      %v3916 = vmul.f32 %v3611, %v3907
      %v3917 = vmul.f32 %v3612, %v3907
      %v3918 = vmul.f32 %v3613, %v3907
      %v3919 = vmul.f32 %v3614, %v3907
      %v3920 = vmul.f32 %v3615, %v3907
      %v3921 = vmul.f32 %v3616, %v3907
      %v3922 = vmul.f32 %v3617, %v3907
      %v3923 = vmul.f32 %v3618, %v3907
      %v3924 = vmul.f32 %v3619, %v3907
      %v3925 = vmul.f32 %v3620, %v3907
      %v3926 = vmul.f32 %v3621, %v3907
      %v3927 = vmul.f32 %v3622, %v3907
      %v3928 = vmul.f32 %v3623, %v3907
      %v3929 = vmul.f32 %v3624, %v3907
      %v3930 = vmul.f32 %v3625, %v3907
      %v3931 = vmul.f32 %v3626, %v3907
      %v3932 = vmul.f32 %v3627, %v3907
      %v3933 = vmul.f32 %v3628, %v3907
      %v3934 = vmul.f32 %v3629, %v3907
      %v3935 = vmul.f32 %v3630, %v3907
      %v3936 = vmul.f32 %v3631, %v3907
      %v3937 = vmul.f32 %v3632, %v3907
      %v3938 = vmul.f32 %v3633, %v3907
      %v3939 = vmul.f32 %v3634, %v3907
      %v3941 = vlaneseq
      %v3942 = vshrl.u32 %v3941, 7
      %v3943 = vsub.s32 0, %v3942
      %v3944 = vrot.slane %v3903, %v3943
      %v3946 = vadd.f32 %v3908, %v3944
      %v3947 = vadd.f32 %v3909, %v3944
      %v3948 = vadd.f32 %v3910, %v3944
      %v3949 = vadd.f32 %v3911, %v3944
      %v3950 = vadd.f32 %v3912, %v3944
      %v3951 = vadd.f32 %v3913, %v3944
      %v3952 = vadd.f32 %v3914, %v3944
      %v3953 = vadd.f32 %v3915, %v3944
      %v3954 = vadd.f32 %v3916, %v3944
      %v3955 = vadd.f32 %v3917, %v3944
      %v3956 = vadd.f32 %v3918, %v3944
      %v3957 = vadd.f32 %v3919, %v3944
      %v3958 = vadd.f32 %v3920, %v3944
      %v3959 = vadd.f32 %v3921, %v3944
      %v3960 = vadd.f32 %v3922, %v3944
      %v3961 = vadd.f32 %v3923, %v3944
      %v3962 = vadd.f32 %v3924, %v3944
      %v3963 = vadd.f32 %v3925, %v3944
      %v3964 = vadd.f32 %v3926, %v3944
      %v3965 = vadd.f32 %v3927, %v3944
      %v3966 = vadd.f32 %v3928, %v3944
      %v3967 = vadd.f32 %v3929, %v3944
      %v3968 = vadd.f32 %v3930, %v3944
      %v3969 = vadd.f32 %v3931, %v3944
      %v3970 = vadd.f32 %v3932, %v3944
      %v3971 = vadd.f32 %v3933, %v3944
      %v3972 = vadd.f32 %v3934, %v3944
      %v3973 = vadd.f32 %v3935, %v3944
      %v3974 = vadd.f32 %v3936, %v3944
      %v3975 = vadd.f32 %v3937, %v3944
      %v3976 = vadd.f32 %v3938, %v3944
      %v3977 = vadd.f32 %v3939, %v3944
      %v3978 = vxor.u32 %v3946, 2147483648
      %v3979 = vxor.u32 %v3947, 2147483648
      %v3980 = vxor.u32 %v3948, 2147483648
      %v3981 = vxor.u32 %v3949, 2147483648
      %v3982 = vxor.u32 %v3950, 2147483648
      %v3983 = vxor.u32 %v3951, 2147483648
      %v3984 = vxor.u32 %v3952, 2147483648
      %v3985 = vxor.u32 %v3953, 2147483648
      %v3986 = vxor.u32 %v3954, 2147483648
      %v3987 = vxor.u32 %v3955, 2147483648
      %v3988 = vxor.u32 %v3956, 2147483648
      %v3989 = vxor.u32 %v3957, 2147483648
      %v3990 = vxor.u32 %v3958, 2147483648
      %v3991 = vxor.u32 %v3959, 2147483648
      %v3992 = vxor.u32 %v3960, 2147483648
      %v3993 = vxor.u32 %v3961, 2147483648
      %v3994 = vxor.u32 %v3962, 2147483648
      %v3995 = vxor.u32 %v3963, 2147483648
      %v3996 = vxor.u32 %v3964, 2147483648
      %v3997 = vxor.u32 %v3965, 2147483648
      %v3998 = vxor.u32 %v3966, 2147483648
      %v3999 = vxor.u32 %v3967, 2147483648
      %v4000 = vxor.u32 %v3968, 2147483648
      %v4001 = vxor.u32 %v3969, 2147483648
      %v4002 = vxor.u32 %v3970, 2147483648
      %v4003 = vxor.u32 %v3971, 2147483648
      %v4004 = vxor.u32 %v3972, 2147483648
      %v4005 = vxor.u32 %v3973, 2147483648
      %v4006 = vxor.u32 %v3974, 2147483648
      %v4007 = vxor.u32 %v3975, 2147483648
      %v4008 = vxor.u32 %v3976, 2147483648
      %v4009 = vxor.u32 %v3977, 2147483648
      %v4010 = vmul.f32 %v3978, 1.442695
      %v4011 = vpow.pop %v4010
      %v4012 = vmul.f32 %v3979, 1.442695
      %v4013 = vpow.pop %v4012
      %v4014 = vmul.f32 %v3980, 1.442695
      %v4015 = vpow.pop %v4014
      %v4016 = vmul.f32 %v3981, 1.442695
      %v4017 = vpow.pop %v4016
      %v4018 = vmul.f32 %v3982, 1.442695
      %v4019 = vpow.pop %v4018
      %v4020 = vmul.f32 %v3983, 1.442695
      %v4021 = vpow.pop %v4020
      %v4022 = vmul.f32 %v3984, 1.442695
      %v4023 = vpow.pop %v4022
      %v4024 = vmul.f32 %v3985, 1.442695
      %v4025 = vpow.pop %v4024
      %v4026 = vmul.f32 %v3986, 1.442695
      %v4027 = vpow.pop %v4026
      %v4028 = vmul.f32 %v3987, 1.442695
      %v4029 = vpow.pop %v4028
      %v4030 = vmul.f32 %v3988, 1.442695
      %v4031 = vpow.pop %v4030
      %v4032 = vmul.f32 %v3989, 1.442695
      %v4033 = vpow.pop %v4032
      %v4034 = vmul.f32 %v3990, 1.442695
      %v4035 = vpow.pop %v4034
      %v4036 = vmul.f32 %v3991, 1.442695
      %v4037 = vpow.pop %v4036
      %v4038 = vmul.f32 %v3992, 1.442695
      %v4039 = vpow.pop %v4038
      %v4040 = vmul.f32 %v3993, 1.442695
      %v4041 = vpow.pop %v4040
      %v4042 = vmul.f32 %v3994, 1.442695
      %v4043 = vpow.pop %v4042
      %v4044 = vmul.f32 %v3995, 1.442695
      %v4045 = vpow.pop %v4044
      %v4046 = vmul.f32 %v3996, 1.442695
      %v4047 = vpow.pop %v4046
      %v4048 = vmul.f32 %v3997, 1.442695
      %v4049 = vpow.pop %v4048
      %v4050 = vmul.f32 %v3998, 1.442695
      %v4051 = vpow.pop %v4050
      %v4052 = vmul.f32 %v3999, 1.442695
      %v4053 = vpow.pop %v4052
      %v4054 = vmul.f32 %v4000, 1.442695
      %v4055 = vpow.pop %v4054
      %v4056 = vmul.f32 %v4001, 1.442695
      %v4057 = vpow.pop %v4056
      %v4058 = vmul.f32 %v4002, 1.442695
      %v4059 = vpow.pop %v4058
      %v4060 = vmul.f32 %v4003, 1.442695
      %v4061 = vpow.pop %v4060
      %v4062 = vmul.f32 %v4004, 1.442695
      %v4063 = vpow.pop %v4062
      %v4064 = vmul.f32 %v4005, 1.442695
      %v4065 = vpow.pop %v4064
      %v4066 = vmul.f32 %v4006, 1.442695
      %v4067 = vpow.pop %v4066
      %v4068 = vmul.f32 %v4007, 1.442695
      %v4069 = vpow.pop %v4068
      %v4070 = vmul.f32 %v4008, 1.442695
      %v4071 = vpow.pop %v4070
      %v4072 = vmul.f32 %v4009, 1.442695
      %v4073 = vpow.pop %v4072
      %v4074 = vadd.f32 %v4011, 1.0
      %v4075 = vadd.f32 %v4013, 1.0
      %v4076 = vadd.f32 %v4015, 1.0
      %v4077 = vadd.f32 %v4017, 1.0
      %v4078 = vadd.f32 %v4019, 1.0
      %v4079 = vadd.f32 %v4021, 1.0
      %v4080 = vadd.f32 %v4023, 1.0
      %v4081 = vadd.f32 %v4025, 1.0
      %v4082 = vadd.f32 %v4027, 1.0
      %v4083 = vadd.f32 %v4029, 1.0
      %v4084 = vadd.f32 %v4031, 1.0
      %v4085 = vadd.f32 %v4033, 1.0
      %v4086 = vadd.f32 %v4035, 1.0
      %v4087 = vadd.f32 %v4037, 1.0
      %v4088 = vadd.f32 %v4039, 1.0
      %v4089 = vadd.f32 %v4041, 1.0
      %v4090 = vadd.f32 %v4043, 1.0
      %v4091 = vadd.f32 %v4045, 1.0
      %v4092 = vadd.f32 %v4047, 1.0
      %v4093 = vadd.f32 %v4049, 1.0
      %v4094 = vadd.f32 %v4051, 1.0
      %v4095 = vadd.f32 %v4053, 1.0
      %v4096 = vadd.f32 %v4055, 1.0
      %v4097 = vadd.f32 %v4057, 1.0
      %v4098 = vadd.f32 %v4059, 1.0
      %v4099 = vadd.f32 %v4061, 1.0
      %v4100 = vadd.f32 %v4063, 1.0
      %v4101 = vadd.f32 %v4065, 1.0
      %v4102 = vadd.f32 %v4067, 1.0
      %v4103 = vadd.f32 %v4069, 1.0
      %v4104 = vadd.f32 %v4071, 1.0
      %v4105 = vadd.f32 %v4073, 1.0
      %v4106 = vrcp.pop %v4074
      %v4107 = vmul.f32 1.0, %v4106
      %v4108 = vrcp.pop %v4075
      %v4109 = vmul.f32 1.0, %v4108
      %v4110 = vrcp.pop %v4076
      %v4111 = vmul.f32 1.0, %v4110
      %v4112 = vrcp.pop %v4077
      %v4113 = vmul.f32 1.0, %v4112
      %v4114 = vrcp.pop %v4078
      %v4115 = vmul.f32 1.0, %v4114
      %v4116 = vrcp.pop %v4079
      %v4117 = vmul.f32 1.0, %v4116
      %v4118 = vrcp.pop %v4080
      %v4119 = vmul.f32 1.0, %v4118
      %v4120 = vrcp.pop %v4081
      %v4121 = vmul.f32 1.0, %v4120
      %v4122 = vrcp.pop %v4082
      %v4123 = vmul.f32 1.0, %v4122
      %v4124 = vrcp.pop %v4083
      %v4125 = vmul.f32 1.0, %v4124
      %v4126 = vrcp.pop %v4084
      %v4127 = vmul.f32 1.0, %v4126
      %v4128 = vrcp.pop %v4085
      %v4129 = vmul.f32 1.0, %v4128
      %v4130 = vrcp.pop %v4086
      %v4131 = vmul.f32 1.0, %v4130
      %v4132 = vrcp.pop %v4087
      %v4133 = vmul.f32 1.0, %v4132
      %v4134 = vrcp.pop %v4088
      %v4135 = vmul.f32 1.0, %v4134
      %v4136 = vrcp.pop %v4089
      %v4137 = vmul.f32 1.0, %v4136
      %v4138 = vrcp.pop %v4090
      %v4139 = vmul.f32 1.0, %v4138
      %v4140 = vrcp.pop %v4091
      %v4141 = vmul.f32 1.0, %v4140
      %v4142 = vrcp.pop %v4092
      %v4143 = vmul.f32 1.0, %v4142
      %v4144 = vrcp.pop %v4093
      %v4145 = vmul.f32 1.0, %v4144
      %v4146 = vrcp.pop %v4094
      %v4147 = vmul.f32 1.0, %v4146
      %v4148 = vrcp.pop %v4095
      %v4149 = vmul.f32 1.0, %v4148
      %v4150 = vrcp.pop %v4096
      %v4151 = vmul.f32 1.0, %v4150
      %v4152 = vrcp.pop %v4097
      %v4153 = vmul.f32 1.0, %v4152
      %v4154 = vrcp.pop %v4098
      %v4155 = vmul.f32 1.0, %v4154
      %v4156 = vrcp.pop %v4099
      %v4157 = vmul.f32 1.0, %v4156
      %v4158 = vrcp.pop %v4100
      %v4159 = vmul.f32 1.0, %v4158
      %v4160 = vrcp.pop %v4101
      %v4161 = vmul.f32 1.0, %v4160
      %v4162 = vrcp.pop %v4102
      %v4163 = vmul.f32 1.0, %v4162
      %v4164 = vrcp.pop %v4103
      %v4165 = vmul.f32 1.0, %v4164
      %v4166 = vrcp.pop %v4104
      %v4167 = vmul.f32 1.0, %v4166
      %v4168 = vrcp.pop %v4105
      %v4169 = vmul.f32 1.0, %v4168
      %v4170 = vmul.f32 %v3946, %v4107
      %v4171 = vmul.f32 %v3947, %v4109
      %v4172 = vmul.f32 %v3948, %v4111
      %v4173 = vmul.f32 %v3949, %v4113
      %v4174 = vmul.f32 %v3950, %v4115
      %v4175 = vmul.f32 %v3951, %v4117
      %v4176 = vmul.f32 %v3952, %v4119
      %v4177 = vmul.f32 %v3953, %v4121
      %v4178 = vmul.f32 %v3954, %v4123
      %v4179 = vmul.f32 %v3955, %v4125
      %v4180 = vmul.f32 %v3956, %v4127
      %v4181 = vmul.f32 %v3957, %v4129
      %v4182 = vmul.f32 %v3958, %v4131
      %v4183 = vmul.f32 %v3959, %v4133
      %v4184 = vmul.f32 %v3960, %v4135
      %v4185 = vmul.f32 %v3961, %v4137
      %v4186 = vmul.f32 %v3962, %v4139
      %v4187 = vmul.f32 %v3963, %v4141
      %v4188 = vmul.f32 %v3964, %v4143
      %v4189 = vmul.f32 %v3965, %v4145
      %v4190 = vmul.f32 %v3966, %v4147
      %v4191 = vmul.f32 %v3967, %v4149
      %v4192 = vmul.f32 %v3968, %v4151
      %v4193 = vmul.f32 %v3969, %v4153
      %v4194 = vmul.f32 %v3970, %v4155
      %v4195 = vmul.f32 %v3971, %v4157
      %v4196 = vmul.f32 %v3972, %v4159
      %v4197 = vmul.f32 %v3973, %v4161
      %v4198 = vmul.f32 %v3974, %v4163
      %v4199 = vmul.f32 %v3975, %v4165
      %v4200 = vmul.f32 %v3976, %v4167
      %v4201 = vmul.f32 %v3977, %v4169
      %v4202 = vpack.c.bf16 %v4171, %v4170
      %v4203 = vpack.c.bf16 %v4173, %v4172
      %v4204 = vpack.c.bf16 %v4175, %v4174
      %v4205 = vpack.c.bf16 %v4177, %v4176
      %v4206 = vpack.c.bf16 %v4179, %v4178
      %v4207 = vpack.c.bf16 %v4181, %v4180
      %v4208 = vpack.c.bf16 %v4183, %v4182
      %v4209 = vpack.c.bf16 %v4185, %v4184
      %v4210 = vpack.c.bf16 %v4187, %v4186
      %v4211 = vpack.c.bf16 %v4189, %v4188
      %v4212 = vpack.c.bf16 %v4191, %v4190
      %v4213 = vpack.c.bf16 %v4193, %v4192
      %v4214 = vpack.c.bf16 %v4195, %v4194
      %v4215 = vpack.c.bf16 %v4197, %v4196
      %v4216 = vpack.c.bf16 %v4199, %v4198
      %v4217 = vpack.c.bf16 %v4201, %v4200
      %4218 = vst.msk [vmem:[%s1180 + $0x8] sm:$0xff] %vm442, %v4202
      %4219 = vst.msk [vmem:[%s1180 + $0x20] sm:$0xff] %vm442, %v4203
      %4220 = vst.msk [vmem:[%s1180 + $0x38] sm:$0xff] %vm442, %v4204
      %4221 = vst.msk [vmem:[%s1180 + $0x50] sm:$0xff] %vm442, %v4205
      %4222 = vst.msk [vmem:[%s1180 + $0x68] sm:$0xff] %vm442, %v4206
      %4223 = vst.msk [vmem:[%s1180 + $0x80] sm:$0xff] %vm442, %v4207
      %4224 = vst.msk [vmem:[%s1180 + $0x98] sm:$0xff] %vm442, %v4208
      %4225 = vst.msk [vmem:[%s1180 + $0xb0] sm:$0xff] %vm442, %v4209
      %4226 = vst.msk [vmem:[%s1180 + $0xc8] sm:$0xff] %vm442, %v4210
      %4227 = vst.msk [vmem:[%s1180 + $0xe0] sm:$0xff] %vm442, %v4211
      %4228 = vst.msk [vmem:[%s1180 + $0xf8] sm:$0xff] %vm442, %v4212
      %4229 = vst.msk [vmem:[%s1180 + $0x110] sm:$0xff] %vm442, %v4213
      %4230 = vst.msk [vmem:[%s1180 + $0x128] sm:$0xff] %vm442, %v4214
      %4231 = vst.msk [vmem:[%s1180 + $0x140] sm:$0xff] %vm442, %v4215
      %4232 = vst.msk [vmem:[%s1180 + $0x158] sm:$0xff] %vm442, %v4216
      %4233 = vst.msk [vmem:[%s1180 + $0x170] sm:$0xff] %vm442, %v4217
      %v4234 = vld [vmem:[%s10] sm:$0x1]
      %v4236 = vlaneseq
      %v4237 = vshrl.u32 %v4236, 7
      %v4238 = vsub.s32 0, %v4237
      %v4239 = vrot.slane %v4234, %v4238
      %v4241 = vld [vmem:[#allocation2] sm:$0x80]
      %v4242 = vld [vmem:[#allocation2 + $0x8] sm:$0xff]
      %v4243 = vld [vmem:[#allocation2 + $0x18] sm:$0x80]
      %v4244 = vld [vmem:[#allocation2 + $0x20] sm:$0xff]
      %v4245 = vld [vmem:[#allocation2 + $0x30] sm:$0x80]
      %v4246 = vld [vmem:[#allocation2 + $0x38] sm:$0xff]
      %v4247 = vld [vmem:[#allocation2 + $0x48] sm:$0x80]
      %v4248 = vld [vmem:[#allocation2 + $0x50] sm:$0xff]
      %v4249 = vld [vmem:[#allocation2 + $0x60] sm:$0x80]
      %v4250 = vld [vmem:[#allocation2 + $0x68] sm:$0xff]
      %v4251 = vld [vmem:[#allocation2 + $0x78] sm:$0x80]
      %v4252 = vld [vmem:[#allocation2 + $0x80] sm:$0xff]
      %v4253 = vld [vmem:[#allocation2 + $0x90] sm:$0x80]
      %v4254 = vld [vmem:[#allocation2 + $0x98] sm:$0xff]
      %v4255 = vld [vmem:[#allocation2 + $0xa8] sm:$0x80]
      %v4256 = vld [vmem:[#allocation2 + $0xb0] sm:$0xff]
      %v4257 = vld [vmem:[#allocation2 + $0xc0] sm:$0x80]
      %v4258 = vld [vmem:[#allocation2 + $0xc8] sm:$0xff]
      %v4259 = vld [vmem:[#allocation2 + $0xd8] sm:$0x80]
      %v4260 = vld [vmem:[#allocation2 + $0xe0] sm:$0xff]
      %v4261 = vld [vmem:[#allocation2 + $0xf0] sm:$0x80]
      %v4262 = vld [vmem:[#allocation2 + $0xf8] sm:$0xff]
      %v4263 = vld [vmem:[#allocation2 + $0x108] sm:$0x80]
      %v4264 = vld [vmem:[#allocation2 + $0x110] sm:$0xff]
      %v4265 = vld [vmem:[#allocation2 + $0x120] sm:$0x80]
      %v4266 = vld [vmem:[#allocation2 + $0x128] sm:$0xff]
      %v4267 = vld [vmem:[#allocation2 + $0x138] sm:$0x80]
      %v4268 = vld [vmem:[#allocation2 + $0x140] sm:$0xff]
      %v4269 = vld [vmem:[#allocation2 + $0x150] sm:$0x80]
      %v4270 = vld [vmem:[#allocation2 + $0x158] sm:$0xff]
      %v4271 = vld [vmem:[#allocation2 + $0x168] sm:$0x80]
      %v4272 = vld [vmem:[#allocation2 + $0x170] sm:$0xff]
      %v4273 = vld [vmem:[#allocation2 + $0x180] sm:$0x80]
      %v4274 = vld [vmem:[#allocation2 + $0x188] sm:$0xff]
      %v4275 = vld [vmem:[#allocation2 + $0x198] sm:$0x80]
      %v4276 = vld [vmem:[#allocation2 + $0x1a0] sm:$0xff]
      %v4278 = vshrl.u32 %v4241, 16
      %v4280 = vrot.slane %v4278, 7
      %v4282 = vshrl.u32 %v4242, 16
      %v4284 = vrot.slane %v4282, 7
      %v4285 = vshll.u32 %v4242, 16
      %v4287 = vor.u32 %v4284, %v4285
      %v4288 = vsel %vm508, %v4280, %v4287
      %v4290 = vshrl.u32 %v4243, 16
      %v4292 = vrot.slane %v4290, 7
      %v4294 = vshrl.u32 %v4244, 16
      %v4296 = vrot.slane %v4294, 7
      %v4297 = vshll.u32 %v4244, 16
      %v4299 = vor.u32 %v4296, %v4297
      %v4300 = vsel %vm508, %v4292, %v4299
      %v4302 = vshrl.u32 %v4245, 16
      %v4304 = vrot.slane %v4302, 7
      %v4306 = vshrl.u32 %v4246, 16
      %v4308 = vrot.slane %v4306, 7
      %v4309 = vshll.u32 %v4246, 16
      %v4311 = vor.u32 %v4308, %v4309
      %v4312 = vsel %vm508, %v4304, %v4311
      %v4314 = vshrl.u32 %v4247, 16
      %v4316 = vrot.slane %v4314, 7
      %v4318 = vshrl.u32 %v4248, 16
      %v4320 = vrot.slane %v4318, 7
      %v4321 = vshll.u32 %v4248, 16
      %v4323 = vor.u32 %v4320, %v4321
      %v4324 = vsel %vm508, %v4316, %v4323
      %v4326 = vshrl.u32 %v4249, 16
      %v4328 = vrot.slane %v4326, 7
      %v4330 = vshrl.u32 %v4250, 16
      %v4332 = vrot.slane %v4330, 7
      %v4333 = vshll.u32 %v4250, 16
      %v4335 = vor.u32 %v4332, %v4333
      %v4336 = vsel %vm508, %v4328, %v4335
      %v4338 = vshrl.u32 %v4251, 16
      %v4340 = vrot.slane %v4338, 7
      %v4342 = vshrl.u32 %v4252, 16
      %v4344 = vrot.slane %v4342, 7
      %v4345 = vshll.u32 %v4252, 16
      %v4347 = vor.u32 %v4344, %v4345
      %v4348 = vsel %vm508, %v4340, %v4347
      %v4350 = vshrl.u32 %v4253, 16
      %v4352 = vrot.slane %v4350, 7
      %v4354 = vshrl.u32 %v4254, 16
      %v4356 = vrot.slane %v4354, 7
      %v4357 = vshll.u32 %v4254, 16
      %v4359 = vor.u32 %v4356, %v4357
      %v4360 = vsel %vm508, %v4352, %v4359
      %v4362 = vshrl.u32 %v4255, 16
      %v4364 = vrot.slane %v4362, 7
      %v4366 = vshrl.u32 %v4256, 16
      %v4368 = vrot.slane %v4366, 7
      %v4369 = vshll.u32 %v4256, 16
      %v4371 = vor.u32 %v4368, %v4369
      %v4372 = vsel %vm508, %v4364, %v4371
      %v4374 = vshrl.u32 %v4257, 16
      %v4376 = vrot.slane %v4374, 7
      %v4378 = vshrl.u32 %v4258, 16
      %v4380 = vrot.slane %v4378, 7
      %v4381 = vshll.u32 %v4258, 16
      %v4383 = vor.u32 %v4380, %v4381
      %v4384 = vsel %vm508, %v4376, %v4383
      %v4386 = vshrl.u32 %v4259, 16
      %v4388 = vrot.slane %v4386, 7
      %v4390 = vshrl.u32 %v4260, 16
      %v4392 = vrot.slane %v4390, 7
      %v4393 = vshll.u32 %v4260, 16
      %v4395 = vor.u32 %v4392, %v4393
      %v4396 = vsel %vm508, %v4388, %v4395
      %v4398 = vshrl.u32 %v4261, 16
      %v4400 = vrot.slane %v4398, 7
      %v4402 = vshrl.u32 %v4262, 16
      %v4404 = vrot.slane %v4402, 7
      %v4405 = vshll.u32 %v4262, 16
      %v4407 = vor.u32 %v4404, %v4405
      %v4408 = vsel %vm508, %v4400, %v4407
      %v4410 = vshrl.u32 %v4263, 16
      %v4412 = vrot.slane %v4410, 7
      %v4414 = vshrl.u32 %v4264, 16
      %v4416 = vrot.slane %v4414, 7
      %v4417 = vshll.u32 %v4264, 16
      %v4419 = vor.u32 %v4416, %v4417
      %v4420 = vsel %vm508, %v4412, %v4419
      %v4422 = vshrl.u32 %v4265, 16
      %v4424 = vrot.slane %v4422, 7
      %v4426 = vshrl.u32 %v4266, 16
      %v4428 = vrot.slane %v4426, 7
      %v4429 = vshll.u32 %v4266, 16
      %v4431 = vor.u32 %v4428, %v4429
      %v4432 = vsel %vm508, %v4424, %v4431
      %v4434 = vshrl.u32 %v4267, 16
      %v4436 = vrot.slane %v4434, 7
      %v4438 = vshrl.u32 %v4268, 16
      %v4440 = vrot.slane %v4438, 7
      %v4441 = vshll.u32 %v4268, 16
      %v4443 = vor.u32 %v4440, %v4441
      %v4444 = vsel %vm508, %v4436, %v4443
      %v4446 = vshrl.u32 %v4269, 16
      %v4448 = vrot.slane %v4446, 7
      %v4450 = vshrl.u32 %v4270, 16
      %v4452 = vrot.slane %v4450, 7
      %v4453 = vshll.u32 %v4270, 16
      %v4455 = vor.u32 %v4452, %v4453
      %v4456 = vsel %vm508, %v4448, %v4455
      %v4458 = vshrl.u32 %v4271, 16
      %v4460 = vrot.slane %v4458, 7
      %v4462 = vshrl.u32 %v4272, 16
      %v4464 = vrot.slane %v4462, 7
      %v4465 = vshll.u32 %v4272, 16
      %v4467 = vor.u32 %v4464, %v4465
      %v4468 = vsel %vm508, %v4460, %v4467
      %v4469 = vld [vmem:[%s9] sm:$0xf]
      %v4470 = vld [vmem:[%s9 + $0x4] sm:$0xf]
      %v4473 = vunpack.c.l.b16 %v4469
      %v4474 = vunpack.c.l.b16 %v4470
      %v4475 = vpack.c.b16 %v4474, %v4473
      %v4478 = vsel %vm442, %v4288, 0
      %v4481 = vsel %vm442, %v4300, 0
      %v4484 = vsel %vm442, %v4312, 0
      %v4487 = vsel %vm442, %v4324, 0
      %v4490 = vsel %vm442, %v4336, 0
      %v4493 = vsel %vm442, %v4348, 0
      %v4496 = vsel %vm442, %v4360, 0
      %v4499 = vsel %vm442, %v4372, 0
      %v4502 = vsel %vm442, %v4384, 0
      %v4505 = vsel %vm442, %v4396, 0
      %v4508 = vsel %vm442, %v4408, 0
      %v4511 = vsel %vm442, %v4420, 0
      %v4514 = vsel %vm442, %v4432, 0
      %v4517 = vsel %vm442, %v4444, 0
      %v4520 = vsel %vm442, %v4456, 0
      %v4523 = vsel %vm442, %v4468, 0
      %4525 = vmatprep.subr.bf16.mxu0 0
      %4526 = vmatpush1.bf16.msra.mxu0 %v4475
      %4527 = vmatprep.subr.bf16.mxu0 0
      %4528 = vmatpush1.bf16.msra.mxu0 0
      %4529 = vmatprep.subr.bf16.mxu0 0
      %4530 = vmatpush1.bf16.msra.mxu0 0
      %4531 = vmatprep.subr.bf16.mxu0 0
      %4532 = vmatpush1.bf16.msra.mxu0 0
      %4533 = vmatprep.subr.bf16.mxu0 0
      %4534 = vmatpush1.bf16.msra.mxu0 0
      %4535 = vmatprep.subr.bf16.mxu0 0
      %4536 = vmatpush1.bf16.msra.mxu0 0
      %4537 = vmatprep.subr.bf16.mxu0 0
      %4538 = vmatpush1.bf16.msra.mxu0 0
      %4539 = vmatprep.subr.bf16.mxu0 0
      %4540 = vmatpush1.bf16.msra.mxu0 0
      %4541 = vmatprep.subr.bf16.mxu0 0
      %4542 = vmatpush1.bf16.msra.mxu0 0
      %4543 = vmatprep.subr.bf16.mxu0 0
      %4544 = vmatpush1.bf16.msra.mxu0 0
      %4545 = vmatprep.subr.bf16.mxu0 0
      %4546 = vmatpush1.bf16.msra.mxu0 0
      %4547 = vmatprep.subr.bf16.mxu0 0
      %4548 = vmatpush1.bf16.msra.mxu0 0
      %4549 = vmatprep.subr.bf16.mxu0 0
      %4550 = vmatpush1.bf16.msra.mxu0 0
      %4551 = vmatprep.subr.bf16.mxu0 0
      %4552 = vmatpush1.bf16.msra.mxu0 0
      %4553 = vmatprep.subr.bf16.mxu0 0
      %4554 = vmatpush1.bf16.msra.mxu0 0
      %4555 = vmatprep.subr.bf16.mxu0 0
      %4556 = vmatpush1.bf16.msra.mxu0 0
      %4557 = vmatprep.mubr.bf16.mxu0 0
      %4558 = vmatmul.mubr.bf16.gmra.mrb[0].mxu0 %v4478
      %v4559 = vpop.f32.mrb[0].mxu0
      %v4560 = vadd.f32 0.0, %v4559
      %v4561 = vpop.f32.mrb[0].mxu0
      %v4562 = vpop.f32.mrb[0].mxu0
      %v4563 = vadd.f32 0.0, %v4562
      %v4564 = vpop.f32.mrb[0].mxu0
      %4565 = vmatprep.mubr.bf16.mxu0 0
      %4566 = vmatmul.mubr.bf16.gmra.mrb[0].mxu0 %v4481
      %v4567 = vpop.f32.mrb[0].mxu0
      %v4568 = vadd.f32 0.0, %v4567
      %v4569 = vpop.f32.mrb[0].mxu0
      %v4570 = vpop.f32.mrb[0].mxu0
      %v4571 = vadd.f32 0.0, %v4570
      %v4572 = vpop.f32.mrb[0].mxu0
      %4573 = vmatprep.mubr.bf16.mxu0 0
      %4574 = vmatmul.mubr.bf16.gmra.mrb[0].mxu0 %v4484
      %v4575 = vpop.f32.mrb[0].mxu0
      %v4576 = vadd.f32 0.0, %v4575
      %v4577 = vpop.f32.mrb[0].mxu0
      %v4578 = vpop.f32.mrb[0].mxu0
      %v4579 = vadd.f32 0.0, %v4578
      %v4580 = vpop.f32.mrb[0].mxu0
      %4581 = vmatprep.mubr.bf16.mxu0 0
      %4582 = vmatmul.mubr.bf16.gmra.mrb[0].mxu0 %v4487
      %v4583 = vpop.f32.mrb[0].mxu0
      %v4584 = vadd.f32 0.0, %v4583
      %v4585 = vpop.f32.mrb[0].mxu0
      %v4586 = vpop.f32.mrb[0].mxu0
      %v4587 = vadd.f32 0.0, %v4586
      %v4588 = vpop.f32.mrb[0].mxu0
      %4589 = vmatprep.mubr.bf16.mxu0 0
      %4590 = vmatmul.mubr.bf16.gmra.mrb[0].mxu0 %v4490
      %v4591 = vpop.f32.mrb[0].mxu0
      %v4592 = vadd.f32 0.0, %v4591
      %v4593 = vpop.f32.mrb[0].mxu0
      %v4594 = vpop.f32.mrb[0].mxu0
      %v4595 = vadd.f32 0.0, %v4594
      %v4596 = vpop.f32.mrb[0].mxu0
      %4597 = vmatprep.mubr.bf16.mxu0 0
      %4598 = vmatmul.mubr.bf16.gmra.mrb[0].mxu0 %v4493
      %v4599 = vpop.f32.mrb[0].mxu0
      %v4600 = vadd.f32 0.0, %v4599
      %v4601 = vpop.f32.mrb[0].mxu0
      %v4602 = vpop.f32.mrb[0].mxu0
      %v4603 = vadd.f32 0.0, %v4602
      %v4604 = vpop.f32.mrb[0].mxu0
      %4605 = vmatprep.mubr.bf16.mxu0 0
      %4606 = vmatmul.mubr.bf16.gmra.mrb[0].mxu0 %v4496
      %v4607 = vpop.f32.mrb[0].mxu0
      %v4608 = vadd.f32 0.0, %v4607
      %v4609 = vpop.f32.mrb[0].mxu0
      %v4610 = vpop.f32.mrb[0].mxu0
      %v4611 = vadd.f32 0.0, %v4610
      %v4612 = vpop.f32.mrb[0].mxu0
      %4613 = vmatprep.mubr.bf16.mxu0 0
      %4614 = vmatmul.mubr.bf16.gmra.mrb[0].mxu0 %v4499
      %v4615 = vpop.f32.mrb[0].mxu0
      %v4616 = vadd.f32 0.0, %v4615
      %v4617 = vpop.f32.mrb[0].mxu0
      %v4618 = vpop.f32.mrb[0].mxu0
      %v4619 = vadd.f32 0.0, %v4618
      %v4620 = vpop.f32.mrb[0].mxu0
      %4621 = vmatprep.mubr.bf16.mxu0 0
      %4622 = vmatmul.mubr.bf16.gmra.mrb[0].mxu0 %v4502
      %v4623 = vpop.f32.mrb[0].mxu0
      %v4624 = vadd.f32 0.0, %v4623
      %v4625 = vpop.f32.mrb[0].mxu0
      %v4626 = vpop.f32.mrb[0].mxu0
      %v4627 = vadd.f32 0.0, %v4626
      %v4628 = vpop.f32.mrb[0].mxu0
      %4629 = vmatprep.mubr.bf16.mxu0 0
      %4630 = vmatmul.mubr.bf16.gmra.mrb[0].mxu0 %v4505
      %v4631 = vpop.f32.mrb[0].mxu0
      %v4632 = vadd.f32 0.0, %v4631
      %v4633 = vpop.f32.mrb[0].mxu0
      %v4634 = vpop.f32.mrb[0].mxu0
      %v4635 = vadd.f32 0.0, %v4634
      %v4636 = vpop.f32.mrb[0].mxu0
      %4637 = vmatprep.mubr.bf16.mxu0 0
      %4638 = vmatmul.mubr.bf16.gmra.mrb[0].mxu0 %v4508
      %v4639 = vpop.f32.mrb[0].mxu0
      %v4640 = vadd.f32 0.0, %v4639
      %v4641 = vpop.f32.mrb[0].mxu0
      %v4642 = vpop.f32.mrb[0].mxu0
      %v4643 = vadd.f32 0.0, %v4642
      %v4644 = vpop.f32.mrb[0].mxu0
      %4645 = vmatprep.mubr.bf16.mxu0 0
      %4646 = vmatmul.mubr.bf16.gmra.mrb[0].mxu0 %v4511
      %v4647 = vpop.f32.mrb[0].mxu0
      %v4648 = vadd.f32 0.0, %v4647
      %v4649 = vpop.f32.mrb[0].mxu0
      %v4650 = vpop.f32.mrb[0].mxu0
      %v4651 = vadd.f32 0.0, %v4650
      %v4652 = vpop.f32.mrb[0].mxu0
      %4653 = vmatprep.mubr.bf16.mxu0 0
      %4654 = vmatmul.mubr.bf16.gmra.mrb[0].mxu0 %v4514
      %v4655 = vpop.f32.mrb[0].mxu0
      %v4656 = vadd.f32 0.0, %v4655
      %v4657 = vpop.f32.mrb[0].mxu0
      %v4658 = vpop.f32.mrb[0].mxu0
      %v4659 = vadd.f32 0.0, %v4658
      %v4660 = vpop.f32.mrb[0].mxu0
      %4661 = vmatprep.mubr.bf16.mxu0 0
      %4662 = vmatmul.mubr.bf16.gmra.mrb[0].mxu0 %v4517
      %v4663 = vpop.f32.mrb[0].mxu0
      %v4664 = vadd.f32 0.0, %v4663
      %v4665 = vpop.f32.mrb[0].mxu0
      %v4666 = vpop.f32.mrb[0].mxu0
      %v4667 = vadd.f32 0.0, %v4666
      %v4668 = vpop.f32.mrb[0].mxu0
      %4669 = vmatprep.mubr.bf16.mxu0 0
      %4670 = vmatmul.mubr.bf16.gmra.mrb[0].mxu0 %v4520
      %v4671 = vpop.f32.mrb[0].mxu0
      %v4672 = vadd.f32 0.0, %v4671
      %v4673 = vpop.f32.mrb[0].mxu0
      %v4674 = vpop.f32.mrb[0].mxu0
      %v4675 = vadd.f32 0.0, %v4674
      %v4676 = vpop.f32.mrb[0].mxu0
      %4677 = vmatprep.mubr.bf16.mxu0 0
      %4678 = vmatmul.mubr.bf16.gmra.mrb[0].mxu0 %v4523
      %v4679 = vpop.f32.mrb[0].mxu0
      %v4680 = vadd.f32 0.0, %v4679
      %v4681 = vpop.f32.mrb[0].mxu0
      %v4682 = vpop.f32.mrb[0].mxu0
      %v4683 = vadd.f32 0.0, %v4682
      %v4684 = vpop.f32.mrb[0].mxu0
      %4685 = vdwg.mxu0
      %v4686 = vadd.f32 %v4239, %v4560
      %v4687 = vadd.f32 %v4239, %v4563
      %v4688 = vadd.f32 %v4239, %v4568
      %v4689 = vadd.f32 %v4239, %v4571
      %v4690 = vadd.f32 %v4239, %v4576
      %v4691 = vadd.f32 %v4239, %v4579
      %v4692 = vadd.f32 %v4239, %v4584
      %v4693 = vadd.f32 %v4239, %v4587
      %v4694 = vadd.f32 %v4239, %v4592
      %v4695 = vadd.f32 %v4239, %v4595
      %v4696 = vadd.f32 %v4239, %v4600
      %v4697 = vadd.f32 %v4239, %v4603
      %v4698 = vadd.f32 %v4239, %v4608
      %v4699 = vadd.f32 %v4239, %v4611
      %v4700 = vadd.f32 %v4239, %v4616
      %v4701 = vadd.f32 %v4239, %v4619
      %v4702 = vadd.f32 %v4239, %v4624
      %v4703 = vadd.f32 %v4239, %v4627
      %v4704 = vadd.f32 %v4239, %v4632
      %v4705 = vadd.f32 %v4239, %v4635
      %v4706 = vadd.f32 %v4239, %v4640
      %v4707 = vadd.f32 %v4239, %v4643
      %v4708 = vadd.f32 %v4239, %v4648
      %v4709 = vadd.f32 %v4239, %v4651
      %v4710 = vadd.f32 %v4239, %v4656
      %v4711 = vadd.f32 %v4239, %v4659
      %v4712 = vadd.f32 %v4239, %v4664
      %v4713 = vadd.f32 %v4239, %v4667
      %v4714 = vadd.f32 %v4239, %v4672
      %v4715 = vadd.f32 %v4239, %v4675
      %v4716 = vadd.f32 %v4239, %v4680
      %v4717 = vadd.f32 %v4239, %v4683
      %v4719 = vshrl.u32 %v4273, 16
      %v4721 = vrot.slane %v4719, 7
      %v4723 = vshrl.u32 %v4274, 16
      %v4725 = vrot.slane %v4723, 7
      %v4726 = vshll.u32 %v4274, 16
      %v4728 = vor.u32 %v4725, %v4726
      %v4729 = vsel %vm508, %v4721, %v4728
      %s4730 = scalar_lea.vmem %s9, 24
      %v4731 = vld [vmem:[%s4730] sm:$0xf]
      %v4732 = vld [vmem:[%s4730 + $0x4] sm:$0xf]
      %v4735 = vunpack.c.l.b16 %v4731
      %v4736 = vunpack.c.l.b16 %v4732
      %v4737 = vpack.c.b16 %v4736, %v4735
      %v4740 = vsel %vm442, %v4729, 0
      %4742 = vmatprep.subr.bf16.mxu0 0
      %4743 = vmatpush1.bf16.msra.mxu0 %v4737
      %4744 = vmatprep.subr.bf16.mxu0 0
      %4745 = vmatpush1.bf16.msra.mxu0 0
      %4746 = vmatprep.subr.bf16.mxu0 0
      %4747 = vmatpush1.bf16.msra.mxu0 0
      %4748 = vmatprep.subr.bf16.mxu0 0
      %4749 = vmatpush1.bf16.msra.mxu0 0
      %4750 = vmatprep.subr.bf16.mxu0 0
      %4751 = vmatpush1.bf16.msra.mxu0 0
      %4752 = vmatprep.subr.bf16.mxu0 0
      %4753 = vmatpush1.bf16.msra.mxu0 0
      %4754 = vmatprep.subr.bf16.mxu0 0
      %4755 = vmatpush1.bf16.msra.mxu0 0
      %4756 = vmatprep.subr.bf16.mxu0 0
      %4757 = vmatpush1.bf16.msra.mxu0 0
      %4758 = vmatprep.subr.bf16.mxu0 0
      %4759 = vmatpush1.bf16.msra.mxu0 0
      %4760 = vmatprep.subr.bf16.mxu0 0
      %4761 = vmatpush1.bf16.msra.mxu0 0
      %4762 = vmatprep.subr.bf16.mxu0 0
      %4763 = vmatpush1.bf16.msra.mxu0 0
      %4764 = vmatprep.subr.bf16.mxu0 0
      %4765 = vmatpush1.bf16.msra.mxu0 0
      %4766 = vmatprep.subr.bf16.mxu0 0
      %4767 = vmatpush1.bf16.msra.mxu0 0
      %4768 = vmatprep.subr.bf16.mxu0 0
      %4769 = vmatpush1.bf16.msra.mxu0 0
      %4770 = vmatprep.subr.bf16.mxu0 0
      %4771 = vmatpush1.bf16.msra.mxu0 0
      %4772 = vmatprep.subr.bf16.mxu0 0
      %4773 = vmatpush1.bf16.msra.mxu0 0
      %4774 = vmatprep.mubr.bf16.mxu0 0
      %4775 = vmatmul.mubr.bf16.gmra.mrb[0].mxu0 %v4481
      %v4776 = vpop.f32.mrb[0].mxu0
      %v4777 = vadd.f32 0.0, %v4776
      %v4778 = vpop.f32.mrb[0].mxu0
      %v4779 = vpop.f32.mrb[0].mxu0
      %v4780 = vadd.f32 0.0, %v4779
      %v4781 = vpop.f32.mrb[0].mxu0
      %4782 = vmatprep.mubr.bf16.mxu0 0
      %4783 = vmatmul.mubr.bf16.gmra.mrb[0].mxu0 %v4484
      %v4784 = vpop.f32.mrb[0].mxu0
      %v4785 = vadd.f32 0.0, %v4784
      %v4786 = vpop.f32.mrb[0].mxu0
      %v4787 = vpop.f32.mrb[0].mxu0
      %v4788 = vadd.f32 0.0, %v4787
      %v4789 = vpop.f32.mrb[0].mxu0
      %4790 = vmatprep.mubr.bf16.mxu0 0
      %4791 = vmatmul.mubr.bf16.gmra.mrb[0].mxu0 %v4487
      %v4792 = vpop.f32.mrb[0].mxu0
      %v4793 = vadd.f32 0.0, %v4792
      %v4794 = vpop.f32.mrb[0].mxu0
      %v4795 = vpop.f32.mrb[0].mxu0
      %v4796 = vadd.f32 0.0, %v4795
      %v4797 = vpop.f32.mrb[0].mxu0
      %4798 = vmatprep.mubr.bf16.mxu0 0
      %4799 = vmatmul.mubr.bf16.gmra.mrb[0].mxu0 %v4490
      %v4800 = vpop.f32.mrb[0].mxu0
      %v4801 = vadd.f32 0.0, %v4800
      %v4802 = vpop.f32.mrb[0].mxu0
      %v4803 = vpop.f32.mrb[0].mxu0
      %v4804 = vadd.f32 0.0, %v4803
      %v4805 = vpop.f32.mrb[0].mxu0
      %4806 = vmatprep.mubr.bf16.mxu0 0
      %4807 = vmatmul.mubr.bf16.gmra.mrb[0].mxu0 %v4493
      %v4808 = vpop.f32.mrb[0].mxu0
      %v4809 = vadd.f32 0.0, %v4808
      %v4810 = vpop.f32.mrb[0].mxu0
      %v4811 = vpop.f32.mrb[0].mxu0
      %v4812 = vadd.f32 0.0, %v4811
      %v4813 = vpop.f32.mrb[0].mxu0
      %4814 = vmatprep.mubr.bf16.mxu0 0
      %4815 = vmatmul.mubr.bf16.gmra.mrb[0].mxu0 %v4496
      %v4816 = vpop.f32.mrb[0].mxu0
      %v4817 = vadd.f32 0.0, %v4816
      %v4818 = vpop.f32.mrb[0].mxu0
      %v4819 = vpop.f32.mrb[0].mxu0
      %v4820 = vadd.f32 0.0, %v4819
      %v4821 = vpop.f32.mrb[0].mxu0
      %4822 = vmatprep.mubr.bf16.mxu0 0
      %4823 = vmatmul.mubr.bf16.gmra.mrb[0].mxu0 %v4499
      %v4824 = vpop.f32.mrb[0].mxu0
      %v4825 = vadd.f32 0.0, %v4824
      %v4826 = vpop.f32.mrb[0].mxu0
      %v4827 = vpop.f32.mrb[0].mxu0
      %v4828 = vadd.f32 0.0, %v4827
      %v4829 = vpop.f32.mrb[0].mxu0
      %4830 = vmatprep.mubr.bf16.mxu0 0
      %4831 = vmatmul.mubr.bf16.gmra.mrb[0].mxu0 %v4502
      %v4832 = vpop.f32.mrb[0].mxu0
      %v4833 = vadd.f32 0.0, %v4832
      %v4834 = vpop.f32.mrb[0].mxu0
      %v4835 = vpop.f32.mrb[0].mxu0
      %v4836 = vadd.f32 0.0, %v4835
      %v4837 = vpop.f32.mrb[0].mxu0
      %4838 = vmatprep.mubr.bf16.mxu0 0
      %4839 = vmatmul.mubr.bf16.gmra.mrb[0].mxu0 %v4505
      %v4840 = vpop.f32.mrb[0].mxu0
      %v4841 = vadd.f32 0.0, %v4840
      %v4842 = vpop.f32.mrb[0].mxu0
      %v4843 = vpop.f32.mrb[0].mxu0
      %v4844 = vadd.f32 0.0, %v4843
      %v4845 = vpop.f32.mrb[0].mxu0
      %4846 = vmatprep.mubr.bf16.mxu0 0
      %4847 = vmatmul.mubr.bf16.gmra.mrb[0].mxu0 %v4508
      %v4848 = vpop.f32.mrb[0].mxu0
      %v4849 = vadd.f32 0.0, %v4848
      %v4850 = vpop.f32.mrb[0].mxu0
      %v4851 = vpop.f32.mrb[0].mxu0
      %v4852 = vadd.f32 0.0, %v4851
      %v4853 = vpop.f32.mrb[0].mxu0
      %4854 = vmatprep.mubr.bf16.mxu0 0
      %4855 = vmatmul.mubr.bf16.gmra.mrb[0].mxu0 %v4511
      %v4856 = vpop.f32.mrb[0].mxu0
      %v4857 = vadd.f32 0.0, %v4856
      %v4858 = vpop.f32.mrb[0].mxu0
      %v4859 = vpop.f32.mrb[0].mxu0
      %v4860 = vadd.f32 0.0, %v4859
      %v4861 = vpop.f32.mrb[0].mxu0
      %4862 = vmatprep.mubr.bf16.mxu0 0
      %4863 = vmatmul.mubr.bf16.gmra.mrb[0].mxu0 %v4514
      %v4864 = vpop.f32.mrb[0].mxu0
      %v4865 = vadd.f32 0.0, %v4864
      %v4866 = vpop.f32.mrb[0].mxu0
      %v4867 = vpop.f32.mrb[0].mxu0
      %v4868 = vadd.f32 0.0, %v4867
      %v4869 = vpop.f32.mrb[0].mxu0
      %4870 = vmatprep.mubr.bf16.mxu0 0
      %4871 = vmatmul.mubr.bf16.gmra.mrb[0].mxu0 %v4517
      %v4872 = vpop.f32.mrb[0].mxu0
      %v4873 = vadd.f32 0.0, %v4872
      %v4874 = vpop.f32.mrb[0].mxu0
      %v4875 = vpop.f32.mrb[0].mxu0
      %v4876 = vadd.f32 0.0, %v4875
      %v4877 = vpop.f32.mrb[0].mxu0
      %4878 = vmatprep.mubr.bf16.mxu0 0
      %4879 = vmatmul.mubr.bf16.gmra.mrb[0].mxu0 %v4520
      %v4880 = vpop.f32.mrb[0].mxu0
      %v4881 = vadd.f32 0.0, %v4880
      %v4882 = vpop.f32.mrb[0].mxu0
      %v4883 = vpop.f32.mrb[0].mxu0
      %v4884 = vadd.f32 0.0, %v4883
      %v4885 = vpop.f32.mrb[0].mxu0
      %4886 = vmatprep.mubr.bf16.mxu0 0
      %4887 = vmatmul.mubr.bf16.gmra.mrb[0].mxu0 %v4523
      %v4888 = vpop.f32.mrb[0].mxu0
      %v4889 = vadd.f32 0.0, %v4888
      %v4890 = vpop.f32.mrb[0].mxu0
      %v4891 = vpop.f32.mrb[0].mxu0
      %v4892 = vadd.f32 0.0, %v4891
      %v4893 = vpop.f32.mrb[0].mxu0
      %4894 = vmatprep.mubr.bf16.mxu0 0
      %4895 = vmatmul.mubr.bf16.gmra.mrb[0].mxu0 %v4740
      %v4896 = vpop.f32.mrb[0].mxu0
      %v4897 = vadd.f32 0.0, %v4896
      %v4898 = vpop.f32.mrb[0].mxu0
      %v4899 = vpop.f32.mrb[0].mxu0
      %v4900 = vadd.f32 0.0, %v4899
      %v4901 = vpop.f32.mrb[0].mxu0
      %4902 = vdwg.mxu0
      %v4903 = vadd.f32 %v4686, %v4777
      %v4904 = vadd.f32 %v4687, %v4780
      %v4905 = vadd.f32 %v4688, %v4785
      %v4906 = vadd.f32 %v4689, %v4788
      %v4907 = vadd.f32 %v4690, %v4793
      %v4908 = vadd.f32 %v4691, %v4796
      %v4909 = vadd.f32 %v4692, %v4801
      %v4910 = vadd.f32 %v4693, %v4804
      %v4911 = vadd.f32 %v4694, %v4809
      %v4912 = vadd.f32 %v4695, %v4812
      %v4913 = vadd.f32 %v4696, %v4817
      %v4914 = vadd.f32 %v4697, %v4820
      %v4915 = vadd.f32 %v4698, %v4825
      %v4916 = vadd.f32 %v4699, %v4828
      %v4917 = vadd.f32 %v4700, %v4833
      %v4918 = vadd.f32 %v4701, %v4836
      %v4919 = vadd.f32 %v4702, %v4841
      %v4920 = vadd.f32 %v4703, %v4844
      %v4921 = vadd.f32 %v4704, %v4849
      %v4922 = vadd.f32 %v4705, %v4852
      %v4923 = vadd.f32 %v4706, %v4857
      %v4924 = vadd.f32 %v4707, %v4860
      %v4925 = vadd.f32 %v4708, %v4865
      %v4926 = vadd.f32 %v4709, %v4868
      %v4927 = vadd.f32 %v4710, %v4873
      %v4928 = vadd.f32 %v4711, %v4876
      %v4929 = vadd.f32 %v4712, %v4881
      %v4930 = vadd.f32 %v4713, %v4884
      %v4931 = vadd.f32 %v4714, %v4889
      %v4932 = vadd.f32 %v4715, %v4892
      %v4933 = vadd.f32 %v4716, %v4897
      %v4934 = vadd.f32 %v4717, %v4900
      %v4936 = vshrl.u32 %v4275, 16
      %v4938 = vrot.slane %v4936, 7
      %v4940 = vshrl.u32 %v4276, 16
      %v4942 = vrot.slane %v4940, 7
      %v4943 = vshll.u32 %v4276, 16
      %v4945 = vor.u32 %v4942, %v4943
      %v4946 = vsel %vm508, %v4938, %v4945
      %s4947 = scalar_lea.vmem %s9, 48
      %v4948 = vld [vmem:[%s4947] sm:$0xf]
      %v4949 = vld [vmem:[%s4947 + $0x4] sm:$0xf]
      %v4952 = vunpack.c.l.b16 %v4948
      %v4953 = vunpack.c.l.b16 %v4949
      %v4954 = vpack.c.b16 %v4953, %v4952
      %v4957 = vsel %vm442, %v4946, 0
      %4959 = vmatprep.subr.bf16.mxu0 0
      %4960 = vmatpush1.bf16.msra.mxu0 %v4954
      %4961 = vmatprep.subr.bf16.mxu0 0
      %4962 = vmatpush1.bf16.msra.mxu0 0
      %4963 = vmatprep.subr.bf16.mxu0 0
      %4964 = vmatpush1.bf16.msra.mxu0 0
      %4965 = vmatprep.subr.bf16.mxu0 0
      %4966 = vmatpush1.bf16.msra.mxu0 0
      %4967 = vmatprep.subr.bf16.mxu0 0
      %4968 = vmatpush1.bf16.msra.mxu0 0
      %4969 = vmatprep.subr.bf16.mxu0 0
      %4970 = vmatpush1.bf16.msra.mxu0 0
      %4971 = vmatprep.subr.bf16.mxu0 0
      %4972 = vmatpush1.bf16.msra.mxu0 0
      %4973 = vmatprep.subr.bf16.mxu0 0
      %4974 = vmatpush1.bf16.msra.mxu0 0
      %4975 = vmatprep.subr.bf16.mxu0 0
      %4976 = vmatpush1.bf16.msra.mxu0 0
      %4977 = vmatprep.subr.bf16.mxu0 0
      %4978 = vmatpush1.bf16.msra.mxu0 0
      %4979 = vmatprep.subr.bf16.mxu0 0
      %4980 = vmatpush1.bf16.msra.mxu0 0
      %4981 = vmatprep.subr.bf16.mxu0 0
      %4982 = vmatpush1.bf16.msra.mxu0 0
      %4983 = vmatprep.subr.bf16.mxu0 0
      %4984 = vmatpush1.bf16.msra.mxu0 0
      %4985 = vmatprep.subr.bf16.mxu0 0
      %4986 = vmatpush1.bf16.msra.mxu0 0
      %4987 = vmatprep.subr.bf16.mxu0 0
      %4988 = vmatpush1.bf16.msra.mxu0 0
      %4989 = vmatprep.subr.bf16.mxu0 0
      %4990 = vmatpush1.bf16.msra.mxu0 0
      %4991 = vmatprep.mubr.bf16.mxu0 0
      %4992 = vmatmul.mubr.bf16.gmra.mrb[0].mxu0 %v4484
      %v4993 = vpop.f32.mrb[0].mxu0
      %v4994 = vadd.f32 0.0, %v4993
      %v4995 = vpop.f32.mrb[0].mxu0
      %v4996 = vpop.f32.mrb[0].mxu0
      %v4997 = vadd.f32 0.0, %v4996
      %v4998 = vpop.f32.mrb[0].mxu0
      %4999 = vmatprep.mubr.bf16.mxu0 0
      %5000 = vmatmul.mubr.bf16.gmra.mrb[0].mxu0 %v4487
      %v5001 = vpop.f32.mrb[0].mxu0
      %v5002 = vadd.f32 0.0, %v5001
      %v5003 = vpop.f32.mrb[0].mxu0
      %v5004 = vpop.f32.mrb[0].mxu0
      %v5005 = vadd.f32 0.0, %v5004
      %v5006 = vpop.f32.mrb[0].mxu0
      %5007 = vmatprep.mubr.bf16.mxu0 0
      %5008 = vmatmul.mubr.bf16.gmra.mrb[0].mxu0 %v4490
      %v5009 = vpop.f32.mrb[0].mxu0
      %v5010 = vadd.f32 0.0, %v5009
      %v5011 = vpop.f32.mrb[0].mxu0
      %v5012 = vpop.f32.mrb[0].mxu0
      %v5013 = vadd.f32 0.0, %v5012
      %v5014 = vpop.f32.mrb[0].mxu0
      %5015 = vmatprep.mubr.bf16.mxu0 0
      %5016 = vmatmul.mubr.bf16.gmra.mrb[0].mxu0 %v4493
      %v5017 = vpop.f32.mrb[0].mxu0
      %v5018 = vadd.f32 0.0, %v5017
      %v5019 = vpop.f32.mrb[0].mxu0
      %v5020 = vpop.f32.mrb[0].mxu0
      %v5021 = vadd.f32 0.0, %v5020
      %v5022 = vpop.f32.mrb[0].mxu0
      %5023 = vmatprep.mubr.bf16.mxu0 0
      %5024 = vmatmul.mubr.bf16.gmra.mrb[0].mxu0 %v4496
      %v5025 = vpop.f32.mrb[0].mxu0
      %v5026 = vadd.f32 0.0, %v5025
      %v5027 = vpop.f32.mrb[0].mxu0
      %v5028 = vpop.f32.mrb[0].mxu0
      %v5029 = vadd.f32 0.0, %v5028
      %v5030 = vpop.f32.mrb[0].mxu0
      %5031 = vmatprep.mubr.bf16.mxu0 0
      %5032 = vmatmul.mubr.bf16.gmra.mrb[0].mxu0 %v4499
      %v5033 = vpop.f32.mrb[0].mxu0
      %v5034 = vadd.f32 0.0, %v5033
      %v5035 = vpop.f32.mrb[0].mxu0
      %v5036 = vpop.f32.mrb[0].mxu0
      %v5037 = vadd.f32 0.0, %v5036
      %v5038 = vpop.f32.mrb[0].mxu0
      %5039 = vmatprep.mubr.bf16.mxu0 0
      %5040 = vmatmul.mubr.bf16.gmra.mrb[0].mxu0 %v4502
      %v5041 = vpop.f32.mrb[0].mxu0
      %v5042 = vadd.f32 0.0, %v5041
      %v5043 = vpop.f32.mrb[0].mxu0
      %v5044 = vpop.f32.mrb[0].mxu0
      %v5045 = vadd.f32 0.0, %v5044
      %v5046 = vpop.f32.mrb[0].mxu0
      %5047 = vmatprep.mubr.bf16.mxu0 0
      %5048 = vmatmul.mubr.bf16.gmra.mrb[0].mxu0 %v4505
      %v5049 = vpop.f32.mrb[0].mxu0
      %v5050 = vadd.f32 0.0, %v5049
      %v5051 = vpop.f32.mrb[0].mxu0
      %v5052 = vpop.f32.mrb[0].mxu0
      %v5053 = vadd.f32 0.0, %v5052
      %v5054 = vpop.f32.mrb[0].mxu0
      %5055 = vmatprep.mubr.bf16.mxu0 0
      %5056 = vmatmul.mubr.bf16.gmra.mrb[0].mxu0 %v4508
      %v5057 = vpop.f32.mrb[0].mxu0
      %v5058 = vadd.f32 0.0, %v5057
      %v5059 = vpop.f32.mrb[0].mxu0
      %v5060 = vpop.f32.mrb[0].mxu0
      %v5061 = vadd.f32 0.0, %v5060
      %v5062 = vpop.f32.mrb[0].mxu0
      %5063 = vmatprep.mubr.bf16.mxu0 0
      %5064 = vmatmul.mubr.bf16.gmra.mrb[0].mxu0 %v4511
      %v5065 = vpop.f32.mrb[0].mxu0
      %v5066 = vadd.f32 0.0, %v5065
      %v5067 = vpop.f32.mrb[0].mxu0
      %v5068 = vpop.f32.mrb[0].mxu0
      %v5069 = vadd.f32 0.0, %v5068
      %v5070 = vpop.f32.mrb[0].mxu0
      %5071 = vmatprep.mubr.bf16.mxu0 0
      %5072 = vmatmul.mubr.bf16.gmra.mrb[0].mxu0 %v4514
      %v5073 = vpop.f32.mrb[0].mxu0
      %v5074 = vadd.f32 0.0, %v5073
      %v5075 = vpop.f32.mrb[0].mxu0
      %v5076 = vpop.f32.mrb[0].mxu0
      %v5077 = vadd.f32 0.0, %v5076
      %v5078 = vpop.f32.mrb[0].mxu0
      %5079 = vmatprep.mubr.bf16.mxu0 0
      %5080 = vmatmul.mubr.bf16.gmra.mrb[0].mxu0 %v4517
      %v5081 = vpop.f32.mrb[0].mxu0
      %v5082 = vadd.f32 0.0, %v5081
      %v5083 = vpop.f32.mrb[0].mxu0
      %v5084 = vpop.f32.mrb[0].mxu0
      %v5085 = vadd.f32 0.0, %v5084
      %v5086 = vpop.f32.mrb[0].mxu0
      %5087 = vmatprep.mubr.bf16.mxu0 0
      %5088 = vmatmul.mubr.bf16.gmra.mrb[0].mxu0 %v4520
      %v5089 = vpop.f32.mrb[0].mxu0
      %v5090 = vadd.f32 0.0, %v5089
      %v5091 = vpop.f32.mrb[0].mxu0
      %v5092 = vpop.f32.mrb[0].mxu0
      %v5093 = vadd.f32 0.0, %v5092
      %v5094 = vpop.f32.mrb[0].mxu0
      %5095 = vmatprep.mubr.bf16.mxu0 0
      %5096 = vmatmul.mubr.bf16.gmra.mrb[0].mxu0 %v4523
      %v5097 = vpop.f32.mrb[0].mxu0
      %v5098 = vadd.f32 0.0, %v5097
      %v5099 = vpop.f32.mrb[0].mxu0
      %v5100 = vpop.f32.mrb[0].mxu0
      %v5101 = vadd.f32 0.0, %v5100
      %v5102 = vpop.f32.mrb[0].mxu0
      %5103 = vmatprep.mubr.bf16.mxu0 0
      %5104 = vmatmul.mubr.bf16.gmra.mrb[0].mxu0 %v4740
      %v5105 = vpop.f32.mrb[0].mxu0
      %v5106 = vadd.f32 0.0, %v5105
      %v5107 = vpop.f32.mrb[0].mxu0
      %v5108 = vpop.f32.mrb[0].mxu0
      %v5109 = vadd.f32 0.0, %v5108
      %v5110 = vpop.f32.mrb[0].mxu0
      %5111 = vmatprep.mubr.bf16.mxu0 0
      %5112 = vmatmul.mubr.bf16.gmra.mrb[0].mxu0 %v4957
      %v5113 = vpop.f32.mrb[0].mxu0
      %v5114 = vadd.f32 0.0, %v5113
      %v5115 = vpop.f32.mrb[0].mxu0
      %v5116 = vpop.f32.mrb[0].mxu0
      %v5117 = vadd.f32 0.0, %v5116
      %v5118 = vpop.f32.mrb[0].mxu0
      %5119 = vdwg.mxu0
      %v5120 = vadd.f32 %v4903, %v4994
      %v5121 = vadd.f32 %v4904, %v4997
      %v5122 = vadd.f32 %v4905, %v5002
      %v5123 = vadd.f32 %v4906, %v5005
      %v5124 = vadd.f32 %v4907, %v5010
      %v5125 = vadd.f32 %v4908, %v5013
      %v5126 = vadd.f32 %v4909, %v5018
      %v5127 = vadd.f32 %v4910, %v5021
      %v5128 = vadd.f32 %v4911, %v5026
      %v5129 = vadd.f32 %v4912, %v5029
      %v5130 = vadd.f32 %v4913, %v5034
      %v5131 = vadd.f32 %v4914, %v5037
      %v5132 = vadd.f32 %v4915, %v5042
      %v5133 = vadd.f32 %v4916, %v5045
      %v5134 = vadd.f32 %v4917, %v5050
      %v5135 = vadd.f32 %v4918, %v5053
      %v5136 = vadd.f32 %v4919, %v5058
      %v5137 = vadd.f32 %v4920, %v5061
      %v5138 = vadd.f32 %v4921, %v5066
      %v5139 = vadd.f32 %v4922, %v5069
      %v5140 = vadd.f32 %v4923, %v5074
      %v5141 = vadd.f32 %v4924, %v5077
      %v5142 = vadd.f32 %v4925, %v5082
      %v5143 = vadd.f32 %v4926, %v5085
      %v5144 = vadd.f32 %v4927, %v5090
      %v5145 = vadd.f32 %v4928, %v5093
      %v5146 = vadd.f32 %v4929, %v5098
      %v5147 = vadd.f32 %v4930, %v5101
      %v5148 = vadd.f32 %v4931, %v5106
      %v5149 = vadd.f32 %v4932, %v5109
      %v5150 = vadd.f32 %v4933, %v5114
      %v5151 = vadd.f32 %v4934, %v5117
      %s5152 = scalar_lea.vmem %s9, 8
      %v5153 = vld [vmem:[%s5152] sm:$0xf]
      %v5154 = vld [vmem:[%s5152 + $0x4] sm:$0xf]
      %v5157 = vunpack.c.l.b16 %v5153
      %v5158 = vunpack.c.l.b16 %v5154
      %v5159 = vpack.c.b16 %v5158, %v5157
      %v5161 = vsel %vm442, %v4242, 0
      %v5163 = vsel %vm442, %v4244, 0
      %v5165 = vsel %vm442, %v4246, 0
      %v5167 = vsel %vm442, %v4248, 0
      %v5169 = vsel %vm442, %v4250, 0
      %v5171 = vsel %vm442, %v4252, 0
      %v5173 = vsel %vm442, %v4254, 0
      %v5175 = vsel %vm442, %v4256, 0
      %v5177 = vsel %vm442, %v4258, 0
      %v5179 = vsel %vm442, %v4260, 0
      %v5181 = vsel %vm442, %v4262, 0
      %v5183 = vsel %vm442, %v4264, 0
      %v5185 = vsel %vm442, %v4266, 0
      %v5187 = vsel %vm442, %v4268, 0
      %v5189 = vsel %vm442, %v4270, 0
      %v5191 = vsel %vm442, %v4272, 0
      %5193 = vmatprep.subr.bf16.mxu0 0
      %5194 = vmatpush1.bf16.msra.mxu0 %v5159
      %5195 = vmatprep.subr.bf16.mxu0 0
      %5196 = vmatpush1.bf16.msra.mxu0 0
      %5197 = vmatprep.subr.bf16.mxu0 0
      %5198 = vmatpush1.bf16.msra.mxu0 0
      %5199 = vmatprep.subr.bf16.mxu0 0
      %5200 = vmatpush1.bf16.msra.mxu0 0
      %5201 = vmatprep.subr.bf16.mxu0 0
      %5202 = vmatpush1.bf16.msra.mxu0 0
      %5203 = vmatprep.subr.bf16.mxu0 0
      %5204 = vmatpush1.bf16.msra.mxu0 0
      %5205 = vmatprep.subr.bf16.mxu0 0
      %5206 = vmatpush1.bf16.msra.mxu0 0
      %5207 = vmatprep.subr.bf16.mxu0 0
      %5208 = vmatpush1.bf16.msra.mxu0 0
      %5209 = vmatprep.subr.bf16.mxu0 0
      %5210 = vmatpush1.bf16.msra.mxu0 0
      %5211 = vmatprep.subr.bf16.mxu0 0
      %5212 = vmatpush1.bf16.msra.mxu0 0
      %5213 = vmatprep.subr.bf16.mxu0 0
      %5214 = vmatpush1.bf16.msra.mxu0 0
      %5215 = vmatprep.subr.bf16.mxu0 0
      %5216 = vmatpush1.bf16.msra.mxu0 0
      %5217 = vmatprep.subr.bf16.mxu0 0
      %5218 = vmatpush1.bf16.msra.mxu0 0
      %5219 = vmatprep.subr.bf16.mxu0 0
      %5220 = vmatpush1.bf16.msra.mxu0 0
      %5221 = vmatprep.subr.bf16.mxu0 0
      %5222 = vmatpush1.bf16.msra.mxu0 0
      %5223 = vmatprep.subr.bf16.mxu0 0
      %5224 = vmatpush1.bf16.msra.mxu0 0
      %5225 = vmatprep.mubr.bf16.mxu0 0
      %5226 = vmatmul.mubr.bf16.gmra.mrb[0].mxu0 %v5161
      %v5227 = vpop.f32.mrb[0].mxu0
      %v5228 = vadd.f32 0.0, %v5227
      %v5229 = vpop.f32.mrb[0].mxu0
      %v5230 = vpop.f32.mrb[0].mxu0
      %v5231 = vadd.f32 0.0, %v5230
      %v5232 = vpop.f32.mrb[0].mxu0
      %5233 = vmatprep.mubr.bf16.mxu0 0
      %5234 = vmatmul.mubr.bf16.gmra.mrb[0].mxu0 %v5163
      %v5235 = vpop.f32.mrb[0].mxu0
      %v5236 = vadd.f32 0.0, %v5235
      %v5237 = vpop.f32.mrb[0].mxu0
      %v5238 = vpop.f32.mrb[0].mxu0
      %v5239 = vadd.f32 0.0, %v5238
      %v5240 = vpop.f32.mrb[0].mxu0
      %5241 = vmatprep.mubr.bf16.mxu0 0
      %5242 = vmatmul.mubr.bf16.gmra.mrb[0].mxu0 %v5165
      %v5243 = vpop.f32.mrb[0].mxu0
      %v5244 = vadd.f32 0.0, %v5243
      %v5245 = vpop.f32.mrb[0].mxu0
      %v5246 = vpop.f32.mrb[0].mxu0
      %v5247 = vadd.f32 0.0, %v5246
      %v5248 = vpop.f32.mrb[0].mxu0
      %5249 = vmatprep.mubr.bf16.mxu0 0
      %5250 = vmatmul.mubr.bf16.gmra.mrb[0].mxu0 %v5167
      %v5251 = vpop.f32.mrb[0].mxu0
      %v5252 = vadd.f32 0.0, %v5251
      %v5253 = vpop.f32.mrb[0].mxu0
      %v5254 = vpop.f32.mrb[0].mxu0
      %v5255 = vadd.f32 0.0, %v5254
      %v5256 = vpop.f32.mrb[0].mxu0
      %5257 = vmatprep.mubr.bf16.mxu0 0
      %5258 = vmatmul.mubr.bf16.gmra.mrb[0].mxu0 %v5169
      %v5259 = vpop.f32.mrb[0].mxu0
      %v5260 = vadd.f32 0.0, %v5259
      %v5261 = vpop.f32.mrb[0].mxu0
      %v5262 = vpop.f32.mrb[0].mxu0
      %v5263 = vadd.f32 0.0, %v5262
      %v5264 = vpop.f32.mrb[0].mxu0
      %5265 = vmatprep.mubr.bf16.mxu0 0
      %5266 = vmatmul.mubr.bf16.gmra.mrb[0].mxu0 %v5171
      %v5267 = vpop.f32.mrb[0].mxu0
      %v5268 = vadd.f32 0.0, %v5267
      %v5269 = vpop.f32.mrb[0].mxu0
      %v5270 = vpop.f32.mrb[0].mxu0
      %v5271 = vadd.f32 0.0, %v5270
      %v5272 = vpop.f32.mrb[0].mxu0
      %5273 = vmatprep.mubr.bf16.mxu0 0
      %5274 = vmatmul.mubr.bf16.gmra.mrb[0].mxu0 %v5173
      %v5275 = vpop.f32.mrb[0].mxu0
      %v5276 = vadd.f32 0.0, %v5275
      %v5277 = vpop.f32.mrb[0].mxu0
      %v5278 = vpop.f32.mrb[0].mxu0
      %v5279 = vadd.f32 0.0, %v5278
      %v5280 = vpop.f32.mrb[0].mxu0
      %5281 = vmatprep.mubr.bf16.mxu0 0
      %5282 = vmatmul.mubr.bf16.gmra.mrb[0].mxu0 %v5175
      %v5283 = vpop.f32.mrb[0].mxu0
      %v5284 = vadd.f32 0.0, %v5283
      %v5285 = vpop.f32.mrb[0].mxu0
      %v5286 = vpop.f32.mrb[0].mxu0
      %v5287 = vadd.f32 0.0, %v5286
      %v5288 = vpop.f32.mrb[0].mxu0
      %5289 = vmatprep.mubr.bf16.mxu0 0
      %5290 = vmatmul.mubr.bf16.gmra.mrb[0].mxu0 %v5177
      %v5291 = vpop.f32.mrb[0].mxu0
      %v5292 = vadd.f32 0.0, %v5291
      %v5293 = vpop.f32.mrb[0].mxu0
      %v5294 = vpop.f32.mrb[0].mxu0
      %v5295 = vadd.f32 0.0, %v5294
      %v5296 = vpop.f32.mrb[0].mxu0
      %5297 = vmatprep.mubr.bf16.mxu0 0
      %5298 = vmatmul.mubr.bf16.gmra.mrb[0].mxu0 %v5179
      %v5299 = vpop.f32.mrb[0].mxu0
      %v5300 = vadd.f32 0.0, %v5299
      %v5301 = vpop.f32.mrb[0].mxu0
      %v5302 = vpop.f32.mrb[0].mxu0
      %v5303 = vadd.f32 0.0, %v5302
      %v5304 = vpop.f32.mrb[0].mxu0
      %5305 = vmatprep.mubr.bf16.mxu0 0
      %5306 = vmatmul.mubr.bf16.gmra.mrb[0].mxu0 %v5181
      %v5307 = vpop.f32.mrb[0].mxu0
      %v5308 = vadd.f32 0.0, %v5307
      %v5309 = vpop.f32.mrb[0].mxu0
      %v5310 = vpop.f32.mrb[0].mxu0
      %v5311 = vadd.f32 0.0, %v5310
      %v5312 = vpop.f32.mrb[0].mxu0
      %5313 = vmatprep.mubr.bf16.mxu0 0
      %5314 = vmatmul.mubr.bf16.gmra.mrb[0].mxu0 %v5183
      %v5315 = vpop.f32.mrb[0].mxu0
      %v5316 = vadd.f32 0.0, %v5315
      %v5317 = vpop.f32.mrb[0].mxu0
      %v5318 = vpop.f32.mrb[0].mxu0
      %v5319 = vadd.f32 0.0, %v5318
      %v5320 = vpop.f32.mrb[0].mxu0
      %5321 = vmatprep.mubr.bf16.mxu0 0
      %5322 = vmatmul.mubr.bf16.gmra.mrb[0].mxu0 %v5185
      %v5323 = vpop.f32.mrb[0].mxu0
      %v5324 = vadd.f32 0.0, %v5323
      %v5325 = vpop.f32.mrb[0].mxu0
      %v5326 = vpop.f32.mrb[0].mxu0
      %v5327 = vadd.f32 0.0, %v5326
      %v5328 = vpop.f32.mrb[0].mxu0
      %5329 = vmatprep.mubr.bf16.mxu0 0
      %5330 = vmatmul.mubr.bf16.gmra.mrb[0].mxu0 %v5187
      %v5331 = vpop.f32.mrb[0].mxu0
      %v5332 = vadd.f32 0.0, %v5331
      %v5333 = vpop.f32.mrb[0].mxu0
      %v5334 = vpop.f32.mrb[0].mxu0
      %v5335 = vadd.f32 0.0, %v5334
      %v5336 = vpop.f32.mrb[0].mxu0
      %5337 = vmatprep.mubr.bf16.mxu0 0
      %5338 = vmatmul.mubr.bf16.gmra.mrb[0].mxu0 %v5189
      %v5339 = vpop.f32.mrb[0].mxu0
      %v5340 = vadd.f32 0.0, %v5339
      %v5341 = vpop.f32.mrb[0].mxu0
      %v5342 = vpop.f32.mrb[0].mxu0
      %v5343 = vadd.f32 0.0, %v5342
      %v5344 = vpop.f32.mrb[0].mxu0
      %5345 = vmatprep.mubr.bf16.mxu0 0
      %5346 = vmatmul.mubr.bf16.gmra.mrb[0].mxu0 %v5191
      %v5347 = vpop.f32.mrb[0].mxu0
      %v5348 = vadd.f32 0.0, %v5347
      %v5349 = vpop.f32.mrb[0].mxu0
      %v5350 = vpop.f32.mrb[0].mxu0
      %v5351 = vadd.f32 0.0, %v5350
      %v5352 = vpop.f32.mrb[0].mxu0
      %5353 = vdwg.mxu0
      %v5354 = vadd.f32 %v5120, %v5228
      %v5355 = vadd.f32 %v5121, %v5231
      %v5356 = vadd.f32 %v5122, %v5236
      %v5357 = vadd.f32 %v5123, %v5239
      %v5358 = vadd.f32 %v5124, %v5244
      %v5359 = vadd.f32 %v5125, %v5247
      %v5360 = vadd.f32 %v5126, %v5252
      %v5361 = vadd.f32 %v5127, %v5255
      %v5362 = vadd.f32 %v5128, %v5260
      %v5363 = vadd.f32 %v5129, %v5263
      %v5364 = vadd.f32 %v5130, %v5268
      %v5365 = vadd.f32 %v5131, %v5271
      %v5366 = vadd.f32 %v5132, %v5276
      %v5367 = vadd.f32 %v5133, %v5279
      %v5368 = vadd.f32 %v5134, %v5284
      %v5369 = vadd.f32 %v5135, %v5287
      %v5370 = vadd.f32 %v5136, %v5292
      %v5371 = vadd.f32 %v5137, %v5295
      %v5372 = vadd.f32 %v5138, %v5300
      %v5373 = vadd.f32 %v5139, %v5303
      %v5374 = vadd.f32 %v5140, %v5308
      %v5375 = vadd.f32 %v5141, %v5311
      %v5376 = vadd.f32 %v5142, %v5316
      %v5377 = vadd.f32 %v5143, %v5319
      %v5378 = vadd.f32 %v5144, %v5324
      %v5379 = vadd.f32 %v5145, %v5327
      %v5380 = vadd.f32 %v5146, %v5332
      %v5381 = vadd.f32 %v5147, %v5335
      %v5382 = vadd.f32 %v5148, %v5340
      %v5383 = vadd.f32 %v5149, %v5343
      %v5384 = vadd.f32 %v5150, %v5348
      %v5385 = vadd.f32 %v5151, %v5351
      %s5386 = scalar_lea.vmem %s9, 32
      %v5387 = vld [vmem:[%s5386] sm:$0xf]
      %v5388 = vld [vmem:[%s5386 + $0x4] sm:$0xf]
      %v5391 = vunpack.c.l.b16 %v5387
      %v5392 = vunpack.c.l.b16 %v5388
      %v5393 = vpack.c.b16 %v5392, %v5391
      %v5395 = vsel %vm442, %v4274, 0
      %5397 = vmatprep.subr.bf16.mxu0 0
      %5398 = vmatpush1.bf16.msra.mxu0 %v5393
      %5399 = vmatprep.subr.bf16.mxu0 0
      %5400 = vmatpush1.bf16.msra.mxu0 0
      %5401 = vmatprep.subr.bf16.mxu0 0
      %5402 = vmatpush1.bf16.msra.mxu0 0
      %5403 = vmatprep.subr.bf16.mxu0 0
      %5404 = vmatpush1.bf16.msra.mxu0 0
      %5405 = vmatprep.subr.bf16.mxu0 0
      %5406 = vmatpush1.bf16.msra.mxu0 0
      %5407 = vmatprep.subr.bf16.mxu0 0
      %5408 = vmatpush1.bf16.msra.mxu0 0
      %5409 = vmatprep.subr.bf16.mxu0 0
      %5410 = vmatpush1.bf16.msra.mxu0 0
      %5411 = vmatprep.subr.bf16.mxu0 0
      %5412 = vmatpush1.bf16.msra.mxu0 0
      %5413 = vmatprep.subr.bf16.mxu0 0
      %5414 = vmatpush1.bf16.msra.mxu0 0
      %5415 = vmatprep.subr.bf16.mxu0 0
      %5416 = vmatpush1.bf16.msra.mxu0 0
      %5417 = vmatprep.subr.bf16.mxu0 0
      %5418 = vmatpush1.bf16.msra.mxu0 0
      %5419 = vmatprep.subr.bf16.mxu0 0
      %5420 = vmatpush1.bf16.msra.mxu0 0
      %5421 = vmatprep.subr.bf16.mxu0 0
      %5422 = vmatpush1.bf16.msra.mxu0 0
      %5423 = vmatprep.subr.bf16.mxu0 0
      %5424 = vmatpush1.bf16.msra.mxu0 0
      %5425 = vmatprep.subr.bf16.mxu0 0
      %5426 = vmatpush1.bf16.msra.mxu0 0
      %5427 = vmatprep.subr.bf16.mxu0 0
      %5428 = vmatpush1.bf16.msra.mxu0 0
      %5429 = vmatprep.mubr.bf16.mxu0 0
      %5430 = vmatmul.mubr.bf16.gmra.mrb[0].mxu0 %v5163
      %v5431 = vpop.f32.mrb[0].mxu0
      %v5432 = vadd.f32 0.0, %v5431
      %v5433 = vpop.f32.mrb[0].mxu0
      %v5434 = vpop.f32.mrb[0].mxu0
      %v5435 = vadd.f32 0.0, %v5434
      %v5436 = vpop.f32.mrb[0].mxu0
      %5437 = vmatprep.mubr.bf16.mxu0 0
      %5438 = vmatmul.mubr.bf16.gmra.mrb[0].mxu0 %v5165
      %v5439 = vpop.f32.mrb[0].mxu0
      %v5440 = vadd.f32 0.0, %v5439
      %v5441 = vpop.f32.mrb[0].mxu0
      %v5442 = vpop.f32.mrb[0].mxu0
      %v5443 = vadd.f32 0.0, %v5442
      %v5444 = vpop.f32.mrb[0].mxu0
      %5445 = vmatprep.mubr.bf16.mxu0 0
      %5446 = vmatmul.mubr.bf16.gmra.mrb[0].mxu0 %v5167
      %v5447 = vpop.f32.mrb[0].mxu0
      %v5448 = vadd.f32 0.0, %v5447
      %v5449 = vpop.f32.mrb[0].mxu0
      %v5450 = vpop.f32.mrb[0].mxu0
      %v5451 = vadd.f32 0.0, %v5450
      %v5452 = vpop.f32.mrb[0].mxu0
      %5453 = vmatprep.mubr.bf16.mxu0 0
      %5454 = vmatmul.mubr.bf16.gmra.mrb[0].mxu0 %v5169
      %v5455 = vpop.f32.mrb[0].mxu0
      %v5456 = vadd.f32 0.0, %v5455
      %v5457 = vpop.f32.mrb[0].mxu0
      %v5458 = vpop.f32.mrb[0].mxu0
      %v5459 = vadd.f32 0.0, %v5458
      %v5460 = vpop.f32.mrb[0].mxu0
      %5461 = vmatprep.mubr.bf16.mxu0 0
      %5462 = vmatmul.mubr.bf16.gmra.mrb[0].mxu0 %v5171
      %v5463 = vpop.f32.mrb[0].mxu0
      %v5464 = vadd.f32 0.0, %v5463
      %v5465 = vpop.f32.mrb[0].mxu0
      %v5466 = vpop.f32.mrb[0].mxu0
      %v5467 = vadd.f32 0.0, %v5466
      %v5468 = vpop.f32.mrb[0].mxu0
      %5469 = vmatprep.mubr.bf16.mxu0 0
      %5470 = vmatmul.mubr.bf16.gmra.mrb[0].mxu0 %v5173
      %v5471 = vpop.f32.mrb[0].mxu0
      %v5472 = vadd.f32 0.0, %v5471
      %v5473 = vpop.f32.mrb[0].mxu0
      %v5474 = vpop.f32.mrb[0].mxu0
      %v5475 = vadd.f32 0.0, %v5474
      %v5476 = vpop.f32.mrb[0].mxu0
      %5477 = vmatprep.mubr.bf16.mxu0 0
      %5478 = vmatmul.mubr.bf16.gmra.mrb[0].mxu0 %v5175
      %v5479 = vpop.f32.mrb[0].mxu0
      %v5480 = vadd.f32 0.0, %v5479
      %v5481 = vpop.f32.mrb[0].mxu0
      %v5482 = vpop.f32.mrb[0].mxu0
      %v5483 = vadd.f32 0.0, %v5482
      %v5484 = vpop.f32.mrb[0].mxu0
      %5485 = vmatprep.mubr.bf16.mxu0 0
      %5486 = vmatmul.mubr.bf16.gmra.mrb[0].mxu0 %v5177
      %v5487 = vpop.f32.mrb[0].mxu0
      %v5488 = vadd.f32 0.0, %v5487
      %v5489 = vpop.f32.mrb[0].mxu0
      %v5490 = vpop.f32.mrb[0].mxu0
      %v5491 = vadd.f32 0.0, %v5490
      %v5492 = vpop.f32.mrb[0].mxu0
      %5493 = vmatprep.mubr.bf16.mxu0 0
      %5494 = vmatmul.mubr.bf16.gmra.mrb[0].mxu0 %v5179
      %v5495 = vpop.f32.mrb[0].mxu0
      %v5496 = vadd.f32 0.0, %v5495
      %v5497 = vpop.f32.mrb[0].mxu0
      %v5498 = vpop.f32.mrb[0].mxu0
      %v5499 = vadd.f32 0.0, %v5498
      %v5500 = vpop.f32.mrb[0].mxu0
      %5501 = vmatprep.mubr.bf16.mxu0 0
      %5502 = vmatmul.mubr.bf16.gmra.mrb[0].mxu0 %v5181
      %v5503 = vpop.f32.mrb[0].mxu0
      %v5504 = vadd.f32 0.0, %v5503
      %v5505 = vpop.f32.mrb[0].mxu0
      %v5506 = vpop.f32.mrb[0].mxu0
      %v5507 = vadd.f32 0.0, %v5506
      %v5508 = vpop.f32.mrb[0].mxu0
      %5509 = vmatprep.mubr.bf16.mxu0 0
      %5510 = vmatmul.mubr.bf16.gmra.mrb[0].mxu0 %v5183
      %v5511 = vpop.f32.mrb[0].mxu0
      %v5512 = vadd.f32 0.0, %v5511
      %v5513 = vpop.f32.mrb[0].mxu0
      %v5514 = vpop.f32.mrb[0].mxu0
      %v5515 = vadd.f32 0.0, %v5514
      %v5516 = vpop.f32.mrb[0].mxu0
      %5517 = vmatprep.mubr.bf16.mxu0 0
      %5518 = vmatmul.mubr.bf16.gmra.mrb[0].mxu0 %v5185
      %v5519 = vpop.f32.mrb[0].mxu0
      %v5520 = vadd.f32 0.0, %v5519
      %v5521 = vpop.f32.mrb[0].mxu0
      %v5522 = vpop.f32.mrb[0].mxu0
      %v5523 = vadd.f32 0.0, %v5522
      %v5524 = vpop.f32.mrb[0].mxu0
      %5525 = vmatprep.mubr.bf16.mxu0 0
      %5526 = vmatmul.mubr.bf16.gmra.mrb[0].mxu0 %v5187
      %v5527 = vpop.f32.mrb[0].mxu0
      %v5528 = vadd.f32 0.0, %v5527
      %v5529 = vpop.f32.mrb[0].mxu0
      %v5530 = vpop.f32.mrb[0].mxu0
      %v5531 = vadd.f32 0.0, %v5530
      %v5532 = vpop.f32.mrb[0].mxu0
      %5533 = vmatprep.mubr.bf16.mxu0 0
      %5534 = vmatmul.mubr.bf16.gmra.mrb[0].mxu0 %v5189
      %v5535 = vpop.f32.mrb[0].mxu0
      %v5536 = vadd.f32 0.0, %v5535
      %v5537 = vpop.f32.mrb[0].mxu0
      %v5538 = vpop.f32.mrb[0].mxu0
      %v5539 = vadd.f32 0.0, %v5538
      %v5540 = vpop.f32.mrb[0].mxu0
      %5541 = vmatprep.mubr.bf16.mxu0 0
      %5542 = vmatmul.mubr.bf16.gmra.mrb[0].mxu0 %v5191
      %v5543 = vpop.f32.mrb[0].mxu0
      %v5544 = vadd.f32 0.0, %v5543
      %v5545 = vpop.f32.mrb[0].mxu0
      %v5546 = vpop.f32.mrb[0].mxu0
      %v5547 = vadd.f32 0.0, %v5546
      %v5548 = vpop.f32.mrb[0].mxu0
      %5549 = vmatprep.mubr.bf16.mxu0 0
      %5550 = vmatmul.mubr.bf16.gmra.mrb[0].mxu0 %v5395
      %v5551 = vpop.f32.mrb[0].mxu0
      %v5552 = vadd.f32 0.0, %v5551
      %v5553 = vpop.f32.mrb[0].mxu0
      %v5554 = vpop.f32.mrb[0].mxu0
      %v5555 = vadd.f32 0.0, %v5554
      %v5556 = vpop.f32.mrb[0].mxu0
      %5557 = vdwg.mxu0
      %v5558 = vadd.f32 %v5354, %v5432
      %v5559 = vadd.f32 %v5355, %v5435
      %v5560 = vadd.f32 %v5356, %v5440
      %v5561 = vadd.f32 %v5357, %v5443
      %v5562 = vadd.f32 %v5358, %v5448
      %v5563 = vadd.f32 %v5359, %v5451
      %v5564 = vadd.f32 %v5360, %v5456
      %v5565 = vadd.f32 %v5361, %v5459
      %v5566 = vadd.f32 %v5362, %v5464
      %v5567 = vadd.f32 %v5363, %v5467
      %v5568 = vadd.f32 %v5364, %v5472
      %v5569 = vadd.f32 %v5365, %v5475
      %v5570 = vadd.f32 %v5366, %v5480
      %v5571 = vadd.f32 %v5367, %v5483
      %v5572 = vadd.f32 %v5368, %v5488
      %v5573 = vadd.f32 %v5369, %v5491
      %v5574 = vadd.f32 %v5370, %v5496
      %v5575 = vadd.f32 %v5371, %v5499
      %v5576 = vadd.f32 %v5372, %v5504
      %v5577 = vadd.f32 %v5373, %v5507
      %v5578 = vadd.f32 %v5374, %v5512
      %v5579 = vadd.f32 %v5375, %v5515
      %v5580 = vadd.f32 %v5376, %v5520
      %v5581 = vadd.f32 %v5377, %v5523
      %v5582 = vadd.f32 %v5378, %v5528
      %v5583 = vadd.f32 %v5379, %v5531
      %v5584 = vadd.f32 %v5380, %v5536
      %v5585 = vadd.f32 %v5381, %v5539
      %v5586 = vadd.f32 %v5382, %v5544
      %v5587 = vadd.f32 %v5383, %v5547
      %v5588 = vadd.f32 %v5384, %v5552
      %v5589 = vadd.f32 %v5385, %v5555
      %s5590 = scalar_lea.vmem %s9, 56
      %v5591 = vld [vmem:[%s5590] sm:$0xf]
      %v5592 = vld [vmem:[%s5590 + $0x4] sm:$0xf]
      %v5595 = vunpack.c.l.b16 %v5591
      %v5596 = vunpack.c.l.b16 %v5592
      %v5597 = vpack.c.b16 %v5596, %v5595
      %v5599 = vsel %vm442, %v4276, 0
      %5601 = vmatprep.subr.bf16.mxu0 0
      %5602 = vmatpush1.bf16.msra.mxu0 %v5597
      %5603 = vmatprep.subr.bf16.mxu0 0
      %5604 = vmatpush1.bf16.msra.mxu0 0
      %5605 = vmatprep.subr.bf16.mxu0 0
      %5606 = vmatpush1.bf16.msra.mxu0 0
      %5607 = vmatprep.subr.bf16.mxu0 0
      %5608 = vmatpush1.bf16.msra.mxu0 0
      %5609 = vmatprep.subr.bf16.mxu0 0
      %5610 = vmatpush1.bf16.msra.mxu0 0
      %5611 = vmatprep.subr.bf16.mxu0 0
      %5612 = vmatpush1.bf16.msra.mxu0 0
      %5613 = vmatprep.subr.bf16.mxu0 0
      %5614 = vmatpush1.bf16.msra.mxu0 0
      %5615 = vmatprep.subr.bf16.mxu0 0
      %5616 = vmatpush1.bf16.msra.mxu0 0
      %5617 = vmatprep.subr.bf16.mxu0 0
      %5618 = vmatpush1.bf16.msra.mxu0 0
      %5619 = vmatprep.subr.bf16.mxu0 0
      %5620 = vmatpush1.bf16.msra.mxu0 0
      %5621 = vmatprep.subr.bf16.mxu0 0
      %5622 = vmatpush1.bf16.msra.mxu0 0
      %5623 = vmatprep.subr.bf16.mxu0 0
      %5624 = vmatpush1.bf16.msra.mxu0 0
      %5625 = vmatprep.subr.bf16.mxu0 0
      %5626 = vmatpush1.bf16.msra.mxu0 0
      %5627 = vmatprep.subr.bf16.mxu0 0
      %5628 = vmatpush1.bf16.msra.mxu0 0
      %5629 = vmatprep.subr.bf16.mxu0 0
      %5630 = vmatpush1.bf16.msra.mxu0 0
      %5631 = vmatprep.subr.bf16.mxu0 0
      %5632 = vmatpush1.bf16.msra.mxu0 0
      %5633 = vmatprep.mubr.bf16.mxu0 0
      %5634 = vmatmul.mubr.bf16.gmra.mrb[0].mxu0 %v5165
      %v5635 = vpop.f32.mrb[0].mxu0
      %v5636 = vadd.f32 0.0, %v5635
      %v5637 = vpop.f32.mrb[0].mxu0
      %v5638 = vpop.f32.mrb[0].mxu0
      %v5639 = vadd.f32 0.0, %v5638
      %v5640 = vpop.f32.mrb[0].mxu0
      %5641 = vmatprep.mubr.bf16.mxu0 0
      %5642 = vmatmul.mubr.bf16.gmra.mrb[0].mxu0 %v5167
      %v5643 = vpop.f32.mrb[0].mxu0
      %v5644 = vadd.f32 0.0, %v5643
      %v5645 = vpop.f32.mrb[0].mxu0
      %v5646 = vpop.f32.mrb[0].mxu0
      %v5647 = vadd.f32 0.0, %v5646
      %v5648 = vpop.f32.mrb[0].mxu0
      %5649 = vmatprep.mubr.bf16.mxu0 0
      %5650 = vmatmul.mubr.bf16.gmra.mrb[0].mxu0 %v5169
      %v5651 = vpop.f32.mrb[0].mxu0
      %v5652 = vadd.f32 0.0, %v5651
      %v5653 = vpop.f32.mrb[0].mxu0
      %v5654 = vpop.f32.mrb[0].mxu0
      %v5655 = vadd.f32 0.0, %v5654
      %v5656 = vpop.f32.mrb[0].mxu0
      %5657 = vmatprep.mubr.bf16.mxu0 0
      %5658 = vmatmul.mubr.bf16.gmra.mrb[0].mxu0 %v5171
      %v5659 = vpop.f32.mrb[0].mxu0
      %v5660 = vadd.f32 0.0, %v5659
      %v5661 = vpop.f32.mrb[0].mxu0
      %v5662 = vpop.f32.mrb[0].mxu0
      %v5663 = vadd.f32 0.0, %v5662
      %v5664 = vpop.f32.mrb[0].mxu0
      %5665 = vmatprep.mubr.bf16.mxu0 0
      %5666 = vmatmul.mubr.bf16.gmra.mrb[0].mxu0 %v5173
      %v5667 = vpop.f32.mrb[0].mxu0
      %v5668 = vadd.f32 0.0, %v5667
      %v5669 = vpop.f32.mrb[0].mxu0
      %v5670 = vpop.f32.mrb[0].mxu0
      %v5671 = vadd.f32 0.0, %v5670
      %v5672 = vpop.f32.mrb[0].mxu0
      %5673 = vmatprep.mubr.bf16.mxu0 0
      %5674 = vmatmul.mubr.bf16.gmra.mrb[0].mxu0 %v5175
      %v5675 = vpop.f32.mrb[0].mxu0
      %v5676 = vadd.f32 0.0, %v5675
      %v5677 = vpop.f32.mrb[0].mxu0
      %v5678 = vpop.f32.mrb[0].mxu0
      %v5679 = vadd.f32 0.0, %v5678
      %v5680 = vpop.f32.mrb[0].mxu0
      %5681 = vmatprep.mubr.bf16.mxu0 0
      %5682 = vmatmul.mubr.bf16.gmra.mrb[0].mxu0 %v5177
      %v5683 = vpop.f32.mrb[0].mxu0
      %v5684 = vadd.f32 0.0, %v5683
      %v5685 = vpop.f32.mrb[0].mxu0
      %v5686 = vpop.f32.mrb[0].mxu0
      %v5687 = vadd.f32 0.0, %v5686
      %v5688 = vpop.f32.mrb[0].mxu0
      %5689 = vmatprep.mubr.bf16.mxu0 0
      %5690 = vmatmul.mubr.bf16.gmra.mrb[0].mxu0 %v5179
      %v5691 = vpop.f32.mrb[0].mxu0
      %v5692 = vadd.f32 0.0, %v5691
      %v5693 = vpop.f32.mrb[0].mxu0
      %v5694 = vpop.f32.mrb[0].mxu0
      %v5695 = vadd.f32 0.0, %v5694
      %v5696 = vpop.f32.mrb[0].mxu0
      %5697 = vmatprep.mubr.bf16.mxu0 0
      %5698 = vmatmul.mubr.bf16.gmra.mrb[0].mxu0 %v5181
      %v5699 = vpop.f32.mrb[0].mxu0
      %v5700 = vadd.f32 0.0, %v5699
      %v5701 = vpop.f32.mrb[0].mxu0
      %v5702 = vpop.f32.mrb[0].mxu0
      %v5703 = vadd.f32 0.0, %v5702
      %v5704 = vpop.f32.mrb[0].mxu0
      %5705 = vmatprep.mubr.bf16.mxu0 0
      %5706 = vmatmul.mubr.bf16.gmra.mrb[0].mxu0 %v5183
      %v5707 = vpop.f32.mrb[0].mxu0
      %v5708 = vadd.f32 0.0, %v5707
      %v5709 = vpop.f32.mrb[0].mxu0
      %v5710 = vpop.f32.mrb[0].mxu0
      %v5711 = vadd.f32 0.0, %v5710
      %v5712 = vpop.f32.mrb[0].mxu0
      %5713 = vmatprep.mubr.bf16.mxu0 0
      %5714 = vmatmul.mubr.bf16.gmra.mrb[0].mxu0 %v5185
      %v5715 = vpop.f32.mrb[0].mxu0
      %v5716 = vadd.f32 0.0, %v5715
      %v5717 = vpop.f32.mrb[0].mxu0
      %v5718 = vpop.f32.mrb[0].mxu0
      %v5719 = vadd.f32 0.0, %v5718
      %v5720 = vpop.f32.mrb[0].mxu0
      %5721 = vmatprep.mubr.bf16.mxu0 0
      %5722 = vmatmul.mubr.bf16.gmra.mrb[0].mxu0 %v5187
      %v5723 = vpop.f32.mrb[0].mxu0
      %v5724 = vadd.f32 0.0, %v5723
      %v5725 = vpop.f32.mrb[0].mxu0
      %v5726 = vpop.f32.mrb[0].mxu0
      %v5727 = vadd.f32 0.0, %v5726
      %v5728 = vpop.f32.mrb[0].mxu0
      %5729 = vmatprep.mubr.bf16.mxu0 0
      %5730 = vmatmul.mubr.bf16.gmra.mrb[0].mxu0 %v5189
      %v5731 = vpop.f32.mrb[0].mxu0
      %v5732 = vadd.f32 0.0, %v5731
      %v5733 = vpop.f32.mrb[0].mxu0
      %v5734 = vpop.f32.mrb[0].mxu0
      %v5735 = vadd.f32 0.0, %v5734
      %v5736 = vpop.f32.mrb[0].mxu0
      %5737 = vmatprep.mubr.bf16.mxu0 0
      %5738 = vmatmul.mubr.bf16.gmra.mrb[0].mxu0 %v5191
      %v5739 = vpop.f32.mrb[0].mxu0
      %v5740 = vadd.f32 0.0, %v5739
      %v5741 = vpop.f32.mrb[0].mxu0
      %v5742 = vpop.f32.mrb[0].mxu0
      %v5743 = vadd.f32 0.0, %v5742
      %v5744 = vpop.f32.mrb[0].mxu0
      %5745 = vmatprep.mubr.bf16.mxu0 0
      %5746 = vmatmul.mubr.bf16.gmra.mrb[0].mxu0 %v5395
      %v5747 = vpop.f32.mrb[0].mxu0
      %v5748 = vadd.f32 0.0, %v5747
      %v5749 = vpop.f32.mrb[0].mxu0
      %v5750 = vpop.f32.mrb[0].mxu0
      %v5751 = vadd.f32 0.0, %v5750
      %v5752 = vpop.f32.mrb[0].mxu0
      %5753 = vmatprep.mubr.bf16.mxu0 0
      %5754 = vmatmul.mubr.bf16.gmra.mrb[0].mxu0 %v5599
      %v5755 = vpop.f32.mrb[0].mxu0
      %v5756 = vadd.f32 0.0, %v5755
      %v5757 = vpop.f32.mrb[0].mxu0
      %v5758 = vpop.f32.mrb[0].mxu0
      %v5759 = vadd.f32 0.0, %v5758
      %v5760 = vpop.f32.mrb[0].mxu0
      %5761 = vdwg.mxu0
      %v5762 = vadd.f32 %v5558, %v5636
      %v5763 = vadd.f32 %v5559, %v5639
      %v5764 = vadd.f32 %v5560, %v5644
      %v5765 = vadd.f32 %v5561, %v5647
      %v5766 = vadd.f32 %v5562, %v5652
      %v5767 = vadd.f32 %v5563, %v5655
      %v5768 = vadd.f32 %v5564, %v5660
      %v5769 = vadd.f32 %v5565, %v5663
      %v5770 = vadd.f32 %v5566, %v5668
      %v5771 = vadd.f32 %v5567, %v5671
      %v5772 = vadd.f32 %v5568, %v5676
      %v5773 = vadd.f32 %v5569, %v5679
      %v5774 = vadd.f32 %v5570, %v5684
      %v5775 = vadd.f32 %v5571, %v5687
      %v5776 = vadd.f32 %v5572, %v5692
      %v5777 = vadd.f32 %v5573, %v5695
      %v5778 = vadd.f32 %v5574, %v5700
      %v5779 = vadd.f32 %v5575, %v5703
      %v5780 = vadd.f32 %v5576, %v5708
      %v5781 = vadd.f32 %v5577, %v5711
      %v5782 = vadd.f32 %v5578, %v5716
      %v5783 = vadd.f32 %v5579, %v5719
      %v5784 = vadd.f32 %v5580, %v5724
      %v5785 = vadd.f32 %v5581, %v5727
      %v5786 = vadd.f32 %v5582, %v5732
      %v5787 = vadd.f32 %v5583, %v5735
      %v5788 = vadd.f32 %v5584, %v5740
      %v5789 = vadd.f32 %v5585, %v5743
      %v5790 = vadd.f32 %v5586, %v5748
      %v5791 = vadd.f32 %v5587, %v5751
      %v5792 = vadd.f32 %v5588, %v5756
      %v5793 = vadd.f32 %v5589, %v5759
      %v5794 = vld [vmem:[#allocation2 + $0x8] sm:$0xff]
      %v5795 = vld [vmem:[#allocation2 + $0x10] sm:$0x1]
      %v5796 = vld [vmem:[#allocation2 + $0x20] sm:$0xff]
      %v5797 = vld [vmem:[#allocation2 + $0x28] sm:$0x1]
      %v5798 = vld [vmem:[#allocation2 + $0x38] sm:$0xff]
      %v5799 = vld [vmem:[#allocation2 + $0x40] sm:$0x1]
      %v5800 = vld [vmem:[#allocation2 + $0x50] sm:$0xff]
      %v5801 = vld [vmem:[#allocation2 + $0x58] sm:$0x1]
      %v5802 = vld [vmem:[#allocation2 + $0x68] sm:$0xff]
      %v5803 = vld [vmem:[#allocation2 + $0x70] sm:$0x1]
      %v5804 = vld [vmem:[#allocation2 + $0x80] sm:$0xff]
      %v5805 = vld [vmem:[#allocation2 + $0x88] sm:$0x1]
      %v5806 = vld [vmem:[#allocation2 + $0x98] sm:$0xff]
      %v5807 = vld [vmem:[#allocation2 + $0xa0] sm:$0x1]
      %v5808 = vld [vmem:[#allocation2 + $0xb0] sm:$0xff]
      %v5809 = vld [vmem:[#allocation2 + $0xb8] sm:$0x1]
      %v5810 = vld [vmem:[#allocation2 + $0xc8] sm:$0xff]
      %v5811 = vld [vmem:[#allocation2 + $0xd0] sm:$0x1]
      %v5812 = vld [vmem:[#allocation2 + $0xe0] sm:$0xff]
      %v5813 = vld [vmem:[#allocation2 + $0xe8] sm:$0x1]
      %v5814 = vld [vmem:[#allocation2 + $0xf8] sm:$0xff]
      %v5815 = vld [vmem:[#allocation2 + $0x100] sm:$0x1]
      %v5816 = vld [vmem:[#allocation2 + $0x110] sm:$0xff]
      %v5817 = vld [vmem:[#allocation2 + $0x118] sm:$0x1]
      %v5818 = vld [vmem:[#allocation2 + $0x128] sm:$0xff]
      %v5819 = vld [vmem:[#allocation2 + $0x130] sm:$0x1]
      %v5820 = vld [vmem:[#allocation2 + $0x140] sm:$0xff]
      %v5821 = vld [vmem:[#allocation2 + $0x148] sm:$0x1]
      %v5822 = vld [vmem:[#allocation2 + $0x158] sm:$0xff]
      %v5823 = vld [vmem:[#allocation2 + $0x160] sm:$0x1]
      %v5824 = vld [vmem:[#allocation2 + $0x170] sm:$0xff]
      %v5825 = vld [vmem:[#allocation2 + $0x178] sm:$0x1]
      %v5826 = vld [vmem:[#allocation2 + $0x188] sm:$0xff]
      %v5827 = vld [vmem:[#allocation2 + $0x190] sm:$0x1]
      %v5828 = vld [vmem:[#allocation2 + $0x1a0] sm:$0xff]
      %v5829 = vld [vmem:[#allocation2 + $0x1a8] sm:$0x1]
      %v5831 = vshrl.u32 %v5794, 16
      %v5833 = vshll.u32 %v5794, 16
      %v5835 = vrot.slane %v5833, 1
      %v5836 = vor.u32 %v5831, %v5835
      %v5838 = vshll.u32 %v5795, 16
      %v5840 = vrot.slane %v5838, 1
      %v5841 = vsel %vm2770, %v5836, %v5840
      %v5843 = vshrl.u32 %v5796, 16
      %v5845 = vshll.u32 %v5796, 16
      %v5847 = vrot.slane %v5845, 1
      %v5848 = vor.u32 %v5843, %v5847
      %v5850 = vshll.u32 %v5797, 16
      %v5852 = vrot.slane %v5850, 1
      %v5853 = vsel %vm2770, %v5848, %v5852
      %v5855 = vshrl.u32 %v5798, 16
      %v5857 = vshll.u32 %v5798, 16
      %v5859 = vrot.slane %v5857, 1
      %v5860 = vor.u32 %v5855, %v5859
      %v5862 = vshll.u32 %v5799, 16
      %v5864 = vrot.slane %v5862, 1
      %v5865 = vsel %vm2770, %v5860, %v5864
      %v5867 = vshrl.u32 %v5800, 16
      %v5869 = vshll.u32 %v5800, 16
      %v5871 = vrot.slane %v5869, 1
      %v5872 = vor.u32 %v5867, %v5871
      %v5874 = vshll.u32 %v5801, 16
      %v5876 = vrot.slane %v5874, 1
      %v5877 = vsel %vm2770, %v5872, %v5876
      %v5879 = vshrl.u32 %v5802, 16
      %v5881 = vshll.u32 %v5802, 16
      %v5883 = vrot.slane %v5881, 1
      %v5884 = vor.u32 %v5879, %v5883
      %v5886 = vshll.u32 %v5803, 16
      %v5888 = vrot.slane %v5886, 1
      %v5889 = vsel %vm2770, %v5884, %v5888
      %v5891 = vshrl.u32 %v5804, 16
      %v5893 = vshll.u32 %v5804, 16
      %v5895 = vrot.slane %v5893, 1
      %v5896 = vor.u32 %v5891, %v5895
      %v5898 = vshll.u32 %v5805, 16
      %v5900 = vrot.slane %v5898, 1
      %v5901 = vsel %vm2770, %v5896, %v5900
      %v5903 = vshrl.u32 %v5806, 16
      %v5905 = vshll.u32 %v5806, 16
      %v5907 = vrot.slane %v5905, 1
      %v5908 = vor.u32 %v5903, %v5907
      %v5910 = vshll.u32 %v5807, 16
      %v5912 = vrot.slane %v5910, 1
      %v5913 = vsel %vm2770, %v5908, %v5912
      %v5915 = vshrl.u32 %v5808, 16
      %v5917 = vshll.u32 %v5808, 16
      %v5919 = vrot.slane %v5917, 1
      %v5920 = vor.u32 %v5915, %v5919
      %v5922 = vshll.u32 %v5809, 16
      %v5924 = vrot.slane %v5922, 1
      %v5925 = vsel %vm2770, %v5920, %v5924
      %v5927 = vshrl.u32 %v5810, 16
      %v5929 = vshll.u32 %v5810, 16
      %v5931 = vrot.slane %v5929, 1
      %v5932 = vor.u32 %v5927, %v5931
      %v5934 = vshll.u32 %v5811, 16
      %v5936 = vrot.slane %v5934, 1
      %v5937 = vsel %vm2770, %v5932, %v5936
      %v5939 = vshrl.u32 %v5812, 16
      %v5941 = vshll.u32 %v5812, 16
      %v5943 = vrot.slane %v5941, 1
      %v5944 = vor.u32 %v5939, %v5943
      %v5946 = vshll.u32 %v5813, 16
      %v5948 = vrot.slane %v5946, 1
      %v5949 = vsel %vm2770, %v5944, %v5948
      %v5951 = vshrl.u32 %v5814, 16
      %v5953 = vshll.u32 %v5814, 16
      %v5955 = vrot.slane %v5953, 1
      %v5956 = vor.u32 %v5951, %v5955
      %v5958 = vshll.u32 %v5815, 16
      %v5960 = vrot.slane %v5958, 1
      %v5961 = vsel %vm2770, %v5956, %v5960
      %v5963 = vshrl.u32 %v5816, 16
      %v5965 = vshll.u32 %v5816, 16
      %v5967 = vrot.slane %v5965, 1
      %v5968 = vor.u32 %v5963, %v5967
      %v5970 = vshll.u32 %v5817, 16
      %v5972 = vrot.slane %v5970, 1
      %v5973 = vsel %vm2770, %v5968, %v5972
      %v5975 = vshrl.u32 %v5818, 16
      %v5977 = vshll.u32 %v5818, 16
      %v5979 = vrot.slane %v5977, 1
      %v5980 = vor.u32 %v5975, %v5979
      %v5982 = vshll.u32 %v5819, 16
      %v5984 = vrot.slane %v5982, 1
      %v5985 = vsel %vm2770, %v5980, %v5984
      %v5987 = vshrl.u32 %v5820, 16
      %v5989 = vshll.u32 %v5820, 16
      %v5991 = vrot.slane %v5989, 1
      %v5992 = vor.u32 %v5987, %v5991
      %v5994 = vshll.u32 %v5821, 16
      %v5996 = vrot.slane %v5994, 1
      %v5997 = vsel %vm2770, %v5992, %v5996
      %v5999 = vshrl.u32 %v5822, 16
      %v6001 = vshll.u32 %v5822, 16
      %v6003 = vrot.slane %v6001, 1
      %v6004 = vor.u32 %v5999, %v6003
      %v6006 = vshll.u32 %v5823, 16
      %v6008 = vrot.slane %v6006, 1
      %v6009 = vsel %vm2770, %v6004, %v6008
      %v6011 = vshrl.u32 %v5824, 16
      %v6013 = vshll.u32 %v5824, 16
      %v6015 = vrot.slane %v6013, 1
      %v6016 = vor.u32 %v6011, %v6015
      %v6018 = vshll.u32 %v5825, 16
      %v6020 = vrot.slane %v6018, 1
      %v6021 = vsel %vm2770, %v6016, %v6020
      %s6022 = scalar_lea.vmem %s9, 16
      %v6023 = vld [vmem:[%s6022] sm:$0xf]
      %v6024 = vld [vmem:[%s6022 + $0x4] sm:$0xf]
      %v6027 = vunpack.c.l.b16 %v6023
      %v6028 = vunpack.c.l.b16 %v6024
      %v6029 = vpack.c.b16 %v6028, %v6027
      %v6032 = vsel %vm442, %v5841, 0
      %v6035 = vsel %vm442, %v5853, 0
      %v6038 = vsel %vm442, %v5865, 0
      %v6041 = vsel %vm442, %v5877, 0
      %v6044 = vsel %vm442, %v5889, 0
      %v6047 = vsel %vm442, %v5901, 0
      %v6050 = vsel %vm442, %v5913, 0
      %v6053 = vsel %vm442, %v5925, 0
      %v6056 = vsel %vm442, %v5937, 0
      %v6059 = vsel %vm442, %v5949, 0
      %v6062 = vsel %vm442, %v5961, 0
      %v6065 = vsel %vm442, %v5973, 0
      %v6068 = vsel %vm442, %v5985, 0
      %v6071 = vsel %vm442, %v5997, 0
      %v6074 = vsel %vm442, %v6009, 0
      %v6077 = vsel %vm442, %v6021, 0
      %6079 = vmatprep.subr.bf16.mxu0 0
      %6080 = vmatpush1.bf16.msra.mxu0 %v6029
      %6081 = vmatprep.subr.bf16.mxu0 0
      %6082 = vmatpush1.bf16.msra.mxu0 0
      %6083 = vmatprep.subr.bf16.mxu0 0
      %6084 = vmatpush1.bf16.msra.mxu0 0
      %6085 = vmatprep.subr.bf16.mxu0 0
      %6086 = vmatpush1.bf16.msra.mxu0 0
      %6087 = vmatprep.subr.bf16.mxu0 0
      %6088 = vmatpush1.bf16.msra.mxu0 0
      %6089 = vmatprep.subr.bf16.mxu0 0
      %6090 = vmatpush1.bf16.msra.mxu0 0
      %6091 = vmatprep.subr.bf16.mxu0 0
      %6092 = vmatpush1.bf16.msra.mxu0 0
      %6093 = vmatprep.subr.bf16.mxu0 0
      %6094 = vmatpush1.bf16.msra.mxu0 0
      %6095 = vmatprep.subr.bf16.mxu0 0
      %6096 = vmatpush1.bf16.msra.mxu0 0
      %6097 = vmatprep.subr.bf16.mxu0 0
      %6098 = vmatpush1.bf16.msra.mxu0 0
      %6099 = vmatprep.subr.bf16.mxu0 0
      %6100 = vmatpush1.bf16.msra.mxu0 0
      %6101 = vmatprep.subr.bf16.mxu0 0
      %6102 = vmatpush1.bf16.msra.mxu0 0
      %6103 = vmatprep.subr.bf16.mxu0 0
      %6104 = vmatpush1.bf16.msra.mxu0 0
      %6105 = vmatprep.subr.bf16.mxu0 0
      %6106 = vmatpush1.bf16.msra.mxu0 0
      %6107 = vmatprep.subr.bf16.mxu0 0
      %6108 = vmatpush1.bf16.msra.mxu0 0
      %6109 = vmatprep.subr.bf16.mxu0 0
      %6110 = vmatpush1.bf16.msra.mxu0 0
      %6111 = vmatprep.mubr.bf16.mxu0 0
      %6112 = vmatmul.mubr.bf16.gmra.mrb[0].mxu0 %v6032
      %v6113 = vpop.f32.mrb[0].mxu0
      %v6114 = vadd.f32 0.0, %v6113
      %v6115 = vpop.f32.mrb[0].mxu0
      %v6116 = vpop.f32.mrb[0].mxu0
      %v6117 = vadd.f32 0.0, %v6116
      %v6118 = vpop.f32.mrb[0].mxu0
      %6119 = vmatprep.mubr.bf16.mxu0 0
      %6120 = vmatmul.mubr.bf16.gmra.mrb[0].mxu0 %v6035
      %v6121 = vpop.f32.mrb[0].mxu0
      %v6122 = vadd.f32 0.0, %v6121
      %v6123 = vpop.f32.mrb[0].mxu0
      %v6124 = vpop.f32.mrb[0].mxu0
      %v6125 = vadd.f32 0.0, %v6124
      %v6126 = vpop.f32.mrb[0].mxu0
      %6127 = vmatprep.mubr.bf16.mxu0 0
      %6128 = vmatmul.mubr.bf16.gmra.mrb[0].mxu0 %v6038
      %v6129 = vpop.f32.mrb[0].mxu0
      %v6130 = vadd.f32 0.0, %v6129
      %v6131 = vpop.f32.mrb[0].mxu0
      %v6132 = vpop.f32.mrb[0].mxu0
      %v6133 = vadd.f32 0.0, %v6132
      %v6134 = vpop.f32.mrb[0].mxu0
      %6135 = vmatprep.mubr.bf16.mxu0 0
      %6136 = vmatmul.mubr.bf16.gmra.mrb[0].mxu0 %v6041
      %v6137 = vpop.f32.mrb[0].mxu0
      %v6138 = vadd.f32 0.0, %v6137
      %v6139 = vpop.f32.mrb[0].mxu0
      %v6140 = vpop.f32.mrb[0].mxu0
      %v6141 = vadd.f32 0.0, %v6140
      %v6142 = vpop.f32.mrb[0].mxu0
      %6143 = vmatprep.mubr.bf16.mxu0 0
      %6144 = vmatmul.mubr.bf16.gmra.mrb[0].mxu0 %v6044
      %v6145 = vpop.f32.mrb[0].mxu0
      %v6146 = vadd.f32 0.0, %v6145
      %v6147 = vpop.f32.mrb[0].mxu0
      %v6148 = vpop.f32.mrb[0].mxu0
      %v6149 = vadd.f32 0.0, %v6148
      %v6150 = vpop.f32.mrb[0].mxu0
      %6151 = vmatprep.mubr.bf16.mxu0 0
      %6152 = vmatmul.mubr.bf16.gmra.mrb[0].mxu0 %v6047
      %v6153 = vpop.f32.mrb[0].mxu0
      %v6154 = vadd.f32 0.0, %v6153
      %v6155 = vpop.f32.mrb[0].mxu0
      %v6156 = vpop.f32.mrb[0].mxu0
      %v6157 = vadd.f32 0.0, %v6156
      %v6158 = vpop.f32.mrb[0].mxu0
      %6159 = vmatprep.mubr.bf16.mxu0 0
      %6160 = vmatmul.mubr.bf16.gmra.mrb[0].mxu0 %v6050
      %v6161 = vpop.f32.mrb[0].mxu0
      %v6162 = vadd.f32 0.0, %v6161
      %v6163 = vpop.f32.mrb[0].mxu0
      %v6164 = vpop.f32.mrb[0].mxu0
      %v6165 = vadd.f32 0.0, %v6164
      %v6166 = vpop.f32.mrb[0].mxu0
      %6167 = vmatprep.mubr.bf16.mxu0 0
      %6168 = vmatmul.mubr.bf16.gmra.mrb[0].mxu0 %v6053
      %v6169 = vpop.f32.mrb[0].mxu0
      %v6170 = vadd.f32 0.0, %v6169
      %v6171 = vpop.f32.mrb[0].mxu0
      %v6172 = vpop.f32.mrb[0].mxu0
      %v6173 = vadd.f32 0.0, %v6172
      %v6174 = vpop.f32.mrb[0].mxu0
      %6175 = vmatprep.mubr.bf16.mxu0 0
      %6176 = vmatmul.mubr.bf16.gmra.mrb[0].mxu0 %v6056
      %v6177 = vpop.f32.mrb[0].mxu0
      %v6178 = vadd.f32 0.0, %v6177
      %v6179 = vpop.f32.mrb[0].mxu0
      %v6180 = vpop.f32.mrb[0].mxu0
      %v6181 = vadd.f32 0.0, %v6180
      %v6182 = vpop.f32.mrb[0].mxu0
      %6183 = vmatprep.mubr.bf16.mxu0 0
      %6184 = vmatmul.mubr.bf16.gmra.mrb[0].mxu0 %v6059
      %v6185 = vpop.f32.mrb[0].mxu0
      %v6186 = vadd.f32 0.0, %v6185
      %v6187 = vpop.f32.mrb[0].mxu0
      %v6188 = vpop.f32.mrb[0].mxu0
      %v6189 = vadd.f32 0.0, %v6188
      %v6190 = vpop.f32.mrb[0].mxu0
      %6191 = vmatprep.mubr.bf16.mxu0 0
      %6192 = vmatmul.mubr.bf16.gmra.mrb[0].mxu0 %v6062
      %v6193 = vpop.f32.mrb[0].mxu0
      %v6194 = vadd.f32 0.0, %v6193
      %v6195 = vpop.f32.mrb[0].mxu0
      %v6196 = vpop.f32.mrb[0].mxu0
      %v6197 = vadd.f32 0.0, %v6196
      %v6198 = vpop.f32.mrb[0].mxu0
      %6199 = vmatprep.mubr.bf16.mxu0 0
      %6200 = vmatmul.mubr.bf16.gmra.mrb[0].mxu0 %v6065
      %v6201 = vpop.f32.mrb[0].mxu0
      %v6202 = vadd.f32 0.0, %v6201
      %v6203 = vpop.f32.mrb[0].mxu0
      %v6204 = vpop.f32.mrb[0].mxu0
      %v6205 = vadd.f32 0.0, %v6204
      %v6206 = vpop.f32.mrb[0].mxu0
      %6207 = vmatprep.mubr.bf16.mxu0 0
      %6208 = vmatmul.mubr.bf16.gmra.mrb[0].mxu0 %v6068
      %v6209 = vpop.f32.mrb[0].mxu0
      %v6210 = vadd.f32 0.0, %v6209
      %v6211 = vpop.f32.mrb[0].mxu0
      %v6212 = vpop.f32.mrb[0].mxu0
      %v6213 = vadd.f32 0.0, %v6212
      %v6214 = vpop.f32.mrb[0].mxu0
      %6215 = vmatprep.mubr.bf16.mxu0 0
      %6216 = vmatmul.mubr.bf16.gmra.mrb[0].mxu0 %v6071
      %v6217 = vpop.f32.mrb[0].mxu0
      %v6218 = vadd.f32 0.0, %v6217
      %v6219 = vpop.f32.mrb[0].mxu0
      %v6220 = vpop.f32.mrb[0].mxu0
      %v6221 = vadd.f32 0.0, %v6220
      %v6222 = vpop.f32.mrb[0].mxu0
      %6223 = vmatprep.mubr.bf16.mxu0 0
      %6224 = vmatmul.mubr.bf16.gmra.mrb[0].mxu0 %v6074
      %v6225 = vpop.f32.mrb[0].mxu0
      %v6226 = vadd.f32 0.0, %v6225
      %v6227 = vpop.f32.mrb[0].mxu0
      %v6228 = vpop.f32.mrb[0].mxu0
      %v6229 = vadd.f32 0.0, %v6228
      %v6230 = vpop.f32.mrb[0].mxu0
      %6231 = vmatprep.mubr.bf16.mxu0 0
      %6232 = vmatmul.mubr.bf16.gmra.mrb[0].mxu0 %v6077
      %v6233 = vpop.f32.mrb[0].mxu0
      %v6234 = vadd.f32 0.0, %v6233
      %v6235 = vpop.f32.mrb[0].mxu0
      %v6236 = vpop.f32.mrb[0].mxu0
      %v6237 = vadd.f32 0.0, %v6236
      %v6238 = vpop.f32.mrb[0].mxu0
      %6239 = vdwg.mxu0
      %v6240 = vadd.f32 %v5762, %v6114
      %v6241 = vadd.f32 %v5763, %v6117
      %v6242 = vadd.f32 %v5764, %v6122
      %v6243 = vadd.f32 %v5765, %v6125
      %v6244 = vadd.f32 %v5766, %v6130
      %v6245 = vadd.f32 %v5767, %v6133
      %v6246 = vadd.f32 %v5768, %v6138
      %v6247 = vadd.f32 %v5769, %v6141
      %v6248 = vadd.f32 %v5770, %v6146
      %v6249 = vadd.f32 %v5771, %v6149
      %v6250 = vadd.f32 %v5772, %v6154
      %v6251 = vadd.f32 %v5773, %v6157
      %v6252 = vadd.f32 %v5774, %v6162
      %v6253 = vadd.f32 %v5775, %v6165
      %v6254 = vadd.f32 %v5776, %v6170
      %v6255 = vadd.f32 %v5777, %v6173
      %v6256 = vadd.f32 %v5778, %v6178
      %v6257 = vadd.f32 %v5779, %v6181
      %v6258 = vadd.f32 %v5780, %v6186
      %v6259 = vadd.f32 %v5781, %v6189
      %v6260 = vadd.f32 %v5782, %v6194
      %v6261 = vadd.f32 %v5783, %v6197
      %v6262 = vadd.f32 %v5784, %v6202
      %v6263 = vadd.f32 %v5785, %v6205
      %v6264 = vadd.f32 %v5786, %v6210
      %v6265 = vadd.f32 %v5787, %v6213
      %v6266 = vadd.f32 %v5788, %v6218
      %v6267 = vadd.f32 %v5789, %v6221
      %v6268 = vadd.f32 %v5790, %v6226
      %v6269 = vadd.f32 %v5791, %v6229
      %v6270 = vadd.f32 %v5792, %v6234
      %v6271 = vadd.f32 %v5793, %v6237
      %v6273 = vshrl.u32 %v5826, 16
      %v6275 = vshll.u32 %v5826, 16
      %v6277 = vrot.slane %v6275, 1
      %v6278 = vor.u32 %v6273, %v6277
      %v6280 = vshll.u32 %v5827, 16
      %v6282 = vrot.slane %v6280, 1
      %v6283 = vsel %vm2770, %v6278, %v6282
      %s6284 = scalar_lea.vmem %s9, 40
      %v6285 = vld [vmem:[%s6284] sm:$0xf]
      %v6286 = vld [vmem:[%s6284 + $0x4] sm:$0xf]
      %v6289 = vunpack.c.l.b16 %v6285
      %v6290 = vunpack.c.l.b16 %v6286
      %v6291 = vpack.c.b16 %v6290, %v6289
      %v6294 = vsel %vm442, %v6283, 0
      %6296 = vmatprep.subr.bf16.mxu0 0
      %6297 = vmatpush1.bf16.msra.mxu0 %v6291
      %6298 = vmatprep.subr.bf16.mxu0 0
      %6299 = vmatpush1.bf16.msra.mxu0 0
      %6300 = vmatprep.subr.bf16.mxu0 0
      %6301 = vmatpush1.bf16.msra.mxu0 0
      %6302 = vmatprep.subr.bf16.mxu0 0
      %6303 = vmatpush1.bf16.msra.mxu0 0
      %6304 = vmatprep.subr.bf16.mxu0 0
      %6305 = vmatpush1.bf16.msra.mxu0 0
      %6306 = vmatprep.subr.bf16.mxu0 0
      %6307 = vmatpush1.bf16.msra.mxu0 0
      %6308 = vmatprep.subr.bf16.mxu0 0
      %6309 = vmatpush1.bf16.msra.mxu0 0
      %6310 = vmatprep.subr.bf16.mxu0 0
      %6311 = vmatpush1.bf16.msra.mxu0 0
      %6312 = vmatprep.subr.bf16.mxu0 0
      %6313 = vmatpush1.bf16.msra.mxu0 0
      %6314 = vmatprep.subr.bf16.mxu0 0
      %6315 = vmatpush1.bf16.msra.mxu0 0
      %6316 = vmatprep.subr.bf16.mxu0 0
      %6317 = vmatpush1.bf16.msra.mxu0 0
      %6318 = vmatprep.subr.bf16.mxu0 0
      %6319 = vmatpush1.bf16.msra.mxu0 0
      %6320 = vmatprep.subr.bf16.mxu0 0
      %6321 = vmatpush1.bf16.msra.mxu0 0
      %6322 = vmatprep.subr.bf16.mxu0 0
      %6323 = vmatpush1.bf16.msra.mxu0 0
      %6324 = vmatprep.subr.bf16.mxu0 0
      %6325 = vmatpush1.bf16.msra.mxu0 0
      %6326 = vmatprep.subr.bf16.mxu0 0
      %6327 = vmatpush1.bf16.msra.mxu0 0
      %6328 = vmatprep.mubr.bf16.mxu0 0
      %6329 = vmatmul.mubr.bf16.gmra.mrb[0].mxu0 %v6035
      %v6330 = vpop.f32.mrb[0].mxu0
      %v6331 = vadd.f32 0.0, %v6330
      %v6332 = vpop.f32.mrb[0].mxu0
      %v6333 = vpop.f32.mrb[0].mxu0
      %v6334 = vadd.f32 0.0, %v6333
      %v6335 = vpop.f32.mrb[0].mxu0
      %6336 = vmatprep.mubr.bf16.mxu0 0
      %6337 = vmatmul.mubr.bf16.gmra.mrb[0].mxu0 %v6038
      %v6338 = vpop.f32.mrb[0].mxu0
      %v6339 = vadd.f32 0.0, %v6338
      %v6340 = vpop.f32.mrb[0].mxu0
      %v6341 = vpop.f32.mrb[0].mxu0
      %v6342 = vadd.f32 0.0, %v6341
      %v6343 = vpop.f32.mrb[0].mxu0
      %6344 = vmatprep.mubr.bf16.mxu0 0
      %6345 = vmatmul.mubr.bf16.gmra.mrb[0].mxu0 %v6041
      %v6346 = vpop.f32.mrb[0].mxu0
      %v6347 = vadd.f32 0.0, %v6346
      %v6348 = vpop.f32.mrb[0].mxu0
      %v6349 = vpop.f32.mrb[0].mxu0
      %v6350 = vadd.f32 0.0, %v6349
      %v6351 = vpop.f32.mrb[0].mxu0
      %6352 = vmatprep.mubr.bf16.mxu0 0
      %6353 = vmatmul.mubr.bf16.gmra.mrb[0].mxu0 %v6044
      %v6354 = vpop.f32.mrb[0].mxu0
      %v6355 = vadd.f32 0.0, %v6354
      %v6356 = vpop.f32.mrb[0].mxu0
      %v6357 = vpop.f32.mrb[0].mxu0
      %v6358 = vadd.f32 0.0, %v6357
      %v6359 = vpop.f32.mrb[0].mxu0
      %6360 = vmatprep.mubr.bf16.mxu0 0
      %6361 = vmatmul.mubr.bf16.gmra.mrb[0].mxu0 %v6047
      %v6362 = vpop.f32.mrb[0].mxu0
      %v6363 = vadd.f32 0.0, %v6362
      %v6364 = vpop.f32.mrb[0].mxu0
      %v6365 = vpop.f32.mrb[0].mxu0
      %v6366 = vadd.f32 0.0, %v6365
      %v6367 = vpop.f32.mrb[0].mxu0
      %6368 = vmatprep.mubr.bf16.mxu0 0
      %6369 = vmatmul.mubr.bf16.gmra.mrb[0].mxu0 %v6050
      %v6370 = vpop.f32.mrb[0].mxu0
      %v6371 = vadd.f32 0.0, %v6370
      %v6372 = vpop.f32.mrb[0].mxu0
      %v6373 = vpop.f32.mrb[0].mxu0
      %v6374 = vadd.f32 0.0, %v6373
      %v6375 = vpop.f32.mrb[0].mxu0
      %6376 = vmatprep.mubr.bf16.mxu0 0
      %6377 = vmatmul.mubr.bf16.gmra.mrb[0].mxu0 %v6053
      %v6378 = vpop.f32.mrb[0].mxu0
      %v6379 = vadd.f32 0.0, %v6378
      %v6380 = vpop.f32.mrb[0].mxu0
      %v6381 = vpop.f32.mrb[0].mxu0
      %v6382 = vadd.f32 0.0, %v6381
      %v6383 = vpop.f32.mrb[0].mxu0
      %6384 = vmatprep.mubr.bf16.mxu0 0
      %6385 = vmatmul.mubr.bf16.gmra.mrb[0].mxu0 %v6056
      %v6386 = vpop.f32.mrb[0].mxu0
      %v6387 = vadd.f32 0.0, %v6386
      %v6388 = vpop.f32.mrb[0].mxu0
      %v6389 = vpop.f32.mrb[0].mxu0
      %v6390 = vadd.f32 0.0, %v6389
      %v6391 = vpop.f32.mrb[0].mxu0
      %6392 = vmatprep.mubr.bf16.mxu0 0
      %6393 = vmatmul.mubr.bf16.gmra.mrb[0].mxu0 %v6059
      %v6394 = vpop.f32.mrb[0].mxu0
      %v6395 = vadd.f32 0.0, %v6394
      %v6396 = vpop.f32.mrb[0].mxu0
      %v6397 = vpop.f32.mrb[0].mxu0
      %v6398 = vadd.f32 0.0, %v6397
      %v6399 = vpop.f32.mrb[0].mxu0
      %6400 = vmatprep.mubr.bf16.mxu0 0
      %6401 = vmatmul.mubr.bf16.gmra.mrb[0].mxu0 %v6062
      %v6402 = vpop.f32.mrb[0].mxu0
      %v6403 = vadd.f32 0.0, %v6402
      %v6404 = vpop.f32.mrb[0].mxu0
      %v6405 = vpop.f32.mrb[0].mxu0
      %v6406 = vadd.f32 0.0, %v6405
      %v6407 = vpop.f32.mrb[0].mxu0
      %6408 = vmatprep.mubr.bf16.mxu0 0
      %6409 = vmatmul.mubr.bf16.gmra.mrb[0].mxu0 %v6065
      %v6410 = vpop.f32.mrb[0].mxu0
      %v6411 = vadd.f32 0.0, %v6410
      %v6412 = vpop.f32.mrb[0].mxu0
      %v6413 = vpop.f32.mrb[0].mxu0
      %v6414 = vadd.f32 0.0, %v6413
      %v6415 = vpop.f32.mrb[0].mxu0
      %6416 = vmatprep.mubr.bf16.mxu0 0
      %6417 = vmatmul.mubr.bf16.gmra.mrb[0].mxu0 %v6068
      %v6418 = vpop.f32.mrb[0].mxu0
      %v6419 = vadd.f32 0.0, %v6418
      %v6420 = vpop.f32.mrb[0].mxu0
      %v6421 = vpop.f32.mrb[0].mxu0
      %v6422 = vadd.f32 0.0, %v6421
      %v6423 = vpop.f32.mrb[0].mxu0
      %6424 = vmatprep.mubr.bf16.mxu0 0
      %6425 = vmatmul.mubr.bf16.gmra.mrb[0].mxu0 %v6071
      %v6426 = vpop.f32.mrb[0].mxu0
      %v6427 = vadd.f32 0.0, %v6426
      %v6428 = vpop.f32.mrb[0].mxu0
      %v6429 = vpop.f32.mrb[0].mxu0
      %v6430 = vadd.f32 0.0, %v6429
      %v6431 = vpop.f32.mrb[0].mxu0
      %6432 = vmatprep.mubr.bf16.mxu0 0
      %6433 = vmatmul.mubr.bf16.gmra.mrb[0].mxu0 %v6074
      %v6434 = vpop.f32.mrb[0].mxu0
      %v6435 = vadd.f32 0.0, %v6434
      %v6436 = vpop.f32.mrb[0].mxu0
      %v6437 = vpop.f32.mrb[0].mxu0
      %v6438 = vadd.f32 0.0, %v6437
      %v6439 = vpop.f32.mrb[0].mxu0
      %6440 = vmatprep.mubr.bf16.mxu0 0
      %6441 = vmatmul.mubr.bf16.gmra.mrb[0].mxu0 %v6077
      %v6442 = vpop.f32.mrb[0].mxu0
      %v6443 = vadd.f32 0.0, %v6442
      %v6444 = vpop.f32.mrb[0].mxu0
      %v6445 = vpop.f32.mrb[0].mxu0
      %v6446 = vadd.f32 0.0, %v6445
      %v6447 = vpop.f32.mrb[0].mxu0
      %6448 = vmatprep.mubr.bf16.mxu0 0
      %6449 = vmatmul.mubr.bf16.gmra.mrb[0].mxu0 %v6294
      %v6450 = vpop.f32.mrb[0].mxu0
      %v6451 = vadd.f32 0.0, %v6450
      %v6452 = vpop.f32.mrb[0].mxu0
      %v6453 = vpop.f32.mrb[0].mxu0
      %v6454 = vadd.f32 0.0, %v6453
      %v6455 = vpop.f32.mrb[0].mxu0
      %6456 = vdwg.mxu0
      %v6457 = vadd.f32 %v6240, %v6331
      %v6458 = vadd.f32 %v6241, %v6334
      %v6459 = vadd.f32 %v6242, %v6339
      %v6460 = vadd.f32 %v6243, %v6342
      %v6461 = vadd.f32 %v6244, %v6347
      %v6462 = vadd.f32 %v6245, %v6350
      %v6463 = vadd.f32 %v6246, %v6355
      %v6464 = vadd.f32 %v6247, %v6358
      %v6465 = vadd.f32 %v6248, %v6363
      %v6466 = vadd.f32 %v6249, %v6366
      %v6467 = vadd.f32 %v6250, %v6371
      %v6468 = vadd.f32 %v6251, %v6374
      %v6469 = vadd.f32 %v6252, %v6379
      %v6470 = vadd.f32 %v6253, %v6382
      %v6471 = vadd.f32 %v6254, %v6387
      %v6472 = vadd.f32 %v6255, %v6390
      %v6473 = vadd.f32 %v6256, %v6395
      %v6474 = vadd.f32 %v6257, %v6398
      %v6475 = vadd.f32 %v6258, %v6403
      %v6476 = vadd.f32 %v6259, %v6406
      %v6477 = vadd.f32 %v6260, %v6411
      %v6478 = vadd.f32 %v6261, %v6414
      %v6479 = vadd.f32 %v6262, %v6419
      %v6480 = vadd.f32 %v6263, %v6422
      %v6481 = vadd.f32 %v6264, %v6427
      %v6482 = vadd.f32 %v6265, %v6430
      %v6483 = vadd.f32 %v6266, %v6435
      %v6484 = vadd.f32 %v6267, %v6438
      %v6485 = vadd.f32 %v6268, %v6443
      %v6486 = vadd.f32 %v6269, %v6446
      %v6487 = vadd.f32 %v6270, %v6451
      %v6488 = vadd.f32 %v6271, %v6454
      %v6490 = vshrl.u32 %v5828, 16
      %v6492 = vshll.u32 %v5828, 16
      %v6494 = vrot.slane %v6492, 1
      %v6495 = vor.u32 %v6490, %v6494
      %v6497 = vshll.u32 %v5829, 16
      %v6499 = vrot.slane %v6497, 1
      %v6500 = vsel %vm2770, %v6495, %v6499
      %s6501 = scalar_lea.vmem %s9, 64
      %v6502 = vld [vmem:[%s6501] sm:$0xf]
      %v6503 = vld [vmem:[%s6501 + $0x4] sm:$0xf]
      %v6506 = vunpack.c.l.b16 %v6502
      %v6507 = vunpack.c.l.b16 %v6503
      %v6508 = vpack.c.b16 %v6507, %v6506
      %v6511 = vsel %vm442, %v6500, 0
      %6513 = vmatprep.subr.bf16.mxu0 0
      %6514 = vmatpush1.bf16.msra.mxu0 %v6508
      %6515 = vmatprep.subr.bf16.mxu0 0
      %6516 = vmatpush1.bf16.msra.mxu0 0
      %6517 = vmatprep.subr.bf16.mxu0 0
      %6518 = vmatpush1.bf16.msra.mxu0 0
      %6519 = vmatprep.subr.bf16.mxu0 0
      %6520 = vmatpush1.bf16.msra.mxu0 0
      %6521 = vmatprep.subr.bf16.mxu0 0
      %6522 = vmatpush1.bf16.msra.mxu0 0
      %6523 = vmatprep.subr.bf16.mxu0 0
      %6524 = vmatpush1.bf16.msra.mxu0 0
      %6525 = vmatprep.subr.bf16.mxu0 0
      %6526 = vmatpush1.bf16.msra.mxu0 0
      %6527 = vmatprep.subr.bf16.mxu0 0
      %6528 = vmatpush1.bf16.msra.mxu0 0
      %6529 = vmatprep.subr.bf16.mxu0 0
      %6530 = vmatpush1.bf16.msra.mxu0 0
      %6531 = vmatprep.subr.bf16.mxu0 0
      %6532 = vmatpush1.bf16.msra.mxu0 0
      %6533 = vmatprep.subr.bf16.mxu0 0
      %6534 = vmatpush1.bf16.msra.mxu0 0
      %6535 = vmatprep.subr.bf16.mxu0 0
      %6536 = vmatpush1.bf16.msra.mxu0 0
      %6537 = vmatprep.subr.bf16.mxu0 0
      %6538 = vmatpush1.bf16.msra.mxu0 0
      %6539 = vmatprep.subr.bf16.mxu0 0
      %6540 = vmatpush1.bf16.msra.mxu0 0
      %6541 = vmatprep.subr.bf16.mxu0 0
      %6542 = vmatpush1.bf16.msra.mxu0 0
      %6543 = vmatprep.subr.bf16.mxu0 0
      %6544 = vmatpush1.bf16.msra.mxu0 0
      %6545 = vmatprep.mubr.bf16.mxu0 0
      %6546 = vmatmul.mubr.bf16.gmra.mrb[0].mxu0 %v6038
      %v6547 = vpop.f32.mrb[0].mxu0
      %v6548 = vadd.f32 0.0, %v6547
      %v6549 = vpop.f32.mrb[0].mxu0
      %v6550 = vpop.f32.mrb[0].mxu0
      %v6551 = vadd.f32 0.0, %v6550
      %v6552 = vpop.f32.mrb[0].mxu0
      %6553 = vmatprep.mubr.bf16.mxu0 0
      %6554 = vmatmul.mubr.bf16.gmra.mrb[0].mxu0 %v6041
      %v6555 = vpop.f32.mrb[0].mxu0
      %v6556 = vadd.f32 0.0, %v6555
      %v6557 = vpop.f32.mrb[0].mxu0
      %v6558 = vpop.f32.mrb[0].mxu0
      %v6559 = vadd.f32 0.0, %v6558
      %v6560 = vpop.f32.mrb[0].mxu0
      %6561 = vmatprep.mubr.bf16.mxu0 0
      %6562 = vmatmul.mubr.bf16.gmra.mrb[0].mxu0 %v6044
      %v6563 = vpop.f32.mrb[0].mxu0
      %v6564 = vadd.f32 0.0, %v6563
      %v6565 = vpop.f32.mrb[0].mxu0
      %v6566 = vpop.f32.mrb[0].mxu0
      %v6567 = vadd.f32 0.0, %v6566
      %v6568 = vpop.f32.mrb[0].mxu0
      %6569 = vmatprep.mubr.bf16.mxu0 0
      %6570 = vmatmul.mubr.bf16.gmra.mrb[0].mxu0 %v6047
      %v6571 = vpop.f32.mrb[0].mxu0
      %v6572 = vadd.f32 0.0, %v6571
      %v6573 = vpop.f32.mrb[0].mxu0
      %v6574 = vpop.f32.mrb[0].mxu0
      %v6575 = vadd.f32 0.0, %v6574
      %v6576 = vpop.f32.mrb[0].mxu0
      %6577 = vmatprep.mubr.bf16.mxu0 0
      %6578 = vmatmul.mubr.bf16.gmra.mrb[0].mxu0 %v6050
      %v6579 = vpop.f32.mrb[0].mxu0
      %v6580 = vadd.f32 0.0, %v6579
      %v6581 = vpop.f32.mrb[0].mxu0
      %v6582 = vpop.f32.mrb[0].mxu0
      %v6583 = vadd.f32 0.0, %v6582
      %v6584 = vpop.f32.mrb[0].mxu0
      %6585 = vmatprep.mubr.bf16.mxu0 0
      %6586 = vmatmul.mubr.bf16.gmra.mrb[0].mxu0 %v6053
      %v6587 = vpop.f32.mrb[0].mxu0
      %v6588 = vadd.f32 0.0, %v6587
      %v6589 = vpop.f32.mrb[0].mxu0
      %v6590 = vpop.f32.mrb[0].mxu0
      %v6591 = vadd.f32 0.0, %v6590
      %v6592 = vpop.f32.mrb[0].mxu0
      %6593 = vmatprep.mubr.bf16.mxu0 0
      %6594 = vmatmul.mubr.bf16.gmra.mrb[0].mxu0 %v6056
      %v6595 = vpop.f32.mrb[0].mxu0
      %v6596 = vadd.f32 0.0, %v6595
      %v6597 = vpop.f32.mrb[0].mxu0
      %v6598 = vpop.f32.mrb[0].mxu0
      %v6599 = vadd.f32 0.0, %v6598
      %v6600 = vpop.f32.mrb[0].mxu0
      %6601 = vmatprep.mubr.bf16.mxu0 0
      %6602 = vmatmul.mubr.bf16.gmra.mrb[0].mxu0 %v6059
      %v6603 = vpop.f32.mrb[0].mxu0
      %v6604 = vadd.f32 0.0, %v6603
      %v6605 = vpop.f32.mrb[0].mxu0
      %v6606 = vpop.f32.mrb[0].mxu0
      %v6607 = vadd.f32 0.0, %v6606
      %v6608 = vpop.f32.mrb[0].mxu0
      %6609 = vmatprep.mubr.bf16.mxu0 0
      %6610 = vmatmul.mubr.bf16.gmra.mrb[0].mxu0 %v6062
      %v6611 = vpop.f32.mrb[0].mxu0
      %v6612 = vadd.f32 0.0, %v6611
      %v6613 = vpop.f32.mrb[0].mxu0
      %v6614 = vpop.f32.mrb[0].mxu0
      %v6615 = vadd.f32 0.0, %v6614
      %v6616 = vpop.f32.mrb[0].mxu0
      %6617 = vmatprep.mubr.bf16.mxu0 0
      %6618 = vmatmul.mubr.bf16.gmra.mrb[0].mxu0 %v6065
      %v6619 = vpop.f32.mrb[0].mxu0
      %v6620 = vadd.f32 0.0, %v6619
      %v6621 = vpop.f32.mrb[0].mxu0
      %v6622 = vpop.f32.mrb[0].mxu0
      %v6623 = vadd.f32 0.0, %v6622
      %v6624 = vpop.f32.mrb[0].mxu0
      %6625 = vmatprep.mubr.bf16.mxu0 0
      %6626 = vmatmul.mubr.bf16.gmra.mrb[0].mxu0 %v6068
      %v6627 = vpop.f32.mrb[0].mxu0
      %v6628 = vadd.f32 0.0, %v6627
      %v6629 = vpop.f32.mrb[0].mxu0
      %v6630 = vpop.f32.mrb[0].mxu0
      %v6631 = vadd.f32 0.0, %v6630
      %v6632 = vpop.f32.mrb[0].mxu0
      %6633 = vmatprep.mubr.bf16.mxu0 0
      %6634 = vmatmul.mubr.bf16.gmra.mrb[0].mxu0 %v6071
      %v6635 = vpop.f32.mrb[0].mxu0
      %v6636 = vadd.f32 0.0, %v6635
      %v6637 = vpop.f32.mrb[0].mxu0
      %v6638 = vpop.f32.mrb[0].mxu0
      %v6639 = vadd.f32 0.0, %v6638
      %v6640 = vpop.f32.mrb[0].mxu0
      %6641 = vmatprep.mubr.bf16.mxu0 0
      %6642 = vmatmul.mubr.bf16.gmra.mrb[0].mxu0 %v6074
      %v6643 = vpop.f32.mrb[0].mxu0
      %v6644 = vadd.f32 0.0, %v6643
      %v6645 = vpop.f32.mrb[0].mxu0
      %v6646 = vpop.f32.mrb[0].mxu0
      %v6647 = vadd.f32 0.0, %v6646
      %v6648 = vpop.f32.mrb[0].mxu0
      %6649 = vmatprep.mubr.bf16.mxu0 0
      %6650 = vmatmul.mubr.bf16.gmra.mrb[0].mxu0 %v6077
      %v6651 = vpop.f32.mrb[0].mxu0
      %v6652 = vadd.f32 0.0, %v6651
      %v6653 = vpop.f32.mrb[0].mxu0
      %v6654 = vpop.f32.mrb[0].mxu0
      %v6655 = vadd.f32 0.0, %v6654
      %v6656 = vpop.f32.mrb[0].mxu0
      %6657 = vmatprep.mubr.bf16.mxu0 0
      %6658 = vmatmul.mubr.bf16.gmra.mrb[0].mxu0 %v6294
      %v6659 = vpop.f32.mrb[0].mxu0
      %v6660 = vadd.f32 0.0, %v6659
      %v6661 = vpop.f32.mrb[0].mxu0
      %v6662 = vpop.f32.mrb[0].mxu0
      %v6663 = vadd.f32 0.0, %v6662
      %v6664 = vpop.f32.mrb[0].mxu0
      %6665 = vmatprep.mubr.bf16.mxu0 0
      %6666 = vmatmul.mubr.bf16.gmra.mrb[0].mxu0 %v6511
      %v6667 = vpop.f32.mrb[0].mxu0
      %v6668 = vadd.f32 0.0, %v6667
      %v6669 = vpop.f32.mrb[0].mxu0
      %v6670 = vpop.f32.mrb[0].mxu0
      %v6671 = vadd.f32 0.0, %v6670
      %v6672 = vpop.f32.mrb[0].mxu0
      %6673 = vdwg.mxu0
      %v6674 = vadd.f32 %v6457, %v6548
      %v6675 = vadd.f32 %v6458, %v6551
      %v6676 = vadd.f32 %v6459, %v6556
      %v6677 = vadd.f32 %v6460, %v6559
      %v6678 = vadd.f32 %v6461, %v6564
      %v6679 = vadd.f32 %v6462, %v6567
      %v6680 = vadd.f32 %v6463, %v6572
      %v6681 = vadd.f32 %v6464, %v6575
      %v6682 = vadd.f32 %v6465, %v6580
      %v6683 = vadd.f32 %v6466, %v6583
      %v6684 = vadd.f32 %v6467, %v6588
      %v6685 = vadd.f32 %v6468, %v6591
      %v6686 = vadd.f32 %v6469, %v6596
      %v6687 = vadd.f32 %v6470, %v6599
      %v6688 = vadd.f32 %v6471, %v6604
      %v6689 = vadd.f32 %v6472, %v6607
      %v6690 = vadd.f32 %v6473, %v6612
      %v6691 = vadd.f32 %v6474, %v6615
      %v6692 = vadd.f32 %v6475, %v6620
      %v6693 = vadd.f32 %v6476, %v6623
      %v6694 = vadd.f32 %v6477, %v6628
      %v6695 = vadd.f32 %v6478, %v6631
      %v6696 = vadd.f32 %v6479, %v6636
      %v6697 = vadd.f32 %v6480, %v6639
      %v6698 = vadd.f32 %v6481, %v6644
      %v6699 = vadd.f32 %v6482, %v6647
      %v6700 = vadd.f32 %v6483, %v6652
      %v6701 = vadd.f32 %v6484, %v6655
      %v6702 = vadd.f32 %v6485, %v6660
      %v6703 = vadd.f32 %v6486, %v6663
      %v6704 = vadd.f32 %v6487, %v6668
      %v6705 = vadd.f32 %v6488, %v6671
      %v6706 = vld [vmem:[%s435] sm:$0xff]
      %v6707 = vld [vmem:[%s435 + $0x8] sm:$0xff]
      %v6708 = vld [vmem:[%s435 + $0x10] sm:$0xff]
      %v6709 = vld [vmem:[%s435 + $0x18] sm:$0xff]
      %v6710 = vld [vmem:[%s435 + $0x20] sm:$0xff]
      %v6711 = vld [vmem:[%s435 + $0x28] sm:$0xff]
      %v6712 = vld [vmem:[%s435 + $0x30] sm:$0xff]
      %v6713 = vld [vmem:[%s435 + $0x38] sm:$0xff]
      %v6714 = vld [vmem:[%s435 + $0x40] sm:$0xff]
      %v6715 = vld [vmem:[%s435 + $0x48] sm:$0xff]
      %v6716 = vld [vmem:[%s435 + $0x50] sm:$0xff]
      %v6717 = vld [vmem:[%s435 + $0x58] sm:$0xff]
      %v6718 = vld [vmem:[%s435 + $0x60] sm:$0xff]
      %v6719 = vld [vmem:[%s435 + $0x68] sm:$0xff]
      %v6720 = vld [vmem:[%s435 + $0x70] sm:$0xff]
      %v6721 = vld [vmem:[%s435 + $0x78] sm:$0xff]
      %v6722 = vld [vmem:[%s435 + $0x80] sm:$0xff]
      %v6723 = vld [vmem:[%s435 + $0x88] sm:$0xff]
      %v6724 = vld [vmem:[%s435 + $0x90] sm:$0xff]
      %v6725 = vld [vmem:[%s435 + $0x98] sm:$0xff]
      %v6726 = vld [vmem:[%s435 + $0xa0] sm:$0xff]
      %v6727 = vld [vmem:[%s435 + $0xa8] sm:$0xff]
      %v6728 = vld [vmem:[%s435 + $0xb0] sm:$0xff]
      %v6729 = vld [vmem:[%s435 + $0xb8] sm:$0xff]
      %v6730 = vld [vmem:[%s435 + $0xc0] sm:$0xff]
      %v6731 = vld [vmem:[%s435 + $0xc8] sm:$0xff]
      %v6732 = vld [vmem:[%s435 + $0xd0] sm:$0xff]
      %v6733 = vld [vmem:[%s435 + $0xd8] sm:$0xff]
      %v6734 = vld [vmem:[%s435 + $0xe0] sm:$0xff]
      %v6735 = vld [vmem:[%s435 + $0xe8] sm:$0xff]
      %v6736 = vld [vmem:[%s435 + $0xf0] sm:$0xff]
      %v6737 = vld [vmem:[%s435 + $0xf8] sm:$0xff]
      %v6738 = vpack.c.bf16 %v6707, %v6706
      %v6739 = vpack.c.bf16 %v6709, %v6708
      %v6740 = vpack.c.bf16 %v6711, %v6710
      %v6741 = vpack.c.bf16 %v6713, %v6712
      %v6742 = vpack.c.bf16 %v6715, %v6714
      %v6743 = vpack.c.bf16 %v6717, %v6716
      %v6744 = vpack.c.bf16 %v6719, %v6718
      %v6745 = vpack.c.bf16 %v6721, %v6720
      %v6746 = vpack.c.bf16 %v6723, %v6722
      %v6747 = vpack.c.bf16 %v6725, %v6724
      %v6748 = vpack.c.bf16 %v6727, %v6726
      %v6749 = vpack.c.bf16 %v6729, %v6728
      %v6750 = vpack.c.bf16 %v6731, %v6730
      %v6751 = vpack.c.bf16 %v6733, %v6732
      %v6752 = vpack.c.bf16 %v6735, %v6734
      %v6753 = vpack.c.bf16 %v6737, %v6736
      %v6754 = vld [vmem:[%s11] sm:$0xf]
      %v6755 = vld [vmem:[%s12] sm:$0x1]
      %v6757 = vlaneseq
      %v6758 = vshrl.u32 %v6757, 7
      %v6759 = vsub.s32 0, %v6758
      %v6760 = vrot.slane %v6755, %v6759
      %v6763 = vsel %vm596, %v6738, 0
      %v6766 = vsel %vm596, %v6739, 0
      %v6769 = vsel %vm596, %v6740, 0
      %v6772 = vsel %vm596, %v6741, 0
      %v6775 = vsel %vm596, %v6742, 0
      %v6778 = vsel %vm596, %v6743, 0
      %v6781 = vsel %vm596, %v6744, 0
      %v6784 = vsel %vm596, %v6745, 0
      %v6787 = vsel %vm596, %v6746, 0
      %v6790 = vsel %vm596, %v6747, 0
      %v6793 = vsel %vm596, %v6748, 0
      %v6796 = vsel %vm596, %v6749, 0
      %v6799 = vsel %vm596, %v6750, 0
      %v6802 = vsel %vm596, %v6751, 0
      %v6805 = vsel %vm596, %v6752, 0
      %v6808 = vsel %vm596, %v6753, 0
      %v6811 = vsel %vm1481, %v6754, 0
      %6813 = vmatprep.subr.bf16.mxu0 0
      %6814 = vmatpush1.bf16.msra.mxu0 %v6811
      %6815 = vmatprep.subr.bf16.mxu0 0
      %6816 = vmatpush1.bf16.msra.mxu0 0
      %6817 = vmatprep.subr.bf16.mxu0 0
      %6818 = vmatpush1.bf16.msra.mxu0 0
      %6819 = vmatprep.subr.bf16.mxu0 0
      %6820 = vmatpush1.bf16.msra.mxu0 0
      %6821 = vmatprep.subr.bf16.mxu0 0
      %6822 = vmatpush1.bf16.msra.mxu0 0
      %6823 = vmatprep.subr.bf16.mxu0 0
      %6824 = vmatpush1.bf16.msra.mxu0 0
      %6825 = vmatprep.subr.bf16.mxu0 0
      %6826 = vmatpush1.bf16.msra.mxu0 0
      %6827 = vmatprep.subr.bf16.mxu0 0
      %6828 = vmatpush1.bf16.msra.mxu0 0
      %6829 = vmatprep.subr.bf16.mxu0 0
      %6830 = vmatpush1.bf16.msra.mxu0 0
      %6831 = vmatprep.subr.bf16.mxu0 0
      %6832 = vmatpush1.bf16.msra.mxu0 0
      %6833 = vmatprep.subr.bf16.mxu0 0
      %6834 = vmatpush1.bf16.msra.mxu0 0
      %6835 = vmatprep.subr.bf16.mxu0 0
      %6836 = vmatpush1.bf16.msra.mxu0 0
      %6837 = vmatprep.subr.bf16.mxu0 0
      %6838 = vmatpush1.bf16.msra.mxu0 0
      %6839 = vmatprep.subr.bf16.mxu0 0
      %6840 = vmatpush1.bf16.msra.mxu0 0
      %6841 = vmatprep.subr.bf16.mxu0 0
      %6842 = vmatpush1.bf16.msra.mxu0 0
      %6843 = vmatprep.subr.bf16.mxu0 0
      %6844 = vmatpush1.bf16.msra.mxu0 0
      %6845 = vmatprep.mubr.bf16.mxu0 0
      %6846 = vmatmul.mubr.bf16.gmra.mrb[0].mxu0 %v6763
      %v6847 = vpop.f32.mrb[0].mxu0
      %v6848 = vadd.f32 %v6760, %v6847
      %v6849 = vpop.f32.mrb[0].mxu0
      %v6850 = vpop.f32.mrb[0].mxu0
      %v6851 = vadd.f32 %v6760, %v6850
      %v6852 = vpop.f32.mrb[0].mxu0
      %6853 = vmatprep.mubr.bf16.mxu0 0
      %6854 = vmatmul.mubr.bf16.gmra.mrb[0].mxu0 %v6766
      %v6855 = vpop.f32.mrb[0].mxu0
      %v6856 = vadd.f32 %v6760, %v6855
      %v6857 = vpop.f32.mrb[0].mxu0
      %v6858 = vpop.f32.mrb[0].mxu0
      %v6859 = vadd.f32 %v6760, %v6858
      %v6860 = vpop.f32.mrb[0].mxu0
      %6861 = vmatprep.mubr.bf16.mxu0 0
      %6862 = vmatmul.mubr.bf16.gmra.mrb[0].mxu0 %v6769
      %v6863 = vpop.f32.mrb[0].mxu0
      %v6864 = vadd.f32 %v6760, %v6863
      %v6865 = vpop.f32.mrb[0].mxu0
      %v6866 = vpop.f32.mrb[0].mxu0
      %v6867 = vadd.f32 %v6760, %v6866
      %v6868 = vpop.f32.mrb[0].mxu0
      %6869 = vmatprep.mubr.bf16.mxu0 0
      %6870 = vmatmul.mubr.bf16.gmra.mrb[0].mxu0 %v6772
      %v6871 = vpop.f32.mrb[0].mxu0
      %v6872 = vadd.f32 %v6760, %v6871
      %v6873 = vpop.f32.mrb[0].mxu0
      %v6874 = vpop.f32.mrb[0].mxu0
      %v6875 = vadd.f32 %v6760, %v6874
      %v6876 = vpop.f32.mrb[0].mxu0
      %6877 = vmatprep.mubr.bf16.mxu0 0
      %6878 = vmatmul.mubr.bf16.gmra.mrb[0].mxu0 %v6775
      %v6879 = vpop.f32.mrb[0].mxu0
      %v6880 = vadd.f32 %v6760, %v6879
      %v6881 = vpop.f32.mrb[0].mxu0
      %v6882 = vpop.f32.mrb[0].mxu0
      %v6883 = vadd.f32 %v6760, %v6882
      %v6884 = vpop.f32.mrb[0].mxu0
      %6885 = vmatprep.mubr.bf16.mxu0 0
      %6886 = vmatmul.mubr.bf16.gmra.mrb[0].mxu0 %v6778
      %v6887 = vpop.f32.mrb[0].mxu0
      %v6888 = vadd.f32 %v6760, %v6887
      %v6889 = vpop.f32.mrb[0].mxu0
      %v6890 = vpop.f32.mrb[0].mxu0
      %v6891 = vadd.f32 %v6760, %v6890
      %v6892 = vpop.f32.mrb[0].mxu0
      %6893 = vmatprep.mubr.bf16.mxu0 0
      %6894 = vmatmul.mubr.bf16.gmra.mrb[0].mxu0 %v6781
      %v6895 = vpop.f32.mrb[0].mxu0
      %v6896 = vadd.f32 %v6760, %v6895
      %v6897 = vpop.f32.mrb[0].mxu0
      %v6898 = vpop.f32.mrb[0].mxu0
      %v6899 = vadd.f32 %v6760, %v6898
      %v6900 = vpop.f32.mrb[0].mxu0
      %6901 = vmatprep.mubr.bf16.mxu0 0
      %6902 = vmatmul.mubr.bf16.gmra.mrb[0].mxu0 %v6784
      %v6903 = vpop.f32.mrb[0].mxu0
      %v6904 = vadd.f32 %v6760, %v6903
      %v6905 = vpop.f32.mrb[0].mxu0
      %v6906 = vpop.f32.mrb[0].mxu0
      %v6907 = vadd.f32 %v6760, %v6906
      %v6908 = vpop.f32.mrb[0].mxu0
      %6909 = vmatprep.mubr.bf16.mxu0 0
      %6910 = vmatmul.mubr.bf16.gmra.mrb[0].mxu0 %v6787
      %v6911 = vpop.f32.mrb[0].mxu0
      %v6912 = vadd.f32 %v6760, %v6911
      %v6913 = vpop.f32.mrb[0].mxu0
      %v6914 = vpop.f32.mrb[0].mxu0
      %v6915 = vadd.f32 %v6760, %v6914
      %v6916 = vpop.f32.mrb[0].mxu0
      %6917 = vmatprep.mubr.bf16.mxu0 0
      %6918 = vmatmul.mubr.bf16.gmra.mrb[0].mxu0 %v6790
      %v6919 = vpop.f32.mrb[0].mxu0
      %v6920 = vadd.f32 %v6760, %v6919
      %v6921 = vpop.f32.mrb[0].mxu0
      %v6922 = vpop.f32.mrb[0].mxu0
      %v6923 = vadd.f32 %v6760, %v6922
      %v6924 = vpop.f32.mrb[0].mxu0
      %6925 = vmatprep.mubr.bf16.mxu0 0
      %6926 = vmatmul.mubr.bf16.gmra.mrb[0].mxu0 %v6793
      %v6927 = vpop.f32.mrb[0].mxu0
      %v6928 = vadd.f32 %v6760, %v6927
      %v6929 = vpop.f32.mrb[0].mxu0
      %v6930 = vpop.f32.mrb[0].mxu0
      %v6931 = vadd.f32 %v6760, %v6930
      %v6932 = vpop.f32.mrb[0].mxu0
      %6933 = vmatprep.mubr.bf16.mxu0 0
      %6934 = vmatmul.mubr.bf16.gmra.mrb[0].mxu0 %v6796
      %v6935 = vpop.f32.mrb[0].mxu0
      %v6936 = vadd.f32 %v6760, %v6935
      %v6937 = vpop.f32.mrb[0].mxu0
      %v6938 = vpop.f32.mrb[0].mxu0
      %v6939 = vadd.f32 %v6760, %v6938
      %v6940 = vpop.f32.mrb[0].mxu0
      %6941 = vmatprep.mubr.bf16.mxu0 0
      %6942 = vmatmul.mubr.bf16.gmra.mrb[0].mxu0 %v6799
      %v6943 = vpop.f32.mrb[0].mxu0
      %v6944 = vadd.f32 %v6760, %v6943
      %v6945 = vpop.f32.mrb[0].mxu0
      %v6946 = vpop.f32.mrb[0].mxu0
      %v6947 = vadd.f32 %v6760, %v6946
      %v6948 = vpop.f32.mrb[0].mxu0
      %6949 = vmatprep.mubr.bf16.mxu0 0
      %6950 = vmatmul.mubr.bf16.gmra.mrb[0].mxu0 %v6802
      %v6951 = vpop.f32.mrb[0].mxu0
      %v6952 = vadd.f32 %v6760, %v6951
      %v6953 = vpop.f32.mrb[0].mxu0
      %v6954 = vpop.f32.mrb[0].mxu0
      %v6955 = vadd.f32 %v6760, %v6954
      %v6956 = vpop.f32.mrb[0].mxu0
      %6957 = vmatprep.mubr.bf16.mxu0 0
      %6958 = vmatmul.mubr.bf16.gmra.mrb[0].mxu0 %v6805
      %v6959 = vpop.f32.mrb[0].mxu0
      %v6960 = vadd.f32 %v6760, %v6959
      %v6961 = vpop.f32.mrb[0].mxu0
      %v6962 = vpop.f32.mrb[0].mxu0
      %v6963 = vadd.f32 %v6760, %v6962
      %v6964 = vpop.f32.mrb[0].mxu0
      %6965 = vmatprep.mubr.bf16.mxu0 0
      %6966 = vmatmul.mubr.bf16.gmra.mrb[0].mxu0 %v6808
      %v6967 = vpop.f32.mrb[0].mxu0
      %v6968 = vadd.f32 %v6760, %v6967
      %v6969 = vpop.f32.mrb[0].mxu0
      %v6970 = vpop.f32.mrb[0].mxu0
      %v6971 = vadd.f32 %v6760, %v6970
      %v6972 = vpop.f32.mrb[0].mxu0
      %6973 = vdwg.mxu0
      %v6974 = vadd.f32 %v6674, %v6848
      %v6975 = vadd.f32 %v6675, %v6851
      %v6976 = vadd.f32 %v6676, %v6856
      %v6977 = vadd.f32 %v6677, %v6859
      %v6978 = vadd.f32 %v6678, %v6864
      %v6979 = vadd.f32 %v6679, %v6867
      %v6980 = vadd.f32 %v6680, %v6872
      %v6981 = vadd.f32 %v6681, %v6875
      %v6982 = vadd.f32 %v6682, %v6880
      %v6983 = vadd.f32 %v6683, %v6883
      %v6984 = vadd.f32 %v6684, %v6888
      %v6985 = vadd.f32 %v6685, %v6891
      %v6986 = vadd.f32 %v6686, %v6896
      %v6987 = vadd.f32 %v6687, %v6899
      %v6988 = vadd.f32 %v6688, %v6904
      %v6989 = vadd.f32 %v6689, %v6907
      %v6990 = vadd.f32 %v6690, %v6912
      %v6991 = vadd.f32 %v6691, %v6915
      %v6992 = vadd.f32 %v6692, %v6920
      %v6993 = vadd.f32 %v6693, %v6923
      %v6994 = vadd.f32 %v6694, %v6928
      %v6995 = vadd.f32 %v6695, %v6931
      %v6996 = vadd.f32 %v6696, %v6936
      %v6997 = vadd.f32 %v6697, %v6939
      %v6998 = vadd.f32 %v6698, %v6944
      %v6999 = vadd.f32 %v6699, %v6947
      %v7000 = vadd.f32 %v6700, %v6952
      %v7001 = vadd.f32 %v6701, %v6955
      %v7002 = vadd.f32 %v6702, %v6960
      %v7003 = vadd.f32 %v6703, %v6963
      %v7004 = vadd.f32 %v6704, %v6968
      %v7005 = vadd.f32 %v6705, %v6971
      %7006 = vst.msk [vmem:[%s440] sm:$0xff] %vm442, %v6974
      %7007 = vst.msk [vmem:[%s440 + $0x8] sm:$0xff] %vm442, %v6975
      %7008 = vst.msk [vmem:[%s440 + $0x10] sm:$0xff] %vm442, %v6976
      %7009 = vst.msk [vmem:[%s440 + $0x18] sm:$0xff] %vm442, %v6977
      %7010 = vst.msk [vmem:[%s440 + $0x20] sm:$0xff] %vm442, %v6978
      %7011 = vst.msk [vmem:[%s440 + $0x28] sm:$0xff] %vm442, %v6979
      %7012 = vst.msk [vmem:[%s440 + $0x30] sm:$0xff] %vm442, %v6980
      %7013 = vst.msk [vmem:[%s440 + $0x38] sm:$0xff] %vm442, %v6981
      %7014 = vst.msk [vmem:[%s440 + $0x40] sm:$0xff] %vm442, %v6982
      %7015 = vst.msk [vmem:[%s440 + $0x48] sm:$0xff] %vm442, %v6983
      %7016 = vst.msk [vmem:[%s440 + $0x50] sm:$0xff] %vm442, %v6984
      %7017 = vst.msk [vmem:[%s440 + $0x58] sm:$0xff] %vm442, %v6985
      %7018 = vst.msk [vmem:[%s440 + $0x60] sm:$0xff] %vm442, %v6986
      %7019 = vst.msk [vmem:[%s440 + $0x68] sm:$0xff] %vm442, %v6987
      %7020 = vst.msk [vmem:[%s440 + $0x70] sm:$0xff] %vm442, %v6988
      %7021 = vst.msk [vmem:[%s440 + $0x78] sm:$0xff] %vm442, %v6989
      %7022 = vst.msk [vmem:[%s440 + $0x80] sm:$0xff] %vm442, %v6990
      %7023 = vst.msk [vmem:[%s440 + $0x88] sm:$0xff] %vm442, %v6991
      %7024 = vst.msk [vmem:[%s440 + $0x90] sm:$0xff] %vm442, %v6992
      %7025 = vst.msk [vmem:[%s440 + $0x98] sm:$0xff] %vm442, %v6993
      %7026 = vst.msk [vmem:[%s440 + $0xa0] sm:$0xff] %vm442, %v6994
      %7027 = vst.msk [vmem:[%s440 + $0xa8] sm:$0xff] %vm442, %v6995
      %7028 = vst.msk [vmem:[%s440 + $0xb0] sm:$0xff] %vm442, %v6996
      %7029 = vst.msk [vmem:[%s440 + $0xb8] sm:$0xff] %vm442, %v6997
      %7030 = vst.msk [vmem:[%s440 + $0xc0] sm:$0xff] %vm442, %v6998
      %7031 = vst.msk [vmem:[%s440 + $0xc8] sm:$0xff] %vm442, %v6999
      %7032 = vst.msk [vmem:[%s440 + $0xd0] sm:$0xff] %vm442, %v7000
      %7033 = vst.msk [vmem:[%s440 + $0xd8] sm:$0xff] %vm442, %v7001
      %7034 = vst.msk [vmem:[%s440 + $0xe0] sm:$0xff] %vm442, %v7002
      %7035 = vst.msk [vmem:[%s440 + $0xe8] sm:$0xff] %vm442, %v7003
      %7036 = vst.msk [vmem:[%s440 + $0xf0] sm:$0xff] %vm442, %v7004
      %7037 = vst.msk [vmem:[%s440 + $0xf8] sm:$0xff] %vm442, %v7005
      %p7038 = scmp.lt.s32.totalorder %s24, 1
      %s7039 = scalar_select %p7038, %s24, 1
      %s7040 = smul.addr %s7039, 32
      %s7041 = smul.addr %s7040, 8
      %s7042 = scalar_lea.vmem %s13, %s7041
      // Predicated region
      $region73: #{tpu_custom_call.1} parent=71 // pred_check
        %p7043 = pneg %p320
      $region74: #{tpu_custom_call.1} parent=71 // pred_check_branch
        %7045 = sbr.rel (%p7043) target = $region76
      $region75: #{tpu_custom_call.1} parent=71 // pred_region
        _
      $region76: #{tpu_custom_call.1} parent=71 // pred_fallthru
        _
    $region72: #{tpu_custom_call.1} parent=5 // pred_fallthru
      _
    %p7046 = scmp.le.s32.totalorder 2, %s19
    // Predicated region
    $region77: #{tpu_custom_call.1} parent=5 // pred_check
      %p7047 = pneg %p7046
    $region78: #{tpu_custom_call.1} parent=5 // pred_check_branch
      %7049 = sbr.rel (%p7047) target = $region80
    $region79: #{tpu_custom_call.1} parent=5 // pred_region
      %s7050 = ssub.s32 %s19, 2
      // Predicated region
      $region81: #{tpu_custom_call.1} parent=79 // pred_check
        %p7051 = pneg %p326
      $region82: #{tpu_custom_call.1} parent=79 // pred_check_branch
        %7053 = sbr.rel (%p7051) target = $region84
      $region83: #{tpu_custom_call.1} parent=79 // pred_region
        %p7054 = scmp.lt.s32.totalorder %s25, 1
        %s7055 = scalar_select %p7054, %s25, 1
        %s7056 = smul.addr %s7055, 32
        %s7057 = smul.addr %s7056, 8
        %s7058 = scalar_lea.vmem %s13, %s7057
      $region84: #{tpu_custom_call.1} parent=79 // pred_fallthru
        _
    $region80: #{tpu_custom_call.1} parent=5 // pred_fallthru
      _
  $region6: #{tpu_custom_call.1} parent=0 // loop_footer
    %s23 = sadd.s32 1, %s19
  $region7: #{tpu_custom_call.1} parent=0 // loop_footer_branch
    %18 = sbr.rel target = $region3
  $region8: #{tpu_custom_call.1} parent=0 // loop_exit
    _

</llo_original>
